<compile_context>
chip_gen: v6e
topology: v6e:2x2x1
jax: 0.10.0
libtpu: 0.0.40
codegen_flags: <defaults>
</compile_context>

<pallas_src>
import jax
import jax.numpy as jnp
from jax.experimental import pallas as pl
from jax.experimental.pallas import tpu as pltpu

KSIZE = 5                  # conv kernel size
C1, C2 = 16, 32            # conv output channels
P1, P2 = 14, 7             # pooled spatial sizes after conv1 / conv2
WPAD1 = 32                 # 28 + 2*2 padded conv1 input height/width
RPP = 7                    # pooled rows per row phase (= P1//2 = P2)
NLANE = 256                # per-pool-phase lane stride (2x128 -> aligned halves)
K1 = KSIZE * WPAD1         # 160: conv1 contraction (kh, padded col)
TAP2 = NLANE               # 256: lanes per conv2 kh tap (224 real + 32 zero)
K2 = KSIZE * TAP2          # 1280: conv2 contraction
FEAT = P2 * P2 * C2        # 1568
NOUT = 10
NOUT_PAD = 128             # logits padded to full-vreg width
_BLOCK_B = 32              # images per grid step; sweep 32/48/64 per generation


# ---------------------------------------------------------------------------
# Parameter prep (trace-time, tiny): banded conv matrices + permuted linear W.
# ---------------------------------------------------------------------------
def _toeplitz(w, n_in, tap_lanes, n_out, col_off):
    """Banded conv+maxpool weight matrix.

    w: (Cout, Cin, K, K).  Returns (K*tap_lanes, 2*NLANE) with
      T[kh*tap_lanes + win*Cin + cin, t*NLANE + v*Cout + cout]
        = w[cout, cin, kh, (win + col_off) - (2*v + t)]   (0 outside the band)
    win indexes the `n_in` stored input columns, (t, v) the pooled output
    column phase / index.  Rows >= n_in*Cin and cols >= n_out*Cout are zero.
    """
    cout_n, cin_n, k, _ = w.shape
    win = jnp.arange(n_in)
    t = jnp.arange(2)
    v = jnp.arange(n_out)
    kw = (win[:, None, None] + col_off) - (2 * v[None, None, :] + t[None, :, None])
    valid = (kw >= 0) & (kw < k)                       # (n_in, 2, n_out)
    kw_c = jnp.clip(kw, 0, k - 1)
    wt = w.transpose(2, 3, 1, 0)                       # (kh, kw, cin, cout)
    g = wt[:, kw_c]                                    # (kh, win, t, v, cin, cout)
    g = jnp.where(valid[None, :, :, :, None, None], g, 0.0)
    g = g.transpose(0, 1, 4, 2, 3, 5)                  # (kh, win, cin, t, v, cout)
    g = g.reshape(k, n_in * cin_n, 2, n_out * cout_n)
    g = jnp.pad(g, ((0, 0), (0, tap_lanes - n_in * cin_n), (0, 0),
                    (0, NLANE - n_out * cout_n)))
    return g.reshape(k * tap_lanes, 2 * NLANE)


def _prep(params):
    w1, b1, w2, b2, wl, bl = params
    # conv1: input cols are padded coords 0..31 (zero pad is real data).
    t1 = _toeplitz(w1, WPAD1, WPAD1, P1, 0).astype(jnp.bfloat16)      # (160, 512)
    # conv2: only the 14 real input cols are stored; pad validity folded in.
    t2 = _toeplitz(w2, P1, TAP2, P2, 2).astype(jnp.bfloat16)          # (1280, 512)
    b1t = jnp.pad(jnp.tile(b1, P1), (0, NLANE - P1 * C1)
                  ).reshape(1, NLANE).astype(jnp.float32)             # lane = v*16+c
    b2t = jnp.pad(jnp.tile(b2, P2), (0, NLANE - P2 * C2)
                  ).reshape(1, NLANE).astype(jnp.float32)             # lane = v*32+c
    # PyTorch flattens features as (c, h, w); the kernel produces (h, w*32+c):
    # permute + pad the linear weight once here so the kernel needs no
    # transpose and its output store is a full 128-lane vreg.
    wl_p = (wl.reshape(NOUT, C2, P2, P2).transpose(2, 3, 1, 0)        # (h, w, c, o)
              .reshape(P2, P2 * C2, NOUT))
    wl_p = jnp.pad(wl_p, ((0, 0), (0, NLANE - P2 * C2),
                          (0, NOUT_PAD - NOUT))).astype(jnp.bfloat16)  # (7, 256, 128)
    blr = jnp.pad(bl, (0, NOUT_PAD - NOUT)).reshape(1, NOUT_PAD).astype(jnp.float32)
    return t1, t2, wl_p, b1t, b2t, blr


# ---------------------------------------------------------------------------
# Fused kernel: conv1+ReLU+pool -> conv2+ReLU+pool -> linear, per batch tile.
# All matmul rows are ordered (pooled-row, image) so every reshape is a no-op
# relayout and every store / tap / half-split is 128-lane aligned.
# ---------------------------------------------------------------------------
def cnn_fused_kernel(x_ref, t1_ref, b1_ref, t2_ref, b2_ref, wl_ref, bl_ref,
                     out_ref, feat_ref, y1q_ref):
    bb = out_ref.shape[0]
    m = RPP * bb
    f32 = jnp.float32

    # Zero only the 4 pad-row borders of the conv2 input scratch (rows q=0 and
    # q=8 of both row-parity planes); the interior is fully rewritten below.
    # (Not gated on program_id: scratch is per-core under megacore.)
    zrow = jnp.zeros((bb, NLANE), jnp.bfloat16)
    for plane in range(2):
        y1q_ref[plane, 0, :, :] = zrow
        y1q_ref[plane, P2 + 1, :, :] = zrow

    # Hoisted constant reads (avoid re-materialized broadcasts per unrolled iter).
    t1 = t1_ref[...]
    t2 = t2_ref[...]
    b1 = b1_ref[...]
    b2 = b2_ref[...]
    bl = bl_ref[...]

    # ---- conv1 + ReLU + 2x2 maxpool -------------------------------------
    # x_ref: (4, 7, bb, 160) host-prepacked kh-unrolled LHS, phase = 2*up + s.
    # Two MXU matmuls per pooled-row phase `up`: (7*bb, 160) @ (160, 512).
    for up in range(2):
        a0 = jnp.dot(x_ref[2 * up].reshape(m, K1), t1, preferred_element_type=f32)
        a1 = jnp.dot(x_ref[2 * up + 1].reshape(m, K1), t1, preferred_element_type=f32)
        # maxpool = max over the two row samples and the two 256-lane column
        # phases (aligned halves); bias + ReLU after the max (bias constant per
        # pool window, ReLU monotone).  Lanes 224..255 come out exactly zero.
        p = jnp.maximum(jnp.maximum(a0[:, :NLANE], a0[:, NLANE:]),
                        jnp.maximum(a1[:, :NLANE], a1[:, NLANE:]))
        y1 = jnp.maximum(p + b1, 0.0).astype(jnp.bfloat16)             # (7*bb, 256)
        # Aligned scatter into the row-parity-2 conv2 input (real rows q=1..7).
        y1q_ref[up, 1:1 + P2, :, :] = y1.reshape(P2, bb, NLANE)

    # ---- conv2 + ReLU + 2x2 maxpool -------------------------------------
    # One matmul per pool-row sample s2: (7*bb, 1280) @ (1280, 512).  Each kh
    # tap is a whole 256-lane row, so the concat is made of aligned copies.
    accs = []
    for s2 in range(2):
        taps = []
        for kh in range(KSIZE):
            off = s2 + kh
            taps.append(y1q_ref[off % 2, off // 2: off // 2 + P2, :, :])
        xk = jnp.concatenate(taps, axis=-1).reshape(m, K2)
        accs.append(jnp.dot(xk, t2, preferred_element_type=f32))
    p2 = jnp.maximum(jnp.maximum(accs[0][:, :NLANE], accs[0][:, NLANE:]),
                     jnp.maximum(accs[1][:, :NLANE], accs[1][:, NLANE:]))
    featb = jnp.maximum(p2 + b2, 0.0).astype(jnp.bfloat16)             # (7*bb, 256)
    feat_ref[...] = featb.reshape(P2, bb, NLANE)

    # ---- linear -----------------------------------------------------------
    # Fed straight from the in-register features (no VMEM round trip).  Each
    # h-slice is a contiguous row block, so no relayout; the flatten/permute
    # is folded into wl at prep time; output is a full 128-lane store.
    acc = jnp.dot(featb[:bb, :], wl_ref[0], preferred_element_type=f32)
    for h in range(1, P2):
        acc = acc + jnp.dot(featb[h * bb:(h + 1) * bb, :], wl_ref[h],
                            preferred_element_type=f32)
    out_ref[...] = acc + bl


# ---------------------------------------------------------------------------
# Wrapper: host does only cheap layout work (zero pad + kh-unrolled conv1 LHS),
# then a single pallas_call over batch tiles.
# ---------------------------------------------------------------------------
def _cnn_forward_impl(x, params):
    B = x.shape[0]
    bb = min(_BLOCK_B, B)          # clamp tile to B (avoids padded-row waste)
    Bp = -(-B // bb) * bb
    grid = (Bp // bb,)             # >1 step when B > bb -> shards across v7x TCs

    # Zero-pad to 32x32 and unroll the 5 kh taps per (pool-row phase, sample)
    # so the conv1 LHS needs no in-kernel lane packing (~9 KB/image).
    xp = jnp.pad(x[:, 0].astype(jnp.float32), ((0, Bp - B), (2, 2), (2, 2)))
    phases = []
    for ph in range(4):            # ph = 2*up + s
        taps = [xp[:, ph + kh: ph + kh + 4 * RPP - 3: 4, :] for kh in range(KSIZE)]
        phases.append(jnp.concatenate(taps, axis=-1))                 # (Bp, 7, 160)
    xcat = jnp.stack(phases, 0).transpose(0, 2, 1, 3).astype(jnp.bfloat16)  # (4,7,Bp,160)

    t1, t2, wl_p, b1t, b2t, blr = _prep(params)

    logits, feat = pl.pallas_call(
        cnn_fused_kernel,
        out_shape=(jax.ShapeDtypeStruct((Bp, NOUT_PAD), jnp.float32),
                   jax.ShapeDtypeStruct((P2, Bp, NLANE), jnp.bfloat16)),
        grid=grid,
        in_specs=[
            pl.BlockSpec((4, RPP, bb, K1), lambda i: (0, 0, i, 0)),     # conv1 LHS tile
            pl.BlockSpec((K1, 2 * NLANE), lambda i: (0, 0)),            # conv1 weights
            pl.BlockSpec((1, NLANE), lambda i: (0, 0)),                 # conv1 bias
            pl.BlockSpec((K2, 2 * NLANE), lambda i: (0, 0)),            # conv2 weights
            pl.BlockSpec((1, NLANE), lambda i: (0, 0)),                 # conv2 bias
            pl.BlockSpec((P2, NLANE, NOUT_PAD), lambda i: (0, 0, 0)),   # linear weights
            pl.BlockSpec((1, NOUT_PAD), lambda i: (0, 0)),              # linear bias
        ],
        out_specs=(
            pl.BlockSpec((bb, NOUT_PAD), lambda i: (i, 0)),
            pl.BlockSpec((P2, bb, NLANE), lambda i: (0, i, 0)),
        ),
        scratch_shapes=[
            pltpu.VMEM((2, P2 + 2, bb, NLANE), jnp.bfloat16),   # padded conv2 input
        ],
        compiler_params=pltpu.CompilerParams(
            dimension_semantics=("parallel",),
            vmem_limit_bytes=32 * 1024 * 1024),
    )(xcat, t1, b1t, t2, b2t, wl_p, blr)

    logits = logits[:B, :NOUT]
    # user-facing flattened features in PyTorch (c, h, w) order (tiny tensor)
    xf = feat[:, :B, :P2 * C2].astype(jnp.float32)       # (h, b, w*32+c)
    x_flat = (xf.reshape(P2, B, P2, C2)                  # (h, b, w, c)
                .transpose(1, 3, 0, 2)                   # (b, c, h, w)
                .reshape(B, FEAT))
    return logits, x_flat


cnn_forward = jax.jit(_cnn_forward_impl)


# ---------------------------------------------------------------------------
# Pure-JAX f32 reference
# ---------------------------------------------------------------------------
def ref_forward(x, params):
    w1, b1, w2, b2, wl, bl = params

    def conv(z, w, b):
        y = jax.lax.conv_general_dilated(
            z, w, (1, 1), ((2, 2), (2, 2)),
            dimension_numbers=("NCHW", "OIHW", "NCHW")) + b.reshape(1, -1, 1, 1)
        return jnp.maximum(y, 0.0)

    def pool(z):
        bsz, c, hh, ww = z.shape
        return z.reshape(bsz, c, hh // 2, 2, ww // 2, 2).max(axis=(3, 5))

    y = pool(conv(x, w1, b1))
    y = pool(conv(y, w2, b2))
    xf = y.reshape(x.shape[0], -1)
    return xf @ wl.T + bl, xf


if __name__ == "__main__":
    key = jax.random.PRNGKey(0)
    kx, k1, k2, k3, k4, k5, k6 = jax.random.split(key, 7)

    def uinit(k, shape, fan_in):
        bound = 1.0 / (fan_in ** 0.5)
        return jax.random.uniform(k, shape, jnp.float32, -bound, bound)

    # Deterministic parameters with PyTorch shapes.
    w1 = uinit(k1, (16, 1, 5, 5), 25)
    b1 = uinit(k2, (16,), 25)
    w2 = uinit(k3, (32, 16, 5, 5), 400)
    b2 = uinit(k4, (32,), 400)
    wl = uinit(k5, (10, FEAT), FEAT)
    bl = uinit(k6, (10,), FEAT)
    params = (w1, b1, w2, b2, wl, bl)

    # Input: batch=2, NCHW 1x28x28 (Linear(7*7*32, 10) fixes the spatial size).
    x = jax.random.normal(kx, (2, 1, 28, 28), jnp.float32)

    out, x_flat = cnn_forward(x, params)
    jax.block_until_ready((out, x_flat))

    ref_out, ref_flat = ref_forward(x, params)
    assert out.shape == (2, 10) and x_flat.shape == (2, FEAT)
    # bf16 matmul operands / bf16 feature output (f32 accumulation) -> relaxed
    # tolerance vs the f32 reference.
    assert jnp.allclose(out, ref_out, rtol=2e-2, atol=2e-2), \
        float(jnp.max(jnp.abs(out - ref_out)))
    assert jnp.allclose(x_flat, ref_flat, rtol=2e-2, atol=2e-2), \
        float(jnp.max(jnp.abs(x_flat - ref_flat)))

    print("KERNEL_OK")
</pallas_src>

<mosaic_0001>
module attributes {stable_mosaic.version = 11 : i64} {
  func.func @cnn_fused_kernel(%arg0: i32, %arg1: memref<4x7x2x160xbf16, #tpu.memory_space<vmem>>, %arg2: memref<160x512xbf16, #tpu.memory_space<vmem>>, %arg3: memref<1x256xf32, #tpu.memory_space<vmem>>, %arg4: memref<1280x512xbf16, #tpu.memory_space<vmem>>, %arg5: memref<1x256xf32, #tpu.memory_space<vmem>>, %arg6: memref<7x256x128xbf16, #tpu.memory_space<vmem>>, %arg7: memref<1x128xf32, #tpu.memory_space<vmem>>, %arg8: memref<2x128xf32, #tpu.memory_space<vmem>>, %arg9: memref<7x2x256xbf16, #tpu.memory_space<vmem>>, %arg10: memref<2x9x2x256xbf16, #tpu.memory_space<vmem>>) attributes {dimension_semantics = [#tpu.dimension_semantics<parallel>], iteration_bounds = array<i64: 1>, scalar_prefetch = 0 : i64, scratch_operands = 1 : i64, tpu.core_type = #tpu.core_type<tc>, window_params = [{transform_indices = @transform_0, window_bounds = array<i64: 4, 7, 2, 160>}, {pipeline_mode = #tpu.pipeline_mode<synchronous>, transform_indices = @transform_1, window_bounds = array<i64: 160, 512>}, {pipeline_mode = #tpu.pipeline_mode<synchronous>, transform_indices = @transform_2, window_bounds = array<i64: 1, 256>}, {pipeline_mode = #tpu.pipeline_mode<synchronous>, transform_indices = @transform_3, window_bounds = array<i64: 1280, 512>}, {pipeline_mode = #tpu.pipeline_mode<synchronous>, transform_indices = @transform_4, window_bounds = array<i64: 1, 256>}, {pipeline_mode = #tpu.pipeline_mode<synchronous>, transform_indices = @transform_5, window_bounds = array<i64: 7, 256, 128>}, {pipeline_mode = #tpu.pipeline_mode<synchronous>, transform_indices = @transform_6, window_bounds = array<i64: 1, 128>}, {transform_indices = @transform_7, window_bounds = array<i64: 2, 128>}, {transform_indices = @transform_8, window_bounds = array<i64: 7, 2, 256>}]} {
    %cst = arith.constant 0.000000e+00 : bf16
    %0 = vector.broadcast %cst : bf16 to vector<2x256xbf16>
    %c0 = arith.constant 0 : index
    %c0_0 = arith.constant 0 : index
    %c0_1 = arith.constant 0 : index
    %c0_2 = arith.constant 0 : index
    %1 = vector.load %arg10[%c0, %c0_0, %c0_1, %c0_2] : memref<2x9x2x256xbf16, #tpu.memory_space<vmem>>, vector<1x1x2x256xbf16>
    %2 = vector.shape_cast %1 : vector<1x1x2x256xbf16> to vector<2x256xbf16>
    %3 = vector.shape_cast %0 : vector<2x256xbf16> to vector<1x1x2x256xbf16>
    tpu.vector_store %arg10[%c0, %c0_0, %c0_1, %c0_2], %3 {strides = array<i32>} : memref<2x9x2x256xbf16, #tpu.memory_space<vmem>>, vector<1x1x2x256xbf16>,
    %c0_3 = arith.constant 0 : index
    %c8 = arith.constant 8 : index
    %c0_4 = arith.constant 0 : index
    %c0_5 = arith.constant 0 : index
    %4 = vector.load %arg10[%c0_3, %c8, %c0_4, %c0_5] : memref<2x9x2x256xbf16, #tpu.memory_space<vmem>>, vector<1x1x2x256xbf16>
    %5 = vector.shape_cast %4 : vector<1x1x2x256xbf16> to vector<2x256xbf16>
    %6 = vector.shape_cast %0 : vector<2x256xbf16> to vector<1x1x2x256xbf16>
    tpu.vector_store %arg10[%c0_3, %c8, %c0_4, %c0_5], %6 {strides = array<i32>} : memref<2x9x2x256xbf16, #tpu.memory_space<vmem>>, vector<1x1x2x256xbf16>,
    %c1 = arith.constant 1 : index
    %c0_6 = arith.constant 0 : index
    %c0_7 = arith.constant 0 : index
    %c0_8 = arith.constant 0 : index
    %7 = vector.load %arg10[%c1, %c0_6, %c0_7, %c0_8] : memref<2x9x2x256xbf16, #tpu.memory_space<vmem>>, vector<1x1x2x256xbf16>
    %8 = vector.shape_cast %7 : vector<1x1x2x256xbf16> to vector<2x256xbf16>
    %9 = vector.shape_cast %0 : vector<2x256xbf16> to vector<1x1x2x256xbf16>
    tpu.vector_store %arg10[%c1, %c0_6, %c0_7, %c0_8], %9 {strides = array<i32>} : memref<2x9x2x256xbf16, #tpu.memory_space<vmem>>, vector<1x1x2x256xbf16>,
    %c1_9 = arith.constant 1 : index
    %c8_10 = arith.constant 8 : index
    %c0_11 = arith.constant 0 : index
    %c0_12 = arith.constant 0 : index
    %10 = vector.load %arg10[%c1_9, %c8_10, %c0_11, %c0_12] : memref<2x9x2x256xbf16, #tpu.memory_space<vmem>>, vector<1x1x2x256xbf16>
    %11 = vector.shape_cast %10 : vector<1x1x2x256xbf16> to vector<2x256xbf16>
    %12 = vector.shape_cast %0 : vector<2x256xbf16> to vector<1x1x2x256xbf16>
    tpu.vector_store %arg10[%c1_9, %c8_10, %c0_11, %c0_12], %12 {strides = array<i32>} : memref<2x9x2x256xbf16, #tpu.memory_space<vmem>>, vector<1x1x2x256xbf16>,
    %c0_13 = arith.constant 0 : index
    %c0_14 = arith.constant 0 : index
    %13 = vector.load %arg2[%c0_13, %c0_14] : memref<160x512xbf16, #tpu.memory_space<vmem>>, vector<160x512xbf16>
    %c0_15 = arith.constant 0 : index
    %c0_16 = arith.constant 0 : index
    %14 = vector.load %arg4[%c0_15, %c0_16] : memref<1280x512xbf16, #tpu.memory_space<vmem>>, vector<1280x512xbf16>
    %c0_17 = arith.constant 0 : index
    %c0_18 = arith.constant 0 : index
    %15 = vector.load %arg3[%c0_17, %c0_18] : memref<1x256xf32, #tpu.memory_space<vmem>>, vector<1x256xf32>
    %c0_19 = arith.constant 0 : index
    %c0_20 = arith.constant 0 : index
    %16 = vector.load %arg5[%c0_19, %c0_20] : memref<1x256xf32, #tpu.memory_space<vmem>>, vector<1x256xf32>
    %c0_21 = arith.constant 0 : index
    %c0_22 = arith.constant 0 : index
    %17 = vector.load %arg7[%c0_21, %c0_22] : memref<1x128xf32, #tpu.memory_space<vmem>>, vector<1x128xf32>
    %c0_23 = arith.constant 0 : index
    %c0_24 = arith.constant 0 : index
    %c0_25 = arith.constant 0 : index
    %c0_26 = arith.constant 0 : index
    %18 = vector.load %arg1[%c0_23, %c0_24, %c0_25, %c0_26] : memref<4x7x2x160xbf16, #tpu.memory_space<vmem>>, vector<1x7x2x160xbf16>
    %19 = vector.shape_cast %18 : vector<1x7x2x160xbf16> to vector<7x2x160xbf16>
    %20 = vector.shape_cast %19 : vector<7x2x160xbf16> to vector<14x160xbf16>
    %cst_27 = arith.constant dense<0.000000e+00> : vector<14x512xf32>
    %21 = tpu.matmul %20, %13, %cst_27 {dimension_numbers = #tpu.dot_dimension_numbers<[1], [0], [0], [1], [0, 0, 1, 1], [], []>} : vector<14x160xbf16>, vector<160x512xbf16>, vector<14x512xf32> -> vector<14x512xf32>
    %c1_28 = arith.constant 1 : index
    %c0_29 = arith.constant 0 : index
    %c0_30 = arith.constant 0 : index
    %c0_31 = arith.constant 0 : index
    %22 = vector.load %arg1[%c1_28, %c0_29, %c0_30, %c0_31] : memref<4x7x2x160xbf16, #tpu.memory_space<vmem>>, vector<1x7x2x160xbf16>
    %23 = vector.shape_cast %22 : vector<1x7x2x160xbf16> to vector<7x2x160xbf16>
    %24 = vector.shape_cast %23 : vector<7x2x160xbf16> to vector<14x160xbf16>
    %cst_32 = arith.constant dense<0.000000e+00> : vector<14x512xf32>
    %25 = tpu.matmul %24, %13, %cst_32 {dimension_numbers = #tpu.dot_dimension_numbers<[1], [0], [0], [1], [0, 0, 1, 1], [], []>} : vector<14x160xbf16>, vector<160x512xbf16>, vector<14x512xf32> -> vector<14x512xf32>
    %26 = vector.extract_strided_slice %21 {offsets = [0, 0], sizes = [14, 256], strides = [1, 1]} : vector<14x512xf32> to vector<14x256xf32>
    %27 = vector.extract_strided_slice %21 {offsets = [0, 256], sizes = [14, 256], strides = [1, 1]} : vector<14x512xf32> to vector<14x256xf32>
    %28 = arith.maximumf %26, %27 : vector<14x256xf32>
    %29 = vector.extract_strided_slice %25 {offsets = [0, 0], sizes = [14, 256], strides = [1, 1]} : vector<14x512xf32> to vector<14x256xf32>
    %30 = vector.extract_strided_slice %25 {offsets = [0, 256], sizes = [14, 256], strides = [1, 1]} : vector<14x512xf32> to vector<14x256xf32>
    %31 = arith.maximumf %29, %30 : vector<14x256xf32>
    %32 = arith.maximumf %28, %31 : vector<14x256xf32>
    %33 = vector.broadcast %15 : vector<1x256xf32> to vector<14x256xf32>
    %34 = arith.addf %32, %33 : vector<14x256xf32>
    %cst_33 = arith.constant 0.000000e+00 : f32
    %35 = vector.broadcast %cst_33 : f32 to vector<14x256xf32>
    %36 = arith.maximumf %34, %35 : vector<14x256xf32>
    %37 = arith.truncf %36 : vector<14x256xf32> to vector<14x256xbf16>
    %38 = vector.shape_cast %37 : vector<14x256xbf16> to vector<7x2x256xbf16>
    %c0_34 = arith.constant 0 : index
    %c1_35 = arith.constant 1 : index
    %c0_36 = arith.constant 0 : index
    %c0_37 = arith.constant 0 : index
    %39 = vector.load %arg10[%c0_34, %c1_35, %c0_36, %c0_37] : memref<2x9x2x256xbf16, #tpu.memory_space<vmem>>, vector<1x7x2x256xbf16>
    %40 = vector.shape_cast %39 : vector<1x7x2x256xbf16> to vector<7x2x256xbf16>
    %41 = vector.shape_cast %38 : vector<7x2x256xbf16> to vector<1x7x2x256xbf16>
    tpu.vector_store %arg10[%c0_34, %c1_35, %c0_36, %c0_37], %41 {strides = array<i32>} : memref<2x9x2x256xbf16, #tpu.memory_space<vmem>>, vector<1x7x2x256xbf16>,
    %c2 = arith.constant 2 : index
    %c0_38 = arith.constant 0 : index
    %c0_39 = arith.constant 0 : index
    %c0_40 = arith.constant 0 : index
    %42 = vector.load %arg1[%c2, %c0_38, %c0_39, %c0_40] : memref<4x7x2x160xbf16, #tpu.memory_space<vmem>>, vector<1x7x2x160xbf16>
    %43 = vector.shape_cast %42 : vector<1x7x2x160xbf16> to vector<7x2x160xbf16>
    %44 = vector.shape_cast %43 : vector<7x2x160xbf16> to vector<14x160xbf16>
    %cst_41 = arith.constant dense<0.000000e+00> : vector<14x512xf32>
    %45 = tpu.matmul %44, %13, %cst_41 {dimension_numbers = #tpu.dot_dimension_numbers<[1], [0], [0], [1], [0, 0, 1, 1], [], []>} : vector<14x160xbf16>, vector<160x512xbf16>, vector<14x512xf32> -> vector<14x512xf32>
    %c3 = arith.constant 3 : index
    %c0_42 = arith.constant 0 : index
    %c0_43 = arith.constant 0 : index
    %c0_44 = arith.constant 0 : index
    %46 = vector.load %arg1[%c3, %c0_42, %c0_43, %c0_44] : memref<4x7x2x160xbf16, #tpu.memory_space<vmem>>, vector<1x7x2x160xbf16>
    %47 = vector.shape_cast %46 : vector<1x7x2x160xbf16> to vector<7x2x160xbf16>
    %48 = vector.shape_cast %47 : vector<7x2x160xbf16> to vector<14x160xbf16>
    %cst_45 = arith.constant dense<0.000000e+00> : vector<14x512xf32>
    %49 = tpu.matmul %48, %13, %cst_45 {dimension_numbers = #tpu.dot_dimension_numbers<[1], [0], [0], [1], [0, 0, 1, 1], [], []>} : vector<14x160xbf16>, vector<160x512xbf16>, vector<14x512xf32> -> vector<14x512xf32>
    %50 = vector.extract_strided_slice %45 {offsets = [0, 0], sizes = [14, 256], strides = [1, 1]} : vector<14x512xf32> to vector<14x256xf32>
    %51 = vector.extract_strided_slice %45 {offsets = [0, 256], sizes = [14, 256], strides = [1, 1]} : vector<14x512xf32> to vector<14x256xf32>
    %52 = arith.maximumf %50, %51 : vector<14x256xf32>
    %53 = vector.extract_strided_slice %49 {offsets = [0, 0], sizes = [14, 256], strides = [1, 1]} : vector<14x512xf32> to vector<14x256xf32>
    %54 = vector.extract_strided_slice %49 {offsets = [0, 256], sizes = [14, 256], strides = [1, 1]} : vector<14x512xf32> to vector<14x256xf32>
    %55 = arith.maximumf %53, %54 : vector<14x256xf32>
    %56 = arith.maximumf %52, %55 : vector<14x256xf32>
    %57 = vector.broadcast %15 : vector<1x256xf32> to vector<14x256xf32>
    %58 = arith.addf %56, %57 : vector<14x256xf32>
    %cst_46 = arith.constant 0.000000e+00 : f32
    %59 = vector.broadcast %cst_46 : f32 to vector<14x256xf32>
    %60 = arith.maximumf %58, %59 : vector<14x256xf32>
    %61 = arith.truncf %60 : vector<14x256xf32> to vector<14x256xbf16>
    %62 = vector.shape_cast %61 : vector<14x256xbf16> to vector<7x2x256xbf16>
    %c1_47 = arith.constant 1 : index
    %c1_48 = arith.constant 1 : index
    %c0_49 = arith.constant 0 : index
    %c0_50 = arith.constant 0 : index
    %63 = vector.load %arg10[%c1_47, %c1_48, %c0_49, %c0_50] : memref<2x9x2x256xbf16, #tpu.memory_space<vmem>>, vector<1x7x2x256xbf16>
    %64 = vector.shape_cast %63 : vector<1x7x2x256xbf16> to vector<7x2x256xbf16>
    %65 = vector.shape_cast %62 : vector<7x2x256xbf16> to vector<1x7x2x256xbf16>
    tpu.vector_store %arg10[%c1_47, %c1_48, %c0_49, %c0_50], %65 {strides = array<i32>} : memref<2x9x2x256xbf16, #tpu.memory_space<vmem>>, vector<1x7x2x256xbf16>,
    %c0_51 = arith.constant 0 : index
    %c0_52 = arith.constant 0 : index
    %c0_53 = arith.constant 0 : index
    %c0_54 = arith.constant 0 : index
    %66 = vector.load %arg10[%c0_51, %c0_52, %c0_53, %c0_54] : memref<2x9x2x256xbf16, #tpu.memory_space<vmem>>, vector<1x7x2x256xbf16>
    %67 = vector.shape_cast %66 : vector<1x7x2x256xbf16> to vector<7x2x256xbf16>
    %c1_55 = arith.constant 1 : index
    %c0_56 = arith.constant 0 : index
    %c0_57 = arith.constant 0 : index
    %c0_58 = arith.constant 0 : index
    %68 = vector.load %arg10[%c1_55, %c0_56, %c0_57, %c0_58] : memref<2x9x2x256xbf16, #tpu.memory_space<vmem>>, vector<1x7x2x256xbf16>
    %69 = vector.shape_cast %68 : vector<1x7x2x256xbf16> to vector<7x2x256xbf16>
    %c0_59 = arith.constant 0 : index
    %c1_60 = arith.constant 1 : index
    %c0_61 = arith.constant 0 : index
    %c0_62 = arith.constant 0 : index
    %70 = vector.load %arg10[%c0_59, %c1_60, %c0_61, %c0_62] : memref<2x9x2x256xbf16, #tpu.memory_space<vmem>>, vector<1x7x2x256xbf16>
    %71 = vector.shape_cast %70 : vector<1x7x2x256xbf16> to vector<7x2x256xbf16>
    %c1_63 = arith.constant 1 : index
    %c1_64 = arith.constant 1 : index
    %c0_65 = arith.constant 0 : index
    %c0_66 = arith.constant 0 : index
    %72 = vector.load %arg10[%c1_63, %c1_64, %c0_65, %c0_66] : memref<2x9x2x256xbf16, #tpu.memory_space<vmem>>, vector<1x7x2x256xbf16>
    %73 = vector.shape_cast %72 : vector<1x7x2x256xbf16> to vector<7x2x256xbf16>
    %c0_67 = arith.constant 0 : index
    %c2_68 = arith.constant 2 : index
    %c0_69 = arith.constant 0 : index
    %c0_70 = arith.constant 0 : index
    %74 = vector.load %arg10[%c0_67, %c2_68, %c0_69, %c0_70] : memref<2x9x2x256xbf16, #tpu.memory_space<vmem>>, vector<1x7x2x256xbf16>
    %75 = vector.shape_cast %74 : vector<1x7x2x256xbf16> to vector<7x2x256xbf16>
    %76 = tpu.concatenate %67, %69, %71, %73, %75 in 2 : vector<7x2x256xbf16>, vector<7x2x256xbf16>, vector<7x2x256xbf16>, vector<7x2x256xbf16>, vector<7x2x256xbf16> -> vector<7x2x1280xbf16>
    %77 = vector.shape_cast %76 : vector<7x2x1280xbf16> to vector<14x1280xbf16>
    %cst_71 = arith.constant dense<0.000000e+00> : vector<14x512xf32>
    %78 = tpu.matmul %77, %14, %cst_71 {dimension_numbers = #tpu.dot_dimension_numbers<[1], [0], [0], [1], [0, 0, 1, 1], [], []>} : vector<14x1280xbf16>, vector<1280x512xbf16>, vector<14x512xf32> -> vector<14x512xf32>
    %c1_72 = arith.constant 1 : index
    %c0_73 = arith.constant 0 : index
    %c0_74 = arith.constant 0 : index
    %c0_75 = arith.constant 0 : index
    %79 = vector.load %arg10[%c1_72, %c0_73, %c0_74, %c0_75] : memref<2x9x2x256xbf16, #tpu.memory_space<vmem>>, vector<1x7x2x256xbf16>
    %80 = vector.shape_cast %79 : vector<1x7x2x256xbf16> to vector<7x2x256xbf16>
    %c0_76 = arith.constant 0 : index
    %c1_77 = arith.constant 1 : index
    %c0_78 = arith.constant 0 : index
    %c0_79 = arith.constant 0 : index
    %81 = vector.load %arg10[%c0_76, %c1_77, %c0_78, %c0_79] : memref<2x9x2x256xbf16, #tpu.memory_space<vmem>>, vector<1x7x2x256xbf16>
    %82 = vector.shape_cast %81 : vector<1x7x2x256xbf16> to vector<7x2x256xbf16>
    %c1_80 = arith.constant 1 : index
    %c1_81 = arith.constant 1 : index
    %c0_82 = arith.constant 0 : index
    %c0_83 = arith.constant 0 : index
    %83 = vector.load %arg10[%c1_80, %c1_81, %c0_82, %c0_83] : memref<2x9x2x256xbf16, #tpu.memory_space<vmem>>, vector<1x7x2x256xbf16>
    %84 = vector.shape_cast %83 : vector<1x7x2x256xbf16> to vector<7x2x256xbf16>
    %c0_84 = arith.constant 0 : index
    %c2_85 = arith.constant 2 : index
    %c0_86 = arith.constant 0 : index
    %c0_87 = arith.constant 0 : index
    %85 = vector.load %arg10[%c0_84, %c2_85, %c0_86, %c0_87] : memref<2x9x2x256xbf16, #tpu.memory_space<vmem>>, vector<1x7x2x256xbf16>
    %86 = vector.shape_cast %85 : vector<1x7x2x256xbf16> to vector<7x2x256xbf16>
    %c1_88 = arith.constant 1 : index
    %c2_89 = arith.constant 2 : index
    %c0_90 = arith.constant 0 : index
    %c0_91 = arith.constant 0 : index
    %87 = vector.load %arg10[%c1_88, %c2_89, %c0_90, %c0_91] : memref<2x9x2x256xbf16, #tpu.memory_space<vmem>>, vector<1x7x2x256xbf16>
    %88 = vector.shape_cast %87 : vector<1x7x2x256xbf16> to vector<7x2x256xbf16>
    %89 = tpu.concatenate %80, %82, %84, %86, %88 in 2 : vector<7x2x256xbf16>, vector<7x2x256xbf16>, vector<7x2x256xbf16>, vector<7x2x256xbf16>, vector<7x2x256xbf16> -> vector<7x2x1280xbf16>
    %90 = vector.shape_cast %89 : vector<7x2x1280xbf16> to vector<14x1280xbf16>
    %cst_92 = arith.constant dense<0.000000e+00> : vector<14x512xf32>
    %91 = tpu.matmul %90, %14, %cst_92 {dimension_numbers = #tpu.dot_dimension_numbers<[1], [0], [0], [1], [0, 0, 1, 1], [], []>} : vector<14x1280xbf16>, vector<1280x512xbf16>, vector<14x512xf32> -> vector<14x512xf32>
    %92 = vector.extract_strided_slice %78 {offsets = [0, 0], sizes = [14, 256], strides = [1, 1]} : vector<14x512xf32> to vector<14x256xf32>
    %93 = vector.extract_strided_slice %78 {offsets = [0, 256], sizes = [14, 256], strides = [1, 1]} : vector<14x512xf32> to vector<14x256xf32>
    %94 = arith.maximumf %92, %93 : vector<14x256xf32>
    %95 = vector.extract_strided_slice %91 {offsets = [0, 0], sizes = [14, 256], strides = [1, 1]} : vector<14x512xf32> to vector<14x256xf32>
    %96 = vector.extract_strided_slice %91 {offsets = [0, 256], sizes = [14, 256], strides = [1, 1]} : vector<14x512xf32> to vector<14x256xf32>
    %97 = arith.maximumf %95, %96 : vector<14x256xf32>
    %98 = arith.maximumf %94, %97 : vector<14x256xf32>
    %99 = vector.broadcast %16 : vector<1x256xf32> to vector<14x256xf32>
    %100 = arith.addf %98, %99 : vector<14x256xf32>
    %cst_93 = arith.constant 0.000000e+00 : f32
    %101 = vector.broadcast %cst_93 : f32 to vector<14x256xf32>
    %102 = arith.maximumf %100, %101 : vector<14x256xf32>
    %103 = arith.truncf %102 : vector<14x256xf32> to vector<14x256xbf16>
    %104 = vector.shape_cast %103 : vector<14x256xbf16> to vector<7x2x256xbf16>
    %c0_94 = arith.constant 0 : index
    %c0_95 = arith.constant 0 : index
    %c0_96 = arith.constant 0 : index
    %105 = vector.load %arg9[%c0_94, %c0_95, %c0_96] : memref<7x2x256xbf16, #tpu.memory_space<vmem>>, vector<7x2x256xbf16>
    tpu.vector_store %arg9[%c0_94, %c0_95, %c0_96], %104 {strides = array<i32>} : memref<7x2x256xbf16, #tpu.memory_space<vmem>>, vector<7x2x256xbf16>,
    %106 = vector.extract_strided_slice %103 {offsets = [0, 0], sizes = [2, 256], strides = [1, 1]} : vector<14x256xbf16> to vector<2x256xbf16>
    %c0_97 = arith.constant 0 : index
    %c0_98 = arith.constant 0 : index
    %c0_99 = arith.constant 0 : index
    %107 = vector.load %arg6[%c0_97, %c0_98, %c0_99] : memref<7x256x128xbf16, #tpu.memory_space<vmem>>, vector<1x256x128xbf16>
    %108 = vector.shape_cast %107 : vector<1x256x128xbf16> to vector<256x128xbf16>
    %cst_100 = arith.constant dense<0.000000e+00> : vector<2x128xf32>
    %109 = tpu.matmul %106, %108, %cst_100 {dimension_numbers = #tpu.dot_dimension_numbers<[1], [0], [0], [1], [0, 0, 1, 1], [], []>} : vector<2x256xbf16>, vector<256x128xbf16>, vector<2x128xf32> -> vector<2x128xf32>
    %110 = vector.extract_strided_slice %103 {offsets = [2, 0], sizes = [2, 256], strides = [1, 1]} : vector<14x256xbf16> to vector<2x256xbf16>
    %c1_101 = arith.constant 1 : index
    %c0_102 = arith.constant 0 : index
    %c0_103 = arith.constant 0 : index
    %111 = vector.load %arg6[%c1_101, %c0_102, %c0_103] : memref<7x256x128xbf16, #tpu.memory_space<vmem>>, vector<1x256x128xbf16>
    %112 = vector.shape_cast %111 : vector<1x256x128xbf16> to vector<256x128xbf16>
    %cst_104 = arith.constant dense<0.000000e+00> : vector<2x128xf32>
    %113 = tpu.matmul %110, %112, %cst_104 {dimension_numbers = #tpu.dot_dimension_numbers<[1], [0], [0], [1], [0, 0, 1, 1], [], []>} : vector<2x256xbf16>, vector<256x128xbf16>, vector<2x128xf32> -> vector<2x128xf32>
    %114 = arith.addf %109, %113 : vector<2x128xf32>
    %115 = vector.extract_strided_slice %103 {offsets = [4, 0], sizes = [2, 256], strides = [1, 1]} : vector<14x256xbf16> to vector<2x256xbf16>
    %c2_105 = arith.constant 2 : index
    %c0_106 = arith.constant 0 : index
    %c0_107 = arith.constant 0 : index
    %116 = vector.load %arg6[%c2_105, %c0_106, %c0_107] : memref<7x256x128xbf16, #tpu.memory_space<vmem>>, vector<1x256x128xbf16>
    %117 = vector.shape_cast %116 : vector<1x256x128xbf16> to vector<256x128xbf16>
    %cst_108 = arith.constant dense<0.000000e+00> : vector<2x128xf32>
    %118 = tpu.matmul %115, %117, %cst_108 {dimension_numbers = #tpu.dot_dimension_numbers<[1], [0], [0], [1], [0, 0, 1, 1], [], []>} : vector<2x256xbf16>, vector<256x128xbf16>, vector<2x128xf32> -> vector<2x128xf32>
    %119 = arith.addf %114, %118 : vector<2x128xf32>
    %120 = vector.extract_strided_slice %103 {offsets = [6, 0], sizes = [2, 256], strides = [1, 1]} : vector<14x256xbf16> to vector<2x256xbf16>
    %c3_109 = arith.constant 3 : index
    %c0_110 = arith.constant 0 : index
    %c0_111 = arith.constant 0 : index
    %121 = vector.load %arg6[%c3_109, %c0_110, %c0_111] : memref<7x256x128xbf16, #tpu.memory_space<vmem>>, vector<1x256x128xbf16>
    %122 = vector.shape_cast %121 : vector<1x256x128xbf16> to vector<256x128xbf16>
    %cst_112 = arith.constant dense<0.000000e+00> : vector<2x128xf32>
    %123 = tpu.matmul %120, %122, %cst_112 {dimension_numbers = #tpu.dot_dimension_numbers<[1], [0], [0], [1], [0, 0, 1, 1], [], []>} : vector<2x256xbf16>, vector<256x128xbf16>, vector<2x128xf32> -> vector<2x128xf32>
    %124 = arith.addf %119, %123 : vector<2x128xf32>
    %125 = vector.extract_strided_slice %103 {offsets = [8, 0], sizes = [2, 256], strides = [1, 1]} : vector<14x256xbf16> to vector<2x256xbf16>
    %c4 = arith.constant 4 : index
    %c0_113 = arith.constant 0 : index
    %c0_114 = arith.constant 0 : index
    %126 = vector.load %arg6[%c4, %c0_113, %c0_114] : memref<7x256x128xbf16, #tpu.memory_space<vmem>>, vector<1x256x128xbf16>
    %127 = vector.shape_cast %126 : vector<1x256x128xbf16> to vector<256x128xbf16>
    %cst_115 = arith.constant dense<0.000000e+00> : vector<2x128xf32>
    %128 = tpu.matmul %125, %127, %cst_115 {dimension_numbers = #tpu.dot_dimension_numbers<[1], [0], [0], [1], [0, 0, 1, 1], [], []>} : vector<2x256xbf16>, vector<256x128xbf16>, vector<2x128xf32> -> vector<2x128xf32>
    %129 = arith.addf %124, %128 : vector<2x128xf32>
    %130 = vector.extract_strided_slice %103 {offsets = [10, 0], sizes = [2, 256], strides = [1, 1]} : vector<14x256xbf16> to vector<2x256xbf16>
    %c5 = arith.constant 5 : index
    %c0_116 = arith.constant 0 : index
    %c0_117 = arith.constant 0 : index
    %131 = vector.load %arg6[%c5, %c0_116, %c0_117] : memref<7x256x128xbf16, #tpu.memory_space<vmem>>, vector<1x256x128xbf16>
    %132 = vector.shape_cast %131 : vector<1x256x128xbf16> to vector<256x128xbf16>
    %cst_118 = arith.constant dense<0.000000e+00> : vector<2x128xf32>
    %133 = tpu.matmul %130, %132, %cst_118 {dimension_numbers = #tpu.dot_dimension_numbers<[1], [0], [0], [1], [0, 0, 1, 1], [], []>} : vector<2x256xbf16>, vector<256x128xbf16>, vector<2x128xf32> -> vector<2x128xf32>
    %134 = arith.addf %129, %133 : vector<2x128xf32>
    %135 = vector.extract_strided_slice %103 {offsets = [12, 0], sizes = [2, 256], strides = [1, 1]} : vector<14x256xbf16> to vector<2x256xbf16>
    %c6 = arith.constant 6 : index
    %c0_119 = arith.constant 0 : index
    %c0_120 = arith.constant 0 : index
    %136 = vector.load %arg6[%c6, %c0_119, %c0_120] : memref<7x256x128xbf16, #tpu.memory_space<vmem>>, vector<1x256x128xbf16>
    %137 = vector.shape_cast %136 : vector<1x256x128xbf16> to vector<256x128xbf16>
    %cst_121 = arith.constant dense<0.000000e+00> : vector<2x128xf32>
    %138 = tpu.matmul %135, %137, %cst_121 {dimension_numbers = #tpu.dot_dimension_numbers<[1], [0], [0], [1], [0, 0, 1, 1], [], []>} : vector<2x256xbf16>, vector<256x128xbf16>, vector<2x128xf32> -> vector<2x128xf32>
    %139 = arith.addf %134, %138 : vector<2x128xf32>
    %140 = vector.broadcast %17 : vector<1x128xf32> to vector<2x128xf32>
    %141 = arith.addf %139, %140 : vector<2x128xf32>
    %c0_122 = arith.constant 0 : index
    %c0_123 = arith.constant 0 : index
    %142 = vector.load %arg8[%c0_122, %c0_123] : memref<2x128xf32, #tpu.memory_space<vmem>>, vector<2x128xf32>
    tpu.vector_store %arg8[%c0_122, %c0_123], %141 {strides = array<i32>} : memref<2x128xf32, #tpu.memory_space<vmem>>, vector<2x128xf32>,
    return
  }
  func.func @transform_0(%arg0: i32) -> (i32, i32, i32, i32) {
    %c0_i32 = arith.constant 0 : i32
    %c0_i32_0 = arith.constant 0 : i32
    %c0_i32_1 = arith.constant 0 : i32
    %c0_i32_2 = arith.constant 0 : i32
    return %c0_i32, %c0_i32_0, %arg0, %c0_i32_1 : i32, i32, i32, i32
  }
  func.func @transform_1(%arg0: i32) -> (i32, i32) {
    %c0_i32 = arith.constant 0 : i32
    %c0_i32_0 = arith.constant 0 : i32
    %c0_i32_1 = arith.constant 0 : i32
    return %c0_i32, %c0_i32_0 : i32, i32
  }
  func.func @transform_2(%arg0: i32) -> (i32, i32) {
    %c0_i32 = arith.constant 0 : i32
    %c0_i32_0 = arith.constant 0 : i32
    %c0_i32_1 = arith.constant 0 : i32
    return %c0_i32, %c0_i32_0 : i32, i32
  }
  func.func @transform_3(%arg0: i32) -> (i32, i32) {
    %c0_i32 = arith.constant 0 : i32
    %c0_i32_0 = arith.constant 0 : i32
    %c0_i32_1 = arith.constant 0 : i32
    return %c0_i32, %c0_i32_0 : i32, i32
  }
  func.func @transform_4(%arg0: i32) -> (i32, i32) {
    %c0_i32 = arith.constant 0 : i32
    %c0_i32_0 = arith.constant 0 : i32
    %c0_i32_1 = arith.constant 0 : i32
    return %c0_i32, %c0_i32_0 : i32, i32
  }
  func.func @transform_5(%arg0: i32) -> (i32, i32, i32) {
    %c0_i32 = arith.constant 0 : i32
    %c0_i32_0 = arith.constant 0 : i32
    %c0_i32_1 = arith.constant 0 : i32
    %c0_i32_2 = arith.constant 0 : i32
    return %c0_i32, %c0_i32_0, %c0_i32_1 : i32, i32, i32
  }
  func.func @transform_6(%arg0: i32) -> (i32, i32) {
    %c0_i32 = arith.constant 0 : i32
    %c0_i32_0 = arith.constant 0 : i32
    %c0_i32_1 = arith.constant 0 : i32
    return %c0_i32, %c0_i32_0 : i32, i32
  }
  func.func @transform_7(%arg0: i32) -> (i32, i32) {
    %c0_i32 = arith.constant 0 : i32
    %c0_i32_0 = arith.constant 0 : i32
    return %arg0, %c0_i32 : i32, i32
  }
  func.func @transform_8(%arg0: i32) -> (i32, i32, i32) {
    %c0_i32 = arith.constant 0 : i32
    %c0_i32_0 = arith.constant 0 : i32
    %c0_i32_1 = arith.constant 0 : i32
    return %c0_i32, %arg0, %c0_i32_0 : i32, i32, i32
  }
}

</mosaic_0001>

<llo_original>
// kernel: tile.13
$region0: #{tile.13}
  #allocation0 [shape = 's32[1]{0}', space=sflag, size = 0x4, scoped, tag = 'scoped memory for tile.13']
  %s0 = inlined_call_operand.vmem [shape: f32[16], index: 0, kind: input, shape index: {}]
  %s1 = inlined_call_operand.vmem [shape: f32[14,16], index: 1, kind: output, shape index: {}]
  // Predicated region
  $region2: #{tile.13} parent=0 // pred_check
    _
  $region3: #{tile.13} parent=0 // pred_check_branch
    %3 = sbr.rel (0) target = $region5
  $region4: #{tile.13} parent=0 // pred_region
    _
  $region5: #{tile.13} parent=0 // pred_fallthru
    _
  %v4 = vld [vmem:[%s0] ss:$0 sm:$0xff]
  %5 = vst [vmem:[%s1] sm:$0xff] %v4
  %s6 = scalar_lea.vmem %s1, 8
  %7 = vst [vmem:[%s6] sm:$0xff] %v4

// kernel: tile.14
$region0: #{tile.14}
  %s0 = inlined_call_operand.vmem [shape: f32[14,16], index: 0, kind: input, shape index: {}]
  %s1 = inlined_call_operand.vmem [shape: f32[224], index: 1, kind: output, shape index: {}]
  $region1: #{tile.14} parent=0
    #allocation0 [shape = 'u8[4096]{0}', space=vmem, size = 0x1000, scoped, tag = 'scoped mem for output reshape']
    %s2 = smov 3
    %v3 = vld [vmem:[%s0] ss:$8 sm:%s2]
    %vm4 = vcmask 130048
    %5 = vst.msk [vmem:[#allocation0] sm:$0x3] %vm4, %v3
    %s6 = scalar_lea.vmem %s0, 7
    %v7 = vld [vmem:[%s6] sm:$0x1]
    %8 = vrot.lane.b32.xlu0 %v7, 112
    %v9 = vpop.permute.xlu0 %8
    %vm10 = vcmask 1048448
    %11 = vst.msk [vmem:[#allocation0] sm:$0x1] %vm10, %v9
    %s12 = scalar_lea.vmem %s0, 6
    %v13 = vld [vmem:[%s12] sm:$0x1]
    %14 = vrot.lane.b32.xlu0 %v13, 96
    %v15 = vpop.permute.xlu0 %14
    %vm16 = vcmask 917248
    %17 = vst.msk [vmem:[#allocation0] sm:$0x1] %vm16, %v15
    %s18 = scalar_lea.vmem %s0, 5
    %s19 = smov 3
    %v20 = vld [vmem:[%s18] ss:$8 sm:%s19]
    %21 = vrot.lane.b32.xlu0 %v20, 80
    %v22 = vpop.permute.xlu0 %21
    %vm23 = vcmask 786048
    %24 = vst.msk [vmem:[#allocation0] sm:$0x3] %vm23, %v22
    %s25 = scalar_lea.vmem %s0, 4
    %s26 = smov 3
    %v27 = vld [vmem:[%s25] ss:$8 sm:%s26]
    %28 = vrot.lane.b32.xlu0 %v27, 64
    %v29 = vpop.permute.xlu0 %28
    %vm30 = vcmask 654848
    %31 = vst.msk [vmem:[#allocation0] sm:$0x3] %vm30, %v29
    %s32 = scalar_lea.vmem %s0, 3
    %s33 = smov 3
    %v34 = vld [vmem:[%s32] ss:$8 sm:%s33]
    %35 = vrot.lane.b32.xlu0 %v34, 48
    %v36 = vpop.permute.xlu0 %35
    %vm37 = vcmask 523648
    %38 = vst.msk [vmem:[#allocation0] sm:$0x3] %vm37, %v36
    %s39 = scalar_lea.vmem %s0, 2
    %s40 = smov 3
    %v41 = vld [vmem:[%s39] ss:$8 sm:%s40]
    %42 = vrot.lane.b32.xlu0 %v41, 32
    %v43 = vpop.permute.xlu0 %42
    %vm44 = vcmask 392448
    %45 = vst.msk [vmem:[#allocation0] sm:$0x3] %vm44, %v43
    %s46 = scalar_lea.vmem %s0, 1
    %s47 = smov 3
    %v48 = vld [vmem:[%s46] ss:$8 sm:%s47]
    %49 = vrot.lane.b32.xlu0 %v48, 16
    %v50 = vpop.permute.xlu0 %49
    %vm51 = vcmask 261248
    %52 = vst.msk [vmem:[#allocation0] sm:$0x3] %vm51, %v50
    %s54 = sshll.u32 1, 2
    %s55 = ssub.s32 %s54, 1
    %v57 = vld [vmem:[#allocation0] sm:%s55]
    %s58 = sshll.u32 1, 2
    %s59 = ssub.s32 %s58, 1
    %60 = vst [vmem:[%s1] sm:%s59] %v57

// kernel: tile.18
$region0: #{tile.18}
  #allocation0 [shape = 's32[1]{0}', space=sflag, size = 0x4, scoped, tag = 'scoped memory for tile.18']
  %s0 = inlined_call_operand.vmem [shape: f32[32], index: 0, kind: input, shape index: {}]
  %s1 = inlined_call_operand.vmem [shape: f32[7,32], index: 1, kind: output, shape index: {}]
  // Predicated region
  $region2: #{tile.18} parent=0 // pred_check
    _
  $region3: #{tile.18} parent=0 // pred_check_branch
    %3 = sbr.rel (0) target = $region5
  $region4: #{tile.18} parent=0 // pred_region
    _
  $region5: #{tile.18} parent=0 // pred_fallthru
    _
  %v4 = vld [vmem:[%s0] ss:$0 sm:$0xff]
  %5 = vst [vmem:[%s1] sm:$0xff] %v4

// kernel: tile.19
$region0: #{tile.19}
  %s0 = inlined_call_operand.vmem [shape: f32[7,32], index: 0, kind: input, shape index: {}]
  %s1 = inlined_call_operand.vmem [shape: f32[224], index: 1, kind: output, shape index: {}]
  $region1: #{tile.19} parent=0
    #allocation0 [shape = 'u8[4096]{0}', space=vmem, size = 0x1000, scoped, tag = 'scoped mem for output reshape']
    %s2 = smov 3
    %v3 = vld [vmem:[%s0] ss:$4 sm:%s2]
    %vm4 = vcmask 261120
    %5 = vst.msk [vmem:[#allocation0] sm:$0x3] %vm4, %v3
    %s6 = scalar_lea.vmem %s0, 3
    %v7 = vld [vmem:[%s6] sm:$0x1]
    %8 = vrot.lane.b32.xlu0 %v7, 96
    %v9 = vpop.permute.xlu0 %8
    %vm10 = vcmask 1048320
    %11 = vst.msk [vmem:[#allocation0] sm:$0x1] %vm10, %v9
    %s12 = scalar_lea.vmem %s0, 2
    %s13 = smov 3
    %v14 = vld [vmem:[%s12] ss:$4 sm:%s13]
    %15 = vrot.lane.b32.xlu0 %v14, 64
    %v16 = vpop.permute.xlu0 %15
    %vm17 = vcmask 785920
    %18 = vst.msk [vmem:[#allocation0] sm:$0x3] %vm17, %v16
    %s19 = scalar_lea.vmem %s0, 1
    %s20 = smov 3
    %v21 = vld [vmem:[%s19] ss:$4 sm:%s20]
    %22 = vrot.lane.b32.xlu0 %v21, 32
    %v23 = vpop.permute.xlu0 %22
    %vm24 = vcmask 523520
    %25 = vst.msk [vmem:[#allocation0] sm:$0x3] %vm24, %v23
    %s27 = sshll.u32 1, 2
    %s28 = ssub.s32 %s27, 1
    %v30 = vld [vmem:[#allocation0] sm:%s28]
    %s31 = sshll.u32 1, 2
    %s32 = ssub.s32 %s31, 1
    %33 = vst [vmem:[%s1] sm:%s32] %v30

// kernel: _cnn_forward_impl.1
$region0: #{_cnn_forward_impl.1}
  #allocation0 [shape = 'u32[]', space=smem, size = 0x4, offset = 0x4, fixed_abs, tag = 'smem constant byte address 0x4 - core index']
  #allocation1 [shape = 'u32[144,128]{1,0:T(1,128)}', space=vmem, size = 0x12000, scoped, tag = 'internal scratch']
  #allocation2 [shape = 'bf16[2,9,2,256]{3,2,1,0:T(2,128)(2,1)}', space=vmem, size = 0x4800, scoped, tag = 'scratch operand']
  %s0 = inlined_call_operand.vmem [shape: bf16[4,7,2,160], index: 0, kind: input, shape index: {}]
  %s1 = inlined_call_operand.vmem [shape: bf16[160,512], index: 1, kind: input, shape index: {}]
  %s2 = inlined_call_operand.vmem [shape: f32[1,256], index: 2, kind: input, shape index: {}]
  %s3 = inlined_call_operand.vmem [shape: bf16[1280,512], index: 3, kind: input, shape index: {}]
  %s4 = inlined_call_operand.vmem [shape: f32[1,256], index: 4, kind: input, shape index: {}]
  %s5 = inlined_call_operand.vmem [shape: bf16[7,256,128], index: 5, kind: input, shape index: {}]
  %s6 = inlined_call_operand.vmem [shape: f32[1,128], index: 6, kind: input, shape index: {}]
  %s7 = inlined_call_operand.hbm [shape: f32[2,128], index: 7, kind: output, shape index: {0}]
  %s8 = inlined_call_operand.vmem [shape: bf16[7,2,256], index: 8, kind: output, shape index: {1}]
  %9 = xla_tuple %s7, %s8
  %s10 = sld [smem:[#allocation0]]
  $region46: #{_cnn_forward_impl.1} parent=0
    _
  %s12 = ssub.s32 1, %s10
  %s13 = scalar_select 0, %s12, %s10
  $region1: #{_cnn_forward_impl.1} parent=0
    #allocation3 [shape = 'u8[1024]{0}', space=vmem, size = 0x400, scoped, tag = 'output window, operand 0, single buffered']
    #allocation4 [shape = 's32[1]{0}', space=sflag, size = 0x4, scoped, tag = 'scoped memory for _cnn_forward_impl.1']
    %14 = vsyncpa [#allocation4], 0
    // Predicated region
    $region2: #{_cnn_forward_impl.1} parent=1 // pred_check
      _
    $region3: #{_cnn_forward_impl.1} parent=1 // pred_check_branch
      %16 = sbr.rel (0) target = $region5
    $region4: #{_cnn_forward_impl.1} parent=1 // pred_region
      _
    $region5: #{_cnn_forward_impl.1} parent=1 // pred_fallthru
      _
    // Predicated region
    $region6: #{_cnn_forward_impl.1} parent=1 // pred_check
      _
    $region7: #{_cnn_forward_impl.1} parent=1 // pred_check_branch
      %18 = sbr.rel (0) target = $region9
    $region8: #{_cnn_forward_impl.1} parent=1 // pred_region
      _
    $region9: #{_cnn_forward_impl.1} parent=1 // pred_fallthru
      _
    // Predicated region
    $region10: #{_cnn_forward_impl.1} parent=1 // pred_check
      _
    $region11: #{_cnn_forward_impl.1} parent=1 // pred_check_branch
      %20 = sbr.rel (0) target = $region13
    $region12: #{_cnn_forward_impl.1} parent=1 // pred_region
      _
    $region13: #{_cnn_forward_impl.1} parent=1 // pred_fallthru
      _
    // Predicated region
    $region14: #{_cnn_forward_impl.1} parent=1 // pred_check
      _
    $region15: #{_cnn_forward_impl.1} parent=1 // pred_check_branch
      %22 = sbr.rel (0) target = $region17
    $region16: #{_cnn_forward_impl.1} parent=1 // pred_region
      _
    $region17: #{_cnn_forward_impl.1} parent=1 // pred_fallthru
      _
    // Predicated region
    $region18: #{_cnn_forward_impl.1} parent=1 // pred_check
      _
    $region19: #{_cnn_forward_impl.1} parent=1 // pred_check_branch
      %24 = sbr.rel (0) target = $region21
    $region20: #{_cnn_forward_impl.1} parent=1 // pred_region
      _
    $region21: #{_cnn_forward_impl.1} parent=1 // pred_fallthru
      _
    // Predicated region
    $region22: #{_cnn_forward_impl.1} parent=1 // pred_check
      _
    $region23: #{_cnn_forward_impl.1} parent=1 // pred_check_branch
      %26 = sbr.rel (0) target = $region25
    $region24: #{_cnn_forward_impl.1} parent=1 // pred_region
      _
    $region25: #{_cnn_forward_impl.1} parent=1 // pred_fallthru
      _
    // Predicated region
    $region26: #{_cnn_forward_impl.1} parent=1 // pred_check
      _
    $region27: #{_cnn_forward_impl.1} parent=1 // pred_check_branch
      %28 = sbr.rel (0) target = $region29
    $region28: #{_cnn_forward_impl.1} parent=1 // pred_region
      _
    $region29: #{_cnn_forward_impl.1} parent=1 // pred_fallthru
      _
    %30 = vst [vmem:[#allocation2] sm:$0x3] 0
    %s31 = scalar_lea.vmem [#allocation2], 16
    %32 = vst [vmem:[%s31] sm:$0x3] 0
    %s33 = scalar_lea.vmem [#allocation2], 18
    %34 = vst [vmem:[%s33] sm:$0x3] 0
    %s35 = scalar_lea.vmem [#allocation2], 34
    %36 = vst [vmem:[%s35] sm:$0x3] 0
    %v37 = vld [vmem:[%s1] sm:$0xff]
    %v38 = vld [vmem:[%s1 + $0x8] sm:$0xff]
    %v39 = vld [vmem:[%s1 + $0x10] sm:$0xff]
    %v40 = vld [vmem:[%s1 + $0x18] sm:$0xff]
    %v41 = vld [vmem:[%s1 + $0x20] sm:$0xff]
    %v42 = vld [vmem:[%s1 + $0x28] sm:$0xff]
    %v43 = vld [vmem:[%s1 + $0x30] sm:$0xff]
    %v44 = vld [vmem:[%s1 + $0x38] sm:$0xff]
    %v45 = vld [vmem:[%s1 + $0x40] sm:$0xff]
    %v46 = vld [vmem:[%s1 + $0x48] sm:$0xff]
    %v47 = vld [vmem:[%s1 + $0x50] sm:$0xff]
    %v48 = vld [vmem:[%s1 + $0x58] sm:$0xff]
    %v49 = vld [vmem:[%s1 + $0x60] sm:$0xff]
    %v50 = vld [vmem:[%s1 + $0x68] sm:$0xff]
    %v51 = vld [vmem:[%s1 + $0x70] sm:$0xff]
    %v52 = vld [vmem:[%s1 + $0x78] sm:$0xff]
    %v53 = vld [vmem:[%s1 + $0x80] sm:$0xff]
    %v54 = vld [vmem:[%s1 + $0x88] sm:$0xff]
    %v55 = vld [vmem:[%s1 + $0x90] sm:$0xff]
    %v56 = vld [vmem:[%s1 + $0x98] sm:$0xff]
    %v57 = vld [vmem:[%s1 + $0xa0] sm:$0xff]
    %v58 = vld [vmem:[%s1 + $0xa8] sm:$0xff]
    %v59 = vld [vmem:[%s1 + $0xb0] sm:$0xff]
    %v60 = vld [vmem:[%s1 + $0xb8] sm:$0xff]
    %v61 = vld [vmem:[%s1 + $0xc0] sm:$0xff]
    %v62 = vld [vmem:[%s1 + $0xc8] sm:$0xff]
    %v63 = vld [vmem:[%s1 + $0xd0] sm:$0xff]
    %v64 = vld [vmem:[%s1 + $0xd8] sm:$0xff]
    %v65 = vld [vmem:[%s1 + $0xe0] sm:$0xff]
    %v66 = vld [vmem:[%s1 + $0xe8] sm:$0xff]
    %v67 = vld [vmem:[%s1 + $0xf0] sm:$0xff]
    %v68 = vld [vmem:[%s1 + $0xf8] sm:$0xff]
    %v69 = vld [vmem:[%s1 + $0x100] sm:$0xff]
    %v70 = vld [vmem:[%s1 + $0x108] sm:$0xff]
    %v71 = vld [vmem:[%s1 + $0x110] sm:$0xff]
    %v72 = vld [vmem:[%s1 + $0x118] sm:$0xff]
    %v73 = vld [vmem:[%s1 + $0x120] sm:$0xff]
    %v74 = vld [vmem:[%s1 + $0x128] sm:$0xff]
    %v75 = vld [vmem:[%s1 + $0x130] sm:$0xff]
    %v76 = vld [vmem:[%s1 + $0x138] sm:$0xff]
    %v77 = vld [vmem:[%s3] sm:$0xff]
    %v78 = vld [vmem:[%s3 + $0x8] sm:$0xff]
    %v79 = vld [vmem:[%s3 + $0x10] sm:$0xff]
    %v80 = vld [vmem:[%s3 + $0x18] sm:$0xff]
    %v81 = vld [vmem:[%s3 + $0x20] sm:$0xff]
    %v82 = vld [vmem:[%s3 + $0x28] sm:$0xff]
    %v83 = vld [vmem:[%s3 + $0x30] sm:$0xff]
    %v84 = vld [vmem:[%s3 + $0x38] sm:$0xff]
    %v85 = vld [vmem:[%s3 + $0x40] sm:$0xff]
    %v86 = vld [vmem:[%s3 + $0x48] sm:$0xff]
    %v87 = vld [vmem:[%s3 + $0x50] sm:$0xff]
    %v88 = vld [vmem:[%s3 + $0x58] sm:$0xff]
    %v89 = vld [vmem:[%s3 + $0x60] sm:$0xff]
    %v90 = vld [vmem:[%s3 + $0x68] sm:$0xff]
    %v91 = vld [vmem:[%s3 + $0x70] sm:$0xff]
    %v92 = vld [vmem:[%s3 + $0x78] sm:$0xff]
    %v93 = vld [vmem:[%s3 + $0x80] sm:$0xff]
    %v94 = vld [vmem:[%s3 + $0x88] sm:$0xff]
    %v95 = vld [vmem:[%s3 + $0x90] sm:$0xff]
    %v96 = vld [vmem:[%s3 + $0x98] sm:$0xff]
    %v97 = vld [vmem:[%s3 + $0xa0] sm:$0xff]
    %v98 = vld [vmem:[%s3 + $0xa8] sm:$0xff]
    %v99 = vld [vmem:[%s3 + $0xb0] sm:$0xff]
    %v100 = vld [vmem:[%s3 + $0xb8] sm:$0xff]
    %v101 = vld [vmem:[%s3 + $0xc0] sm:$0xff]
    %v102 = vld [vmem:[%s3 + $0xc8] sm:$0xff]
    %v103 = vld [vmem:[%s3 + $0xd0] sm:$0xff]
    %v104 = vld [vmem:[%s3 + $0xd8] sm:$0xff]
    %v105 = vld [vmem:[%s3 + $0xe0] sm:$0xff]
    %v106 = vld [vmem:[%s3 + $0xe8] sm:$0xff]
    %v107 = vld [vmem:[%s3 + $0xf0] sm:$0xff]
    %v108 = vld [vmem:[%s3 + $0xf8] sm:$0xff]
    %v109 = vld [vmem:[%s3 + $0x100] sm:$0xff]
    %v110 = vld [vmem:[%s3 + $0x108] sm:$0xff]
    %v111 = vld [vmem:[%s3 + $0x110] sm:$0xff]
    %v112 = vld [vmem:[%s3 + $0x118] sm:$0xff]
    %v113 = vld [vmem:[%s3 + $0x120] sm:$0xff]
    %v114 = vld [vmem:[%s3 + $0x128] sm:$0xff]
    %v115 = vld [vmem:[%s3 + $0x130] sm:$0xff]
    %v116 = vld [vmem:[%s3 + $0x138] sm:$0xff]
    %v117 = vld [vmem:[%s3 + $0x140] sm:$0xff]
    %v118 = vld [vmem:[%s3 + $0x148] sm:$0xff]
    %v119 = vld [vmem:[%s3 + $0x150] sm:$0xff]
    %v120 = vld [vmem:[%s3 + $0x158] sm:$0xff]
    %v121 = vld [vmem:[%s3 + $0x160] sm:$0xff]
    %v122 = vld [vmem:[%s3 + $0x168] sm:$0xff]
    %v123 = vld [vmem:[%s3 + $0x170] sm:$0xff]
    %v124 = vld [vmem:[%s3 + $0x178] sm:$0xff]
    %v125 = vld [vmem:[%s3 + $0x180] sm:$0xff]
    %v126 = vld [vmem:[%s3 + $0x188] sm:$0xff]
    %v127 = vld [vmem:[%s3 + $0x190] sm:$0xff]
    %v128 = vld [vmem:[%s3 + $0x198] sm:$0xff]
    %v129 = vld [vmem:[%s3 + $0x1a0] sm:$0xff]
    %v130 = vld [vmem:[%s3 + $0x1a8] sm:$0xff]
    %v131 = vld [vmem:[%s3 + $0x1b0] sm:$0xff]
    %v132 = vld [vmem:[%s3 + $0x1b8] sm:$0xff]
    %v133 = vld [vmem:[%s3 + $0x1c0] sm:$0xff]
    %v134 = vld [vmem:[%s3 + $0x1c8] sm:$0xff]
    %v135 = vld [vmem:[%s3 + $0x1d0] sm:$0xff]
    %v136 = vld [vmem:[%s3 + $0x1d8] sm:$0xff]
    %v137 = vld [vmem:[%s3 + $0x1e0] sm:$0xff]
    %v138 = vld [vmem:[%s3 + $0x1e8] sm:$0xff]
    %v139 = vld [vmem:[%s3 + $0x1f0] sm:$0xff]
    %v140 = vld [vmem:[%s3 + $0x1f8] sm:$0xff]
    %v141 = vld [vmem:[%s3 + $0x200] sm:$0xff]
    %v142 = vld [vmem:[%s3 + $0x208] sm:$0xff]
    %v143 = vld [vmem:[%s3 + $0x210] sm:$0xff]
    %v144 = vld [vmem:[%s3 + $0x218] sm:$0xff]
    %v145 = vld [vmem:[%s3 + $0x220] sm:$0xff]
    %v146 = vld [vmem:[%s3 + $0x228] sm:$0xff]
    %v147 = vld [vmem:[%s3 + $0x230] sm:$0xff]
    %v148 = vld [vmem:[%s3 + $0x238] sm:$0xff]
    %v149 = vld [vmem:[%s3 + $0x240] sm:$0xff]
    %v150 = vld [vmem:[%s3 + $0x248] sm:$0xff]
    %v151 = vld [vmem:[%s3 + $0x250] sm:$0xff]
    %v152 = vld [vmem:[%s3 + $0x258] sm:$0xff]
    %v153 = vld [vmem:[%s3 + $0x260] sm:$0xff]
    %v154 = vld [vmem:[%s3 + $0x268] sm:$0xff]
    %v155 = vld [vmem:[%s3 + $0x270] sm:$0xff]
    %v156 = vld [vmem:[%s3 + $0x278] sm:$0xff]
    %v157 = vld [vmem:[%s3 + $0x280] sm:$0xff]
    %v158 = vld [vmem:[%s3 + $0x288] sm:$0xff]
    %v159 = vld [vmem:[%s3 + $0x290] sm:$0xff]
    %v160 = vld [vmem:[%s3 + $0x298] sm:$0xff]
    %v161 = vld [vmem:[%s3 + $0x2a0] sm:$0xff]
    %v162 = vld [vmem:[%s3 + $0x2a8] sm:$0xff]
    %v163 = vld [vmem:[%s3 + $0x2b0] sm:$0xff]
    %v164 = vld [vmem:[%s3 + $0x2b8] sm:$0xff]
    %v165 = vld [vmem:[%s3 + $0x2c0] sm:$0xff]
    %v166 = vld [vmem:[%s3 + $0x2c8] sm:$0xff]
    %v167 = vld [vmem:[%s3 + $0x2d0] sm:$0xff]
    %v168 = vld [vmem:[%s3 + $0x2d8] sm:$0xff]
    %v169 = vld [vmem:[%s3 + $0x2e0] sm:$0xff]
    %v170 = vld [vmem:[%s3 + $0x2e8] sm:$0xff]
    %v171 = vld [vmem:[%s3 + $0x2f0] sm:$0xff]
    %v172 = vld [vmem:[%s3 + $0x2f8] sm:$0xff]
    %v173 = vld [vmem:[%s3 + $0x300] sm:$0xff]
    %v174 = vld [vmem:[%s3 + $0x308] sm:$0xff]
    %v175 = vld [vmem:[%s3 + $0x310] sm:$0xff]
    %v176 = vld [vmem:[%s3 + $0x318] sm:$0xff]
    %v177 = vld [vmem:[%s3 + $0x320] sm:$0xff]
    %v178 = vld [vmem:[%s3 + $0x328] sm:$0xff]
    %v179 = vld [vmem:[%s3 + $0x330] sm:$0xff]
    %v180 = vld [vmem:[%s3 + $0x338] sm:$0xff]
    %v181 = vld [vmem:[%s3 + $0x340] sm:$0xff]
    %v182 = vld [vmem:[%s3 + $0x348] sm:$0xff]
    %v183 = vld [vmem:[%s3 + $0x350] sm:$0xff]
    %v184 = vld [vmem:[%s3 + $0x358] sm:$0xff]
    %v185 = vld [vmem:[%s3 + $0x360] sm:$0xff]
    %v186 = vld [vmem:[%s3 + $0x368] sm:$0xff]
    %v187 = vld [vmem:[%s3 + $0x370] sm:$0xff]
    %v188 = vld [vmem:[%s3 + $0x378] sm:$0xff]
    %v189 = vld [vmem:[%s3 + $0x380] sm:$0xff]
    %v190 = vld [vmem:[%s3 + $0x388] sm:$0xff]
    %v191 = vld [vmem:[%s3 + $0x390] sm:$0xff]
    %v192 = vld [vmem:[%s3 + $0x398] sm:$0xff]
    %v193 = vld [vmem:[%s3 + $0x3a0] sm:$0xff]
    %v194 = vld [vmem:[%s3 + $0x3a8] sm:$0xff]
    %v195 = vld [vmem:[%s3 + $0x3b0] sm:$0xff]
    %v196 = vld [vmem:[%s3 + $0x3b8] sm:$0xff]
    %v197 = vld [vmem:[%s3 + $0x3c0] sm:$0xff]
    %v198 = vld [vmem:[%s3 + $0x3c8] sm:$0xff]
    %v199 = vld [vmem:[%s3 + $0x3d0] sm:$0xff]
    %v200 = vld [vmem:[%s3 + $0x3d8] sm:$0xff]
    %v201 = vld [vmem:[%s3 + $0x3e0] sm:$0xff]
    %v202 = vld [vmem:[%s3 + $0x3e8] sm:$0xff]
    %v203 = vld [vmem:[%s3 + $0x3f0] sm:$0xff]
    %v204 = vld [vmem:[%s3 + $0x3f8] sm:$0xff]
    %v205 = vld [vmem:[%s3 + $0x400] sm:$0xff]
    %v206 = vld [vmem:[%s3 + $0x408] sm:$0xff]
    %v207 = vld [vmem:[%s3 + $0x410] sm:$0xff]
    %v208 = vld [vmem:[%s3 + $0x418] sm:$0xff]
    %v209 = vld [vmem:[%s3 + $0x420] sm:$0xff]
    %v210 = vld [vmem:[%s3 + $0x428] sm:$0xff]
    %v211 = vld [vmem:[%s3 + $0x430] sm:$0xff]
    %v212 = vld [vmem:[%s3 + $0x438] sm:$0xff]
    %v213 = vld [vmem:[%s3 + $0x440] sm:$0xff]
    %v214 = vld [vmem:[%s3 + $0x448] sm:$0xff]
    %v215 = vld [vmem:[%s3 + $0x450] sm:$0xff]
    %v216 = vld [vmem:[%s3 + $0x458] sm:$0xff]
    %v217 = vld [vmem:[%s3 + $0x460] sm:$0xff]
    %v218 = vld [vmem:[%s3 + $0x468] sm:$0xff]
    %v219 = vld [vmem:[%s3 + $0x470] sm:$0xff]
    %v220 = vld [vmem:[%s3 + $0x478] sm:$0xff]
    %v221 = vld [vmem:[%s3 + $0x480] sm:$0xff]
    %v222 = vld [vmem:[%s3 + $0x488] sm:$0xff]
    %v223 = vld [vmem:[%s3 + $0x490] sm:$0xff]
    %v224 = vld [vmem:[%s3 + $0x498] sm:$0xff]
    %v225 = vld [vmem:[%s3 + $0x4a0] sm:$0xff]
    %v226 = vld [vmem:[%s3 + $0x4a8] sm:$0xff]
    %v227 = vld [vmem:[%s3 + $0x4b0] sm:$0xff]
    %v228 = vld [vmem:[%s3 + $0x4b8] sm:$0xff]
    %v229 = vld [vmem:[%s3 + $0x4c0] sm:$0xff]
    %v230 = vld [vmem:[%s3 + $0x4c8] sm:$0xff]
    %v231 = vld [vmem:[%s3 + $0x4d0] sm:$0xff]
    %v232 = vld [vmem:[%s3 + $0x4d8] sm:$0xff]
    %v233 = vld [vmem:[%s3 + $0x4e0] sm:$0xff]
    %v234 = vld [vmem:[%s3 + $0x4e8] sm:$0xff]
    %v235 = vld [vmem:[%s3 + $0x4f0] sm:$0xff]
    %v236 = vld [vmem:[%s3 + $0x4f8] sm:$0xff]
    %v237 = vld [vmem:[%s3 + $0x500] sm:$0xff]
    %v238 = vld [vmem:[%s3 + $0x508] sm:$0xff]
    %v239 = vld [vmem:[%s3 + $0x510] sm:$0xff]
    %v240 = vld [vmem:[%s3 + $0x518] sm:$0xff]
    %v241 = vld [vmem:[%s3 + $0x520] sm:$0xff]
    %v242 = vld [vmem:[%s3 + $0x528] sm:$0xff]
    %v243 = vld [vmem:[%s3 + $0x530] sm:$0xff]
    %v244 = vld [vmem:[%s3 + $0x538] sm:$0xff]
    %v245 = vld [vmem:[%s3 + $0x540] sm:$0xff]
    %v246 = vld [vmem:[%s3 + $0x548] sm:$0xff]
    %v247 = vld [vmem:[%s3 + $0x550] sm:$0xff]
    %v248 = vld [vmem:[%s3 + $0x558] sm:$0xff]
    %v249 = vld [vmem:[%s3 + $0x560] sm:$0xff]
    %v250 = vld [vmem:[%s3 + $0x568] sm:$0xff]
    %v251 = vld [vmem:[%s3 + $0x570] sm:$0xff]
    %v252 = vld [vmem:[%s3 + $0x578] sm:$0xff]
    %v253 = vld [vmem:[%s3 + $0x580] sm:$0xff]
    %v254 = vld [vmem:[%s3 + $0x588] sm:$0xff]
    %v255 = vld [vmem:[%s3 + $0x590] sm:$0xff]
    %v256 = vld [vmem:[%s3 + $0x598] sm:$0xff]
    %v257 = vld [vmem:[%s3 + $0x5a0] sm:$0xff]
    %v258 = vld [vmem:[%s3 + $0x5a8] sm:$0xff]
    %v259 = vld [vmem:[%s3 + $0x5b0] sm:$0xff]
    %v260 = vld [vmem:[%s3 + $0x5b8] sm:$0xff]
    %v261 = vld [vmem:[%s3 + $0x5c0] sm:$0xff]
    %v262 = vld [vmem:[%s3 + $0x5c8] sm:$0xff]
    %v263 = vld [vmem:[%s3 + $0x5d0] sm:$0xff]
    %v264 = vld [vmem:[%s3 + $0x5d8] sm:$0xff]
    %v265 = vld [vmem:[%s3 + $0x5e0] sm:$0xff]
    %v266 = vld [vmem:[%s3 + $0x5e8] sm:$0xff]
    %v267 = vld [vmem:[%s3 + $0x5f0] sm:$0xff]
    %v268 = vld [vmem:[%s3 + $0x5f8] sm:$0xff]
    %v269 = vld [vmem:[%s3 + $0x600] sm:$0xff]
    %v270 = vld [vmem:[%s3 + $0x608] sm:$0xff]
    %v271 = vld [vmem:[%s3 + $0x610] sm:$0xff]
    %v272 = vld [vmem:[%s3 + $0x618] sm:$0xff]
    %v273 = vld [vmem:[%s3 + $0x620] sm:$0xff]
    %v274 = vld [vmem:[%s3 + $0x628] sm:$0xff]
    %v275 = vld [vmem:[%s3 + $0x630] sm:$0xff]
    %v276 = vld [vmem:[%s3 + $0x638] sm:$0xff]
    %v277 = vld [vmem:[%s3 + $0x640] sm:$0xff]
    %v278 = vld [vmem:[%s3 + $0x648] sm:$0xff]
    %v279 = vld [vmem:[%s3 + $0x650] sm:$0xff]
    %v280 = vld [vmem:[%s3 + $0x658] sm:$0xff]
    %v281 = vld [vmem:[%s3 + $0x660] sm:$0xff]
    %v282 = vld [vmem:[%s3 + $0x668] sm:$0xff]
    %v283 = vld [vmem:[%s3 + $0x670] sm:$0xff]
    %v284 = vld [vmem:[%s3 + $0x678] sm:$0xff]
    %v285 = vld [vmem:[%s3 + $0x680] sm:$0xff]
    %v286 = vld [vmem:[%s3 + $0x688] sm:$0xff]
    %v287 = vld [vmem:[%s3 + $0x690] sm:$0xff]
    %v288 = vld [vmem:[%s3 + $0x698] sm:$0xff]
    %v289 = vld [vmem:[%s3 + $0x6a0] sm:$0xff]
    %v290 = vld [vmem:[%s3 + $0x6a8] sm:$0xff]
    %v291 = vld [vmem:[%s3 + $0x6b0] sm:$0xff]
    %v292 = vld [vmem:[%s3 + $0x6b8] sm:$0xff]
    %v293 = vld [vmem:[%s3 + $0x6c0] sm:$0xff]
    %v294 = vld [vmem:[%s3 + $0x6c8] sm:$0xff]
    %v295 = vld [vmem:[%s3 + $0x6d0] sm:$0xff]
    %v296 = vld [vmem:[%s3 + $0x6d8] sm:$0xff]
    %v297 = vld [vmem:[%s3 + $0x6e0] sm:$0xff]
    %v298 = vld [vmem:[%s3 + $0x6e8] sm:$0xff]
    %v299 = vld [vmem:[%s3 + $0x6f0] sm:$0xff]
    %v300 = vld [vmem:[%s3 + $0x6f8] sm:$0xff]
    %v301 = vld [vmem:[%s3 + $0x700] sm:$0xff]
    %v302 = vld [vmem:[%s3 + $0x708] sm:$0xff]
    %v303 = vld [vmem:[%s3 + $0x710] sm:$0xff]
    %v304 = vld [vmem:[%s3 + $0x718] sm:$0xff]
    %v305 = vld [vmem:[%s3 + $0x720] sm:$0xff]
    %v306 = vld [vmem:[%s3 + $0x728] sm:$0xff]
    %v307 = vld [vmem:[%s3 + $0x730] sm:$0xff]
    %v308 = vld [vmem:[%s3 + $0x738] sm:$0xff]
    %v309 = vld [vmem:[%s3 + $0x740] sm:$0xff]
    %v310 = vld [vmem:[%s3 + $0x748] sm:$0xff]
    %v311 = vld [vmem:[%s3 + $0x750] sm:$0xff]
    %v312 = vld [vmem:[%s3 + $0x758] sm:$0xff]
    %v313 = vld [vmem:[%s3 + $0x760] sm:$0xff]
    %v314 = vld [vmem:[%s3 + $0x768] sm:$0xff]
    %v315 = vld [vmem:[%s3 + $0x770] sm:$0xff]
    %v316 = vld [vmem:[%s3 + $0x778] sm:$0xff]
    %v317 = vld [vmem:[%s3 + $0x780] sm:$0xff]
    %v318 = vld [vmem:[%s3 + $0x788] sm:$0xff]
    %v319 = vld [vmem:[%s3 + $0x790] sm:$0xff]
    %v320 = vld [vmem:[%s3 + $0x798] sm:$0xff]
    %v321 = vld [vmem:[%s3 + $0x7a0] sm:$0xff]
    %v322 = vld [vmem:[%s3 + $0x7a8] sm:$0xff]
    %v323 = vld [vmem:[%s3 + $0x7b0] sm:$0xff]
    %v324 = vld [vmem:[%s3 + $0x7b8] sm:$0xff]
    %v325 = vld [vmem:[%s3 + $0x7c0] sm:$0xff]
    %v326 = vld [vmem:[%s3 + $0x7c8] sm:$0xff]
    %v327 = vld [vmem:[%s3 + $0x7d0] sm:$0xff]
    %v328 = vld [vmem:[%s3 + $0x7d8] sm:$0xff]
    %v329 = vld [vmem:[%s3 + $0x7e0] sm:$0xff]
    %v330 = vld [vmem:[%s3 + $0x7e8] sm:$0xff]
    %v331 = vld [vmem:[%s3 + $0x7f0] sm:$0xff]
    %v332 = vld [vmem:[%s3 + $0x7f8] sm:$0xff]
    %v333 = vld [vmem:[%s3 + $0x800] sm:$0xff]
    %v334 = vld [vmem:[%s3 + $0x808] sm:$0xff]
    %v335 = vld [vmem:[%s3 + $0x810] sm:$0xff]
    %v336 = vld [vmem:[%s3 + $0x818] sm:$0xff]
    %v337 = vld [vmem:[%s3 + $0x820] sm:$0xff]
    %v338 = vld [vmem:[%s3 + $0x828] sm:$0xff]
    %v339 = vld [vmem:[%s3 + $0x830] sm:$0xff]
    %v340 = vld [vmem:[%s3 + $0x838] sm:$0xff]
    %v341 = vld [vmem:[%s3 + $0x840] sm:$0xff]
    %v342 = vld [vmem:[%s3 + $0x848] sm:$0xff]
    %v343 = vld [vmem:[%s3 + $0x850] sm:$0xff]
    %v344 = vld [vmem:[%s3 + $0x858] sm:$0xff]
    %v345 = vld [vmem:[%s3 + $0x860] sm:$0xff]
    %v346 = vld [vmem:[%s3 + $0x868] sm:$0xff]
    %v347 = vld [vmem:[%s3 + $0x870] sm:$0xff]
    %v348 = vld [vmem:[%s3 + $0x878] sm:$0xff]
    %v349 = vld [vmem:[%s3 + $0x880] sm:$0xff]
    %v350 = vld [vmem:[%s3 + $0x888] sm:$0xff]
    %v351 = vld [vmem:[%s3 + $0x890] sm:$0xff]
    %v352 = vld [vmem:[%s3 + $0x898] sm:$0xff]
    %v353 = vld [vmem:[%s3 + $0x8a0] sm:$0xff]
    %v354 = vld [vmem:[%s3 + $0x8a8] sm:$0xff]
    %v355 = vld [vmem:[%s3 + $0x8b0] sm:$0xff]
    %v356 = vld [vmem:[%s3 + $0x8b8] sm:$0xff]
    %v357 = vld [vmem:[%s3 + $0x8c0] sm:$0xff]
    %v358 = vld [vmem:[%s3 + $0x8c8] sm:$0xff]
    %v359 = vld [vmem:[%s3 + $0x8d0] sm:$0xff]
    %v360 = vld [vmem:[%s3 + $0x8d8] sm:$0xff]
    %v361 = vld [vmem:[%s3 + $0x8e0] sm:$0xff]
    %v362 = vld [vmem:[%s3 + $0x8e8] sm:$0xff]
    %v363 = vld [vmem:[%s3 + $0x8f0] sm:$0xff]
    %v364 = vld [vmem:[%s3 + $0x8f8] sm:$0xff]
    %v365 = vld [vmem:[%s3 + $0x900] sm:$0xff]
    %v366 = vld [vmem:[%s3 + $0x908] sm:$0xff]
    %v367 = vld [vmem:[%s3 + $0x910] sm:$0xff]
    %v368 = vld [vmem:[%s3 + $0x918] sm:$0xff]
    %v369 = vld [vmem:[%s3 + $0x920] sm:$0xff]
    %v370 = vld [vmem:[%s3 + $0x928] sm:$0xff]
    %v371 = vld [vmem:[%s3 + $0x930] sm:$0xff]
    %v372 = vld [vmem:[%s3 + $0x938] sm:$0xff]
    %v373 = vld [vmem:[%s3 + $0x940] sm:$0xff]
    %v374 = vld [vmem:[%s3 + $0x948] sm:$0xff]
    %v375 = vld [vmem:[%s3 + $0x950] sm:$0xff]
    %v376 = vld [vmem:[%s3 + $0x958] sm:$0xff]
    %v377 = vld [vmem:[%s3 + $0x960] sm:$0xff]
    %v378 = vld [vmem:[%s3 + $0x968] sm:$0xff]
    %v379 = vld [vmem:[%s3 + $0x970] sm:$0xff]
    %v380 = vld [vmem:[%s3 + $0x978] sm:$0xff]
    %v381 = vld [vmem:[%s3 + $0x980] sm:$0xff]
    %v382 = vld [vmem:[%s3 + $0x988] sm:$0xff]
    %v383 = vld [vmem:[%s3 + $0x990] sm:$0xff]
    %v384 = vld [vmem:[%s3 + $0x998] sm:$0xff]
    %v385 = vld [vmem:[%s3 + $0x9a0] sm:$0xff]
    %v386 = vld [vmem:[%s3 + $0x9a8] sm:$0xff]
    %v387 = vld [vmem:[%s3 + $0x9b0] sm:$0xff]
    %v388 = vld [vmem:[%s3 + $0x9b8] sm:$0xff]
    %v389 = vld [vmem:[%s3 + $0x9c0] sm:$0xff]
    %v390 = vld [vmem:[%s3 + $0x9c8] sm:$0xff]
    %v391 = vld [vmem:[%s3 + $0x9d0] sm:$0xff]
    %v392 = vld [vmem:[%s3 + $0x9d8] sm:$0xff]
    %v393 = vld [vmem:[%s3 + $0x9e0] sm:$0xff]
    %v394 = vld [vmem:[%s3 + $0x9e8] sm:$0xff]
    %v395 = vld [vmem:[%s3 + $0x9f0] sm:$0xff]
    %v396 = vld [vmem:[%s3 + $0x9f8] sm:$0xff]
    %v397 = vld [vmem:[%s2] sm:$0x3]
    %v398 = vld [vmem:[%s4] sm:$0x3]
    %v399 = vld [vmem:[%s6] sm:$0x1]
    %v400 = vld [vmem:[%s0] sm:$0x3]
    %v401 = vld [vmem:[%s0 + $0x2] sm:$0x3]
    %v402 = vld [vmem:[%s0 + $0x4] sm:$0x3]
    %v403 = vld [vmem:[%s0 + $0x6] sm:$0x3]
    %v404 = vld [vmem:[%s0 + $0x8] sm:$0x3]
    %v405 = vld [vmem:[%s0 + $0xa] sm:$0x3]
    %v406 = vld [vmem:[%s0 + $0xc] sm:$0x3]
    %v414 = vcombine.low %v400, %v401
    %v415 = vcombine.low %v402, %v403
    %v416 = vcombine.low %v404, %v405
    %v418 = vunpack.c.l.s4 1966171168
    %v419 = vunpack.c.0.s8 %v418
    %v420 = vlaneseq
    %v421 = vshrl.u32 %v420, 7
    %v422 = vsub.s32 %v419, %v421
    %v423 = vrot.slane %v414, %v422
    %v425 = vunpack.c.l.s4 1966171168
    %v426 = vunpack.c.0.s8 %v425
    %v427 = vlaneseq
    %v428 = vshrl.u32 %v427, 7
    %v429 = vsub.s32 %v426, %v428
    %v430 = vrot.slane %v415, %v429
    %v432 = vunpack.c.l.s4 1966171168
    %v433 = vunpack.c.0.s8 %v432
    %v434 = vlaneseq
    %v435 = vshrl.u32 %v434, 7
    %v436 = vsub.s32 %v433, %v435
    %v437 = vrot.slane %v416, %v436
    %v439 = vunpack.c.l.s4 1966171168
    %v440 = vunpack.c.0.s8 %v439
    %v441 = vlaneseq
    %v442 = vshrl.u32 %v441, 7
    %v443 = vsub.s32 %v440, %v442
    %v444 = vrot.slane %v406, %v443
    %v445 = vcombine.low %v423, %v430
    %v446 = vcombine.high %v423, %v430
    %v447 = vcombine.low %v437, %v444
    %v448 = vcombine.high %v437, %v444
    %v450 = vunpack.c.l.s4 1966171168
    %v451 = vunpack.c.0.s8 %v450
    %v452 = vlaneseq
    %v453 = vshrl.u32 %v452, 7
    %v454 = vsub.s32 %v451, %v453
    %v455 = vrot.slane %v445, %v454
    %v457 = vunpack.c.l.s4 1966171168
    %v458 = vunpack.c.0.s8 %v457
    %v459 = vlaneseq
    %v460 = vshrl.u32 %v459, 7
    %v461 = vsub.s32 %v458, %v460
    %v462 = vrot.slane %v446, %v461
    %v464 = vunpack.c.l.s4 1966171168
    %v465 = vunpack.c.0.s8 %v464
    %v466 = vlaneseq
    %v467 = vshrl.u32 %v466, 7
    %v468 = vsub.s32 %v465, %v467
    %v469 = vrot.slane %v447, %v468
    %v471 = vunpack.c.l.s4 1966171168
    %v472 = vunpack.c.0.s8 %v471
    %v473 = vlaneseq
    %v474 = vshrl.u32 %v473, 7
    %v475 = vsub.s32 %v472, %v474
    %v476 = vrot.slane %v448, %v475
    %v477 = vcombine.low %v455, %v469
    %v478 = vcombine.low %v462, %v476
    %v520 = vunpack.c.l.b16 %v37
    %v521 = vunpack.c.h.b16 %v37
    %v522 = vunpack.c.l.b16 %v38
    %v523 = vunpack.c.h.b16 %v38
    %v524 = vunpack.c.l.b16 %v39
    %v525 = vunpack.c.h.b16 %v39
    %v526 = vunpack.c.l.b16 %v40
    %v527 = vunpack.c.h.b16 %v40
    %v528 = vunpack.c.l.b16 %v41
    %v529 = vunpack.c.h.b16 %v41
    %v530 = vunpack.c.l.b16 %v42
    %v531 = vunpack.c.h.b16 %v42
    %v532 = vunpack.c.l.b16 %v43
    %v533 = vunpack.c.h.b16 %v43
    %v534 = vunpack.c.l.b16 %v44
    %v535 = vunpack.c.h.b16 %v44
    %v536 = vunpack.c.l.b16 %v45
    %v537 = vunpack.c.h.b16 %v45
    %v538 = vunpack.c.l.b16 %v46
    %v539 = vunpack.c.h.b16 %v46
    %v540 = vunpack.c.l.b16 %v47
    %v541 = vunpack.c.h.b16 %v47
    %v542 = vunpack.c.l.b16 %v48
    %v543 = vunpack.c.h.b16 %v48
    %v544 = vunpack.c.l.b16 %v49
    %v545 = vunpack.c.h.b16 %v49
    %v546 = vunpack.c.l.b16 %v50
    %v547 = vunpack.c.h.b16 %v50
    %v548 = vunpack.c.l.b16 %v51
    %v549 = vunpack.c.h.b16 %v51
    %v550 = vunpack.c.l.b16 %v52
    %v551 = vunpack.c.h.b16 %v52
    %v552 = vunpack.c.l.b16 %v53
    %v553 = vunpack.c.h.b16 %v53
    %v554 = vunpack.c.l.b16 %v54
    %v555 = vunpack.c.h.b16 %v54
    %v556 = vunpack.c.l.b16 %v55
    %v557 = vunpack.c.h.b16 %v55
    %v558 = vunpack.c.l.b16 %v56
    %v559 = vunpack.c.h.b16 %v56
    %v560 = vunpack.c.l.b16 %v57
    %v561 = vunpack.c.h.b16 %v57
    %v562 = vunpack.c.l.b16 %v58
    %v563 = vunpack.c.h.b16 %v58
    %v564 = vunpack.c.l.b16 %v59
    %v565 = vunpack.c.h.b16 %v59
    %v566 = vunpack.c.l.b16 %v60
    %v567 = vunpack.c.h.b16 %v60
    %v568 = vunpack.c.l.b16 %v61
    %v569 = vunpack.c.h.b16 %v61
    %v570 = vunpack.c.l.b16 %v62
    %v571 = vunpack.c.h.b16 %v62
    %v572 = vunpack.c.l.b16 %v63
    %v573 = vunpack.c.h.b16 %v63
    %v574 = vunpack.c.l.b16 %v64
    %v575 = vunpack.c.h.b16 %v64
    %v576 = vunpack.c.l.b16 %v65
    %v577 = vunpack.c.h.b16 %v65
    %v578 = vunpack.c.l.b16 %v66
    %v579 = vunpack.c.h.b16 %v66
    %v580 = vunpack.c.l.b16 %v67
    %v581 = vunpack.c.h.b16 %v67
    %v582 = vunpack.c.l.b16 %v68
    %v583 = vunpack.c.h.b16 %v68
    %v584 = vunpack.c.l.b16 %v69
    %v585 = vunpack.c.h.b16 %v69
    %v586 = vunpack.c.l.b16 %v70
    %v587 = vunpack.c.h.b16 %v70
    %v588 = vunpack.c.l.b16 %v71
    %v589 = vunpack.c.h.b16 %v71
    %v590 = vunpack.c.l.b16 %v72
    %v591 = vunpack.c.h.b16 %v72
    %v592 = vunpack.c.l.b16 %v73
    %v593 = vunpack.c.h.b16 %v73
    %v594 = vunpack.c.l.b16 %v74
    %v595 = vunpack.c.h.b16 %v74
    %v596 = vunpack.c.l.b16 %v75
    %v597 = vunpack.c.h.b16 %v75
    %v598 = vunpack.c.l.b16 %v76
    %v599 = vunpack.c.h.b16 %v76
    %v600 = vpack.c.b16 %v524, %v520
    %v601 = vpack.c.b16 %v525, %v521
    %v602 = vpack.c.b16 %v526, %v522
    %v603 = vpack.c.b16 %v527, %v523
    %v604 = vpack.c.b16 %v532, %v528
    %v605 = vpack.c.b16 %v533, %v529
    %v606 = vpack.c.b16 %v534, %v530
    %v607 = vpack.c.b16 %v535, %v531
    %v608 = vpack.c.b16 %v540, %v536
    %v609 = vpack.c.b16 %v541, %v537
    %v610 = vpack.c.b16 %v542, %v538
    %v611 = vpack.c.b16 %v543, %v539
    %v612 = vpack.c.b16 %v548, %v544
    %v613 = vpack.c.b16 %v549, %v545
    %v614 = vpack.c.b16 %v550, %v546
    %v615 = vpack.c.b16 %v551, %v547
    %v616 = vpack.c.b16 %v556, %v552
    %v617 = vpack.c.b16 %v557, %v553
    %v618 = vpack.c.b16 %v558, %v554
    %v619 = vpack.c.b16 %v559, %v555
    %v620 = vpack.c.b16 %v564, %v560
    %v621 = vpack.c.b16 %v565, %v561
    %v622 = vpack.c.b16 %v566, %v562
    %v623 = vpack.c.b16 %v567, %v563
    %v624 = vpack.c.b16 %v572, %v568
    %v625 = vpack.c.b16 %v573, %v569
    %v626 = vpack.c.b16 %v574, %v570
    %v627 = vpack.c.b16 %v575, %v571
    %v628 = vpack.c.b16 %v580, %v576
    %v629 = vpack.c.b16 %v581, %v577
    %v630 = vpack.c.b16 %v582, %v578
    %v631 = vpack.c.b16 %v583, %v579
    %v632 = vpack.c.b16 %v588, %v584
    %v633 = vpack.c.b16 %v589, %v585
    %v634 = vpack.c.b16 %v590, %v586
    %v635 = vpack.c.b16 %v591, %v587
    %v636 = vpack.c.b16 %v596, %v592
    %v637 = vpack.c.b16 %v597, %v593
    %v638 = vpack.c.b16 %v598, %v594
    %v639 = vpack.c.b16 %v599, %v595
    %vm680 = vcmask 261120
    %v682 = vsel %vm680, %v478, 0
    %684 = vmatprep.subr.bf16.mxu0 %v629
    %685 = vmatpush1.bf16.msra.mxu0 %v628
    %686 = vmatprep.subr.bf16.mxu0 %v625
    %687 = vmatpush1.bf16.msra.mxu0 %v624
    %688 = vmatprep.subr.bf16.mxu0 %v621
    %689 = vmatpush1.bf16.msra.mxu0 %v620
    %690 = vmatprep.subr.bf16.mxu0 %v617
    %691 = vmatpush1.bf16.msra.mxu0 %v616
    %692 = vmatprep.subr.bf16.mxu0 %v613
    %693 = vmatpush1.bf16.msra.mxu0 %v612
    %694 = vmatprep.subr.bf16.mxu0 %v609
    %695 = vmatpush1.bf16.msra.mxu0 %v608
    %696 = vmatprep.subr.bf16.mxu0 %v605
    %697 = vmatpush1.bf16.msra.mxu0 %v604
    %698 = vmatprep.subr.bf16.mxu0 %v601
    %699 = vmatpush1.bf16.msra.mxu0 %v600
    %700 = vmatprep.subr.bf16.mxu0 0
    %701 = vmatpush2.bf16.msra.mxu0 0
    %702 = vmatprep.subr.bf16.mxu0 0
    %703 = vmatpush2.bf16.msra.mxu0 0
    %704 = vmatprep.subr.bf16.mxu0 0
    %705 = vmatpush2.bf16.msra.mxu0 0
    %706 = vmatprep.subr.bf16.mxu0 0
    %707 = vmatpush2.bf16.msra.mxu0 0
    %708 = vmatprep.subr.bf16.mxu0 0
    %709 = vmatpush2.bf16.msra.mxu0 0
    %710 = vmatprep.subr.bf16.mxu0 0
    %711 = vmatpush2.bf16.msra.mxu0 0
    %712 = vmatprep.subr.bf16.mxu0 %v637
    %713 = vmatpush2.bf16.msra.mxu0 %v636
    %714 = vmatprep.subr.bf16.mxu0 %v633
    %715 = vmatpush2.bf16.msra.mxu0 %v632
    %716 = vmatprep.mubr.bf16.mxu0 %v682
    %717 = vmatmul.mubr.bf16.gmra.mxu0 %v477
    %v718 = vpop.f32.mrf.mxu0
    %v719 = vadd.f32 0.0, %v718
    %v720 = vpop.f32.mrf.mxu0
    %v721 = vadd.f32 0.0, %v720
    %v722 = vpop.f32.mrf.mxu0
    %v723 = vadd.f32 0.0, %v722
    %v724 = vpop.f32.mrf.mxu0
    %v725 = vadd.f32 0.0, %v724
    %726 = vdwg.mxu0
    %727 = vmatprep.subr.bf16.mxu0 %v631
    %728 = vmatpush1.bf16.msra.mxu0 %v630
    %729 = vmatprep.subr.bf16.mxu0 %v627
    %730 = vmatpush1.bf16.msra.mxu0 %v626
    %731 = vmatprep.subr.bf16.mxu0 %v623
    %732 = vmatpush1.bf16.msra.mxu0 %v622
    %733 = vmatprep.subr.bf16.mxu0 %v619
    %734 = vmatpush1.bf16.msra.mxu0 %v618
    %735 = vmatprep.subr.bf16.mxu0 %v615
    %736 = vmatpush1.bf16.msra.mxu0 %v614
    %737 = vmatprep.subr.bf16.mxu0 %v611
    %738 = vmatpush1.bf16.msra.mxu0 %v610
    %739 = vmatprep.subr.bf16.mxu0 %v607
    %740 = vmatpush1.bf16.msra.mxu0 %v606
    %741 = vmatprep.subr.bf16.mxu0 %v603
    %742 = vmatpush1.bf16.msra.mxu0 %v602
    %743 = vmatprep.subr.bf16.mxu0 0
    %744 = vmatpush2.bf16.msra.mxu0 0
    %745 = vmatprep.subr.bf16.mxu0 0
    %746 = vmatpush2.bf16.msra.mxu0 0
    %747 = vmatprep.subr.bf16.mxu0 0
    %748 = vmatpush2.bf16.msra.mxu0 0
    %749 = vmatprep.subr.bf16.mxu0 0
    %750 = vmatpush2.bf16.msra.mxu0 0
    %751 = vmatprep.subr.bf16.mxu0 0
    %752 = vmatpush2.bf16.msra.mxu0 0
    %753 = vmatprep.subr.bf16.mxu0 0
    %754 = vmatpush2.bf16.msra.mxu0 0
    %755 = vmatprep.subr.bf16.mxu0 %v639
    %756 = vmatpush2.bf16.msra.mxu0 %v638
    %757 = vmatprep.subr.bf16.mxu0 %v635
    %758 = vmatpush2.bf16.msra.mxu0 %v634
    %759 = vmatprep.mubr.bf16.mxu0 %v682
    %760 = vmatmul.mubr.bf16.gmra.mxu0 %v477
    %v761 = vpop.f32.mrf.mxu0
    %v762 = vadd.f32 0.0, %v761
    %v763 = vpop.f32.mrf.mxu0
    %v764 = vadd.f32 0.0, %v763
    %v765 = vpop.f32.mrf.mxu0
    %v766 = vadd.f32 0.0, %v765
    %v767 = vpop.f32.mrf.mxu0
    %v768 = vadd.f32 0.0, %v767
    %769 = vdwg.mxu0
    %s770 = scalar_lea.vmem %s0, 14
    %v771 = vld [vmem:[%s770] sm:$0x3]
    %v772 = vld [vmem:[%s770 + $0x2] sm:$0x3]
    %v773 = vld [vmem:[%s770 + $0x4] sm:$0x3]
    %v774 = vld [vmem:[%s770 + $0x6] sm:$0x3]
    %v775 = vld [vmem:[%s770 + $0x8] sm:$0x3]
    %v776 = vld [vmem:[%s770 + $0xa] sm:$0x3]
    %v777 = vld [vmem:[%s770 + $0xc] sm:$0x3]
    %v785 = vcombine.low %v771, %v772
    %v786 = vcombine.low %v773, %v774
    %v787 = vcombine.low %v775, %v776
    %v789 = vunpack.c.l.s4 1966171168
    %v790 = vunpack.c.0.s8 %v789
    %v791 = vlaneseq
    %v792 = vshrl.u32 %v791, 7
    %v793 = vsub.s32 %v790, %v792
    %v794 = vrot.slane %v785, %v793
    %v796 = vunpack.c.l.s4 1966171168
    %v797 = vunpack.c.0.s8 %v796
    %v798 = vlaneseq
    %v799 = vshrl.u32 %v798, 7
    %v800 = vsub.s32 %v797, %v799
    %v801 = vrot.slane %v786, %v800
    %v803 = vunpack.c.l.s4 1966171168
    %v804 = vunpack.c.0.s8 %v803
    %v805 = vlaneseq
    %v806 = vshrl.u32 %v805, 7
    %v807 = vsub.s32 %v804, %v806
    %v808 = vrot.slane %v787, %v807
    %v810 = vunpack.c.l.s4 1966171168
    %v811 = vunpack.c.0.s8 %v810
    %v812 = vlaneseq
    %v813 = vshrl.u32 %v812, 7
    %v814 = vsub.s32 %v811, %v813
    %v815 = vrot.slane %v777, %v814
    %v816 = vcombine.low %v794, %v801
    %v817 = vcombine.high %v794, %v801
    %v818 = vcombine.low %v808, %v815
    %v819 = vcombine.high %v808, %v815
    %v821 = vunpack.c.l.s4 1966171168
    %v822 = vunpack.c.0.s8 %v821
    %v823 = vlaneseq
    %v824 = vshrl.u32 %v823, 7
    %v825 = vsub.s32 %v822, %v824
    %v826 = vrot.slane %v816, %v825
    %v828 = vunpack.c.l.s4 1966171168
    %v829 = vunpack.c.0.s8 %v828
    %v830 = vlaneseq
    %v831 = vshrl.u32 %v830, 7
    %v832 = vsub.s32 %v829, %v831
    %v833 = vrot.slane %v817, %v832
    %v835 = vunpack.c.l.s4 1966171168
    %v836 = vunpack.c.0.s8 %v835
    %v837 = vlaneseq
    %v838 = vshrl.u32 %v837, 7
    %v839 = vsub.s32 %v836, %v838
    %v840 = vrot.slane %v818, %v839
    %v842 = vunpack.c.l.s4 1966171168
    %v843 = vunpack.c.0.s8 %v842
    %v844 = vlaneseq
    %v845 = vshrl.u32 %v844, 7
    %v846 = vsub.s32 %v843, %v845
    %v847 = vrot.slane %v819, %v846
    %v848 = vcombine.low %v826, %v840
    %v849 = vcombine.low %v833, %v847
    %v852 = vsel %vm680, %v849, 0
    %854 = vmatprep.subr.bf16.mxu0 %v629
    %855 = vmatpush1.bf16.msra.mxu0 %v628
    %856 = vmatprep.subr.bf16.mxu0 %v625
    %857 = vmatpush1.bf16.msra.mxu0 %v624
    %858 = vmatprep.subr.bf16.mxu0 %v621
    %859 = vmatpush1.bf16.msra.mxu0 %v620
    %860 = vmatprep.subr.bf16.mxu0 %v617
    %861 = vmatpush1.bf16.msra.mxu0 %v616
    %862 = vmatprep.subr.bf16.mxu0 %v613
    %863 = vmatpush1.bf16.msra.mxu0 %v612
    %864 = vmatprep.subr.bf16.mxu0 %v609
    %865 = vmatpush1.bf16.msra.mxu0 %v608
    %866 = vmatprep.subr.bf16.mxu0 %v605
    %867 = vmatpush1.bf16.msra.mxu0 %v604
    %868 = vmatprep.subr.bf16.mxu0 %v601
    %869 = vmatpush1.bf16.msra.mxu0 %v600
    %870 = vmatprep.subr.bf16.mxu0 0
    %871 = vmatpush2.bf16.msra.mxu0 0
    %872 = vmatprep.subr.bf16.mxu0 0
    %873 = vmatpush2.bf16.msra.mxu0 0
    %874 = vmatprep.subr.bf16.mxu0 0
    %875 = vmatpush2.bf16.msra.mxu0 0
    %876 = vmatprep.subr.bf16.mxu0 0
    %877 = vmatpush2.bf16.msra.mxu0 0
    %878 = vmatprep.subr.bf16.mxu0 0
    %879 = vmatpush2.bf16.msra.mxu0 0
    %880 = vmatprep.subr.bf16.mxu0 0
    %881 = vmatpush2.bf16.msra.mxu0 0
    %882 = vmatprep.subr.bf16.mxu0 %v637
    %883 = vmatpush2.bf16.msra.mxu0 %v636
    %884 = vmatprep.subr.bf16.mxu0 %v633
    %885 = vmatpush2.bf16.msra.mxu0 %v632
    %886 = vmatprep.mubr.bf16.mxu0 %v852
    %887 = vmatmul.mubr.bf16.gmra.mxu0 %v848
    %v888 = vpop.f32.mrf.mxu0
    %v889 = vadd.f32 0.0, %v888
    %v890 = vpop.f32.mrf.mxu0
    %v891 = vadd.f32 0.0, %v890
    %v892 = vpop.f32.mrf.mxu0
    %v893 = vadd.f32 0.0, %v892
    %v894 = vpop.f32.mrf.mxu0
    %v895 = vadd.f32 0.0, %v894
    %896 = vdwg.mxu0
    %897 = vmatprep.subr.bf16.mxu0 %v631
    %898 = vmatpush1.bf16.msra.mxu0 %v630
    %899 = vmatprep.subr.bf16.mxu0 %v627
    %900 = vmatpush1.bf16.msra.mxu0 %v626
    %901 = vmatprep.subr.bf16.mxu0 %v623
    %902 = vmatpush1.bf16.msra.mxu0 %v622
    %903 = vmatprep.subr.bf16.mxu0 %v619
    %904 = vmatpush1.bf16.msra.mxu0 %v618
    %905 = vmatprep.subr.bf16.mxu0 %v615
    %906 = vmatpush1.bf16.msra.mxu0 %v614
    %907 = vmatprep.subr.bf16.mxu0 %v611
    %908 = vmatpush1.bf16.msra.mxu0 %v610
    %909 = vmatprep.subr.bf16.mxu0 %v607
    %910 = vmatpush1.bf16.msra.mxu0 %v606
    %911 = vmatprep.subr.bf16.mxu0 %v603
    %912 = vmatpush1.bf16.msra.mxu0 %v602
    %913 = vmatprep.subr.bf16.mxu0 0
    %914 = vmatpush2.bf16.msra.mxu0 0
    %915 = vmatprep.subr.bf16.mxu0 0
    %916 = vmatpush2.bf16.msra.mxu0 0
    %917 = vmatprep.subr.bf16.mxu0 0
    %918 = vmatpush2.bf16.msra.mxu0 0
    %919 = vmatprep.subr.bf16.mxu0 0
    %920 = vmatpush2.bf16.msra.mxu0 0
    %921 = vmatprep.subr.bf16.mxu0 0
    %922 = vmatpush2.bf16.msra.mxu0 0
    %923 = vmatprep.subr.bf16.mxu0 0
    %924 = vmatpush2.bf16.msra.mxu0 0
    %925 = vmatprep.subr.bf16.mxu0 %v639
    %926 = vmatpush2.bf16.msra.mxu0 %v638
    %927 = vmatprep.subr.bf16.mxu0 %v635
    %928 = vmatpush2.bf16.msra.mxu0 %v634
    %929 = vmatprep.mubr.bf16.mxu0 %v852
    %930 = vmatmul.mubr.bf16.gmra.mxu0 %v848
    %v931 = vpop.f32.mrf.mxu0
    %v932 = vadd.f32 0.0, %v931
    %v933 = vpop.f32.mrf.mxu0
    %v934 = vadd.f32 0.0, %v933
    %v935 = vpop.f32.mrf.mxu0
    %v936 = vadd.f32 0.0, %v935
    %v937 = vpop.f32.mrf.mxu0
    %v938 = vadd.f32 0.0, %v937
    %939 = vdwg.mxu0
    %v940 = vmax.f32 %v719, %v762
    %v941 = vmax.f32 %v721, %v764
    %v942 = vmax.f32 %v723, %v766
    %v943 = vmax.f32 %v725, %v768
    %v944 = vmax.f32 %v889, %v932
    %v945 = vmax.f32 %v891, %v934
    %v946 = vmax.f32 %v893, %v936
    %v947 = vmax.f32 %v895, %v938
    %v948 = vmax.f32 %v940, %v944
    %v949 = vmax.f32 %v941, %v945
    %v950 = vmax.f32 %v942, %v946
    %v951 = vmax.f32 %v943, %v947
    %v953 = vlaneseq
    %v954 = vshrl.u32 %v953, 7
    %v955 = vsub.s32 0, %v954
    %v956 = vrot.slane %v397, %v955
    %v957 = vlaneseq
    %v958 = vshrl.u32 %v957, 7
    %v959 = vsub.s32 1, %v958
    %v960 = vrot.slane %v397, %v959
    %v963 = vadd.f32 %v948, %v956
    %v964 = vadd.f32 %v949, %v960
    %v965 = vadd.f32 %v950, %v956
    %v966 = vadd.f32 %v951, %v960
    %v967 = vmax.f32 %v963, 0.0
    %v968 = vmax.f32 %v964, 0.0
    %v969 = vmax.f32 %v965, 0.0
    %v970 = vmax.f32 %v966, 0.0
    %v971 = vpack.c.bf16 %v969, %v967
    %v972 = vpack.c.bf16 %v970, %v968
    %v975 = vcombine.low %v971, %v972
    %v976 = vcombine.high %v971, %v972
    %v978 = vunpack.c.l.s4 1966171168
    %v979 = vunpack.c.0.s8 %v978
    %v980 = vlaneseq
    %v981 = vshrl.u32 %v980, 7
    %v982 = vsub.s32 %v979, %v981
    %v983 = vrot.slane %v975, %v982
    %v985 = vunpack.c.l.s4 1966171168
    %v986 = vunpack.c.0.s8 %v985
    %v987 = vlaneseq
    %v988 = vshrl.u32 %v987, 7
    %v989 = vsub.s32 %v986, %v988
    %v990 = vrot.slane %v976, %v989
    %v991 = vcombine.high %v983, %v983
    %v992 = vcombine.high %v990, %v990
    %v994 = vunpack.c.l.s4 1966171168
    %v995 = vunpack.c.0.s8 %v994
    %v996 = vlaneseq
    %v997 = vshrl.u32 %v996, 7
    %v998 = vsub.s32 %v995, %v997
    %v999 = vrot.slane %v983, %v998
    %v1001 = vunpack.c.l.s4 1966171168
    %v1002 = vunpack.c.0.s8 %v1001
    %v1003 = vlaneseq
    %v1004 = vshrl.u32 %v1003, 7
    %v1005 = vsub.s32 %v1002, %v1004
    %v1006 = vrot.slane %v990, %v1005
    %v1008 = vunpack.c.l.s4 1966171168
    %v1009 = vunpack.c.0.s8 %v1008
    %v1010 = vlaneseq
    %v1011 = vshrl.u32 %v1010, 7
    %v1012 = vsub.s32 %v1009, %v1011
    %v1013 = vrot.slane %v991, %v1012
    %v1015 = vunpack.c.l.s4 1966171168
    %v1016 = vunpack.c.0.s8 %v1015
    %v1017 = vlaneseq
    %v1018 = vshrl.u32 %v1017, 7
    %v1019 = vsub.s32 %v1016, %v1018
    %v1020 = vrot.slane %v992, %v1019
    %v1021 = vcombine.high %v999, %v999
    %v1022 = vcombine.high %v1006, %v1006
    %v1023 = vcombine.high %v1013, %v1013
    %s1031 = scalar_lea.vmem [#allocation2], 2
    %1032 = vst [vmem:[%s1031] sm:$0x3] %v999
    %1033 = vst [vmem:[%s1031 + $0x2] sm:$0x3] %v1013
    %1034 = vst [vmem:[%s1031 + $0x4] sm:$0x3] %v1021
    %1035 = vst [vmem:[%s1031 + $0x6] sm:$0x3] %v1023
    %1036 = vst [vmem:[%s1031 + $0x8] sm:$0x3] %v1006
    %1037 = vst [vmem:[%s1031 + $0xa] sm:$0x3] %v1020
    %1038 = vst [vmem:[%s1031 + $0xc] sm:$0x3] %v1022
    %s1039 = scalar_lea.vmem %s0, 28
    %v1040 = vld [vmem:[%s1039] sm:$0x3]
    %v1041 = vld [vmem:[%s1039 + $0x2] sm:$0x3]
    %v1042 = vld [vmem:[%s1039 + $0x4] sm:$0x3]
    %v1043 = vld [vmem:[%s1039 + $0x6] sm:$0x3]
    %v1044 = vld [vmem:[%s1039 + $0x8] sm:$0x3]
    %v1045 = vld [vmem:[%s1039 + $0xa] sm:$0x3]
    %v1046 = vld [vmem:[%s1039 + $0xc] sm:$0x3]
    %v1054 = vcombine.low %v1040, %v1041
    %v1055 = vcombine.low %v1042, %v1043
    %v1056 = vcombine.low %v1044, %v1045
    %v1058 = vunpack.c.l.s4 1966171168
    %v1059 = vunpack.c.0.s8 %v1058
    %v1060 = vlaneseq
    %v1061 = vshrl.u32 %v1060, 7
    %v1062 = vsub.s32 %v1059, %v1061
    %v1063 = vrot.slane %v1054, %v1062
    %v1065 = vunpack.c.l.s4 1966171168
    %v1066 = vunpack.c.0.s8 %v1065
    %v1067 = vlaneseq
    %v1068 = vshrl.u32 %v1067, 7
    %v1069 = vsub.s32 %v1066, %v1068
    %v1070 = vrot.slane %v1055, %v1069
    %v1072 = vunpack.c.l.s4 1966171168
    %v1073 = vunpack.c.0.s8 %v1072
    %v1074 = vlaneseq
    %v1075 = vshrl.u32 %v1074, 7
    %v1076 = vsub.s32 %v1073, %v1075
    %v1077 = vrot.slane %v1056, %v1076
    %v1079 = vunpack.c.l.s4 1966171168
    %v1080 = vunpack.c.0.s8 %v1079
    %v1081 = vlaneseq
    %v1082 = vshrl.u32 %v1081, 7
    %v1083 = vsub.s32 %v1080, %v1082
    %v1084 = vrot.slane %v1046, %v1083
    %v1085 = vcombine.low %v1063, %v1070
    %v1086 = vcombine.high %v1063, %v1070
    %v1087 = vcombine.low %v1077, %v1084
    %v1088 = vcombine.high %v1077, %v1084
    %v1090 = vunpack.c.l.s4 1966171168
    %v1091 = vunpack.c.0.s8 %v1090
    %v1092 = vlaneseq
    %v1093 = vshrl.u32 %v1092, 7
    %v1094 = vsub.s32 %v1091, %v1093
    %v1095 = vrot.slane %v1085, %v1094
    %v1097 = vunpack.c.l.s4 1966171168
    %v1098 = vunpack.c.0.s8 %v1097
    %v1099 = vlaneseq
    %v1100 = vshrl.u32 %v1099, 7
    %v1101 = vsub.s32 %v1098, %v1100
    %v1102 = vrot.slane %v1086, %v1101
    %v1104 = vunpack.c.l.s4 1966171168
    %v1105 = vunpack.c.0.s8 %v1104
    %v1106 = vlaneseq
    %v1107 = vshrl.u32 %v1106, 7
    %v1108 = vsub.s32 %v1105, %v1107
    %v1109 = vrot.slane %v1087, %v1108
    %v1111 = vunpack.c.l.s4 1966171168
    %v1112 = vunpack.c.0.s8 %v1111
    %v1113 = vlaneseq
    %v1114 = vshrl.u32 %v1113, 7
    %v1115 = vsub.s32 %v1112, %v1114
    %v1116 = vrot.slane %v1088, %v1115
    %v1117 = vcombine.low %v1095, %v1109
    %v1118 = vcombine.low %v1102, %v1116
    %v1121 = vsel %vm680, %v1118, 0
    %1123 = vmatprep.subr.bf16.mxu0 %v629
    %1124 = vmatpush1.bf16.msra.mxu0 %v628
    %1125 = vmatprep.subr.bf16.mxu0 %v625
    %1126 = vmatpush1.bf16.msra.mxu0 %v624
    %1127 = vmatprep.subr.bf16.mxu0 %v621
    %1128 = vmatpush1.bf16.msra.mxu0 %v620
    %1129 = vmatprep.subr.bf16.mxu0 %v617
    %1130 = vmatpush1.bf16.msra.mxu0 %v616
    %1131 = vmatprep.subr.bf16.mxu0 %v613
    %1132 = vmatpush1.bf16.msra.mxu0 %v612
    %1133 = vmatprep.subr.bf16.mxu0 %v609
    %1134 = vmatpush1.bf16.msra.mxu0 %v608
    %1135 = vmatprep.subr.bf16.mxu0 %v605
    %1136 = vmatpush1.bf16.msra.mxu0 %v604
    %1137 = vmatprep.subr.bf16.mxu0 %v601
    %1138 = vmatpush1.bf16.msra.mxu0 %v600
    %1139 = vmatprep.subr.bf16.mxu0 0
    %1140 = vmatpush2.bf16.msra.mxu0 0
    %1141 = vmatprep.subr.bf16.mxu0 0
    %1142 = vmatpush2.bf16.msra.mxu0 0
    %1143 = vmatprep.subr.bf16.mxu0 0
    %1144 = vmatpush2.bf16.msra.mxu0 0
    %1145 = vmatprep.subr.bf16.mxu0 0
    %1146 = vmatpush2.bf16.msra.mxu0 0
    %1147 = vmatprep.subr.bf16.mxu0 0
    %1148 = vmatpush2.bf16.msra.mxu0 0
    %1149 = vmatprep.subr.bf16.mxu0 0
    %1150 = vmatpush2.bf16.msra.mxu0 0
    %1151 = vmatprep.subr.bf16.mxu0 %v637
    %1152 = vmatpush2.bf16.msra.mxu0 %v636
    %1153 = vmatprep.subr.bf16.mxu0 %v633
    %1154 = vmatpush2.bf16.msra.mxu0 %v632
    %1155 = vmatprep.mubr.bf16.mxu0 %v1121
    %1156 = vmatmul.mubr.bf16.gmra.mxu0 %v1117
    %v1157 = vpop.f32.mrf.mxu0
    %v1158 = vadd.f32 0.0, %v1157
    %v1159 = vpop.f32.mrf.mxu0
    %v1160 = vadd.f32 0.0, %v1159
    %v1161 = vpop.f32.mrf.mxu0
    %v1162 = vadd.f32 0.0, %v1161
    %v1163 = vpop.f32.mrf.mxu0
    %v1164 = vadd.f32 0.0, %v1163
    %1165 = vdwg.mxu0
    %1166 = vmatprep.subr.bf16.mxu0 %v631
    %1167 = vmatpush1.bf16.msra.mxu0 %v630
    %1168 = vmatprep.subr.bf16.mxu0 %v627
    %1169 = vmatpush1.bf16.msra.mxu0 %v626
    %1170 = vmatprep.subr.bf16.mxu0 %v623
    %1171 = vmatpush1.bf16.msra.mxu0 %v622
    %1172 = vmatprep.subr.bf16.mxu0 %v619
    %1173 = vmatpush1.bf16.msra.mxu0 %v618
    %1174 = vmatprep.subr.bf16.mxu0 %v615
    %1175 = vmatpush1.bf16.msra.mxu0 %v614
    %1176 = vmatprep.subr.bf16.mxu0 %v611
    %1177 = vmatpush1.bf16.msra.mxu0 %v610
    %1178 = vmatprep.subr.bf16.mxu0 %v607
    %1179 = vmatpush1.bf16.msra.mxu0 %v606
    %1180 = vmatprep.subr.bf16.mxu0 %v603
    %1181 = vmatpush1.bf16.msra.mxu0 %v602
    %1182 = vmatprep.subr.bf16.mxu0 0
    %1183 = vmatpush2.bf16.msra.mxu0 0
    %1184 = vmatprep.subr.bf16.mxu0 0
    %1185 = vmatpush2.bf16.msra.mxu0 0
    %1186 = vmatprep.subr.bf16.mxu0 0
    %1187 = vmatpush2.bf16.msra.mxu0 0
    %1188 = vmatprep.subr.bf16.mxu0 0
    %1189 = vmatpush2.bf16.msra.mxu0 0
    %1190 = vmatprep.subr.bf16.mxu0 0
    %1191 = vmatpush2.bf16.msra.mxu0 0
    %1192 = vmatprep.subr.bf16.mxu0 0
    %1193 = vmatpush2.bf16.msra.mxu0 0
    %1194 = vmatprep.subr.bf16.mxu0 %v639
    %1195 = vmatpush2.bf16.msra.mxu0 %v638
    %1196 = vmatprep.subr.bf16.mxu0 %v635
    %1197 = vmatpush2.bf16.msra.mxu0 %v634
    %1198 = vmatprep.mubr.bf16.mxu0 %v1121
    %1199 = vmatmul.mubr.bf16.gmra.mxu0 %v1117
    %v1200 = vpop.f32.mrf.mxu0
    %v1201 = vadd.f32 0.0, %v1200
    %v1202 = vpop.f32.mrf.mxu0
    %v1203 = vadd.f32 0.0, %v1202
    %v1204 = vpop.f32.mrf.mxu0
    %v1205 = vadd.f32 0.0, %v1204
    %v1206 = vpop.f32.mrf.mxu0
    %v1207 = vadd.f32 0.0, %v1206
    %1208 = vdwg.mxu0
    %s1209 = scalar_lea.vmem %s0, 42
    %v1210 = vld [vmem:[%s1209] sm:$0x3]
    %v1211 = vld [vmem:[%s1209 + $0x2] sm:$0x3]
    %v1212 = vld [vmem:[%s1209 + $0x4] sm:$0x3]
    %v1213 = vld [vmem:[%s1209 + $0x6] sm:$0x3]
    %v1214 = vld [vmem:[%s1209 + $0x8] sm:$0x3]
    %v1215 = vld [vmem:[%s1209 + $0xa] sm:$0x3]
    %v1216 = vld [vmem:[%s1209 + $0xc] sm:$0x3]
    %v1224 = vcombine.low %v1210, %v1211
    %v1225 = vcombine.low %v1212, %v1213
    %v1226 = vcombine.low %v1214, %v1215
    %v1228 = vunpack.c.l.s4 1966171168
    %v1229 = vunpack.c.0.s8 %v1228
    %v1230 = vlaneseq
    %v1231 = vshrl.u32 %v1230, 7
    %v1232 = vsub.s32 %v1229, %v1231
    %v1233 = vrot.slane %v1224, %v1232
    %v1235 = vunpack.c.l.s4 1966171168
    %v1236 = vunpack.c.0.s8 %v1235
    %v1237 = vlaneseq
    %v1238 = vshrl.u32 %v1237, 7
    %v1239 = vsub.s32 %v1236, %v1238
    %v1240 = vrot.slane %v1225, %v1239
    %v1242 = vunpack.c.l.s4 1966171168
    %v1243 = vunpack.c.0.s8 %v1242
    %v1244 = vlaneseq
    %v1245 = vshrl.u32 %v1244, 7
    %v1246 = vsub.s32 %v1243, %v1245
    %v1247 = vrot.slane %v1226, %v1246
    %v1249 = vunpack.c.l.s4 1966171168
    %v1250 = vunpack.c.0.s8 %v1249
    %v1251 = vlaneseq
    %v1252 = vshrl.u32 %v1251, 7
    %v1253 = vsub.s32 %v1250, %v1252
    %v1254 = vrot.slane %v1216, %v1253
    %v1255 = vcombine.low %v1233, %v1240
    %v1256 = vcombine.high %v1233, %v1240
    %v1257 = vcombine.low %v1247, %v1254
    %v1258 = vcombine.high %v1247, %v1254
    %v1260 = vunpack.c.l.s4 1966171168
    %v1261 = vunpack.c.0.s8 %v1260
    %v1262 = vlaneseq
    %v1263 = vshrl.u32 %v1262, 7
    %v1264 = vsub.s32 %v1261, %v1263
    %v1265 = vrot.slane %v1255, %v1264
    %v1267 = vunpack.c.l.s4 1966171168
    %v1268 = vunpack.c.0.s8 %v1267
    %v1269 = vlaneseq
    %v1270 = vshrl.u32 %v1269, 7
    %v1271 = vsub.s32 %v1268, %v1270
    %v1272 = vrot.slane %v1256, %v1271
    %v1274 = vunpack.c.l.s4 1966171168
    %v1275 = vunpack.c.0.s8 %v1274
    %v1276 = vlaneseq
    %v1277 = vshrl.u32 %v1276, 7
    %v1278 = vsub.s32 %v1275, %v1277
    %v1279 = vrot.slane %v1257, %v1278
    %v1281 = vunpack.c.l.s4 1966171168
    %v1282 = vunpack.c.0.s8 %v1281
    %v1283 = vlaneseq
    %v1284 = vshrl.u32 %v1283, 7
    %v1285 = vsub.s32 %v1282, %v1284
    %v1286 = vrot.slane %v1258, %v1285
    %v1287 = vcombine.low %v1265, %v1279
    %v1288 = vcombine.low %v1272, %v1286
    %v1291 = vsel %vm680, %v1288, 0
    %1293 = vmatprep.subr.bf16.mxu0 %v629
    %1294 = vmatpush1.bf16.msra.mxu0 %v628
    %1295 = vmatprep.subr.bf16.mxu0 %v625
    %1296 = vmatpush1.bf16.msra.mxu0 %v624
    %1297 = vmatprep.subr.bf16.mxu0 %v621
    %1298 = vmatpush1.bf16.msra.mxu0 %v620
    %1299 = vmatprep.subr.bf16.mxu0 %v617
    %1300 = vmatpush1.bf16.msra.mxu0 %v616
    %1301 = vmatprep.subr.bf16.mxu0 %v613
    %1302 = vmatpush1.bf16.msra.mxu0 %v612
    %1303 = vmatprep.subr.bf16.mxu0 %v609
    %1304 = vmatpush1.bf16.msra.mxu0 %v608
    %1305 = vmatprep.subr.bf16.mxu0 %v605
    %1306 = vmatpush1.bf16.msra.mxu0 %v604
    %1307 = vmatprep.subr.bf16.mxu0 %v601
    %1308 = vmatpush1.bf16.msra.mxu0 %v600
    %1309 = vmatprep.subr.bf16.mxu0 0
    %1310 = vmatpush2.bf16.msra.mxu0 0
    %1311 = vmatprep.subr.bf16.mxu0 0
    %1312 = vmatpush2.bf16.msra.mxu0 0
    %1313 = vmatprep.subr.bf16.mxu0 0
    %1314 = vmatpush2.bf16.msra.mxu0 0
    %1315 = vmatprep.subr.bf16.mxu0 0
    %1316 = vmatpush2.bf16.msra.mxu0 0
    %1317 = vmatprep.subr.bf16.mxu0 0
    %1318 = vmatpush2.bf16.msra.mxu0 0
    %1319 = vmatprep.subr.bf16.mxu0 0
    %1320 = vmatpush2.bf16.msra.mxu0 0
    %1321 = vmatprep.subr.bf16.mxu0 %v637
    %1322 = vmatpush2.bf16.msra.mxu0 %v636
    %1323 = vmatprep.subr.bf16.mxu0 %v633
    %1324 = vmatpush2.bf16.msra.mxu0 %v632
    %1325 = vmatprep.mubr.bf16.mxu0 %v1291
    %1326 = vmatmul.mubr.bf16.gmra.mxu0 %v1287
    %v1327 = vpop.f32.mrf.mxu0
    %v1328 = vadd.f32 0.0, %v1327
    %v1329 = vpop.f32.mrf.mxu0
    %v1330 = vadd.f32 0.0, %v1329
    %v1331 = vpop.f32.mrf.mxu0
    %v1332 = vadd.f32 0.0, %v1331
    %v1333 = vpop.f32.mrf.mxu0
    %v1334 = vadd.f32 0.0, %v1333
    %1335 = vdwg.mxu0
    %1336 = vmatprep.subr.bf16.mxu0 %v631
    %1337 = vmatpush1.bf16.msra.mxu0 %v630
    %1338 = vmatprep.subr.bf16.mxu0 %v627
    %1339 = vmatpush1.bf16.msra.mxu0 %v626
    %1340 = vmatprep.subr.bf16.mxu0 %v623
    %1341 = vmatpush1.bf16.msra.mxu0 %v622
    %1342 = vmatprep.subr.bf16.mxu0 %v619
    %1343 = vmatpush1.bf16.msra.mxu0 %v618
    %1344 = vmatprep.subr.bf16.mxu0 %v615
    %1345 = vmatpush1.bf16.msra.mxu0 %v614
    %1346 = vmatprep.subr.bf16.mxu0 %v611
    %1347 = vmatpush1.bf16.msra.mxu0 %v610
    %1348 = vmatprep.subr.bf16.mxu0 %v607
    %1349 = vmatpush1.bf16.msra.mxu0 %v606
    %1350 = vmatprep.subr.bf16.mxu0 %v603
    %1351 = vmatpush1.bf16.msra.mxu0 %v602
    %1352 = vmatprep.subr.bf16.mxu0 0
    %1353 = vmatpush2.bf16.msra.mxu0 0
    %1354 = vmatprep.subr.bf16.mxu0 0
    %1355 = vmatpush2.bf16.msra.mxu0 0
    %1356 = vmatprep.subr.bf16.mxu0 0
    %1357 = vmatpush2.bf16.msra.mxu0 0
    %1358 = vmatprep.subr.bf16.mxu0 0
    %1359 = vmatpush2.bf16.msra.mxu0 0
    %1360 = vmatprep.subr.bf16.mxu0 0
    %1361 = vmatpush2.bf16.msra.mxu0 0
    %1362 = vmatprep.subr.bf16.mxu0 0
    %1363 = vmatpush2.bf16.msra.mxu0 0
    %1364 = vmatprep.subr.bf16.mxu0 %v639
    %1365 = vmatpush2.bf16.msra.mxu0 %v638
    %1366 = vmatprep.subr.bf16.mxu0 %v635
    %1367 = vmatpush2.bf16.msra.mxu0 %v634
    %1368 = vmatprep.mubr.bf16.mxu0 %v1291
    %1369 = vmatmul.mubr.bf16.gmra.mxu0 %v1287
    %v1370 = vpop.f32.mrf.mxu0
    %v1371 = vadd.f32 0.0, %v1370
    %v1372 = vpop.f32.mrf.mxu0
    %v1373 = vadd.f32 0.0, %v1372
    %v1374 = vpop.f32.mrf.mxu0
    %v1375 = vadd.f32 0.0, %v1374
    %v1376 = vpop.f32.mrf.mxu0
    %v1377 = vadd.f32 0.0, %v1376
    %1378 = vdwg.mxu0
    %v1379 = vmax.f32 %v1158, %v1201
    %v1380 = vmax.f32 %v1160, %v1203
    %v1381 = vmax.f32 %v1162, %v1205
    %v1382 = vmax.f32 %v1164, %v1207
    %v1383 = vmax.f32 %v1328, %v1371
    %v1384 = vmax.f32 %v1330, %v1373
    %v1385 = vmax.f32 %v1332, %v1375
    %v1386 = vmax.f32 %v1334, %v1377
    %v1387 = vmax.f32 %v1379, %v1383
    %v1388 = vmax.f32 %v1380, %v1384
    %v1389 = vmax.f32 %v1381, %v1385
    %v1390 = vmax.f32 %v1382, %v1386
    %v1391 = vadd.f32 %v1387, %v956
    %v1392 = vadd.f32 %v1388, %v960
    %v1393 = vadd.f32 %v1389, %v956
    %v1394 = vadd.f32 %v1390, %v960
    %v1395 = vmax.f32 %v1391, 0.0
    %v1396 = vmax.f32 %v1392, 0.0
    %v1397 = vmax.f32 %v1393, 0.0
    %v1398 = vmax.f32 %v1394, 0.0
    %v1399 = vpack.c.bf16 %v1397, %v1395
    %v1400 = vpack.c.bf16 %v1398, %v1396
    %v1403 = vcombine.low %v1399, %v1400
    %v1404 = vcombine.high %v1399, %v1400
    %v1406 = vunpack.c.l.s4 1966171168
    %v1407 = vunpack.c.0.s8 %v1406
    %v1408 = vlaneseq
    %v1409 = vshrl.u32 %v1408, 7
    %v1410 = vsub.s32 %v1407, %v1409
    %v1411 = vrot.slane %v1403, %v1410
    %v1413 = vunpack.c.l.s4 1966171168
    %v1414 = vunpack.c.0.s8 %v1413
    %v1415 = vlaneseq
    %v1416 = vshrl.u32 %v1415, 7
    %v1417 = vsub.s32 %v1414, %v1416
    %v1418 = vrot.slane %v1404, %v1417
    %v1419 = vcombine.high %v1411, %v1411
    %v1420 = vcombine.high %v1418, %v1418
    %v1422 = vunpack.c.l.s4 1966171168
    %v1423 = vunpack.c.0.s8 %v1422
    %v1424 = vlaneseq
    %v1425 = vshrl.u32 %v1424, 7
    %v1426 = vsub.s32 %v1423, %v1425
    %v1427 = vrot.slane %v1411, %v1426
    %v1429 = vunpack.c.l.s4 1966171168
    %v1430 = vunpack.c.0.s8 %v1429
    %v1431 = vlaneseq
    %v1432 = vshrl.u32 %v1431, 7
    %v1433 = vsub.s32 %v1430, %v1432
    %v1434 = vrot.slane %v1418, %v1433
    %v1436 = vunpack.c.l.s4 1966171168
    %v1437 = vunpack.c.0.s8 %v1436
    %v1438 = vlaneseq
    %v1439 = vshrl.u32 %v1438, 7
    %v1440 = vsub.s32 %v1437, %v1439
    %v1441 = vrot.slane %v1419, %v1440
    %v1443 = vunpack.c.l.s4 1966171168
    %v1444 = vunpack.c.0.s8 %v1443
    %v1445 = vlaneseq
    %v1446 = vshrl.u32 %v1445, 7
    %v1447 = vsub.s32 %v1444, %v1446
    %v1448 = vrot.slane %v1420, %v1447
    %v1449 = vcombine.high %v1427, %v1427
    %v1450 = vcombine.high %v1434, %v1434
    %v1451 = vcombine.high %v1441, %v1441
    %s1459 = scalar_lea.vmem [#allocation2], 20
    %1460 = vst [vmem:[%s1459] sm:$0x3] %v1427
    %1461 = vst [vmem:[%s1459 + $0x2] sm:$0x3] %v1441
    %1462 = vst [vmem:[%s1459 + $0x4] sm:$0x3] %v1449
    %1463 = vst [vmem:[%s1459 + $0x6] sm:$0x3] %v1451
    %1464 = vst [vmem:[%s1459 + $0x8] sm:$0x3] %v1434
    %1465 = vst [vmem:[%s1459 + $0xa] sm:$0x3] %v1448
    %1466 = vst [vmem:[%s1459 + $0xc] sm:$0x3] %v1450
    %v1467 = vld [vmem:[#allocation2] sm:$0x3]
    %v1468 = vld [vmem:[#allocation2 + $0x2] sm:$0x3]
    %v1469 = vld [vmem:[#allocation2 + $0x4] sm:$0x3]
    %v1470 = vld [vmem:[#allocation2 + $0x6] sm:$0x3]
    %v1471 = vld [vmem:[#allocation2 + $0x8] sm:$0x3]
    %v1472 = vld [vmem:[#allocation2 + $0xa] sm:$0x3]
    %v1473 = vld [vmem:[#allocation2 + $0xc] sm:$0x3]
    %v1474 = vld [vmem:[%s33] sm:$0x3]
    %v1475 = vld [vmem:[%s33 + $0x2] sm:$0x3]
    %v1476 = vld [vmem:[%s33 + $0x4] sm:$0x3]
    %v1477 = vld [vmem:[%s33 + $0x6] sm:$0x3]
    %v1478 = vld [vmem:[%s33 + $0x8] sm:$0x3]
    %v1479 = vld [vmem:[%s33 + $0xa] sm:$0x3]
    %v1480 = vld [vmem:[%s33 + $0xc] sm:$0x3]
    %v1481 = vld [vmem:[%s1031] sm:$0x3]
    %v1482 = vld [vmem:[%s1031 + $0x2] sm:$0x3]
    %v1483 = vld [vmem:[%s1031 + $0x4] sm:$0x3]
    %v1484 = vld [vmem:[%s1031 + $0x6] sm:$0x3]
    %v1485 = vld [vmem:[%s1031 + $0x8] sm:$0x3]
    %v1486 = vld [vmem:[%s1031 + $0xa] sm:$0x3]
    %v1487 = vld [vmem:[%s1031 + $0xc] sm:$0x3]
    %v1488 = vld [vmem:[%s1459] sm:$0x3]
    %v1489 = vld [vmem:[%s1459 + $0x2] sm:$0x3]
    %v1490 = vld [vmem:[%s1459 + $0x4] sm:$0x3]
    %v1491 = vld [vmem:[%s1459 + $0x6] sm:$0x3]
    %v1492 = vld [vmem:[%s1459 + $0x8] sm:$0x3]
    %v1493 = vld [vmem:[%s1459 + $0xa] sm:$0x3]
    %v1494 = vld [vmem:[%s1459 + $0xc] sm:$0x3]
    %s1495 = scalar_lea.vmem [#allocation2], 4
    %v1496 = vld [vmem:[%s1495] sm:$0x3]
    %v1497 = vld [vmem:[%s1495 + $0x2] sm:$0x3]
    %v1498 = vld [vmem:[%s1495 + $0x4] sm:$0x3]
    %v1499 = vld [vmem:[%s1495 + $0x6] sm:$0x3]
    %v1500 = vld [vmem:[%s1495 + $0x8] sm:$0x3]
    %v1501 = vld [vmem:[%s1495 + $0xa] sm:$0x3]
    %v1502 = vld [vmem:[%s1495 + $0xc] sm:$0x3]
    %v1511 = vunpack.c.l.s4 1966171168
    %v1512 = vunpack.c.0.s8 %v1511
    %v1513 = vlaneseq
    %v1514 = vshrl.u32 %v1513, 7
    %v1515 = vsub.s32 %v1512, %v1514
    %v1516 = vrot.slane %v1467, %v1515
    %v1517 = vcombine.high %v1516, %v1516
    %v1519 = vunpack.c.l.s4 1966171168
    %v1520 = vunpack.c.0.s8 %v1519
    %v1521 = vlaneseq
    %v1522 = vshrl.u32 %v1521, 7
    %v1523 = vsub.s32 %v1520, %v1522
    %v1524 = vrot.slane %v1516, %v1523
    %v1526 = vunpack.c.l.s4 1966171168
    %v1527 = vunpack.c.0.s8 %v1526
    %v1528 = vlaneseq
    %v1529 = vshrl.u32 %v1528, 7
    %v1530 = vsub.s32 %v1527, %v1529
    %v1531 = vrot.slane %v1517, %v1530
    %v1533 = vunpack.c.l.s4 1966171168
    %v1534 = vunpack.c.0.s8 %v1533
    %v1535 = vlaneseq
    %v1536 = vshrl.u32 %v1535, 7
    %v1537 = vsub.s32 %v1534, %v1536
    %v1538 = vrot.slane %v1468, %v1537
    %v1539 = vcombine.high %v1538, %v1538
    %v1541 = vunpack.c.l.s4 1966171168
    %v1542 = vunpack.c.0.s8 %v1541
    %v1543 = vlaneseq
    %v1544 = vshrl.u32 %v1543, 7
    %v1545 = vsub.s32 %v1542, %v1544
    %v1546 = vrot.slane %v1538, %v1545
    %v1548 = vunpack.c.l.s4 1966171168
    %v1549 = vunpack.c.0.s8 %v1548
    %v1550 = vlaneseq
    %v1551 = vshrl.u32 %v1550, 7
    %v1552 = vsub.s32 %v1549, %v1551
    %v1553 = vrot.slane %v1539, %v1552
    %v1555 = vunpack.c.l.s4 1966171168
    %v1556 = vunpack.c.0.s8 %v1555
    %v1557 = vlaneseq
    %v1558 = vshrl.u32 %v1557, 7
    %v1559 = vsub.s32 %v1556, %v1558
    %v1560 = vrot.slane %v1469, %v1559
    %v1561 = vcombine.high %v1560, %v1560
    %v1563 = vunpack.c.l.s4 1966171168
    %v1564 = vunpack.c.0.s8 %v1563
    %v1565 = vlaneseq
    %v1566 = vshrl.u32 %v1565, 7
    %v1567 = vsub.s32 %v1564, %v1566
    %v1568 = vrot.slane %v1560, %v1567
    %v1570 = vunpack.c.l.s4 1966171168
    %v1571 = vunpack.c.0.s8 %v1570
    %v1572 = vlaneseq
    %v1573 = vshrl.u32 %v1572, 7
    %v1574 = vsub.s32 %v1571, %v1573
    %v1575 = vrot.slane %v1561, %v1574
    %v1577 = vunpack.c.l.s4 1966171168
    %v1578 = vunpack.c.0.s8 %v1577
    %v1579 = vlaneseq
    %v1580 = vshrl.u32 %v1579, 7
    %v1581 = vsub.s32 %v1578, %v1580
    %v1582 = vrot.slane %v1470, %v1581
    %v1583 = vcombine.high %v1582, %v1582
    %v1585 = vunpack.c.l.s4 1966171168
    %v1586 = vunpack.c.0.s8 %v1585
    %v1587 = vlaneseq
    %v1588 = vshrl.u32 %v1587, 7
    %v1589 = vsub.s32 %v1586, %v1588
    %v1590 = vrot.slane %v1582, %v1589
    %v1592 = vunpack.c.l.s4 1966171168
    %v1593 = vunpack.c.0.s8 %v1592
    %v1594 = vlaneseq
    %v1595 = vshrl.u32 %v1594, 7
    %v1596 = vsub.s32 %v1593, %v1595
    %v1597 = vrot.slane %v1583, %v1596
    %v1599 = vunpack.c.l.s4 1966171168
    %v1600 = vunpack.c.0.s8 %v1599
    %v1601 = vlaneseq
    %v1602 = vshrl.u32 %v1601, 7
    %v1603 = vsub.s32 %v1600, %v1602
    %v1604 = vrot.slane %v1471, %v1603
    %v1605 = vcombine.high %v1604, %v1604
    %v1607 = vunpack.c.l.s4 1966171168
    %v1608 = vunpack.c.0.s8 %v1607
    %v1609 = vlaneseq
    %v1610 = vshrl.u32 %v1609, 7
    %v1611 = vsub.s32 %v1608, %v1610
    %v1612 = vrot.slane %v1604, %v1611
    %v1614 = vunpack.c.l.s4 1966171168
    %v1615 = vunpack.c.0.s8 %v1614
    %v1616 = vlaneseq
    %v1617 = vshrl.u32 %v1616, 7
    %v1618 = vsub.s32 %v1615, %v1617
    %v1619 = vrot.slane %v1605, %v1618
    %v1621 = vunpack.c.l.s4 1966171168
    %v1622 = vunpack.c.0.s8 %v1621
    %v1623 = vlaneseq
    %v1624 = vshrl.u32 %v1623, 7
    %v1625 = vsub.s32 %v1622, %v1624
    %v1626 = vrot.slane %v1472, %v1625
    %v1627 = vcombine.high %v1626, %v1626
    %v1629 = vunpack.c.l.s4 1966171168
    %v1630 = vunpack.c.0.s8 %v1629
    %v1631 = vlaneseq
    %v1632 = vshrl.u32 %v1631, 7
    %v1633 = vsub.s32 %v1630, %v1632
    %v1634 = vrot.slane %v1626, %v1633
    %v1636 = vunpack.c.l.s4 1966171168
    %v1637 = vunpack.c.0.s8 %v1636
    %v1638 = vlaneseq
    %v1639 = vshrl.u32 %v1638, 7
    %v1640 = vsub.s32 %v1637, %v1639
    %v1641 = vrot.slane %v1627, %v1640
    %v1643 = vunpack.c.l.s4 1966171168
    %v1644 = vunpack.c.0.s8 %v1643
    %v1645 = vlaneseq
    %v1646 = vshrl.u32 %v1645, 7
    %v1647 = vsub.s32 %v1644, %v1646
    %v1648 = vrot.slane %v1473, %v1647
    %v1649 = vcombine.high %v1648, %v1648
    %v1651 = vunpack.c.l.s4 1966171168
    %v1652 = vunpack.c.0.s8 %v1651
    %v1653 = vlaneseq
    %v1654 = vshrl.u32 %v1653, 7
    %v1655 = vsub.s32 %v1652, %v1654
    %v1656 = vrot.slane %v1648, %v1655
    %v1658 = vunpack.c.l.s4 1966171168
    %v1659 = vunpack.c.0.s8 %v1658
    %v1660 = vlaneseq
    %v1661 = vshrl.u32 %v1660, 7
    %v1662 = vsub.s32 %v1659, %v1661
    %v1663 = vrot.slane %v1649, %v1662
    %v1672 = vunpack.c.l.s4 1966171168
    %v1673 = vunpack.c.0.s8 %v1672
    %v1674 = vlaneseq
    %v1675 = vshrl.u32 %v1674, 7
    %v1676 = vsub.s32 %v1673, %v1675
    %v1677 = vrot.slane %v1474, %v1676
    %v1678 = vcombine.high %v1677, %v1677
    %v1680 = vunpack.c.l.s4 1966171168
    %v1681 = vunpack.c.0.s8 %v1680
    %v1682 = vlaneseq
    %v1683 = vshrl.u32 %v1682, 7
    %v1684 = vsub.s32 %v1681, %v1683
    %v1685 = vrot.slane %v1677, %v1684
    %v1687 = vunpack.c.l.s4 1966171168
    %v1688 = vunpack.c.0.s8 %v1687
    %v1689 = vlaneseq
    %v1690 = vshrl.u32 %v1689, 7
    %v1691 = vsub.s32 %v1688, %v1690
    %v1692 = vrot.slane %v1678, %v1691
    %v1694 = vunpack.c.l.s4 1966171168
    %v1695 = vunpack.c.0.s8 %v1694
    %v1696 = vlaneseq
    %v1697 = vshrl.u32 %v1696, 7
    %v1698 = vsub.s32 %v1695, %v1697
    %v1699 = vrot.slane %v1475, %v1698
    %v1700 = vcombine.high %v1699, %v1699
    %v1702 = vunpack.c.l.s4 1966171168
    %v1703 = vunpack.c.0.s8 %v1702
    %v1704 = vlaneseq
    %v1705 = vshrl.u32 %v1704, 7
    %v1706 = vsub.s32 %v1703, %v1705
    %v1707 = vrot.slane %v1699, %v1706
    %v1709 = vunpack.c.l.s4 1966171168
    %v1710 = vunpack.c.0.s8 %v1709
    %v1711 = vlaneseq
    %v1712 = vshrl.u32 %v1711, 7
    %v1713 = vsub.s32 %v1710, %v1712
    %v1714 = vrot.slane %v1700, %v1713
    %v1716 = vunpack.c.l.s4 1966171168
    %v1717 = vunpack.c.0.s8 %v1716
    %v1718 = vlaneseq
    %v1719 = vshrl.u32 %v1718, 7
    %v1720 = vsub.s32 %v1717, %v1719
    %v1721 = vrot.slane %v1476, %v1720
    %v1722 = vcombine.high %v1721, %v1721
    %v1724 = vunpack.c.l.s4 1966171168
    %v1725 = vunpack.c.0.s8 %v1724
    %v1726 = vlaneseq
    %v1727 = vshrl.u32 %v1726, 7
    %v1728 = vsub.s32 %v1725, %v1727
    %v1729 = vrot.slane %v1721, %v1728
    %v1731 = vunpack.c.l.s4 1966171168
    %v1732 = vunpack.c.0.s8 %v1731
    %v1733 = vlaneseq
    %v1734 = vshrl.u32 %v1733, 7
    %v1735 = vsub.s32 %v1732, %v1734
    %v1736 = vrot.slane %v1722, %v1735
    %v1738 = vunpack.c.l.s4 1966171168
    %v1739 = vunpack.c.0.s8 %v1738
    %v1740 = vlaneseq
    %v1741 = vshrl.u32 %v1740, 7
    %v1742 = vsub.s32 %v1739, %v1741
    %v1743 = vrot.slane %v1477, %v1742
    %v1744 = vcombine.high %v1743, %v1743
    %v1746 = vunpack.c.l.s4 1966171168
    %v1747 = vunpack.c.0.s8 %v1746
    %v1748 = vlaneseq
    %v1749 = vshrl.u32 %v1748, 7
    %v1750 = vsub.s32 %v1747, %v1749
    %v1751 = vrot.slane %v1743, %v1750
    %v1753 = vunpack.c.l.s4 1966171168
    %v1754 = vunpack.c.0.s8 %v1753
    %v1755 = vlaneseq
    %v1756 = vshrl.u32 %v1755, 7
    %v1757 = vsub.s32 %v1754, %v1756
    %v1758 = vrot.slane %v1744, %v1757
    %v1760 = vunpack.c.l.s4 1966171168
    %v1761 = vunpack.c.0.s8 %v1760
    %v1762 = vlaneseq
    %v1763 = vshrl.u32 %v1762, 7
    %v1764 = vsub.s32 %v1761, %v1763
    %v1765 = vrot.slane %v1478, %v1764
    %v1766 = vcombine.high %v1765, %v1765
    %v1768 = vunpack.c.l.s4 1966171168
    %v1769 = vunpack.c.0.s8 %v1768
    %v1770 = vlaneseq
    %v1771 = vshrl.u32 %v1770, 7
    %v1772 = vsub.s32 %v1769, %v1771
    %v1773 = vrot.slane %v1765, %v1772
    %v1775 = vunpack.c.l.s4 1966171168
    %v1776 = vunpack.c.0.s8 %v1775
    %v1777 = vlaneseq
    %v1778 = vshrl.u32 %v1777, 7
    %v1779 = vsub.s32 %v1776, %v1778
    %v1780 = vrot.slane %v1766, %v1779
    %v1782 = vunpack.c.l.s4 1966171168
    %v1783 = vunpack.c.0.s8 %v1782
    %v1784 = vlaneseq
    %v1785 = vshrl.u32 %v1784, 7
    %v1786 = vsub.s32 %v1783, %v1785
    %v1787 = vrot.slane %v1479, %v1786
    %v1788 = vcombine.high %v1787, %v1787
    %v1790 = vunpack.c.l.s4 1966171168
    %v1791 = vunpack.c.0.s8 %v1790
    %v1792 = vlaneseq
    %v1793 = vshrl.u32 %v1792, 7
    %v1794 = vsub.s32 %v1791, %v1793
    %v1795 = vrot.slane %v1787, %v1794
    %v1797 = vunpack.c.l.s4 1966171168
    %v1798 = vunpack.c.0.s8 %v1797
    %v1799 = vlaneseq
    %v1800 = vshrl.u32 %v1799, 7
    %v1801 = vsub.s32 %v1798, %v1800
    %v1802 = vrot.slane %v1788, %v1801
    %v1804 = vunpack.c.l.s4 1966171168
    %v1805 = vunpack.c.0.s8 %v1804
    %v1806 = vlaneseq
    %v1807 = vshrl.u32 %v1806, 7
    %v1808 = vsub.s32 %v1805, %v1807
    %v1809 = vrot.slane %v1480, %v1808
    %v1810 = vcombine.high %v1809, %v1809
    %v1812 = vunpack.c.l.s4 1966171168
    %v1813 = vunpack.c.0.s8 %v1812
    %v1814 = vlaneseq
    %v1815 = vshrl.u32 %v1814, 7
    %v1816 = vsub.s32 %v1813, %v1815
    %v1817 = vrot.slane %v1809, %v1816
    %v1819 = vunpack.c.l.s4 1966171168
    %v1820 = vunpack.c.0.s8 %v1819
    %v1821 = vlaneseq
    %v1822 = vshrl.u32 %v1821, 7
    %v1823 = vsub.s32 %v1820, %v1822
    %v1824 = vrot.slane %v1810, %v1823
    %v1833 = vunpack.c.l.s4 1966171168
    %v1834 = vunpack.c.0.s8 %v1833
    %v1835 = vlaneseq
    %v1836 = vshrl.u32 %v1835, 7
    %v1837 = vsub.s32 %v1834, %v1836
    %v1838 = vrot.slane %v1481, %v1837
    %v1839 = vcombine.high %v1838, %v1838
    %v1841 = vunpack.c.l.s4 1966171168
    %v1842 = vunpack.c.0.s8 %v1841
    %v1843 = vlaneseq
    %v1844 = vshrl.u32 %v1843, 7
    %v1845 = vsub.s32 %v1842, %v1844
    %v1846 = vrot.slane %v1838, %v1845
    %v1848 = vunpack.c.l.s4 1966171168
    %v1849 = vunpack.c.0.s8 %v1848
    %v1850 = vlaneseq
    %v1851 = vshrl.u32 %v1850, 7
    %v1852 = vsub.s32 %v1849, %v1851
    %v1853 = vrot.slane %v1839, %v1852
    %v1855 = vunpack.c.l.s4 1966171168
    %v1856 = vunpack.c.0.s8 %v1855
    %v1857 = vlaneseq
    %v1858 = vshrl.u32 %v1857, 7
    %v1859 = vsub.s32 %v1856, %v1858
    %v1860 = vrot.slane %v1482, %v1859
    %v1861 = vcombine.high %v1860, %v1860
    %v1863 = vunpack.c.l.s4 1966171168
    %v1864 = vunpack.c.0.s8 %v1863
    %v1865 = vlaneseq
    %v1866 = vshrl.u32 %v1865, 7
    %v1867 = vsub.s32 %v1864, %v1866
    %v1868 = vrot.slane %v1860, %v1867
    %v1870 = vunpack.c.l.s4 1966171168
    %v1871 = vunpack.c.0.s8 %v1870
    %v1872 = vlaneseq
    %v1873 = vshrl.u32 %v1872, 7
    %v1874 = vsub.s32 %v1871, %v1873
    %v1875 = vrot.slane %v1861, %v1874
    %v1877 = vunpack.c.l.s4 1966171168
    %v1878 = vunpack.c.0.s8 %v1877
    %v1879 = vlaneseq
    %v1880 = vshrl.u32 %v1879, 7
    %v1881 = vsub.s32 %v1878, %v1880
    %v1882 = vrot.slane %v1483, %v1881
    %v1883 = vcombine.high %v1882, %v1882
    %v1885 = vunpack.c.l.s4 1966171168
    %v1886 = vunpack.c.0.s8 %v1885
    %v1887 = vlaneseq
    %v1888 = vshrl.u32 %v1887, 7
    %v1889 = vsub.s32 %v1886, %v1888
    %v1890 = vrot.slane %v1882, %v1889
    %v1892 = vunpack.c.l.s4 1966171168
    %v1893 = vunpack.c.0.s8 %v1892
    %v1894 = vlaneseq
    %v1895 = vshrl.u32 %v1894, 7
    %v1896 = vsub.s32 %v1893, %v1895
    %v1897 = vrot.slane %v1883, %v1896
    %v1899 = vunpack.c.l.s4 1966171168
    %v1900 = vunpack.c.0.s8 %v1899
    %v1901 = vlaneseq
    %v1902 = vshrl.u32 %v1901, 7
    %v1903 = vsub.s32 %v1900, %v1902
    %v1904 = vrot.slane %v1484, %v1903
    %v1905 = vcombine.high %v1904, %v1904
    %v1907 = vunpack.c.l.s4 1966171168
    %v1908 = vunpack.c.0.s8 %v1907
    %v1909 = vlaneseq
    %v1910 = vshrl.u32 %v1909, 7
    %v1911 = vsub.s32 %v1908, %v1910
    %v1912 = vrot.slane %v1904, %v1911
    %v1914 = vunpack.c.l.s4 1966171168
    %v1915 = vunpack.c.0.s8 %v1914
    %v1916 = vlaneseq
    %v1917 = vshrl.u32 %v1916, 7
    %v1918 = vsub.s32 %v1915, %v1917
    %v1919 = vrot.slane %v1905, %v1918
    %v1921 = vunpack.c.l.s4 1966171168
    %v1922 = vunpack.c.0.s8 %v1921
    %v1923 = vlaneseq
    %v1924 = vshrl.u32 %v1923, 7
    %v1925 = vsub.s32 %v1922, %v1924
    %v1926 = vrot.slane %v1485, %v1925
    %v1927 = vcombine.high %v1926, %v1926
    %v1929 = vunpack.c.l.s4 1966171168
    %v1930 = vunpack.c.0.s8 %v1929
    %v1931 = vlaneseq
    %v1932 = vshrl.u32 %v1931, 7
    %v1933 = vsub.s32 %v1930, %v1932
    %v1934 = vrot.slane %v1926, %v1933
    %v1936 = vunpack.c.l.s4 1966171168
    %v1937 = vunpack.c.0.s8 %v1936
    %v1938 = vlaneseq
    %v1939 = vshrl.u32 %v1938, 7
    %v1940 = vsub.s32 %v1937, %v1939
    %v1941 = vrot.slane %v1927, %v1940
    %v1943 = vunpack.c.l.s4 1966171168
    %v1944 = vunpack.c.0.s8 %v1943
    %v1945 = vlaneseq
    %v1946 = vshrl.u32 %v1945, 7
    %v1947 = vsub.s32 %v1944, %v1946
    %v1948 = vrot.slane %v1486, %v1947
    %v1949 = vcombine.high %v1948, %v1948
    %v1951 = vunpack.c.l.s4 1966171168
    %v1952 = vunpack.c.0.s8 %v1951
    %v1953 = vlaneseq
    %v1954 = vshrl.u32 %v1953, 7
    %v1955 = vsub.s32 %v1952, %v1954
    %v1956 = vrot.slane %v1948, %v1955
    %v1958 = vunpack.c.l.s4 1966171168
    %v1959 = vunpack.c.0.s8 %v1958
    %v1960 = vlaneseq
    %v1961 = vshrl.u32 %v1960, 7
    %v1962 = vsub.s32 %v1959, %v1961
    %v1963 = vrot.slane %v1949, %v1962
    %v1965 = vunpack.c.l.s4 1966171168
    %v1966 = vunpack.c.0.s8 %v1965
    %v1967 = vlaneseq
    %v1968 = vshrl.u32 %v1967, 7
    %v1969 = vsub.s32 %v1966, %v1968
    %v1970 = vrot.slane %v1487, %v1969
    %v1971 = vcombine.high %v1970, %v1970
    %v1973 = vunpack.c.l.s4 1966171168
    %v1974 = vunpack.c.0.s8 %v1973
    %v1975 = vlaneseq
    %v1976 = vshrl.u32 %v1975, 7
    %v1977 = vsub.s32 %v1974, %v1976
    %v1978 = vrot.slane %v1970, %v1977
    %v1980 = vunpack.c.l.s4 1966171168
    %v1981 = vunpack.c.0.s8 %v1980
    %v1982 = vlaneseq
    %v1983 = vshrl.u32 %v1982, 7
    %v1984 = vsub.s32 %v1981, %v1983
    %v1985 = vrot.slane %v1971, %v1984
    %v1994 = vunpack.c.l.s4 1966171168
    %v1995 = vunpack.c.0.s8 %v1994
    %v1996 = vlaneseq
    %v1997 = vshrl.u32 %v1996, 7
    %v1998 = vsub.s32 %v1995, %v1997
    %v1999 = vrot.slane %v1488, %v1998
    %v2000 = vcombine.high %v1999, %v1999
    %v2002 = vunpack.c.l.s4 1966171168
    %v2003 = vunpack.c.0.s8 %v2002
    %v2004 = vlaneseq
    %v2005 = vshrl.u32 %v2004, 7
    %v2006 = vsub.s32 %v2003, %v2005
    %v2007 = vrot.slane %v1999, %v2006
    %v2009 = vunpack.c.l.s4 1966171168
    %v2010 = vunpack.c.0.s8 %v2009
    %v2011 = vlaneseq
    %v2012 = vshrl.u32 %v2011, 7
    %v2013 = vsub.s32 %v2010, %v2012
    %v2014 = vrot.slane %v2000, %v2013
    %v2016 = vunpack.c.l.s4 1966171168
    %v2017 = vunpack.c.0.s8 %v2016
    %v2018 = vlaneseq
    %v2019 = vshrl.u32 %v2018, 7
    %v2020 = vsub.s32 %v2017, %v2019
    %v2021 = vrot.slane %v1489, %v2020
    %v2022 = vcombine.high %v2021, %v2021
    %v2024 = vunpack.c.l.s4 1966171168
    %v2025 = vunpack.c.0.s8 %v2024
    %v2026 = vlaneseq
    %v2027 = vshrl.u32 %v2026, 7
    %v2028 = vsub.s32 %v2025, %v2027
    %v2029 = vrot.slane %v2021, %v2028
    %v2031 = vunpack.c.l.s4 1966171168
    %v2032 = vunpack.c.0.s8 %v2031
    %v2033 = vlaneseq
    %v2034 = vshrl.u32 %v2033, 7
    %v2035 = vsub.s32 %v2032, %v2034
    %v2036 = vrot.slane %v2022, %v2035
    %v2038 = vunpack.c.l.s4 1966171168
    %v2039 = vunpack.c.0.s8 %v2038
    %v2040 = vlaneseq
    %v2041 = vshrl.u32 %v2040, 7
    %v2042 = vsub.s32 %v2039, %v2041
    %v2043 = vrot.slane %v1490, %v2042
    %v2044 = vcombine.high %v2043, %v2043
    %v2046 = vunpack.c.l.s4 1966171168
    %v2047 = vunpack.c.0.s8 %v2046
    %v2048 = vlaneseq
    %v2049 = vshrl.u32 %v2048, 7
    %v2050 = vsub.s32 %v2047, %v2049
    %v2051 = vrot.slane %v2043, %v2050
    %v2053 = vunpack.c.l.s4 1966171168
    %v2054 = vunpack.c.0.s8 %v2053
    %v2055 = vlaneseq
    %v2056 = vshrl.u32 %v2055, 7
    %v2057 = vsub.s32 %v2054, %v2056
    %v2058 = vrot.slane %v2044, %v2057
    %v2060 = vunpack.c.l.s4 1966171168
    %v2061 = vunpack.c.0.s8 %v2060
    %v2062 = vlaneseq
    %v2063 = vshrl.u32 %v2062, 7
    %v2064 = vsub.s32 %v2061, %v2063
    %v2065 = vrot.slane %v1491, %v2064
    %v2066 = vcombine.high %v2065, %v2065
    %v2068 = vunpack.c.l.s4 1966171168
    %v2069 = vunpack.c.0.s8 %v2068
    %v2070 = vlaneseq
    %v2071 = vshrl.u32 %v2070, 7
    %v2072 = vsub.s32 %v2069, %v2071
    %v2073 = vrot.slane %v2065, %v2072
    %v2075 = vunpack.c.l.s4 1966171168
    %v2076 = vunpack.c.0.s8 %v2075
    %v2077 = vlaneseq
    %v2078 = vshrl.u32 %v2077, 7
    %v2079 = vsub.s32 %v2076, %v2078
    %v2080 = vrot.slane %v2066, %v2079
    %v2082 = vunpack.c.l.s4 1966171168
    %v2083 = vunpack.c.0.s8 %v2082
    %v2084 = vlaneseq
    %v2085 = vshrl.u32 %v2084, 7
    %v2086 = vsub.s32 %v2083, %v2085
    %v2087 = vrot.slane %v1492, %v2086
    %v2088 = vcombine.high %v2087, %v2087
    %v2090 = vunpack.c.l.s4 1966171168
    %v2091 = vunpack.c.0.s8 %v2090
    %v2092 = vlaneseq
    %v2093 = vshrl.u32 %v2092, 7
    %v2094 = vsub.s32 %v2091, %v2093
    %v2095 = vrot.slane %v2087, %v2094
    %v2097 = vunpack.c.l.s4 1966171168
    %v2098 = vunpack.c.0.s8 %v2097
    %v2099 = vlaneseq
    %v2100 = vshrl.u32 %v2099, 7
    %v2101 = vsub.s32 %v2098, %v2100
    %v2102 = vrot.slane %v2088, %v2101
    %v2104 = vunpack.c.l.s4 1966171168
    %v2105 = vunpack.c.0.s8 %v2104
    %v2106 = vlaneseq
    %v2107 = vshrl.u32 %v2106, 7
    %v2108 = vsub.s32 %v2105, %v2107
    %v2109 = vrot.slane %v1493, %v2108
    %v2110 = vcombine.high %v2109, %v2109
    %v2112 = vunpack.c.l.s4 1966171168
    %v2113 = vunpack.c.0.s8 %v2112
    %v2114 = vlaneseq
    %v2115 = vshrl.u32 %v2114, 7
    %v2116 = vsub.s32 %v2113, %v2115
    %v2117 = vrot.slane %v2109, %v2116
    %v2119 = vunpack.c.l.s4 1966171168
    %v2120 = vunpack.c.0.s8 %v2119
    %v2121 = vlaneseq
    %v2122 = vshrl.u32 %v2121, 7
    %v2123 = vsub.s32 %v2120, %v2122
    %v2124 = vrot.slane %v2110, %v2123
    %v2126 = vunpack.c.l.s4 1966171168
    %v2127 = vunpack.c.0.s8 %v2126
    %v2128 = vlaneseq
    %v2129 = vshrl.u32 %v2128, 7
    %v2130 = vsub.s32 %v2127, %v2129
    %v2131 = vrot.slane %v1494, %v2130
    %v2132 = vcombine.high %v2131, %v2131
    %v2134 = vunpack.c.l.s4 1966171168
    %v2135 = vunpack.c.0.s8 %v2134
    %v2136 = vlaneseq
    %v2137 = vshrl.u32 %v2136, 7
    %v2138 = vsub.s32 %v2135, %v2137
    %v2139 = vrot.slane %v2131, %v2138
    %v2141 = vunpack.c.l.s4 1966171168
    %v2142 = vunpack.c.0.s8 %v2141
    %v2143 = vlaneseq
    %v2144 = vshrl.u32 %v2143, 7
    %v2145 = vsub.s32 %v2142, %v2144
    %v2146 = vrot.slane %v2132, %v2145
    %v2155 = vunpack.c.l.s4 1966171168
    %v2156 = vunpack.c.0.s8 %v2155
    %v2157 = vlaneseq
    %v2158 = vshrl.u32 %v2157, 7
    %v2159 = vsub.s32 %v2156, %v2158
    %v2160 = vrot.slane %v1496, %v2159
    %v2161 = vcombine.high %v2160, %v2160
    %v2163 = vunpack.c.l.s4 1966171168
    %v2164 = vunpack.c.0.s8 %v2163
    %v2165 = vlaneseq
    %v2166 = vshrl.u32 %v2165, 7
    %v2167 = vsub.s32 %v2164, %v2166
    %v2168 = vrot.slane %v2160, %v2167
    %v2170 = vunpack.c.l.s4 1966171168
    %v2171 = vunpack.c.0.s8 %v2170
    %v2172 = vlaneseq
    %v2173 = vshrl.u32 %v2172, 7
    %v2174 = vsub.s32 %v2171, %v2173
    %v2175 = vrot.slane %v2161, %v2174
    %v2177 = vunpack.c.l.s4 1966171168
    %v2178 = vunpack.c.0.s8 %v2177
    %v2179 = vlaneseq
    %v2180 = vshrl.u32 %v2179, 7
    %v2181 = vsub.s32 %v2178, %v2180
    %v2182 = vrot.slane %v1497, %v2181
    %v2183 = vcombine.high %v2182, %v2182
    %v2185 = vunpack.c.l.s4 1966171168
    %v2186 = vunpack.c.0.s8 %v2185
    %v2187 = vlaneseq
    %v2188 = vshrl.u32 %v2187, 7
    %v2189 = vsub.s32 %v2186, %v2188
    %v2190 = vrot.slane %v2182, %v2189
    %v2192 = vunpack.c.l.s4 1966171168
    %v2193 = vunpack.c.0.s8 %v2192
    %v2194 = vlaneseq
    %v2195 = vshrl.u32 %v2194, 7
    %v2196 = vsub.s32 %v2193, %v2195
    %v2197 = vrot.slane %v2183, %v2196
    %v2199 = vunpack.c.l.s4 1966171168
    %v2200 = vunpack.c.0.s8 %v2199
    %v2201 = vlaneseq
    %v2202 = vshrl.u32 %v2201, 7
    %v2203 = vsub.s32 %v2200, %v2202
    %v2204 = vrot.slane %v1498, %v2203
    %v2205 = vcombine.high %v2204, %v2204
    %v2207 = vunpack.c.l.s4 1966171168
    %v2208 = vunpack.c.0.s8 %v2207
    %v2209 = vlaneseq
    %v2210 = vshrl.u32 %v2209, 7
    %v2211 = vsub.s32 %v2208, %v2210
    %v2212 = vrot.slane %v2204, %v2211
    %v2214 = vunpack.c.l.s4 1966171168
    %v2215 = vunpack.c.0.s8 %v2214
    %v2216 = vlaneseq
    %v2217 = vshrl.u32 %v2216, 7
    %v2218 = vsub.s32 %v2215, %v2217
    %v2219 = vrot.slane %v2205, %v2218
    %v2221 = vunpack.c.l.s4 1966171168
    %v2222 = vunpack.c.0.s8 %v2221
    %v2223 = vlaneseq
    %v2224 = vshrl.u32 %v2223, 7
    %v2225 = vsub.s32 %v2222, %v2224
    %v2226 = vrot.slane %v1499, %v2225
    %v2227 = vcombine.high %v2226, %v2226
    %v2229 = vunpack.c.l.s4 1966171168
    %v2230 = vunpack.c.0.s8 %v2229
    %v2231 = vlaneseq
    %v2232 = vshrl.u32 %v2231, 7
    %v2233 = vsub.s32 %v2230, %v2232
    %v2234 = vrot.slane %v2226, %v2233
    %v2236 = vunpack.c.l.s4 1966171168
    %v2237 = vunpack.c.0.s8 %v2236
    %v2238 = vlaneseq
    %v2239 = vshrl.u32 %v2238, 7
    %v2240 = vsub.s32 %v2237, %v2239
    %v2241 = vrot.slane %v2227, %v2240
    %v2243 = vunpack.c.l.s4 1966171168
    %v2244 = vunpack.c.0.s8 %v2243
    %v2245 = vlaneseq
    %v2246 = vshrl.u32 %v2245, 7
    %v2247 = vsub.s32 %v2244, %v2246
    %v2248 = vrot.slane %v1500, %v2247
    %v2249 = vcombine.high %v2248, %v2248
    %v2251 = vunpack.c.l.s4 1966171168
    %v2252 = vunpack.c.0.s8 %v2251
    %v2253 = vlaneseq
    %v2254 = vshrl.u32 %v2253, 7
    %v2255 = vsub.s32 %v2252, %v2254
    %v2256 = vrot.slane %v2248, %v2255
    %v2258 = vunpack.c.l.s4 1966171168
    %v2259 = vunpack.c.0.s8 %v2258
    %v2260 = vlaneseq
    %v2261 = vshrl.u32 %v2260, 7
    %v2262 = vsub.s32 %v2259, %v2261
    %v2263 = vrot.slane %v2249, %v2262
    %v2265 = vunpack.c.l.s4 1966171168
    %v2266 = vunpack.c.0.s8 %v2265
    %v2267 = vlaneseq
    %v2268 = vshrl.u32 %v2267, 7
    %v2269 = vsub.s32 %v2266, %v2268
    %v2270 = vrot.slane %v1501, %v2269
    %v2271 = vcombine.high %v2270, %v2270
    %v2273 = vunpack.c.l.s4 1966171168
    %v2274 = vunpack.c.0.s8 %v2273
    %v2275 = vlaneseq
    %v2276 = vshrl.u32 %v2275, 7
    %v2277 = vsub.s32 %v2274, %v2276
    %v2278 = vrot.slane %v2270, %v2277
    %v2280 = vunpack.c.l.s4 1966171168
    %v2281 = vunpack.c.0.s8 %v2280
    %v2282 = vlaneseq
    %v2283 = vshrl.u32 %v2282, 7
    %v2284 = vsub.s32 %v2281, %v2283
    %v2285 = vrot.slane %v2271, %v2284
    %v2287 = vunpack.c.l.s4 1966171168
    %v2288 = vunpack.c.0.s8 %v2287
    %v2289 = vlaneseq
    %v2290 = vshrl.u32 %v2289, 7
    %v2291 = vsub.s32 %v2288, %v2290
    %v2292 = vrot.slane %v1502, %v2291
    %v2293 = vcombine.high %v2292, %v2292
    %v2295 = vunpack.c.l.s4 1966171168
    %v2296 = vunpack.c.0.s8 %v2295
    %v2297 = vlaneseq
    %v2298 = vshrl.u32 %v2297, 7
    %v2299 = vsub.s32 %v2296, %v2298
    %v2300 = vrot.slane %v2292, %v2299
    %v2302 = vunpack.c.l.s4 1966171168
    %v2303 = vunpack.c.0.s8 %v2302
    %v2304 = vlaneseq
    %v2305 = vshrl.u32 %v2304, 7
    %v2306 = vsub.s32 %v2303, %v2305
    %v2307 = vrot.slane %v2293, %v2306
    %v2308 = vcombine.low %v1524, %v1531
    %v2309 = vcombine.low %v1685, %v1692
    %v2310 = vcombine.low %v1846, %v1853
    %v2311 = vcombine.low %v2007, %v2014
    %v2313 = vunpack.c.l.s4 1966171168
    %v2314 = vunpack.c.0.s8 %v2313
    %v2315 = vlaneseq
    %v2316 = vshrl.u32 %v2315, 7
    %v2317 = vsub.s32 %v2314, %v2316
    %v2318 = vrot.slane %v2308, %v2317
    %v2320 = vunpack.c.l.s4 1966171168
    %v2321 = vunpack.c.0.s8 %v2320
    %v2322 = vlaneseq
    %v2323 = vshrl.u32 %v2322, 7
    %v2324 = vsub.s32 %v2321, %v2323
    %v2325 = vrot.slane %v2309, %v2324
    %v2327 = vunpack.c.l.s4 1966171168
    %v2328 = vunpack.c.0.s8 %v2327
    %v2329 = vlaneseq
    %v2330 = vshrl.u32 %v2329, 7
    %v2331 = vsub.s32 %v2328, %v2330
    %v2332 = vrot.slane %v2310, %v2331
    %v2334 = vunpack.c.l.s4 1966171168
    %v2335 = vunpack.c.0.s8 %v2334
    %v2336 = vlaneseq
    %v2337 = vshrl.u32 %v2336, 7
    %v2338 = vsub.s32 %v2335, %v2337
    %v2339 = vrot.slane %v2311, %v2338
    %v2340 = vcombine.low %v2318, %v2325
    %v2341 = vcombine.low %v2332, %v2339
    %v2343 = vunpack.c.l.s4 1966171168
    %v2344 = vunpack.c.0.s8 %v2343
    %v2345 = vlaneseq
    %v2346 = vshrl.u32 %v2345, 7
    %v2347 = vsub.s32 %v2344, %v2346
    %v2348 = vrot.slane %v2340, %v2347
    %v2350 = vunpack.c.l.s4 1966171168
    %v2351 = vunpack.c.0.s8 %v2350
    %v2352 = vlaneseq
    %v2353 = vshrl.u32 %v2352, 7
    %v2354 = vsub.s32 %v2351, %v2353
    %v2355 = vrot.slane %v2341, %v2354
    %v2356 = vcombine.low %v2348, %v2355
    %v2357 = vcombine.low %v2168, %v2175
    %v2359 = vunpack.c.l.s4 1966171168
    %v2360 = vunpack.c.0.s8 %v2359
    %v2361 = vlaneseq
    %v2362 = vshrl.u32 %v2361, 7
    %v2363 = vsub.s32 %v2360, %v2362
    %v2364 = vrot.slane %v2357, %v2363
    %v2366 = vunpack.c.l.s4 1966171168
    %v2367 = vunpack.c.0.s8 %v2366
    %v2368 = vlaneseq
    %v2369 = vshrl.u32 %v2368, 7
    %v2370 = vsub.s32 %v2367, %v2369
    %v2371 = vrot.slane %v2364, %v2370
    %v2372 = vcombine.low %v1546, %v1553
    %v2373 = vcombine.low %v1707, %v1714
    %v2374 = vcombine.low %v1868, %v1875
    %v2375 = vcombine.low %v2029, %v2036
    %v2377 = vunpack.c.l.s4 1966171168
    %v2378 = vunpack.c.0.s8 %v2377
    %v2379 = vlaneseq
    %v2380 = vshrl.u32 %v2379, 7
    %v2381 = vsub.s32 %v2378, %v2380
    %v2382 = vrot.slane %v2372, %v2381
    %v2384 = vunpack.c.l.s4 1966171168
    %v2385 = vunpack.c.0.s8 %v2384
    %v2386 = vlaneseq
    %v2387 = vshrl.u32 %v2386, 7
    %v2388 = vsub.s32 %v2385, %v2387
    %v2389 = vrot.slane %v2373, %v2388
    %v2391 = vunpack.c.l.s4 1966171168
    %v2392 = vunpack.c.0.s8 %v2391
    %v2393 = vlaneseq
    %v2394 = vshrl.u32 %v2393, 7
    %v2395 = vsub.s32 %v2392, %v2394
    %v2396 = vrot.slane %v2374, %v2395
    %v2398 = vunpack.c.l.s4 1966171168
    %v2399 = vunpack.c.0.s8 %v2398
    %v2400 = vlaneseq
    %v2401 = vshrl.u32 %v2400, 7
    %v2402 = vsub.s32 %v2399, %v2401
    %v2403 = vrot.slane %v2375, %v2402
    %v2404 = vcombine.low %v2382, %v2389
    %v2405 = vcombine.low %v2396, %v2403
    %v2407 = vunpack.c.l.s4 1966171168
    %v2408 = vunpack.c.0.s8 %v2407
    %v2409 = vlaneseq
    %v2410 = vshrl.u32 %v2409, 7
    %v2411 = vsub.s32 %v2408, %v2410
    %v2412 = vrot.slane %v2404, %v2411
    %v2414 = vunpack.c.l.s4 1966171168
    %v2415 = vunpack.c.0.s8 %v2414
    %v2416 = vlaneseq
    %v2417 = vshrl.u32 %v2416, 7
    %v2418 = vsub.s32 %v2415, %v2417
    %v2419 = vrot.slane %v2405, %v2418
    %v2420 = vcombine.low %v2412, %v2419
    %v2421 = vcombine.low %v2190, %v2197
    %v2423 = vunpack.c.l.s4 1966171168
    %v2424 = vunpack.c.0.s8 %v2423
    %v2425 = vlaneseq
    %v2426 = vshrl.u32 %v2425, 7
    %v2427 = vsub.s32 %v2424, %v2426
    %v2428 = vrot.slane %v2421, %v2427
    %v2430 = vunpack.c.l.s4 1966171168
    %v2431 = vunpack.c.0.s8 %v2430
    %v2432 = vlaneseq
    %v2433 = vshrl.u32 %v2432, 7
    %v2434 = vsub.s32 %v2431, %v2433
    %v2435 = vrot.slane %v2428, %v2434
    %v2436 = vcombine.low %v1568, %v1575
    %v2437 = vcombine.low %v1729, %v1736
    %v2438 = vcombine.low %v1890, %v1897
    %v2439 = vcombine.low %v2051, %v2058
    %v2441 = vunpack.c.l.s4 1966171168
    %v2442 = vunpack.c.0.s8 %v2441
    %v2443 = vlaneseq
    %v2444 = vshrl.u32 %v2443, 7
    %v2445 = vsub.s32 %v2442, %v2444
    %v2446 = vrot.slane %v2436, %v2445
    %v2448 = vunpack.c.l.s4 1966171168
    %v2449 = vunpack.c.0.s8 %v2448
    %v2450 = vlaneseq
    %v2451 = vshrl.u32 %v2450, 7
    %v2452 = vsub.s32 %v2449, %v2451
    %v2453 = vrot.slane %v2437, %v2452
    %v2455 = vunpack.c.l.s4 1966171168
    %v2456 = vunpack.c.0.s8 %v2455
    %v2457 = vlaneseq
    %v2458 = vshrl.u32 %v2457, 7
    %v2459 = vsub.s32 %v2456, %v2458
    %v2460 = vrot.slane %v2438, %v2459
    %v2462 = vunpack.c.l.s4 1966171168
    %v2463 = vunpack.c.0.s8 %v2462
    %v2464 = vlaneseq
    %v2465 = vshrl.u32 %v2464, 7
    %v2466 = vsub.s32 %v2463, %v2465
    %v2467 = vrot.slane %v2439, %v2466
    %v2468 = vcombine.low %v2446, %v2453
    %v2469 = vcombine.low %v2460, %v2467
    %v2471 = vunpack.c.l.s4 1966171168
    %v2472 = vunpack.c.0.s8 %v2471
    %v2473 = vlaneseq
    %v2474 = vshrl.u32 %v2473, 7
    %v2475 = vsub.s32 %v2472, %v2474
    %v2476 = vrot.slane %v2468, %v2475
    %v2478 = vunpack.c.l.s4 1966171168
    %v2479 = vunpack.c.0.s8 %v2478
    %v2480 = vlaneseq
    %v2481 = vshrl.u32 %v2480, 7
    %v2482 = vsub.s32 %v2479, %v2481
    %v2483 = vrot.slane %v2469, %v2482
    %v2484 = vcombine.low %v2476, %v2483
    %v2485 = vcombine.low %v2212, %v2219
    %v2487 = vunpack.c.l.s4 1966171168
    %v2488 = vunpack.c.0.s8 %v2487
    %v2489 = vlaneseq
    %v2490 = vshrl.u32 %v2489, 7
    %v2491 = vsub.s32 %v2488, %v2490
    %v2492 = vrot.slane %v2485, %v2491
    %v2494 = vunpack.c.l.s4 1966171168
    %v2495 = vunpack.c.0.s8 %v2494
    %v2496 = vlaneseq
    %v2497 = vshrl.u32 %v2496, 7
    %v2498 = vsub.s32 %v2495, %v2497
    %v2499 = vrot.slane %v2492, %v2498
    %v2500 = vcombine.low %v1590, %v1597
    %v2501 = vcombine.low %v1751, %v1758
    %v2502 = vcombine.low %v1912, %v1919
    %v2503 = vcombine.low %v2073, %v2080
    %v2505 = vunpack.c.l.s4 1966171168
    %v2506 = vunpack.c.0.s8 %v2505
    %v2507 = vlaneseq
    %v2508 = vshrl.u32 %v2507, 7
    %v2509 = vsub.s32 %v2506, %v2508
    %v2510 = vrot.slane %v2500, %v2509
    %v2512 = vunpack.c.l.s4 1966171168
    %v2513 = vunpack.c.0.s8 %v2512
    %v2514 = vlaneseq
    %v2515 = vshrl.u32 %v2514, 7
    %v2516 = vsub.s32 %v2513, %v2515
    %v2517 = vrot.slane %v2501, %v2516
    %v2519 = vunpack.c.l.s4 1966171168
    %v2520 = vunpack.c.0.s8 %v2519
    %v2521 = vlaneseq
    %v2522 = vshrl.u32 %v2521, 7
    %v2523 = vsub.s32 %v2520, %v2522
    %v2524 = vrot.slane %v2502, %v2523
    %v2526 = vunpack.c.l.s4 1966171168
    %v2527 = vunpack.c.0.s8 %v2526
    %v2528 = vlaneseq
    %v2529 = vshrl.u32 %v2528, 7
    %v2530 = vsub.s32 %v2527, %v2529
    %v2531 = vrot.slane %v2503, %v2530
    %v2532 = vcombine.low %v2510, %v2517
    %v2533 = vcombine.low %v2524, %v2531
    %v2535 = vunpack.c.l.s4 1966171168
    %v2536 = vunpack.c.0.s8 %v2535
    %v2537 = vlaneseq
    %v2538 = vshrl.u32 %v2537, 7
    %v2539 = vsub.s32 %v2536, %v2538
    %v2540 = vrot.slane %v2532, %v2539
    %v2542 = vunpack.c.l.s4 1966171168
    %v2543 = vunpack.c.0.s8 %v2542
    %v2544 = vlaneseq
    %v2545 = vshrl.u32 %v2544, 7
    %v2546 = vsub.s32 %v2543, %v2545
    %v2547 = vrot.slane %v2533, %v2546
    %v2548 = vcombine.low %v2540, %v2547
    %v2549 = vcombine.low %v2234, %v2241
    %v2551 = vunpack.c.l.s4 1966171168
    %v2552 = vunpack.c.0.s8 %v2551
    %v2553 = vlaneseq
    %v2554 = vshrl.u32 %v2553, 7
    %v2555 = vsub.s32 %v2552, %v2554
    %v2556 = vrot.slane %v2549, %v2555
    %v2558 = vunpack.c.l.s4 1966171168
    %v2559 = vunpack.c.0.s8 %v2558
    %v2560 = vlaneseq
    %v2561 = vshrl.u32 %v2560, 7
    %v2562 = vsub.s32 %v2559, %v2561
    %v2563 = vrot.slane %v2556, %v2562
    %v2564 = vcombine.low %v1612, %v1619
    %v2565 = vcombine.low %v1773, %v1780
    %v2566 = vcombine.low %v1934, %v1941
    %v2567 = vcombine.low %v2095, %v2102
    %v2569 = vunpack.c.l.s4 1966171168
    %v2570 = vunpack.c.0.s8 %v2569
    %v2571 = vlaneseq
    %v2572 = vshrl.u32 %v2571, 7
    %v2573 = vsub.s32 %v2570, %v2572
    %v2574 = vrot.slane %v2564, %v2573
    %v2576 = vunpack.c.l.s4 1966171168
    %v2577 = vunpack.c.0.s8 %v2576
    %v2578 = vlaneseq
    %v2579 = vshrl.u32 %v2578, 7
    %v2580 = vsub.s32 %v2577, %v2579
    %v2581 = vrot.slane %v2565, %v2580
    %v2583 = vunpack.c.l.s4 1966171168
    %v2584 = vunpack.c.0.s8 %v2583
    %v2585 = vlaneseq
    %v2586 = vshrl.u32 %v2585, 7
    %v2587 = vsub.s32 %v2584, %v2586
    %v2588 = vrot.slane %v2566, %v2587
    %v2590 = vunpack.c.l.s4 1966171168
    %v2591 = vunpack.c.0.s8 %v2590
    %v2592 = vlaneseq
    %v2593 = vshrl.u32 %v2592, 7
    %v2594 = vsub.s32 %v2591, %v2593
    %v2595 = vrot.slane %v2567, %v2594
    %v2596 = vcombine.low %v2574, %v2581
    %v2597 = vcombine.low %v2588, %v2595
    %v2599 = vunpack.c.l.s4 1966171168
    %v2600 = vunpack.c.0.s8 %v2599
    %v2601 = vlaneseq
    %v2602 = vshrl.u32 %v2601, 7
    %v2603 = vsub.s32 %v2600, %v2602
    %v2604 = vrot.slane %v2596, %v2603
    %v2606 = vunpack.c.l.s4 1966171168
    %v2607 = vunpack.c.0.s8 %v2606
    %v2608 = vlaneseq
    %v2609 = vshrl.u32 %v2608, 7
    %v2610 = vsub.s32 %v2607, %v2609
    %v2611 = vrot.slane %v2597, %v2610
    %v2612 = vcombine.low %v2604, %v2611
    %v2613 = vcombine.low %v2256, %v2263
    %v2615 = vunpack.c.l.s4 1966171168
    %v2616 = vunpack.c.0.s8 %v2615
    %v2617 = vlaneseq
    %v2618 = vshrl.u32 %v2617, 7
    %v2619 = vsub.s32 %v2616, %v2618
    %v2620 = vrot.slane %v2613, %v2619
    %v2622 = vunpack.c.l.s4 1966171168
    %v2623 = vunpack.c.0.s8 %v2622
    %v2624 = vlaneseq
    %v2625 = vshrl.u32 %v2624, 7
    %v2626 = vsub.s32 %v2623, %v2625
    %v2627 = vrot.slane %v2620, %v2626
    %v2628 = vcombine.low %v1634, %v1641
    %v2629 = vcombine.low %v1795, %v1802
    %v2630 = vcombine.low %v1956, %v1963
    %v2631 = vcombine.low %v2117, %v2124
    %v2633 = vunpack.c.l.s4 1966171168
    %v2634 = vunpack.c.0.s8 %v2633
    %v2635 = vlaneseq
    %v2636 = vshrl.u32 %v2635, 7
    %v2637 = vsub.s32 %v2634, %v2636
    %v2638 = vrot.slane %v2628, %v2637
    %v2640 = vunpack.c.l.s4 1966171168
    %v2641 = vunpack.c.0.s8 %v2640
    %v2642 = vlaneseq
    %v2643 = vshrl.u32 %v2642, 7
    %v2644 = vsub.s32 %v2641, %v2643
    %v2645 = vrot.slane %v2629, %v2644
    %v2647 = vunpack.c.l.s4 1966171168
    %v2648 = vunpack.c.0.s8 %v2647
    %v2649 = vlaneseq
    %v2650 = vshrl.u32 %v2649, 7
    %v2651 = vsub.s32 %v2648, %v2650
    %v2652 = vrot.slane %v2630, %v2651
    %v2654 = vunpack.c.l.s4 1966171168
    %v2655 = vunpack.c.0.s8 %v2654
    %v2656 = vlaneseq
    %v2657 = vshrl.u32 %v2656, 7
    %v2658 = vsub.s32 %v2655, %v2657
    %v2659 = vrot.slane %v2631, %v2658
    %v2660 = vcombine.low %v2638, %v2645
    %v2661 = vcombine.low %v2652, %v2659
    %v2663 = vunpack.c.l.s4 1966171168
    %v2664 = vunpack.c.0.s8 %v2663
    %v2665 = vlaneseq
    %v2666 = vshrl.u32 %v2665, 7
    %v2667 = vsub.s32 %v2664, %v2666
    %v2668 = vrot.slane %v2660, %v2667
    %v2670 = vunpack.c.l.s4 1966171168
    %v2671 = vunpack.c.0.s8 %v2670
    %v2672 = vlaneseq
    %v2673 = vshrl.u32 %v2672, 7
    %v2674 = vsub.s32 %v2671, %v2673
    %v2675 = vrot.slane %v2661, %v2674
    %v2676 = vcombine.low %v2668, %v2675
    %v2677 = vcombine.low %v2278, %v2285
    %v2679 = vunpack.c.l.s4 1966171168
    %v2680 = vunpack.c.0.s8 %v2679
    %v2681 = vlaneseq
    %v2682 = vshrl.u32 %v2681, 7
    %v2683 = vsub.s32 %v2680, %v2682
    %v2684 = vrot.slane %v2677, %v2683
    %v2686 = vunpack.c.l.s4 1966171168
    %v2687 = vunpack.c.0.s8 %v2686
    %v2688 = vlaneseq
    %v2689 = vshrl.u32 %v2688, 7
    %v2690 = vsub.s32 %v2687, %v2689
    %v2691 = vrot.slane %v2684, %v2690
    %v2692 = vcombine.low %v1656, %v1663
    %v2693 = vcombine.low %v1817, %v1824
    %v2694 = vcombine.low %v1978, %v1985
    %v2695 = vcombine.low %v2139, %v2146
    %v2697 = vunpack.c.l.s4 1966171168
    %v2698 = vunpack.c.0.s8 %v2697
    %v2699 = vlaneseq
    %v2700 = vshrl.u32 %v2699, 7
    %v2701 = vsub.s32 %v2698, %v2700
    %v2702 = vrot.slane %v2692, %v2701
    %v2704 = vunpack.c.l.s4 1966171168
    %v2705 = vunpack.c.0.s8 %v2704
    %v2706 = vlaneseq
    %v2707 = vshrl.u32 %v2706, 7
    %v2708 = vsub.s32 %v2705, %v2707
    %v2709 = vrot.slane %v2693, %v2708
    %v2711 = vunpack.c.l.s4 1966171168
    %v2712 = vunpack.c.0.s8 %v2711
    %v2713 = vlaneseq
    %v2714 = vshrl.u32 %v2713, 7
    %v2715 = vsub.s32 %v2712, %v2714
    %v2716 = vrot.slane %v2694, %v2715
    %v2718 = vunpack.c.l.s4 1966171168
    %v2719 = vunpack.c.0.s8 %v2718
    %v2720 = vlaneseq
    %v2721 = vshrl.u32 %v2720, 7
    %v2722 = vsub.s32 %v2719, %v2721
    %v2723 = vrot.slane %v2695, %v2722
    %v2724 = vcombine.low %v2702, %v2709
    %v2725 = vcombine.low %v2716, %v2723
    %v2727 = vunpack.c.l.s4 1966171168
    %v2728 = vunpack.c.0.s8 %v2727
    %v2729 = vlaneseq
    %v2730 = vshrl.u32 %v2729, 7
    %v2731 = vsub.s32 %v2728, %v2730
    %v2732 = vrot.slane %v2724, %v2731
    %v2734 = vunpack.c.l.s4 1966171168
    %v2735 = vunpack.c.0.s8 %v2734
    %v2736 = vlaneseq
    %v2737 = vshrl.u32 %v2736, 7
    %v2738 = vsub.s32 %v2735, %v2737
    %v2739 = vrot.slane %v2725, %v2738
    %v2740 = vcombine.low %v2732, %v2739
    %v2741 = vcombine.low %v2300, %v2307
    %v2743 = vunpack.c.l.s4 1966171168
    %v2744 = vunpack.c.0.s8 %v2743
    %v2745 = vlaneseq
    %v2746 = vshrl.u32 %v2745, 7
    %v2747 = vsub.s32 %v2744, %v2746
    %v2748 = vrot.slane %v2741, %v2747
    %v2750 = vunpack.c.l.s4 1966171168
    %v2751 = vunpack.c.0.s8 %v2750
    %v2752 = vlaneseq
    %v2753 = vshrl.u32 %v2752, 7
    %v2754 = vsub.s32 %v2751, %v2753
    %v2755 = vrot.slane %v2748, %v2754
    %v2756 = vcombine.low %v2356, %v2420
    %v2757 = vcombine.high %v2356, %v2420
    %v2758 = vcombine.low %v2484, %v2548
    %v2759 = vcombine.high %v2484, %v2548
    %v2760 = vcombine.low %v2612, %v2676
    %v2761 = vcombine.high %v2612, %v2676
    %v2762 = vcombine.high %v2740, %v2740
    %v2764 = vunpack.c.l.s4 1966171168
    %v2765 = vunpack.c.0.s8 %v2764
    %v2766 = vlaneseq
    %v2767 = vshrl.u32 %v2766, 7
    %v2768 = vsub.s32 %v2765, %v2767
    %v2769 = vrot.slane %v2756, %v2768
    %v2771 = vunpack.c.l.s4 1966171168
    %v2772 = vunpack.c.0.s8 %v2771
    %v2773 = vlaneseq
    %v2774 = vshrl.u32 %v2773, 7
    %v2775 = vsub.s32 %v2772, %v2774
    %v2776 = vrot.slane %v2757, %v2775
    %v2778 = vunpack.c.l.s4 1966171168
    %v2779 = vunpack.c.0.s8 %v2778
    %v2780 = vlaneseq
    %v2781 = vshrl.u32 %v2780, 7
    %v2782 = vsub.s32 %v2779, %v2781
    %v2783 = vrot.slane %v2758, %v2782
    %v2785 = vunpack.c.l.s4 1966171168
    %v2786 = vunpack.c.0.s8 %v2785
    %v2787 = vlaneseq
    %v2788 = vshrl.u32 %v2787, 7
    %v2789 = vsub.s32 %v2786, %v2788
    %v2790 = vrot.slane %v2759, %v2789
    %v2792 = vunpack.c.l.s4 1966171168
    %v2793 = vunpack.c.0.s8 %v2792
    %v2794 = vlaneseq
    %v2795 = vshrl.u32 %v2794, 7
    %v2796 = vsub.s32 %v2793, %v2795
    %v2797 = vrot.slane %v2760, %v2796
    %v2799 = vunpack.c.l.s4 1966171168
    %v2800 = vunpack.c.0.s8 %v2799
    %v2801 = vlaneseq
    %v2802 = vshrl.u32 %v2801, 7
    %v2803 = vsub.s32 %v2800, %v2802
    %v2804 = vrot.slane %v2761, %v2803
    %v2806 = vunpack.c.l.s4 1966171168
    %v2807 = vunpack.c.0.s8 %v2806
    %v2808 = vlaneseq
    %v2809 = vshrl.u32 %v2808, 7
    %v2810 = vsub.s32 %v2807, %v2809
    %v2811 = vrot.slane %v2740, %v2810
    %v2813 = vunpack.c.l.s4 1966171168
    %v2814 = vunpack.c.0.s8 %v2813
    %v2815 = vlaneseq
    %v2816 = vshrl.u32 %v2815, 7
    %v2817 = vsub.s32 %v2814, %v2816
    %v2818 = vrot.slane %v2762, %v2817
    %v2819 = vcombine.low %v2769, %v2783
    %v2820 = vcombine.high %v2769, %v2783
    %v2821 = vcombine.low %v2776, %v2790
    %v2822 = vcombine.high %v2776, %v2790
    %v2823 = vcombine.low %v2797, %v2811
    %v2824 = vcombine.high %v2797, %v2811
    %v2825 = vcombine.low %v2804, %v2818
    %v2826 = vcombine.high %v2804, %v2818
    %v2828 = vunpack.c.l.s4 1966171168
    %v2829 = vunpack.c.0.s8 %v2828
    %v2830 = vlaneseq
    %v2831 = vshrl.u32 %v2830, 7
    %v2832 = vsub.s32 %v2829, %v2831
    %v2833 = vrot.slane %v2819, %v2832
    %v2835 = vunpack.c.l.s4 1966171168
    %v2836 = vunpack.c.0.s8 %v2835
    %v2837 = vlaneseq
    %v2838 = vshrl.u32 %v2837, 7
    %v2839 = vsub.s32 %v2836, %v2838
    %v2840 = vrot.slane %v2821, %v2839
    %v2842 = vunpack.c.l.s4 1966171168
    %v2843 = vunpack.c.0.s8 %v2842
    %v2844 = vlaneseq
    %v2845 = vshrl.u32 %v2844, 7
    %v2846 = vsub.s32 %v2843, %v2845
    %v2847 = vrot.slane %v2820, %v2846
    %v2849 = vunpack.c.l.s4 1966171168
    %v2850 = vunpack.c.0.s8 %v2849
    %v2851 = vlaneseq
    %v2852 = vshrl.u32 %v2851, 7
    %v2853 = vsub.s32 %v2850, %v2852
    %v2854 = vrot.slane %v2822, %v2853
    %v2856 = vunpack.c.l.s4 1966171168
    %v2857 = vunpack.c.0.s8 %v2856
    %v2858 = vlaneseq
    %v2859 = vshrl.u32 %v2858, 7
    %v2860 = vsub.s32 %v2857, %v2859
    %v2861 = vrot.slane %v2823, %v2860
    %v2863 = vunpack.c.l.s4 1966171168
    %v2864 = vunpack.c.0.s8 %v2863
    %v2865 = vlaneseq
    %v2866 = vshrl.u32 %v2865, 7
    %v2867 = vsub.s32 %v2864, %v2866
    %v2868 = vrot.slane %v2825, %v2867
    %v2870 = vunpack.c.l.s4 1966171168
    %v2871 = vunpack.c.0.s8 %v2870
    %v2872 = vlaneseq
    %v2873 = vshrl.u32 %v2872, 7
    %v2874 = vsub.s32 %v2871, %v2873
    %v2875 = vrot.slane %v2824, %v2874
    %v2877 = vunpack.c.l.s4 1966171168
    %v2878 = vunpack.c.0.s8 %v2877
    %v2879 = vlaneseq
    %v2880 = vshrl.u32 %v2879, 7
    %v2881 = vsub.s32 %v2878, %v2880
    %v2882 = vrot.slane %v2826, %v2881
    %v2883 = vcombine.low %v2833, %v2861
    %v2884 = vcombine.high %v2833, %v2861
    %v2885 = vcombine.low %v2840, %v2868
    %v2886 = vcombine.high %v2840, %v2868
    %v2887 = vcombine.low %v2847, %v2875
    %v2888 = vcombine.high %v2847, %v2875
    %v2889 = vcombine.low %v2854, %v2882
    %v2890 = vcombine.high %v2854, %v2882
    %v2891 = vcombine.low %v2371, %v2435
    %v2892 = vcombine.low %v2499, %v2563
    %v2893 = vcombine.low %v2627, %v2691
    %v2895 = vunpack.c.l.s4 1966171168
    %v2896 = vunpack.c.0.s8 %v2895
    %v2897 = vlaneseq
    %v2898 = vshrl.u32 %v2897, 7
    %v2899 = vsub.s32 %v2896, %v2898
    %v2900 = vrot.slane %v2891, %v2899
    %v2902 = vunpack.c.l.s4 1966171168
    %v2903 = vunpack.c.0.s8 %v2902
    %v2904 = vlaneseq
    %v2905 = vshrl.u32 %v2904, 7
    %v2906 = vsub.s32 %v2903, %v2905
    %v2907 = vrot.slane %v2892, %v2906
    %v2909 = vunpack.c.l.s4 1966171168
    %v2910 = vunpack.c.0.s8 %v2909
    %v2911 = vlaneseq
    %v2912 = vshrl.u32 %v2911, 7
    %v2913 = vsub.s32 %v2910, %v2912
    %v2914 = vrot.slane %v2893, %v2913
    %v2916 = vunpack.c.l.s4 1966171168
    %v2917 = vunpack.c.0.s8 %v2916
    %v2918 = vlaneseq
    %v2919 = vshrl.u32 %v2918, 7
    %v2920 = vsub.s32 %v2917, %v2919
    %v2921 = vrot.slane %v2755, %v2920
    %v2922 = vcombine.low %v2900, %v2907
    %v2923 = vcombine.high %v2900, %v2907
    %v2924 = vcombine.low %v2914, %v2921
    %v2925 = vcombine.high %v2914, %v2921
    %v2927 = vunpack.c.l.s4 1966171168
    %v2928 = vunpack.c.0.s8 %v2927
    %v2929 = vlaneseq
    %v2930 = vshrl.u32 %v2929, 7
    %v2931 = vsub.s32 %v2928, %v2930
    %v2932 = vrot.slane %v2922, %v2931
    %v2934 = vunpack.c.l.s4 1966171168
    %v2935 = vunpack.c.0.s8 %v2934
    %v2936 = vlaneseq
    %v2937 = vshrl.u32 %v2936, 7
    %v2938 = vsub.s32 %v2935, %v2937
    %v2939 = vrot.slane %v2923, %v2938
    %v2941 = vunpack.c.l.s4 1966171168
    %v2942 = vunpack.c.0.s8 %v2941
    %v2943 = vlaneseq
    %v2944 = vshrl.u32 %v2943, 7
    %v2945 = vsub.s32 %v2942, %v2944
    %v2946 = vrot.slane %v2924, %v2945
    %v2948 = vunpack.c.l.s4 1966171168
    %v2949 = vunpack.c.0.s8 %v2948
    %v2950 = vlaneseq
    %v2951 = vshrl.u32 %v2950, 7
    %v2952 = vsub.s32 %v2949, %v2951
    %v2953 = vrot.slane %v2925, %v2952
    %v2954 = vcombine.low %v2932, %v2946
    %v2955 = vcombine.low %v2939, %v2953
    %v3286 = vunpack.c.l.b16 %v77
    %v3287 = vunpack.c.h.b16 %v77
    %v3288 = vunpack.c.l.b16 %v78
    %v3289 = vunpack.c.h.b16 %v78
    %v3290 = vunpack.c.l.b16 %v79
    %v3291 = vunpack.c.h.b16 %v79
    %v3292 = vunpack.c.l.b16 %v80
    %v3293 = vunpack.c.h.b16 %v80
    %v3294 = vunpack.c.l.b16 %v81
    %v3295 = vunpack.c.h.b16 %v81
    %v3296 = vunpack.c.l.b16 %v82
    %v3297 = vunpack.c.h.b16 %v82
    %v3298 = vunpack.c.l.b16 %v83
    %v3299 = vunpack.c.h.b16 %v83
    %v3300 = vunpack.c.l.b16 %v84
    %v3301 = vunpack.c.h.b16 %v84
    %v3302 = vunpack.c.l.b16 %v85
    %v3303 = vunpack.c.h.b16 %v85
    %v3304 = vunpack.c.l.b16 %v86
    %v3305 = vunpack.c.h.b16 %v86
    %v3306 = vunpack.c.l.b16 %v87
    %v3307 = vunpack.c.h.b16 %v87
    %v3308 = vunpack.c.l.b16 %v88
    %v3309 = vunpack.c.h.b16 %v88
    %v3310 = vunpack.c.l.b16 %v89
    %v3311 = vunpack.c.h.b16 %v89
    %v3312 = vunpack.c.l.b16 %v90
    %v3313 = vunpack.c.h.b16 %v90
    %v3314 = vunpack.c.l.b16 %v91
    %v3315 = vunpack.c.h.b16 %v91
    %v3316 = vunpack.c.l.b16 %v92
    %v3317 = vunpack.c.h.b16 %v92
    %v3318 = vunpack.c.l.b16 %v93
    %v3319 = vunpack.c.h.b16 %v93
    %v3320 = vunpack.c.l.b16 %v94
    %v3321 = vunpack.c.h.b16 %v94
    %v3322 = vunpack.c.l.b16 %v95
    %v3323 = vunpack.c.h.b16 %v95
    %v3324 = vunpack.c.l.b16 %v96
    %v3325 = vunpack.c.h.b16 %v96
    %v3326 = vunpack.c.l.b16 %v97
    %v3327 = vunpack.c.h.b16 %v97
    %v3328 = vunpack.c.l.b16 %v98
    %v3329 = vunpack.c.h.b16 %v98
    %v3330 = vunpack.c.l.b16 %v99
    %v3331 = vunpack.c.h.b16 %v99
    %v3332 = vunpack.c.l.b16 %v100
    %v3333 = vunpack.c.h.b16 %v100
    %v3334 = vunpack.c.l.b16 %v101
    %v3335 = vunpack.c.h.b16 %v101
    %v3336 = vunpack.c.l.b16 %v102
    %v3337 = vunpack.c.h.b16 %v102
    %v3338 = vunpack.c.l.b16 %v103
    %v3339 = vunpack.c.h.b16 %v103
    %v3340 = vunpack.c.l.b16 %v104
    %v3341 = vunpack.c.h.b16 %v104
    %v3342 = vunpack.c.l.b16 %v105
    %v3343 = vunpack.c.h.b16 %v105
    %v3344 = vunpack.c.l.b16 %v106
    %v3345 = vunpack.c.h.b16 %v106
    %v3346 = vunpack.c.l.b16 %v107
    %v3347 = vunpack.c.h.b16 %v107
    %v3348 = vunpack.c.l.b16 %v108
    %v3349 = vunpack.c.h.b16 %v108
    %v3350 = vunpack.c.l.b16 %v109
    %v3351 = vunpack.c.h.b16 %v109
    %v3352 = vunpack.c.l.b16 %v110
    %v3353 = vunpack.c.h.b16 %v110
    %v3354 = vunpack.c.l.b16 %v111
    %v3355 = vunpack.c.h.b16 %v111
    %v3356 = vunpack.c.l.b16 %v112
    %v3357 = vunpack.c.h.b16 %v112
    %v3358 = vunpack.c.l.b16 %v113
    %v3359 = vunpack.c.h.b16 %v113
    %v3360 = vunpack.c.l.b16 %v114
    %v3361 = vunpack.c.h.b16 %v114
    %v3362 = vunpack.c.l.b16 %v115
    %v3363 = vunpack.c.h.b16 %v115
    %v3364 = vunpack.c.l.b16 %v116
    %v3365 = vunpack.c.h.b16 %v116
    %v3366 = vunpack.c.l.b16 %v117
    %v3367 = vunpack.c.h.b16 %v117
    %v3368 = vunpack.c.l.b16 %v118
    %v3369 = vunpack.c.h.b16 %v118
    %v3370 = vunpack.c.l.b16 %v119
    %v3371 = vunpack.c.h.b16 %v119
    %v3372 = vunpack.c.l.b16 %v120
    %v3373 = vunpack.c.h.b16 %v120
    %v3374 = vunpack.c.l.b16 %v121
    %v3375 = vunpack.c.h.b16 %v121
    %v3376 = vunpack.c.l.b16 %v122
    %v3377 = vunpack.c.h.b16 %v122
    %v3378 = vunpack.c.l.b16 %v123
    %v3379 = vunpack.c.h.b16 %v123
    %v3380 = vunpack.c.l.b16 %v124
    %v3381 = vunpack.c.h.b16 %v124
    %v3382 = vunpack.c.l.b16 %v125
    %v3383 = vunpack.c.h.b16 %v125
    %v3384 = vunpack.c.l.b16 %v126
    %v3385 = vunpack.c.h.b16 %v126
    %v3386 = vunpack.c.l.b16 %v127
    %v3387 = vunpack.c.h.b16 %v127
    %v3388 = vunpack.c.l.b16 %v128
    %v3389 = vunpack.c.h.b16 %v128
    %v3390 = vunpack.c.l.b16 %v129
    %v3391 = vunpack.c.h.b16 %v129
    %v3392 = vunpack.c.l.b16 %v130
    %v3393 = vunpack.c.h.b16 %v130
    %v3394 = vunpack.c.l.b16 %v131
    %v3395 = vunpack.c.h.b16 %v131
    %v3396 = vunpack.c.l.b16 %v132
    %v3397 = vunpack.c.h.b16 %v132
    %v3398 = vunpack.c.l.b16 %v133
    %v3399 = vunpack.c.h.b16 %v133
    %v3400 = vunpack.c.l.b16 %v134
    %v3401 = vunpack.c.h.b16 %v134
    %v3402 = vunpack.c.l.b16 %v135
    %v3403 = vunpack.c.h.b16 %v135
    %v3404 = vunpack.c.l.b16 %v136
    %v3405 = vunpack.c.h.b16 %v136
    %v3406 = vunpack.c.l.b16 %v137
    %v3407 = vunpack.c.h.b16 %v137
    %v3408 = vunpack.c.l.b16 %v138
    %v3409 = vunpack.c.h.b16 %v138
    %v3410 = vunpack.c.l.b16 %v139
    %v3411 = vunpack.c.h.b16 %v139
    %v3412 = vunpack.c.l.b16 %v140
    %v3413 = vunpack.c.h.b16 %v140
    %v3414 = vunpack.c.l.b16 %v141
    %v3415 = vunpack.c.h.b16 %v141
    %v3416 = vunpack.c.l.b16 %v142
    %v3417 = vunpack.c.h.b16 %v142
    %v3418 = vunpack.c.l.b16 %v143
    %v3419 = vunpack.c.h.b16 %v143
    %v3420 = vunpack.c.l.b16 %v144
    %v3421 = vunpack.c.h.b16 %v144
    %v3422 = vunpack.c.l.b16 %v145
    %v3423 = vunpack.c.h.b16 %v145
    %v3424 = vunpack.c.l.b16 %v146
    %v3425 = vunpack.c.h.b16 %v146
    %v3426 = vunpack.c.l.b16 %v147
    %v3427 = vunpack.c.h.b16 %v147
    %v3428 = vunpack.c.l.b16 %v148
    %v3429 = vunpack.c.h.b16 %v148
    %v3430 = vunpack.c.l.b16 %v149
    %v3431 = vunpack.c.h.b16 %v149
    %v3432 = vunpack.c.l.b16 %v150
    %v3433 = vunpack.c.h.b16 %v150
    %v3434 = vunpack.c.l.b16 %v151
    %v3435 = vunpack.c.h.b16 %v151
    %v3436 = vunpack.c.l.b16 %v152
    %v3437 = vunpack.c.h.b16 %v152
    %v3438 = vunpack.c.l.b16 %v153
    %v3439 = vunpack.c.h.b16 %v153
    %v3440 = vunpack.c.l.b16 %v154
    %v3441 = vunpack.c.h.b16 %v154
    %v3442 = vunpack.c.l.b16 %v155
    %v3443 = vunpack.c.h.b16 %v155
    %v3444 = vunpack.c.l.b16 %v156
    %v3445 = vunpack.c.h.b16 %v156
    %v3446 = vunpack.c.l.b16 %v157
    %v3447 = vunpack.c.h.b16 %v157
    %v3448 = vunpack.c.l.b16 %v158
    %v3449 = vunpack.c.h.b16 %v158
    %v3450 = vunpack.c.l.b16 %v159
    %v3451 = vunpack.c.h.b16 %v159
    %v3452 = vunpack.c.l.b16 %v160
    %v3453 = vunpack.c.h.b16 %v160
    %v3454 = vunpack.c.l.b16 %v161
    %v3455 = vunpack.c.h.b16 %v161
    %v3456 = vunpack.c.l.b16 %v162
    %v3457 = vunpack.c.h.b16 %v162
    %v3458 = vunpack.c.l.b16 %v163
    %v3459 = vunpack.c.h.b16 %v163
    %v3460 = vunpack.c.l.b16 %v164
    %v3461 = vunpack.c.h.b16 %v164
    %v3462 = vunpack.c.l.b16 %v165
    %v3463 = vunpack.c.h.b16 %v165
    %v3464 = vunpack.c.l.b16 %v166
    %v3465 = vunpack.c.h.b16 %v166
    %v3466 = vunpack.c.l.b16 %v167
    %v3467 = vunpack.c.h.b16 %v167
    %v3468 = vunpack.c.l.b16 %v168
    %v3469 = vunpack.c.h.b16 %v168
    %v3470 = vunpack.c.l.b16 %v169
    %v3471 = vunpack.c.h.b16 %v169
    %v3472 = vunpack.c.l.b16 %v170
    %v3473 = vunpack.c.h.b16 %v170
    %v3474 = vunpack.c.l.b16 %v171
    %v3475 = vunpack.c.h.b16 %v171
    %v3476 = vunpack.c.l.b16 %v172
    %v3477 = vunpack.c.h.b16 %v172
    %v3478 = vunpack.c.l.b16 %v173
    %v3479 = vunpack.c.h.b16 %v173
    %v3480 = vunpack.c.l.b16 %v174
    %v3481 = vunpack.c.h.b16 %v174
    %v3482 = vunpack.c.l.b16 %v175
    %v3483 = vunpack.c.h.b16 %v175
    %v3484 = vunpack.c.l.b16 %v176
    %v3485 = vunpack.c.h.b16 %v176
    %v3486 = vunpack.c.l.b16 %v177
    %v3487 = vunpack.c.h.b16 %v177
    %v3488 = vunpack.c.l.b16 %v178
    %v3489 = vunpack.c.h.b16 %v178
    %v3490 = vunpack.c.l.b16 %v179
    %v3491 = vunpack.c.h.b16 %v179
    %v3492 = vunpack.c.l.b16 %v180
    %v3493 = vunpack.c.h.b16 %v180
    %v3494 = vunpack.c.l.b16 %v181
    %v3495 = vunpack.c.h.b16 %v181
    %v3496 = vunpack.c.l.b16 %v182
    %v3497 = vunpack.c.h.b16 %v182
    %v3498 = vunpack.c.l.b16 %v183
    %v3499 = vunpack.c.h.b16 %v183
    %v3500 = vunpack.c.l.b16 %v184
    %v3501 = vunpack.c.h.b16 %v184
    %v3502 = vunpack.c.l.b16 %v185
    %v3503 = vunpack.c.h.b16 %v185
    %v3504 = vunpack.c.l.b16 %v186
    %v3505 = vunpack.c.h.b16 %v186
    %v3506 = vunpack.c.l.b16 %v187
    %v3507 = vunpack.c.h.b16 %v187
    %v3508 = vunpack.c.l.b16 %v188
    %v3509 = vunpack.c.h.b16 %v188
    %v3510 = vunpack.c.l.b16 %v189
    %v3511 = vunpack.c.h.b16 %v189
    %v3512 = vunpack.c.l.b16 %v190
    %v3513 = vunpack.c.h.b16 %v190
    %v3514 = vunpack.c.l.b16 %v191
    %v3515 = vunpack.c.h.b16 %v191
    %v3516 = vunpack.c.l.b16 %v192
    %v3517 = vunpack.c.h.b16 %v192
    %v3518 = vunpack.c.l.b16 %v193
    %v3519 = vunpack.c.h.b16 %v193
    %v3520 = vunpack.c.l.b16 %v194
    %v3521 = vunpack.c.h.b16 %v194
    %v3522 = vunpack.c.l.b16 %v195
    %v3523 = vunpack.c.h.b16 %v195
    %v3524 = vunpack.c.l.b16 %v196
    %v3525 = vunpack.c.h.b16 %v196
    %v3526 = vunpack.c.l.b16 %v197
    %v3527 = vunpack.c.h.b16 %v197
    %v3528 = vunpack.c.l.b16 %v198
    %v3529 = vunpack.c.h.b16 %v198
    %v3530 = vunpack.c.l.b16 %v199
    %v3531 = vunpack.c.h.b16 %v199
    %v3532 = vunpack.c.l.b16 %v200
    %v3533 = vunpack.c.h.b16 %v200
    %v3534 = vunpack.c.l.b16 %v201
    %v3535 = vunpack.c.h.b16 %v201
    %v3536 = vunpack.c.l.b16 %v202
    %v3537 = vunpack.c.h.b16 %v202
    %v3538 = vunpack.c.l.b16 %v203
    %v3539 = vunpack.c.h.b16 %v203
    %v3540 = vunpack.c.l.b16 %v204
    %v3541 = vunpack.c.h.b16 %v204
    %v3542 = vunpack.c.l.b16 %v205
    %v3543 = vunpack.c.h.b16 %v205
    %v3544 = vunpack.c.l.b16 %v206
    %v3545 = vunpack.c.h.b16 %v206
    %v3546 = vunpack.c.l.b16 %v207
    %v3547 = vunpack.c.h.b16 %v207
    %v3548 = vunpack.c.l.b16 %v208
    %v3549 = vunpack.c.h.b16 %v208
    %v3550 = vunpack.c.l.b16 %v209
    %v3551 = vunpack.c.h.b16 %v209
    %v3552 = vunpack.c.l.b16 %v210
    %v3553 = vunpack.c.h.b16 %v210
    %v3554 = vunpack.c.l.b16 %v211
    %v3555 = vunpack.c.h.b16 %v211
    %v3556 = vunpack.c.l.b16 %v212
    %v3557 = vunpack.c.h.b16 %v212
    %v3558 = vunpack.c.l.b16 %v213
    %v3559 = vunpack.c.h.b16 %v213
    %v3560 = vunpack.c.l.b16 %v214
    %v3561 = vunpack.c.h.b16 %v214
    %v3562 = vunpack.c.l.b16 %v215
    %v3563 = vunpack.c.h.b16 %v215
    %v3564 = vunpack.c.l.b16 %v216
    %v3565 = vunpack.c.h.b16 %v216
    %v3566 = vunpack.c.l.b16 %v217
    %v3567 = vunpack.c.h.b16 %v217
    %v3568 = vunpack.c.l.b16 %v218
    %v3569 = vunpack.c.h.b16 %v218
    %v3570 = vunpack.c.l.b16 %v219
    %v3571 = vunpack.c.h.b16 %v219
    %v3572 = vunpack.c.l.b16 %v220
    %v3573 = vunpack.c.h.b16 %v220
    %v3574 = vunpack.c.l.b16 %v221
    %v3575 = vunpack.c.h.b16 %v221
    %v3576 = vunpack.c.l.b16 %v222
    %v3577 = vunpack.c.h.b16 %v222
    %v3578 = vunpack.c.l.b16 %v223
    %v3579 = vunpack.c.h.b16 %v223
    %v3580 = vunpack.c.l.b16 %v224
    %v3581 = vunpack.c.h.b16 %v224
    %v3582 = vunpack.c.l.b16 %v225
    %v3583 = vunpack.c.h.b16 %v225
    %v3584 = vunpack.c.l.b16 %v226
    %v3585 = vunpack.c.h.b16 %v226
    %v3586 = vunpack.c.l.b16 %v227
    %v3587 = vunpack.c.h.b16 %v227
    %v3588 = vunpack.c.l.b16 %v228
    %v3589 = vunpack.c.h.b16 %v228
    %v3590 = vunpack.c.l.b16 %v229
    %v3591 = vunpack.c.h.b16 %v229
    %v3592 = vunpack.c.l.b16 %v230
    %v3593 = vunpack.c.h.b16 %v230
    %v3594 = vunpack.c.l.b16 %v231
    %v3595 = vunpack.c.h.b16 %v231
    %v3596 = vunpack.c.l.b16 %v232
    %v3597 = vunpack.c.h.b16 %v232
    %v3598 = vunpack.c.l.b16 %v233
    %v3599 = vunpack.c.h.b16 %v233
    %v3600 = vunpack.c.l.b16 %v234
    %v3601 = vunpack.c.h.b16 %v234
    %v3602 = vunpack.c.l.b16 %v235
    %v3603 = vunpack.c.h.b16 %v235
    %v3604 = vunpack.c.l.b16 %v236
    %v3605 = vunpack.c.h.b16 %v236
    %v3606 = vunpack.c.l.b16 %v237
    %v3607 = vunpack.c.h.b16 %v237
    %v3608 = vunpack.c.l.b16 %v238
    %v3609 = vunpack.c.h.b16 %v238
    %v3610 = vunpack.c.l.b16 %v239
    %v3611 = vunpack.c.h.b16 %v239
    %v3612 = vunpack.c.l.b16 %v240
    %v3613 = vunpack.c.h.b16 %v240
    %v3614 = vunpack.c.l.b16 %v241
    %v3615 = vunpack.c.h.b16 %v241
    %v3616 = vunpack.c.l.b16 %v242
    %v3617 = vunpack.c.h.b16 %v242
    %v3618 = vunpack.c.l.b16 %v243
    %v3619 = vunpack.c.h.b16 %v243
    %v3620 = vunpack.c.l.b16 %v244
    %v3621 = vunpack.c.h.b16 %v244
    %v3622 = vunpack.c.l.b16 %v245
    %v3623 = vunpack.c.h.b16 %v245
    %v3624 = vunpack.c.l.b16 %v246
    %v3625 = vunpack.c.h.b16 %v246
    %v3626 = vunpack.c.l.b16 %v247
    %v3627 = vunpack.c.h.b16 %v247
    %v3628 = vunpack.c.l.b16 %v248
    %v3629 = vunpack.c.h.b16 %v248
    %v3630 = vunpack.c.l.b16 %v249
    %v3631 = vunpack.c.h.b16 %v249
    %v3632 = vunpack.c.l.b16 %v250
    %v3633 = vunpack.c.h.b16 %v250
    %v3634 = vunpack.c.l.b16 %v251
    %v3635 = vunpack.c.h.b16 %v251
    %v3636 = vunpack.c.l.b16 %v252
    %v3637 = vunpack.c.h.b16 %v252
    %v3638 = vunpack.c.l.b16 %v253
    %v3639 = vunpack.c.h.b16 %v253
    %v3640 = vunpack.c.l.b16 %v254
    %v3641 = vunpack.c.h.b16 %v254
    %v3642 = vunpack.c.l.b16 %v255
    %v3643 = vunpack.c.h.b16 %v255
    %v3644 = vunpack.c.l.b16 %v256
    %v3645 = vunpack.c.h.b16 %v256
    %v3646 = vunpack.c.l.b16 %v257
    %v3647 = vunpack.c.h.b16 %v257
    %v3648 = vunpack.c.l.b16 %v258
    %v3649 = vunpack.c.h.b16 %v258
    %v3650 = vunpack.c.l.b16 %v259
    %v3651 = vunpack.c.h.b16 %v259
    %v3652 = vunpack.c.l.b16 %v260
    %v3653 = vunpack.c.h.b16 %v260
    %v3654 = vunpack.c.l.b16 %v261
    %v3655 = vunpack.c.h.b16 %v261
    %v3656 = vunpack.c.l.b16 %v262
    %v3657 = vunpack.c.h.b16 %v262
    %v3658 = vunpack.c.l.b16 %v263
    %v3659 = vunpack.c.h.b16 %v263
    %v3660 = vunpack.c.l.b16 %v264
    %v3661 = vunpack.c.h.b16 %v264
    %v3662 = vunpack.c.l.b16 %v265
    %v3663 = vunpack.c.h.b16 %v265
    %v3664 = vunpack.c.l.b16 %v266
    %v3665 = vunpack.c.h.b16 %v266
    %v3666 = vunpack.c.l.b16 %v267
    %v3667 = vunpack.c.h.b16 %v267
    %v3668 = vunpack.c.l.b16 %v268
    %v3669 = vunpack.c.h.b16 %v268
    %v3670 = vunpack.c.l.b16 %v269
    %v3671 = vunpack.c.h.b16 %v269
    %v3672 = vunpack.c.l.b16 %v270
    %v3673 = vunpack.c.h.b16 %v270
    %v3674 = vunpack.c.l.b16 %v271
    %v3675 = vunpack.c.h.b16 %v271
    %v3676 = vunpack.c.l.b16 %v272
    %v3677 = vunpack.c.h.b16 %v272
    %v3678 = vunpack.c.l.b16 %v273
    %v3679 = vunpack.c.h.b16 %v273
    %v3680 = vunpack.c.l.b16 %v274
    %v3681 = vunpack.c.h.b16 %v274
    %v3682 = vunpack.c.l.b16 %v275
    %v3683 = vunpack.c.h.b16 %v275
    %v3684 = vunpack.c.l.b16 %v276
    %v3685 = vunpack.c.h.b16 %v276
    %v3686 = vunpack.c.l.b16 %v277
    %v3687 = vunpack.c.h.b16 %v277
    %v3688 = vunpack.c.l.b16 %v278
    %v3689 = vunpack.c.h.b16 %v278
    %v3690 = vunpack.c.l.b16 %v279
    %v3691 = vunpack.c.h.b16 %v279
    %v3692 = vunpack.c.l.b16 %v280
    %v3693 = vunpack.c.h.b16 %v280
    %v3694 = vunpack.c.l.b16 %v281
    %v3695 = vunpack.c.h.b16 %v281
    %v3696 = vunpack.c.l.b16 %v282
    %v3697 = vunpack.c.h.b16 %v282
    %v3698 = vunpack.c.l.b16 %v283
    %v3699 = vunpack.c.h.b16 %v283
    %v3700 = vunpack.c.l.b16 %v284
    %v3701 = vunpack.c.h.b16 %v284
    %v3702 = vunpack.c.l.b16 %v285
    %v3703 = vunpack.c.h.b16 %v285
    %v3704 = vunpack.c.l.b16 %v286
    %v3705 = vunpack.c.h.b16 %v286
    %v3706 = vunpack.c.l.b16 %v287
    %v3707 = vunpack.c.h.b16 %v287
    %v3708 = vunpack.c.l.b16 %v288
    %v3709 = vunpack.c.h.b16 %v288
    %v3710 = vunpack.c.l.b16 %v289
    %v3711 = vunpack.c.h.b16 %v289
    %v3712 = vunpack.c.l.b16 %v290
    %v3713 = vunpack.c.h.b16 %v290
    %v3714 = vunpack.c.l.b16 %v291
    %v3715 = vunpack.c.h.b16 %v291
    %v3716 = vunpack.c.l.b16 %v292
    %v3717 = vunpack.c.h.b16 %v292
    %v3718 = vunpack.c.l.b16 %v293
    %v3719 = vunpack.c.h.b16 %v293
    %v3720 = vunpack.c.l.b16 %v294
    %v3721 = vunpack.c.h.b16 %v294
    %v3722 = vunpack.c.l.b16 %v295
    %v3723 = vunpack.c.h.b16 %v295
    %v3724 = vunpack.c.l.b16 %v296
    %v3725 = vunpack.c.h.b16 %v296
    %v3726 = vunpack.c.l.b16 %v297
    %v3727 = vunpack.c.h.b16 %v297
    %v3728 = vunpack.c.l.b16 %v298
    %v3729 = vunpack.c.h.b16 %v298
    %v3730 = vunpack.c.l.b16 %v299
    %v3731 = vunpack.c.h.b16 %v299
    %v3732 = vunpack.c.l.b16 %v300
    %v3733 = vunpack.c.h.b16 %v300
    %v3734 = vunpack.c.l.b16 %v301
    %v3735 = vunpack.c.h.b16 %v301
    %v3736 = vunpack.c.l.b16 %v302
    %v3737 = vunpack.c.h.b16 %v302
    %v3738 = vunpack.c.l.b16 %v303
    %v3739 = vunpack.c.h.b16 %v303
    %v3740 = vunpack.c.l.b16 %v304
    %v3741 = vunpack.c.h.b16 %v304
    %v3742 = vunpack.c.l.b16 %v305
    %v3743 = vunpack.c.h.b16 %v305
    %v3744 = vunpack.c.l.b16 %v306
    %v3745 = vunpack.c.h.b16 %v306
    %v3746 = vunpack.c.l.b16 %v307
    %v3747 = vunpack.c.h.b16 %v307
    %v3748 = vunpack.c.l.b16 %v308
    %v3749 = vunpack.c.h.b16 %v308
    %v3750 = vunpack.c.l.b16 %v309
    %v3751 = vunpack.c.h.b16 %v309
    %v3752 = vunpack.c.l.b16 %v310
    %v3753 = vunpack.c.h.b16 %v310
    %v3754 = vunpack.c.l.b16 %v311
    %v3755 = vunpack.c.h.b16 %v311
    %v3756 = vunpack.c.l.b16 %v312
    %v3757 = vunpack.c.h.b16 %v312
    %v3758 = vunpack.c.l.b16 %v313
    %v3759 = vunpack.c.h.b16 %v313
    %v3760 = vunpack.c.l.b16 %v314
    %v3761 = vunpack.c.h.b16 %v314
    %v3762 = vunpack.c.l.b16 %v315
    %v3763 = vunpack.c.h.b16 %v315
    %v3764 = vunpack.c.l.b16 %v316
    %v3765 = vunpack.c.h.b16 %v316
    %v3766 = vunpack.c.l.b16 %v317
    %v3767 = vunpack.c.h.b16 %v317
    %v3768 = vunpack.c.l.b16 %v318
    %v3769 = vunpack.c.h.b16 %v318
    %v3770 = vunpack.c.l.b16 %v319
    %v3771 = vunpack.c.h.b16 %v319
    %v3772 = vunpack.c.l.b16 %v320
    %v3773 = vunpack.c.h.b16 %v320
    %v3774 = vunpack.c.l.b16 %v321
    %v3775 = vunpack.c.h.b16 %v321
    %v3776 = vunpack.c.l.b16 %v322
    %v3777 = vunpack.c.h.b16 %v322
    %v3778 = vunpack.c.l.b16 %v323
    %v3779 = vunpack.c.h.b16 %v323
    %v3780 = vunpack.c.l.b16 %v324
    %v3781 = vunpack.c.h.b16 %v324
    %v3782 = vunpack.c.l.b16 %v325
    %v3783 = vunpack.c.h.b16 %v325
    %v3784 = vunpack.c.l.b16 %v326
    %v3785 = vunpack.c.h.b16 %v326
    %v3786 = vunpack.c.l.b16 %v327
    %v3787 = vunpack.c.h.b16 %v327
    %v3788 = vunpack.c.l.b16 %v328
    %v3789 = vunpack.c.h.b16 %v328
    %v3790 = vunpack.c.l.b16 %v329
    %v3791 = vunpack.c.h.b16 %v329
    %v3792 = vunpack.c.l.b16 %v330
    %v3793 = vunpack.c.h.b16 %v330
    %v3794 = vunpack.c.l.b16 %v331
    %v3795 = vunpack.c.h.b16 %v331
    %v3796 = vunpack.c.l.b16 %v332
    %v3797 = vunpack.c.h.b16 %v332
    %v3798 = vunpack.c.l.b16 %v333
    %v3799 = vunpack.c.h.b16 %v333
    %v3800 = vunpack.c.l.b16 %v334
    %v3801 = vunpack.c.h.b16 %v334
    %v3802 = vunpack.c.l.b16 %v335
    %v3803 = vunpack.c.h.b16 %v335
    %v3804 = vunpack.c.l.b16 %v336
    %v3805 = vunpack.c.h.b16 %v336
    %v3806 = vunpack.c.l.b16 %v337
    %v3807 = vunpack.c.h.b16 %v337
    %v3808 = vunpack.c.l.b16 %v338
    %v3809 = vunpack.c.h.b16 %v338
    %v3810 = vunpack.c.l.b16 %v339
    %v3811 = vunpack.c.h.b16 %v339
    %v3812 = vunpack.c.l.b16 %v340
    %v3813 = vunpack.c.h.b16 %v340
    %v3814 = vunpack.c.l.b16 %v341
    %v3815 = vunpack.c.h.b16 %v341
    %v3816 = vunpack.c.l.b16 %v342
    %v3817 = vunpack.c.h.b16 %v342
    %v3818 = vunpack.c.l.b16 %v343
    %v3819 = vunpack.c.h.b16 %v343
    %v3820 = vunpack.c.l.b16 %v344
    %v3821 = vunpack.c.h.b16 %v344
    %v3822 = vunpack.c.l.b16 %v345
    %v3823 = vunpack.c.h.b16 %v345
    %v3824 = vunpack.c.l.b16 %v346
    %v3825 = vunpack.c.h.b16 %v346
    %v3826 = vunpack.c.l.b16 %v347
    %v3827 = vunpack.c.h.b16 %v347
    %v3828 = vunpack.c.l.b16 %v348
    %v3829 = vunpack.c.h.b16 %v348
    %v3830 = vunpack.c.l.b16 %v349
    %v3831 = vunpack.c.h.b16 %v349
    %v3832 = vunpack.c.l.b16 %v350
    %v3833 = vunpack.c.h.b16 %v350
    %v3834 = vunpack.c.l.b16 %v351
    %v3835 = vunpack.c.h.b16 %v351
    %v3836 = vunpack.c.l.b16 %v352
    %v3837 = vunpack.c.h.b16 %v352
    %v3838 = vunpack.c.l.b16 %v353
    %v3839 = vunpack.c.h.b16 %v353
    %v3840 = vunpack.c.l.b16 %v354
    %v3841 = vunpack.c.h.b16 %v354
    %v3842 = vunpack.c.l.b16 %v355
    %v3843 = vunpack.c.h.b16 %v355
    %v3844 = vunpack.c.l.b16 %v356
    %v3845 = vunpack.c.h.b16 %v356
    %v3846 = vunpack.c.l.b16 %v357
    %v3847 = vunpack.c.h.b16 %v357
    %v3848 = vunpack.c.l.b16 %v358
    %v3849 = vunpack.c.h.b16 %v358
    %v3850 = vunpack.c.l.b16 %v359
    %v3851 = vunpack.c.h.b16 %v359
    %v3852 = vunpack.c.l.b16 %v360
    %v3853 = vunpack.c.h.b16 %v360
    %v3854 = vunpack.c.l.b16 %v361
    %v3855 = vunpack.c.h.b16 %v361
    %v3856 = vunpack.c.l.b16 %v362
    %v3857 = vunpack.c.h.b16 %v362
    %v3858 = vunpack.c.l.b16 %v363
    %v3859 = vunpack.c.h.b16 %v363
    %v3860 = vunpack.c.l.b16 %v364
    %v3861 = vunpack.c.h.b16 %v364
    %v3862 = vunpack.c.l.b16 %v365
    %v3863 = vunpack.c.h.b16 %v365
    %v3864 = vunpack.c.l.b16 %v366
    %v3865 = vunpack.c.h.b16 %v366
    %v3866 = vunpack.c.l.b16 %v367
    %v3867 = vunpack.c.h.b16 %v367
    %v3868 = vunpack.c.l.b16 %v368
    %v3869 = vunpack.c.h.b16 %v368
    %v3870 = vunpack.c.l.b16 %v369
    %v3871 = vunpack.c.h.b16 %v369
    %v3872 = vunpack.c.l.b16 %v370
    %v3873 = vunpack.c.h.b16 %v370
    %v3874 = vunpack.c.l.b16 %v371
    %v3875 = vunpack.c.h.b16 %v371
    %v3876 = vunpack.c.l.b16 %v372
    %v3877 = vunpack.c.h.b16 %v372
    %v3878 = vunpack.c.l.b16 %v373
    %v3879 = vunpack.c.h.b16 %v373
    %v3880 = vunpack.c.l.b16 %v374
    %v3881 = vunpack.c.h.b16 %v374
    %v3882 = vunpack.c.l.b16 %v375
    %v3883 = vunpack.c.h.b16 %v375
    %v3884 = vunpack.c.l.b16 %v376
    %v3885 = vunpack.c.h.b16 %v376
    %v3886 = vunpack.c.l.b16 %v377
    %v3887 = vunpack.c.h.b16 %v377
    %v3888 = vunpack.c.l.b16 %v378
    %v3889 = vunpack.c.h.b16 %v378
    %v3890 = vunpack.c.l.b16 %v379
    %v3891 = vunpack.c.h.b16 %v379
    %v3892 = vunpack.c.l.b16 %v380
    %v3893 = vunpack.c.h.b16 %v380
    %v3894 = vunpack.c.l.b16 %v381
    %v3895 = vunpack.c.h.b16 %v381
    %v3896 = vunpack.c.l.b16 %v382
    %v3897 = vunpack.c.h.b16 %v382
    %v3898 = vunpack.c.l.b16 %v383
    %v3899 = vunpack.c.h.b16 %v383
    %v3900 = vunpack.c.l.b16 %v384
    %v3901 = vunpack.c.h.b16 %v384
    %v3902 = vunpack.c.l.b16 %v385
    %v3903 = vunpack.c.h.b16 %v385
    %v3904 = vunpack.c.l.b16 %v386
    %v3905 = vunpack.c.h.b16 %v386
    %v3906 = vunpack.c.l.b16 %v387
    %v3907 = vunpack.c.h.b16 %v387
    %v3908 = vunpack.c.l.b16 %v388
    %v3909 = vunpack.c.h.b16 %v388
    %v3910 = vunpack.c.l.b16 %v389
    %v3911 = vunpack.c.h.b16 %v389
    %v3912 = vunpack.c.l.b16 %v390
    %v3913 = vunpack.c.h.b16 %v390
    %v3914 = vunpack.c.l.b16 %v391
    %v3915 = vunpack.c.h.b16 %v391
    %v3916 = vunpack.c.l.b16 %v392
    %v3917 = vunpack.c.h.b16 %v392
    %v3918 = vunpack.c.l.b16 %v393
    %v3919 = vunpack.c.h.b16 %v393
    %v3920 = vunpack.c.l.b16 %v394
    %v3921 = vunpack.c.h.b16 %v394
    %v3922 = vunpack.c.l.b16 %v395
    %v3923 = vunpack.c.h.b16 %v395
    %v3924 = vunpack.c.l.b16 %v396
    %v3925 = vunpack.c.h.b16 %v396
    %v3926 = vpack.c.b16 %v3290, %v3286
    %v3927 = vpack.c.b16 %v3291, %v3287
    %v3928 = vpack.c.b16 %v3292, %v3288
    %v3929 = vpack.c.b16 %v3293, %v3289
    %v3930 = vpack.c.b16 %v3298, %v3294
    %v3931 = vpack.c.b16 %v3299, %v3295
    %v3932 = vpack.c.b16 %v3300, %v3296
    %v3933 = vpack.c.b16 %v3301, %v3297
    %v3934 = vpack.c.b16 %v3306, %v3302
    %v3935 = vpack.c.b16 %v3307, %v3303
    %v3936 = vpack.c.b16 %v3308, %v3304
    %v3937 = vpack.c.b16 %v3309, %v3305
    %v3938 = vpack.c.b16 %v3314, %v3310
    %v3939 = vpack.c.b16 %v3315, %v3311
    %v3940 = vpack.c.b16 %v3316, %v3312
    %v3941 = vpack.c.b16 %v3317, %v3313
    %v3942 = vpack.c.b16 %v3322, %v3318
    %v3943 = vpack.c.b16 %v3323, %v3319
    %v3944 = vpack.c.b16 %v3324, %v3320
    %v3945 = vpack.c.b16 %v3325, %v3321
    %v3946 = vpack.c.b16 %v3330, %v3326
    %v3947 = vpack.c.b16 %v3331, %v3327
    %v3948 = vpack.c.b16 %v3332, %v3328
    %v3949 = vpack.c.b16 %v3333, %v3329
    %v3950 = vpack.c.b16 %v3338, %v3334
    %v3951 = vpack.c.b16 %v3339, %v3335
    %v3952 = vpack.c.b16 %v3340, %v3336
    %v3953 = vpack.c.b16 %v3341, %v3337
    %v3954 = vpack.c.b16 %v3346, %v3342
    %v3955 = vpack.c.b16 %v3347, %v3343
    %v3956 = vpack.c.b16 %v3348, %v3344
    %v3957 = vpack.c.b16 %v3349, %v3345
    %v3958 = vpack.c.b16 %v3354, %v3350
    %v3959 = vpack.c.b16 %v3355, %v3351
    %v3960 = vpack.c.b16 %v3356, %v3352
    %v3961 = vpack.c.b16 %v3357, %v3353
    %v3962 = vpack.c.b16 %v3362, %v3358
    %v3963 = vpack.c.b16 %v3363, %v3359
    %v3964 = vpack.c.b16 %v3364, %v3360
    %v3965 = vpack.c.b16 %v3365, %v3361
    %v3966 = vpack.c.b16 %v3370, %v3366
    %v3967 = vpack.c.b16 %v3371, %v3367
    %v3968 = vpack.c.b16 %v3372, %v3368
    %v3969 = vpack.c.b16 %v3373, %v3369
    %v3970 = vpack.c.b16 %v3378, %v3374
    %v3971 = vpack.c.b16 %v3379, %v3375
    %v3972 = vpack.c.b16 %v3380, %v3376
    %v3973 = vpack.c.b16 %v3381, %v3377
    %v3974 = vpack.c.b16 %v3386, %v3382
    %v3975 = vpack.c.b16 %v3387, %v3383
    %v3976 = vpack.c.b16 %v3388, %v3384
    %v3977 = vpack.c.b16 %v3389, %v3385
    %v3978 = vpack.c.b16 %v3394, %v3390
    %v3979 = vpack.c.b16 %v3395, %v3391
    %v3980 = vpack.c.b16 %v3396, %v3392
    %v3981 = vpack.c.b16 %v3397, %v3393
    %v3982 = vpack.c.b16 %v3402, %v3398
    %v3983 = vpack.c.b16 %v3403, %v3399
    %v3984 = vpack.c.b16 %v3404, %v3400
    %v3985 = vpack.c.b16 %v3405, %v3401
    %v3986 = vpack.c.b16 %v3410, %v3406
    %v3987 = vpack.c.b16 %v3411, %v3407
    %v3988 = vpack.c.b16 %v3412, %v3408
    %v3989 = vpack.c.b16 %v3413, %v3409
    %v3990 = vpack.c.b16 %v3418, %v3414
    %v3991 = vpack.c.b16 %v3419, %v3415
    %v3992 = vpack.c.b16 %v3420, %v3416
    %v3993 = vpack.c.b16 %v3421, %v3417
    %v3994 = vpack.c.b16 %v3426, %v3422
    %v3995 = vpack.c.b16 %v3427, %v3423
    %v3996 = vpack.c.b16 %v3428, %v3424
    %v3997 = vpack.c.b16 %v3429, %v3425
    %v3998 = vpack.c.b16 %v3434, %v3430
    %v3999 = vpack.c.b16 %v3435, %v3431
    %v4000 = vpack.c.b16 %v3436, %v3432
    %v4001 = vpack.c.b16 %v3437, %v3433
    %v4002 = vpack.c.b16 %v3442, %v3438
    %v4003 = vpack.c.b16 %v3443, %v3439
    %v4004 = vpack.c.b16 %v3444, %v3440
    %v4005 = vpack.c.b16 %v3445, %v3441
    %v4006 = vpack.c.b16 %v3450, %v3446
    %v4007 = vpack.c.b16 %v3451, %v3447
    %v4008 = vpack.c.b16 %v3452, %v3448
    %v4009 = vpack.c.b16 %v3453, %v3449
    %v4010 = vpack.c.b16 %v3458, %v3454
    %v4011 = vpack.c.b16 %v3459, %v3455
    %v4012 = vpack.c.b16 %v3460, %v3456
    %v4013 = vpack.c.b16 %v3461, %v3457
    %v4014 = vpack.c.b16 %v3466, %v3462
    %v4015 = vpack.c.b16 %v3467, %v3463
    %v4016 = vpack.c.b16 %v3468, %v3464
    %v4017 = vpack.c.b16 %v3469, %v3465
    %v4018 = vpack.c.b16 %v3474, %v3470
    %v4019 = vpack.c.b16 %v3475, %v3471
    %v4020 = vpack.c.b16 %v3476, %v3472
    %v4021 = vpack.c.b16 %v3477, %v3473
    %v4022 = vpack.c.b16 %v3482, %v3478
    %v4023 = vpack.c.b16 %v3483, %v3479
    %v4024 = vpack.c.b16 %v3484, %v3480
    %v4025 = vpack.c.b16 %v3485, %v3481
    %v4026 = vpack.c.b16 %v3490, %v3486
    %v4027 = vpack.c.b16 %v3491, %v3487
    %v4028 = vpack.c.b16 %v3492, %v3488
    %v4029 = vpack.c.b16 %v3493, %v3489
    %v4030 = vpack.c.b16 %v3498, %v3494
    %v4031 = vpack.c.b16 %v3499, %v3495
    %v4032 = vpack.c.b16 %v3500, %v3496
    %v4033 = vpack.c.b16 %v3501, %v3497
    %v4034 = vpack.c.b16 %v3506, %v3502
    %v4035 = vpack.c.b16 %v3507, %v3503
    %v4036 = vpack.c.b16 %v3508, %v3504
    %v4037 = vpack.c.b16 %v3509, %v3505
    %v4038 = vpack.c.b16 %v3514, %v3510
    %v4039 = vpack.c.b16 %v3515, %v3511
    %v4040 = vpack.c.b16 %v3516, %v3512
    %v4041 = vpack.c.b16 %v3517, %v3513
    %v4042 = vpack.c.b16 %v3522, %v3518
    %v4043 = vpack.c.b16 %v3523, %v3519
    %v4044 = vpack.c.b16 %v3524, %v3520
    %v4045 = vpack.c.b16 %v3525, %v3521
    %v4046 = vpack.c.b16 %v3530, %v3526
    %v4047 = vpack.c.b16 %v3531, %v3527
    %v4048 = vpack.c.b16 %v3532, %v3528
    %v4049 = vpack.c.b16 %v3533, %v3529
    %v4050 = vpack.c.b16 %v3538, %v3534
    %v4051 = vpack.c.b16 %v3539, %v3535
    %v4052 = vpack.c.b16 %v3540, %v3536
    %v4053 = vpack.c.b16 %v3541, %v3537
    %v4054 = vpack.c.b16 %v3546, %v3542
    %v4055 = vpack.c.b16 %v3547, %v3543
    %v4056 = vpack.c.b16 %v3548, %v3544
    %v4057 = vpack.c.b16 %v3549, %v3545
    %v4058 = vpack.c.b16 %v3554, %v3550
    %v4059 = vpack.c.b16 %v3555, %v3551
    %v4060 = vpack.c.b16 %v3556, %v3552
    %v4061 = vpack.c.b16 %v3557, %v3553
    %v4062 = vpack.c.b16 %v3562, %v3558
    %v4063 = vpack.c.b16 %v3563, %v3559
    %v4064 = vpack.c.b16 %v3564, %v3560
    %v4065 = vpack.c.b16 %v3565, %v3561
    %v4066 = vpack.c.b16 %v3570, %v3566
    %v4067 = vpack.c.b16 %v3571, %v3567
    %v4068 = vpack.c.b16 %v3572, %v3568
    %v4069 = vpack.c.b16 %v3573, %v3569
    %v4070 = vpack.c.b16 %v3578, %v3574
    %v4071 = vpack.c.b16 %v3579, %v3575
    %v4072 = vpack.c.b16 %v3580, %v3576
    %v4073 = vpack.c.b16 %v3581, %v3577
    %v4074 = vpack.c.b16 %v3586, %v3582
    %v4075 = vpack.c.b16 %v3587, %v3583
    %v4076 = vpack.c.b16 %v3588, %v3584
    %v4077 = vpack.c.b16 %v3589, %v3585
    %v4078 = vpack.c.b16 %v3594, %v3590
    %v4079 = vpack.c.b16 %v3595, %v3591
    %v4080 = vpack.c.b16 %v3596, %v3592
    %v4081 = vpack.c.b16 %v3597, %v3593
    %v4082 = vpack.c.b16 %v3602, %v3598
    %v4083 = vpack.c.b16 %v3603, %v3599
    %v4084 = vpack.c.b16 %v3604, %v3600
    %v4085 = vpack.c.b16 %v3605, %v3601
    %v4086 = vpack.c.b16 %v3610, %v3606
    %v4087 = vpack.c.b16 %v3611, %v3607
    %v4088 = vpack.c.b16 %v3612, %v3608
    %v4089 = vpack.c.b16 %v3613, %v3609
    %v4090 = vpack.c.b16 %v3618, %v3614
    %v4091 = vpack.c.b16 %v3619, %v3615
    %v4092 = vpack.c.b16 %v3620, %v3616
    %v4093 = vpack.c.b16 %v3621, %v3617
    %v4094 = vpack.c.b16 %v3626, %v3622
    %v4095 = vpack.c.b16 %v3627, %v3623
    %v4096 = vpack.c.b16 %v3628, %v3624
    %v4097 = vpack.c.b16 %v3629, %v3625
    %v4098 = vpack.c.b16 %v3634, %v3630
    %v4099 = vpack.c.b16 %v3635, %v3631
    %v4100 = vpack.c.b16 %v3636, %v3632
    %v4101 = vpack.c.b16 %v3637, %v3633
    %v4102 = vpack.c.b16 %v3642, %v3638
    %v4103 = vpack.c.b16 %v3643, %v3639
    %v4104 = vpack.c.b16 %v3644, %v3640
    %v4105 = vpack.c.b16 %v3645, %v3641
    %v4106 = vpack.c.b16 %v3650, %v3646
    %v4107 = vpack.c.b16 %v3651, %v3647
    %v4108 = vpack.c.b16 %v3652, %v3648
    %v4109 = vpack.c.b16 %v3653, %v3649
    %v4110 = vpack.c.b16 %v3658, %v3654
    %v4111 = vpack.c.b16 %v3659, %v3655
    %v4112 = vpack.c.b16 %v3660, %v3656
    %v4113 = vpack.c.b16 %v3661, %v3657
    %v4114 = vpack.c.b16 %v3666, %v3662
    %v4115 = vpack.c.b16 %v3667, %v3663
    %v4116 = vpack.c.b16 %v3668, %v3664
    %v4117 = vpack.c.b16 %v3669, %v3665
    %v4118 = vpack.c.b16 %v3674, %v3670
    %v4119 = vpack.c.b16 %v3675, %v3671
    %v4120 = vpack.c.b16 %v3676, %v3672
    %v4121 = vpack.c.b16 %v3677, %v3673
    %v4122 = vpack.c.b16 %v3682, %v3678
    %v4123 = vpack.c.b16 %v3683, %v3679
    %v4124 = vpack.c.b16 %v3684, %v3680
    %v4125 = vpack.c.b16 %v3685, %v3681
    %v4126 = vpack.c.b16 %v3690, %v3686
    %v4127 = vpack.c.b16 %v3691, %v3687
    %v4128 = vpack.c.b16 %v3692, %v3688
    %v4129 = vpack.c.b16 %v3693, %v3689
    %v4130 = vpack.c.b16 %v3698, %v3694
    %v4131 = vpack.c.b16 %v3699, %v3695
    %v4132 = vpack.c.b16 %v3700, %v3696
    %v4133 = vpack.c.b16 %v3701, %v3697
    %v4134 = vpack.c.b16 %v3706, %v3702
    %v4135 = vpack.c.b16 %v3707, %v3703
    %v4136 = vpack.c.b16 %v3708, %v3704
    %v4137 = vpack.c.b16 %v3709, %v3705
    %v4138 = vpack.c.b16 %v3714, %v3710
    %v4139 = vpack.c.b16 %v3715, %v3711
    %v4140 = vpack.c.b16 %v3716, %v3712
    %v4141 = vpack.c.b16 %v3717, %v3713
    %v4142 = vpack.c.b16 %v3722, %v3718
    %v4143 = vpack.c.b16 %v3723, %v3719
    %v4144 = vpack.c.b16 %v3724, %v3720
    %v4145 = vpack.c.b16 %v3725, %v3721
    %v4146 = vpack.c.b16 %v3730, %v3726
    %v4147 = vpack.c.b16 %v3731, %v3727
    %v4148 = vpack.c.b16 %v3732, %v3728
    %v4149 = vpack.c.b16 %v3733, %v3729
    %v4150 = vpack.c.b16 %v3738, %v3734
    %v4151 = vpack.c.b16 %v3739, %v3735
    %v4152 = vpack.c.b16 %v3740, %v3736
    %v4153 = vpack.c.b16 %v3741, %v3737
    %v4154 = vpack.c.b16 %v3746, %v3742
    %v4155 = vpack.c.b16 %v3747, %v3743
    %v4156 = vpack.c.b16 %v3748, %v3744
    %v4157 = vpack.c.b16 %v3749, %v3745
    %v4158 = vpack.c.b16 %v3754, %v3750
    %v4159 = vpack.c.b16 %v3755, %v3751
    %v4160 = vpack.c.b16 %v3756, %v3752
    %v4161 = vpack.c.b16 %v3757, %v3753
    %v4162 = vpack.c.b16 %v3762, %v3758
    %v4163 = vpack.c.b16 %v3763, %v3759
    %v4164 = vpack.c.b16 %v3764, %v3760
    %v4165 = vpack.c.b16 %v3765, %v3761
    %v4166 = vpack.c.b16 %v3770, %v3766
    %v4167 = vpack.c.b16 %v3771, %v3767
    %v4168 = vpack.c.b16 %v3772, %v3768
    %v4169 = vpack.c.b16 %v3773, %v3769
    %v4170 = vpack.c.b16 %v3778, %v3774
    %v4171 = vpack.c.b16 %v3779, %v3775
    %v4172 = vpack.c.b16 %v3780, %v3776
    %v4173 = vpack.c.b16 %v3781, %v3777
    %v4174 = vpack.c.b16 %v3786, %v3782
    %v4175 = vpack.c.b16 %v3787, %v3783
    %v4176 = vpack.c.b16 %v3788, %v3784
    %v4177 = vpack.c.b16 %v3789, %v3785
    %v4178 = vpack.c.b16 %v3794, %v3790
    %v4179 = vpack.c.b16 %v3795, %v3791
    %v4180 = vpack.c.b16 %v3796, %v3792
    %v4181 = vpack.c.b16 %v3797, %v3793
    %v4182 = vpack.c.b16 %v3802, %v3798
    %v4183 = vpack.c.b16 %v3803, %v3799
    %v4184 = vpack.c.b16 %v3804, %v3800
    %v4185 = vpack.c.b16 %v3805, %v3801
    %v4186 = vpack.c.b16 %v3810, %v3806
    %v4187 = vpack.c.b16 %v3811, %v3807
    %v4188 = vpack.c.b16 %v3812, %v3808
    %v4189 = vpack.c.b16 %v3813, %v3809
    %v4190 = vpack.c.b16 %v3818, %v3814
    %v4191 = vpack.c.b16 %v3819, %v3815
    %v4192 = vpack.c.b16 %v3820, %v3816
    %v4193 = vpack.c.b16 %v3821, %v3817
    %v4194 = vpack.c.b16 %v3826, %v3822
    %v4195 = vpack.c.b16 %v3827, %v3823
    %v4196 = vpack.c.b16 %v3828, %v3824
    %v4197 = vpack.c.b16 %v3829, %v3825
    %v4198 = vpack.c.b16 %v3834, %v3830
    %v4199 = vpack.c.b16 %v3835, %v3831
    %v4200 = vpack.c.b16 %v3836, %v3832
    %v4201 = vpack.c.b16 %v3837, %v3833
    %v4202 = vpack.c.b16 %v3842, %v3838
    %v4203 = vpack.c.b16 %v3843, %v3839
    %v4204 = vpack.c.b16 %v3844, %v3840
    %v4205 = vpack.c.b16 %v3845, %v3841
    %v4206 = vpack.c.b16 %v3850, %v3846
    %v4207 = vpack.c.b16 %v3851, %v3847
    %v4208 = vpack.c.b16 %v3852, %v3848
    %v4209 = vpack.c.b16 %v3853, %v3849
    %v4210 = vpack.c.b16 %v3858, %v3854
    %v4211 = vpack.c.b16 %v3859, %v3855
    %v4212 = vpack.c.b16 %v3860, %v3856
    %v4213 = vpack.c.b16 %v3861, %v3857
    %v4214 = vpack.c.b16 %v3866, %v3862
    %v4215 = vpack.c.b16 %v3867, %v3863
    %v4216 = vpack.c.b16 %v3868, %v3864
    %v4217 = vpack.c.b16 %v3869, %v3865
    %v4218 = vpack.c.b16 %v3874, %v3870
    %v4219 = vpack.c.b16 %v3875, %v3871
    %v4220 = vpack.c.b16 %v3876, %v3872
    %v4221 = vpack.c.b16 %v3877, %v3873
    %v4222 = vpack.c.b16 %v3882, %v3878
    %v4223 = vpack.c.b16 %v3883, %v3879
    %v4224 = vpack.c.b16 %v3884, %v3880
    %v4225 = vpack.c.b16 %v3885, %v3881
    %v4226 = vpack.c.b16 %v3890, %v3886
    %v4227 = vpack.c.b16 %v3891, %v3887
    %v4228 = vpack.c.b16 %v3892, %v3888
    %v4229 = vpack.c.b16 %v3893, %v3889
    %v4230 = vpack.c.b16 %v3898, %v3894
    %v4231 = vpack.c.b16 %v3899, %v3895
    %v4232 = vpack.c.b16 %v3900, %v3896
    %v4233 = vpack.c.b16 %v3901, %v3897
    %v4234 = vpack.c.b16 %v3906, %v3902
    %v4235 = vpack.c.b16 %v3907, %v3903
    %v4236 = vpack.c.b16 %v3908, %v3904
    %v4237 = vpack.c.b16 %v3909, %v3905
    %v4238 = vpack.c.b16 %v3914, %v3910
    %v4239 = vpack.c.b16 %v3915, %v3911
    %v4240 = vpack.c.b16 %v3916, %v3912
    %v4241 = vpack.c.b16 %v3917, %v3913
    %v4242 = vpack.c.b16 %v3922, %v3918
    %v4243 = vpack.c.b16 %v3923, %v3919
    %v4244 = vpack.c.b16 %v3924, %v3920
    %v4245 = vpack.c.b16 %v3925, %v3921
    %4566 = vmatprep.subr.bf16.mxu0 %v3955
    %4567 = vmatpush1.bf16.msra.mxu0 %v3954
    %4568 = vmatprep.subr.bf16.mxu0 %v3951
    %4569 = vmatpush1.bf16.msra.mxu0 %v3950
    %4570 = vmatprep.subr.bf16.mxu0 %v3947
    %4571 = vmatpush1.bf16.msra.mxu0 %v3946
    %4572 = vmatprep.subr.bf16.mxu0 %v3943
    %4573 = vmatpush1.bf16.msra.mxu0 %v3942
    %4574 = vmatprep.subr.bf16.mxu0 %v3939
    %4575 = vmatpush1.bf16.msra.mxu0 %v3938
    %4576 = vmatprep.subr.bf16.mxu0 %v3935
    %4577 = vmatpush1.bf16.msra.mxu0 %v3934
    %4578 = vmatprep.subr.bf16.mxu0 %v3931
    %4579 = vmatpush1.bf16.msra.mxu0 %v3930
    %4580 = vmatprep.subr.bf16.mxu0 %v3927
    %4581 = vmatpush1.bf16.msra.mxu0 %v3926
    %4582 = vmatprep.subr.bf16.mxu0 %v3987
    %4583 = vmatpush2.bf16.msra.mxu0 %v3986
    %4584 = vmatprep.subr.bf16.mxu0 %v3983
    %4585 = vmatpush2.bf16.msra.mxu0 %v3982
    %4586 = vmatprep.subr.bf16.mxu0 %v3979
    %4587 = vmatpush2.bf16.msra.mxu0 %v3978
    %4588 = vmatprep.subr.bf16.mxu0 %v3975
    %4589 = vmatpush2.bf16.msra.mxu0 %v3974
    %4590 = vmatprep.subr.bf16.mxu0 %v3971
    %4591 = vmatpush2.bf16.msra.mxu0 %v3970
    %4592 = vmatprep.subr.bf16.mxu0 %v3967
    %4593 = vmatpush2.bf16.msra.mxu0 %v3966
    %4594 = vmatprep.subr.bf16.mxu0 %v3963
    %4595 = vmatpush2.bf16.msra.mxu0 %v3962
    %4596 = vmatprep.subr.bf16.mxu0 %v3959
    %4597 = vmatpush2.bf16.msra.mxu0 %v3958
    %4598 = vmatprep.mubr.bf16.mxu0 %v2887
    %4599 = vmatmul.mubr.bf16.gmra.mxu0 %v2883
    %v4600 = vpop.f32.mrf.mxu0
    %v4601 = vadd.f32 0.0, %v4600
    %v4602 = vpop.f32.mrf.mxu0
    %v4603 = vadd.f32 0.0, %v4602
    %v4604 = vpop.f32.mrf.mxu0
    %v4605 = vadd.f32 0.0, %v4604
    %v4606 = vpop.f32.mrf.mxu0
    %v4607 = vadd.f32 0.0, %v4606
    %4608 = vdwg.mxu0
    %4609 = vmatprep.subr.bf16.mxu0 %v4019
    %4610 = vmatpush1.bf16.msra.mxu0 %v4018
    %4611 = vmatprep.subr.bf16.mxu0 %v4015
    %4612 = vmatpush1.bf16.msra.mxu0 %v4014
    %4613 = vmatprep.subr.bf16.mxu0 %v4011
    %4614 = vmatpush1.bf16.msra.mxu0 %v4010
    %4615 = vmatprep.subr.bf16.mxu0 %v4007
    %4616 = vmatpush1.bf16.msra.mxu0 %v4006
    %4617 = vmatprep.subr.bf16.mxu0 %v4003
    %4618 = vmatpush1.bf16.msra.mxu0 %v4002
    %4619 = vmatprep.subr.bf16.mxu0 %v3999
    %4620 = vmatpush1.bf16.msra.mxu0 %v3998
    %4621 = vmatprep.subr.bf16.mxu0 %v3995
    %4622 = vmatpush1.bf16.msra.mxu0 %v3994
    %4623 = vmatprep.subr.bf16.mxu0 %v3991
    %4624 = vmatpush1.bf16.msra.mxu0 %v3990
    %4625 = vmatprep.subr.bf16.mxu0 %v4051
    %4626 = vmatpush2.bf16.msra.mxu0 %v4050
    %4627 = vmatprep.subr.bf16.mxu0 %v4047
    %4628 = vmatpush2.bf16.msra.mxu0 %v4046
    %4629 = vmatprep.subr.bf16.mxu0 %v4043
    %4630 = vmatpush2.bf16.msra.mxu0 %v4042
    %4631 = vmatprep.subr.bf16.mxu0 %v4039
    %4632 = vmatpush2.bf16.msra.mxu0 %v4038
    %4633 = vmatprep.subr.bf16.mxu0 %v4035
    %4634 = vmatpush2.bf16.msra.mxu0 %v4034
    %4635 = vmatprep.subr.bf16.mxu0 %v4031
    %4636 = vmatpush2.bf16.msra.mxu0 %v4030
    %4637 = vmatprep.subr.bf16.mxu0 %v4027
    %4638 = vmatpush2.bf16.msra.mxu0 %v4026
    %4639 = vmatprep.subr.bf16.mxu0 %v4023
    %4640 = vmatpush2.bf16.msra.mxu0 %v4022
    %4641 = vmatprep.mubr.bf16.mxu0 %v2888
    %4642 = vmatmul.mubr.bf16.gmra.mxu0 %v2884
    %v4643 = vpop.f32.mrf.mxu0
    %v4644 = vadd.f32 %v4601, %v4643
    %v4645 = vpop.f32.mrf.mxu0
    %v4646 = vadd.f32 %v4603, %v4645
    %v4647 = vpop.f32.mrf.mxu0
    %v4648 = vadd.f32 %v4605, %v4647
    %v4649 = vpop.f32.mrf.mxu0
    %v4650 = vadd.f32 %v4607, %v4649
    %4651 = vdwg.mxu0
    %4652 = vmatprep.subr.bf16.mxu0 %v4083
    %4653 = vmatpush1.bf16.msra.mxu0 %v4082
    %4654 = vmatprep.subr.bf16.mxu0 %v4079
    %4655 = vmatpush1.bf16.msra.mxu0 %v4078
    %4656 = vmatprep.subr.bf16.mxu0 %v4075
    %4657 = vmatpush1.bf16.msra.mxu0 %v4074
    %4658 = vmatprep.subr.bf16.mxu0 %v4071
    %4659 = vmatpush1.bf16.msra.mxu0 %v4070
    %4660 = vmatprep.subr.bf16.mxu0 %v4067
    %4661 = vmatpush1.bf16.msra.mxu0 %v4066
    %4662 = vmatprep.subr.bf16.mxu0 %v4063
    %4663 = vmatpush1.bf16.msra.mxu0 %v4062
    %4664 = vmatprep.subr.bf16.mxu0 %v4059
    %4665 = vmatpush1.bf16.msra.mxu0 %v4058
    %4666 = vmatprep.subr.bf16.mxu0 %v4055
    %4667 = vmatpush1.bf16.msra.mxu0 %v4054
    %4668 = vmatprep.subr.bf16.mxu0 %v4115
    %4669 = vmatpush2.bf16.msra.mxu0 %v4114
    %4670 = vmatprep.subr.bf16.mxu0 %v4111
    %4671 = vmatpush2.bf16.msra.mxu0 %v4110
    %4672 = vmatprep.subr.bf16.mxu0 %v4107
    %4673 = vmatpush2.bf16.msra.mxu0 %v4106
    %4674 = vmatprep.subr.bf16.mxu0 %v4103
    %4675 = vmatpush2.bf16.msra.mxu0 %v4102
    %4676 = vmatprep.subr.bf16.mxu0 %v4099
    %4677 = vmatpush2.bf16.msra.mxu0 %v4098
    %4678 = vmatprep.subr.bf16.mxu0 %v4095
    %4679 = vmatpush2.bf16.msra.mxu0 %v4094
    %4680 = vmatprep.subr.bf16.mxu0 %v4091
    %4681 = vmatpush2.bf16.msra.mxu0 %v4090
    %4682 = vmatprep.subr.bf16.mxu0 %v4087
    %4683 = vmatpush2.bf16.msra.mxu0 %v4086
    %4684 = vmatprep.mubr.bf16.mxu0 %v2889
    %4685 = vmatmul.mubr.bf16.gmra.mxu0 %v2885
    %v4686 = vpop.f32.mrf.mxu0
    %v4687 = vadd.f32 %v4644, %v4686
    %v4688 = vpop.f32.mrf.mxu0
    %v4689 = vadd.f32 %v4646, %v4688
    %v4690 = vpop.f32.mrf.mxu0
    %v4691 = vadd.f32 %v4648, %v4690
    %v4692 = vpop.f32.mrf.mxu0
    %v4693 = vadd.f32 %v4650, %v4692
    %4694 = vdwg.mxu0
    %4695 = vmatprep.subr.bf16.mxu0 %v4147
    %4696 = vmatpush1.bf16.msra.mxu0 %v4146
    %4697 = vmatprep.subr.bf16.mxu0 %v4143
    %4698 = vmatpush1.bf16.msra.mxu0 %v4142
    %4699 = vmatprep.subr.bf16.mxu0 %v4139
    %4700 = vmatpush1.bf16.msra.mxu0 %v4138
    %4701 = vmatprep.subr.bf16.mxu0 %v4135
    %4702 = vmatpush1.bf16.msra.mxu0 %v4134
    %4703 = vmatprep.subr.bf16.mxu0 %v4131
    %4704 = vmatpush1.bf16.msra.mxu0 %v4130
    %4705 = vmatprep.subr.bf16.mxu0 %v4127
    %4706 = vmatpush1.bf16.msra.mxu0 %v4126
    %4707 = vmatprep.subr.bf16.mxu0 %v4123
    %4708 = vmatpush1.bf16.msra.mxu0 %v4122
    %4709 = vmatprep.subr.bf16.mxu0 %v4119
    %4710 = vmatpush1.bf16.msra.mxu0 %v4118
    %4711 = vmatprep.subr.bf16.mxu0 %v4179
    %4712 = vmatpush2.bf16.msra.mxu0 %v4178
    %4713 = vmatprep.subr.bf16.mxu0 %v4175
    %4714 = vmatpush2.bf16.msra.mxu0 %v4174
    %4715 = vmatprep.subr.bf16.mxu0 %v4171
    %4716 = vmatpush2.bf16.msra.mxu0 %v4170
    %4717 = vmatprep.subr.bf16.mxu0 %v4167
    %4718 = vmatpush2.bf16.msra.mxu0 %v4166
    %4719 = vmatprep.subr.bf16.mxu0 %v4163
    %4720 = vmatpush2.bf16.msra.mxu0 %v4162
    %4721 = vmatprep.subr.bf16.mxu0 %v4159
    %4722 = vmatpush2.bf16.msra.mxu0 %v4158
    %4723 = vmatprep.subr.bf16.mxu0 %v4155
    %4724 = vmatpush2.bf16.msra.mxu0 %v4154
    %4725 = vmatprep.subr.bf16.mxu0 %v4151
    %4726 = vmatpush2.bf16.msra.mxu0 %v4150
    %4727 = vmatprep.mubr.bf16.mxu0 %v2890
    %4728 = vmatmul.mubr.bf16.gmra.mxu0 %v2886
    %v4729 = vpop.f32.mrf.mxu0
    %v4730 = vadd.f32 %v4687, %v4729
    %v4731 = vpop.f32.mrf.mxu0
    %v4732 = vadd.f32 %v4689, %v4731
    %v4733 = vpop.f32.mrf.mxu0
    %v4734 = vadd.f32 %v4691, %v4733
    %v4735 = vpop.f32.mrf.mxu0
    %v4736 = vadd.f32 %v4693, %v4735
    %4737 = vdwg.mxu0
    %4738 = vmatprep.subr.bf16.mxu0 %v4211
    %4739 = vmatpush1.bf16.msra.mxu0 %v4210
    %4740 = vmatprep.subr.bf16.mxu0 %v4207
    %4741 = vmatpush1.bf16.msra.mxu0 %v4206
    %4742 = vmatprep.subr.bf16.mxu0 %v4203
    %4743 = vmatpush1.bf16.msra.mxu0 %v4202
    %4744 = vmatprep.subr.bf16.mxu0 %v4199
    %4745 = vmatpush1.bf16.msra.mxu0 %v4198
    %4746 = vmatprep.subr.bf16.mxu0 %v4195
    %4747 = vmatpush1.bf16.msra.mxu0 %v4194
    %4748 = vmatprep.subr.bf16.mxu0 %v4191
    %4749 = vmatpush1.bf16.msra.mxu0 %v4190
    %4750 = vmatprep.subr.bf16.mxu0 %v4187
    %4751 = vmatpush1.bf16.msra.mxu0 %v4186
    %4752 = vmatprep.subr.bf16.mxu0 %v4183
    %4753 = vmatpush1.bf16.msra.mxu0 %v4182
    %4754 = vmatprep.subr.bf16.mxu0 %v4243
    %4755 = vmatpush2.bf16.msra.mxu0 %v4242
    %4756 = vmatprep.subr.bf16.mxu0 %v4239
    %4757 = vmatpush2.bf16.msra.mxu0 %v4238
    %4758 = vmatprep.subr.bf16.mxu0 %v4235
    %4759 = vmatpush2.bf16.msra.mxu0 %v4234
    %4760 = vmatprep.subr.bf16.mxu0 %v4231
    %4761 = vmatpush2.bf16.msra.mxu0 %v4230
    %4762 = vmatprep.subr.bf16.mxu0 %v4227
    %4763 = vmatpush2.bf16.msra.mxu0 %v4226
    %4764 = vmatprep.subr.bf16.mxu0 %v4223
    %4765 = vmatpush2.bf16.msra.mxu0 %v4222
    %4766 = vmatprep.subr.bf16.mxu0 %v4219
    %4767 = vmatpush2.bf16.msra.mxu0 %v4218
    %4768 = vmatprep.subr.bf16.mxu0 %v4215
    %4769 = vmatpush2.bf16.msra.mxu0 %v4214
    %4770 = vmatprep.mubr.bf16.mxu0 %v2955
    %4771 = vmatmul.mubr.bf16.gmra.mxu0 %v2954
    %v4772 = vpop.f32.mrf.mxu0
    %v4773 = vadd.f32 %v4730, %v4772
    %v4774 = vpop.f32.mrf.mxu0
    %v4775 = vadd.f32 %v4732, %v4774
    %v4776 = vpop.f32.mrf.mxu0
    %v4777 = vadd.f32 %v4734, %v4776
    %v4778 = vpop.f32.mrf.mxu0
    %v4779 = vadd.f32 %v4736, %v4778
    %4780 = vdwg.mxu0
    %4781 = vmatprep.subr.bf16.mxu0 %v3957
    %4782 = vmatpush1.bf16.msra.mxu0 %v3956
    %4783 = vmatprep.subr.bf16.mxu0 %v3953
    %4784 = vmatpush1.bf16.msra.mxu0 %v3952
    %4785 = vmatprep.subr.bf16.mxu0 %v3949
    %4786 = vmatpush1.bf16.msra.mxu0 %v3948
    %4787 = vmatprep.subr.bf16.mxu0 %v3945
    %4788 = vmatpush1.bf16.msra.mxu0 %v3944
    %4789 = vmatprep.subr.bf16.mxu0 %v3941
    %4790 = vmatpush1.bf16.msra.mxu0 %v3940
    %4791 = vmatprep.subr.bf16.mxu0 %v3937
    %4792 = vmatpush1.bf16.msra.mxu0 %v3936
    %4793 = vmatprep.subr.bf16.mxu0 %v3933
    %4794 = vmatpush1.bf16.msra.mxu0 %v3932
    %4795 = vmatprep.subr.bf16.mxu0 %v3929
    %4796 = vmatpush1.bf16.msra.mxu0 %v3928
    %4797 = vmatprep.subr.bf16.mxu0 %v3989
    %4798 = vmatpush2.bf16.msra.mxu0 %v3988
    %4799 = vmatprep.subr.bf16.mxu0 %v3985
    %4800 = vmatpush2.bf16.msra.mxu0 %v3984
    %4801 = vmatprep.subr.bf16.mxu0 %v3981
    %4802 = vmatpush2.bf16.msra.mxu0 %v3980
    %4803 = vmatprep.subr.bf16.mxu0 %v3977
    %4804 = vmatpush2.bf16.msra.mxu0 %v3976
    %4805 = vmatprep.subr.bf16.mxu0 %v3973
    %4806 = vmatpush2.bf16.msra.mxu0 %v3972
    %4807 = vmatprep.subr.bf16.mxu0 %v3969
    %4808 = vmatpush2.bf16.msra.mxu0 %v3968
    %4809 = vmatprep.subr.bf16.mxu0 %v3965
    %4810 = vmatpush2.bf16.msra.mxu0 %v3964
    %4811 = vmatprep.subr.bf16.mxu0 %v3961
    %4812 = vmatpush2.bf16.msra.mxu0 %v3960
    %4813 = vmatprep.mubr.bf16.mxu0 %v2887
    %4814 = vmatmul.mubr.bf16.gmra.mxu0 %v2883
    %v4815 = vpop.f32.mrf.mxu0
    %v4816 = vadd.f32 0.0, %v4815
    %v4817 = vpop.f32.mrf.mxu0
    %v4818 = vadd.f32 0.0, %v4817
    %v4819 = vpop.f32.mrf.mxu0
    %v4820 = vadd.f32 0.0, %v4819
    %v4821 = vpop.f32.mrf.mxu0
    %v4822 = vadd.f32 0.0, %v4821
    %4823 = vdwg.mxu0
    %4824 = vmatprep.subr.bf16.mxu0 %v4021
    %4825 = vmatpush1.bf16.msra.mxu0 %v4020
    %4826 = vmatprep.subr.bf16.mxu0 %v4017
    %4827 = vmatpush1.bf16.msra.mxu0 %v4016
    %4828 = vmatprep.subr.bf16.mxu0 %v4013
    %4829 = vmatpush1.bf16.msra.mxu0 %v4012
    %4830 = vmatprep.subr.bf16.mxu0 %v4009
    %4831 = vmatpush1.bf16.msra.mxu0 %v4008
    %4832 = vmatprep.subr.bf16.mxu0 %v4005
    %4833 = vmatpush1.bf16.msra.mxu0 %v4004
    %4834 = vmatprep.subr.bf16.mxu0 %v4001
    %4835 = vmatpush1.bf16.msra.mxu0 %v4000
    %4836 = vmatprep.subr.bf16.mxu0 %v3997
    %4837 = vmatpush1.bf16.msra.mxu0 %v3996
    %4838 = vmatprep.subr.bf16.mxu0 %v3993
    %4839 = vmatpush1.bf16.msra.mxu0 %v3992
    %4840 = vmatprep.subr.bf16.mxu0 %v4053
    %4841 = vmatpush2.bf16.msra.mxu0 %v4052
    %4842 = vmatprep.subr.bf16.mxu0 %v4049
    %4843 = vmatpush2.bf16.msra.mxu0 %v4048
    %4844 = vmatprep.subr.bf16.mxu0 %v4045
    %4845 = vmatpush2.bf16.msra.mxu0 %v4044
    %4846 = vmatprep.subr.bf16.mxu0 %v4041
    %4847 = vmatpush2.bf16.msra.mxu0 %v4040
    %4848 = vmatprep.subr.bf16.mxu0 %v4037
    %4849 = vmatpush2.bf16.msra.mxu0 %v4036
    %4850 = vmatprep.subr.bf16.mxu0 %v4033
    %4851 = vmatpush2.bf16.msra.mxu0 %v4032
    %4852 = vmatprep.subr.bf16.mxu0 %v4029
    %4853 = vmatpush2.bf16.msra.mxu0 %v4028
    %4854 = vmatprep.subr.bf16.mxu0 %v4025
    %4855 = vmatpush2.bf16.msra.mxu0 %v4024
    %4856 = vmatprep.mubr.bf16.mxu0 %v2888
    %4857 = vmatmul.mubr.bf16.gmra.mxu0 %v2884
    %v4858 = vpop.f32.mrf.mxu0
    %v4859 = vadd.f32 %v4816, %v4858
    %v4860 = vpop.f32.mrf.mxu0
    %v4861 = vadd.f32 %v4818, %v4860
    %v4862 = vpop.f32.mrf.mxu0
    %v4863 = vadd.f32 %v4820, %v4862
    %v4864 = vpop.f32.mrf.mxu0
    %v4865 = vadd.f32 %v4822, %v4864
    %4866 = vdwg.mxu0
    %4867 = vmatprep.subr.bf16.mxu0 %v4085
    %4868 = vmatpush1.bf16.msra.mxu0 %v4084
    %4869 = vmatprep.subr.bf16.mxu0 %v4081
    %4870 = vmatpush1.bf16.msra.mxu0 %v4080
    %4871 = vmatprep.subr.bf16.mxu0 %v4077
    %4872 = vmatpush1.bf16.msra.mxu0 %v4076
    %4873 = vmatprep.subr.bf16.mxu0 %v4073
    %4874 = vmatpush1.bf16.msra.mxu0 %v4072
    %4875 = vmatprep.subr.bf16.mxu0 %v4069
    %4876 = vmatpush1.bf16.msra.mxu0 %v4068
    %4877 = vmatprep.subr.bf16.mxu0 %v4065
    %4878 = vmatpush1.bf16.msra.mxu0 %v4064
    %4879 = vmatprep.subr.bf16.mxu0 %v4061
    %4880 = vmatpush1.bf16.msra.mxu0 %v4060
    %4881 = vmatprep.subr.bf16.mxu0 %v4057
    %4882 = vmatpush1.bf16.msra.mxu0 %v4056
    %4883 = vmatprep.subr.bf16.mxu0 %v4117
    %4884 = vmatpush2.bf16.msra.mxu0 %v4116
    %4885 = vmatprep.subr.bf16.mxu0 %v4113
    %4886 = vmatpush2.bf16.msra.mxu0 %v4112
    %4887 = vmatprep.subr.bf16.mxu0 %v4109
    %4888 = vmatpush2.bf16.msra.mxu0 %v4108
    %4889 = vmatprep.subr.bf16.mxu0 %v4105
    %4890 = vmatpush2.bf16.msra.mxu0 %v4104
    %4891 = vmatprep.subr.bf16.mxu0 %v4101
    %4892 = vmatpush2.bf16.msra.mxu0 %v4100
    %4893 = vmatprep.subr.bf16.mxu0 %v4097
    %4894 = vmatpush2.bf16.msra.mxu0 %v4096
    %4895 = vmatprep.subr.bf16.mxu0 %v4093
    %4896 = vmatpush2.bf16.msra.mxu0 %v4092
    %4897 = vmatprep.subr.bf16.mxu0 %v4089
    %4898 = vmatpush2.bf16.msra.mxu0 %v4088
    %4899 = vmatprep.mubr.bf16.mxu0 %v2889
    %4900 = vmatmul.mubr.bf16.gmra.mxu0 %v2885
    %v4901 = vpop.f32.mrf.mxu0
    %v4902 = vadd.f32 %v4859, %v4901
    %v4903 = vpop.f32.mrf.mxu0
    %v4904 = vadd.f32 %v4861, %v4903
    %v4905 = vpop.f32.mrf.mxu0
    %v4906 = vadd.f32 %v4863, %v4905
    %v4907 = vpop.f32.mrf.mxu0
    %v4908 = vadd.f32 %v4865, %v4907
    %4909 = vdwg.mxu0
    %4910 = vmatprep.subr.bf16.mxu0 %v4149
    %4911 = vmatpush1.bf16.msra.mxu0 %v4148
    %4912 = vmatprep.subr.bf16.mxu0 %v4145
    %4913 = vmatpush1.bf16.msra.mxu0 %v4144
    %4914 = vmatprep.subr.bf16.mxu0 %v4141
    %4915 = vmatpush1.bf16.msra.mxu0 %v4140
    %4916 = vmatprep.subr.bf16.mxu0 %v4137
    %4917 = vmatpush1.bf16.msra.mxu0 %v4136
    %4918 = vmatprep.subr.bf16.mxu0 %v4133
    %4919 = vmatpush1.bf16.msra.mxu0 %v4132
    %4920 = vmatprep.subr.bf16.mxu0 %v4129
    %4921 = vmatpush1.bf16.msra.mxu0 %v4128
    %4922 = vmatprep.subr.bf16.mxu0 %v4125
    %4923 = vmatpush1.bf16.msra.mxu0 %v4124
    %4924 = vmatprep.subr.bf16.mxu0 %v4121
    %4925 = vmatpush1.bf16.msra.mxu0 %v4120
    %4926 = vmatprep.subr.bf16.mxu0 %v4181
    %4927 = vmatpush2.bf16.msra.mxu0 %v4180
    %4928 = vmatprep.subr.bf16.mxu0 %v4177
    %4929 = vmatpush2.bf16.msra.mxu0 %v4176
    %4930 = vmatprep.subr.bf16.mxu0 %v4173
    %4931 = vmatpush2.bf16.msra.mxu0 %v4172
    %4932 = vmatprep.subr.bf16.mxu0 %v4169
    %4933 = vmatpush2.bf16.msra.mxu0 %v4168
    %4934 = vmatprep.subr.bf16.mxu0 %v4165
    %4935 = vmatpush2.bf16.msra.mxu0 %v4164
    %4936 = vmatprep.subr.bf16.mxu0 %v4161
    %4937 = vmatpush2.bf16.msra.mxu0 %v4160
    %4938 = vmatprep.subr.bf16.mxu0 %v4157
    %4939 = vmatpush2.bf16.msra.mxu0 %v4156
    %4940 = vmatprep.subr.bf16.mxu0 %v4153
    %4941 = vmatpush2.bf16.msra.mxu0 %v4152
    %4942 = vmatprep.mubr.bf16.mxu0 %v2890
    %4943 = vmatmul.mubr.bf16.gmra.mxu0 %v2886
    %v4944 = vpop.f32.mrf.mxu0
    %v4945 = vadd.f32 %v4902, %v4944
    %v4946 = vpop.f32.mrf.mxu0
    %v4947 = vadd.f32 %v4904, %v4946
    %v4948 = vpop.f32.mrf.mxu0
    %v4949 = vadd.f32 %v4906, %v4948
    %v4950 = vpop.f32.mrf.mxu0
    %v4951 = vadd.f32 %v4908, %v4950
    %4952 = vdwg.mxu0
    %4953 = vmatprep.subr.bf16.mxu0 %v4213
    %4954 = vmatpush1.bf16.msra.mxu0 %v4212
    %4955 = vmatprep.subr.bf16.mxu0 %v4209
    %4956 = vmatpush1.bf16.msra.mxu0 %v4208
    %4957 = vmatprep.subr.bf16.mxu0 %v4205
    %4958 = vmatpush1.bf16.msra.mxu0 %v4204
    %4959 = vmatprep.subr.bf16.mxu0 %v4201
    %4960 = vmatpush1.bf16.msra.mxu0 %v4200
    %4961 = vmatprep.subr.bf16.mxu0 %v4197
    %4962 = vmatpush1.bf16.msra.mxu0 %v4196
    %4963 = vmatprep.subr.bf16.mxu0 %v4193
    %4964 = vmatpush1.bf16.msra.mxu0 %v4192
    %4965 = vmatprep.subr.bf16.mxu0 %v4189
    %4966 = vmatpush1.bf16.msra.mxu0 %v4188
    %4967 = vmatprep.subr.bf16.mxu0 %v4185
    %4968 = vmatpush1.bf16.msra.mxu0 %v4184
    %4969 = vmatprep.subr.bf16.mxu0 %v4245
    %4970 = vmatpush2.bf16.msra.mxu0 %v4244
    %4971 = vmatprep.subr.bf16.mxu0 %v4241
    %4972 = vmatpush2.bf16.msra.mxu0 %v4240
    %4973 = vmatprep.subr.bf16.mxu0 %v4237
    %4974 = vmatpush2.bf16.msra.mxu0 %v4236
    %4975 = vmatprep.subr.bf16.mxu0 %v4233
    %4976 = vmatpush2.bf16.msra.mxu0 %v4232
    %4977 = vmatprep.subr.bf16.mxu0 %v4229
    %4978 = vmatpush2.bf16.msra.mxu0 %v4228
    %4979 = vmatprep.subr.bf16.mxu0 %v4225
    %4980 = vmatpush2.bf16.msra.mxu0 %v4224
    %4981 = vmatprep.subr.bf16.mxu0 %v4221
    %4982 = vmatpush2.bf16.msra.mxu0 %v4220
    %4983 = vmatprep.subr.bf16.mxu0 %v4217
    %4984 = vmatpush2.bf16.msra.mxu0 %v4216
    %4985 = vmatprep.mubr.bf16.mxu0 %v2955
    %4986 = vmatmul.mubr.bf16.gmra.mxu0 %v2954
    %v4987 = vpop.f32.mrf.mxu0
    %v4988 = vadd.f32 %v4945, %v4987
    %v4989 = vpop.f32.mrf.mxu0
    %v4990 = vadd.f32 %v4947, %v4989
    %v4991 = vpop.f32.mrf.mxu0
    %v4992 = vadd.f32 %v4949, %v4991
    %v4993 = vpop.f32.mrf.mxu0
    %v4994 = vadd.f32 %v4951, %v4993
    %4995 = vdwg.mxu0
    %s4996 = scalar_lea.vmem [#allocation2], 22
    %v4997 = vld [vmem:[%s4996] sm:$0x3]
    %v4998 = vld [vmem:[%s4996 + $0x2] sm:$0x3]
    %v4999 = vld [vmem:[%s4996 + $0x4] sm:$0x3]
    %v5000 = vld [vmem:[%s4996 + $0x6] sm:$0x3]
    %v5001 = vld [vmem:[%s4996 + $0x8] sm:$0x3]
    %v5002 = vld [vmem:[%s4996 + $0xa] sm:$0x3]
    %v5003 = vld [vmem:[%s4996 + $0xc] sm:$0x3]
    %v5012 = vunpack.c.l.s4 1966171168
    %v5013 = vunpack.c.0.s8 %v5012
    %v5014 = vlaneseq
    %v5015 = vshrl.u32 %v5014, 7
    %v5016 = vsub.s32 %v5013, %v5015
    %v5017 = vrot.slane %v4997, %v5016
    %v5018 = vcombine.high %v5017, %v5017
    %v5020 = vunpack.c.l.s4 1966171168
    %v5021 = vunpack.c.0.s8 %v5020
    %v5022 = vlaneseq
    %v5023 = vshrl.u32 %v5022, 7
    %v5024 = vsub.s32 %v5021, %v5023
    %v5025 = vrot.slane %v5017, %v5024
    %v5027 = vunpack.c.l.s4 1966171168
    %v5028 = vunpack.c.0.s8 %v5027
    %v5029 = vlaneseq
    %v5030 = vshrl.u32 %v5029, 7
    %v5031 = vsub.s32 %v5028, %v5030
    %v5032 = vrot.slane %v5018, %v5031
    %v5034 = vunpack.c.l.s4 1966171168
    %v5035 = vunpack.c.0.s8 %v5034
    %v5036 = vlaneseq
    %v5037 = vshrl.u32 %v5036, 7
    %v5038 = vsub.s32 %v5035, %v5037
    %v5039 = vrot.slane %v4998, %v5038
    %v5040 = vcombine.high %v5039, %v5039
    %v5042 = vunpack.c.l.s4 1966171168
    %v5043 = vunpack.c.0.s8 %v5042
    %v5044 = vlaneseq
    %v5045 = vshrl.u32 %v5044, 7
    %v5046 = vsub.s32 %v5043, %v5045
    %v5047 = vrot.slane %v5039, %v5046
    %v5049 = vunpack.c.l.s4 1966171168
    %v5050 = vunpack.c.0.s8 %v5049
    %v5051 = vlaneseq
    %v5052 = vshrl.u32 %v5051, 7
    %v5053 = vsub.s32 %v5050, %v5052
    %v5054 = vrot.slane %v5040, %v5053
    %v5056 = vunpack.c.l.s4 1966171168
    %v5057 = vunpack.c.0.s8 %v5056
    %v5058 = vlaneseq
    %v5059 = vshrl.u32 %v5058, 7
    %v5060 = vsub.s32 %v5057, %v5059
    %v5061 = vrot.slane %v4999, %v5060
    %v5062 = vcombine.high %v5061, %v5061
    %v5064 = vunpack.c.l.s4 1966171168
    %v5065 = vunpack.c.0.s8 %v5064
    %v5066 = vlaneseq
    %v5067 = vshrl.u32 %v5066, 7
    %v5068 = vsub.s32 %v5065, %v5067
    %v5069 = vrot.slane %v5061, %v5068
    %v5071 = vunpack.c.l.s4 1966171168
    %v5072 = vunpack.c.0.s8 %v5071
    %v5073 = vlaneseq
    %v5074 = vshrl.u32 %v5073, 7
    %v5075 = vsub.s32 %v5072, %v5074
    %v5076 = vrot.slane %v5062, %v5075
    %v5078 = vunpack.c.l.s4 1966171168
    %v5079 = vunpack.c.0.s8 %v5078
    %v5080 = vlaneseq
    %v5081 = vshrl.u32 %v5080, 7
    %v5082 = vsub.s32 %v5079, %v5081
    %v5083 = vrot.slane %v5000, %v5082
    %v5084 = vcombine.high %v5083, %v5083
    %v5086 = vunpack.c.l.s4 1966171168
    %v5087 = vunpack.c.0.s8 %v5086
    %v5088 = vlaneseq
    %v5089 = vshrl.u32 %v5088, 7
    %v5090 = vsub.s32 %v5087, %v5089
    %v5091 = vrot.slane %v5083, %v5090
    %v5093 = vunpack.c.l.s4 1966171168
    %v5094 = vunpack.c.0.s8 %v5093
    %v5095 = vlaneseq
    %v5096 = vshrl.u32 %v5095, 7
    %v5097 = vsub.s32 %v5094, %v5096
    %v5098 = vrot.slane %v5084, %v5097
    %v5100 = vunpack.c.l.s4 1966171168
    %v5101 = vunpack.c.0.s8 %v5100
    %v5102 = vlaneseq
    %v5103 = vshrl.u32 %v5102, 7
    %v5104 = vsub.s32 %v5101, %v5103
    %v5105 = vrot.slane %v5001, %v5104
    %v5106 = vcombine.high %v5105, %v5105
    %v5108 = vunpack.c.l.s4 1966171168
    %v5109 = vunpack.c.0.s8 %v5108
    %v5110 = vlaneseq
    %v5111 = vshrl.u32 %v5110, 7
    %v5112 = vsub.s32 %v5109, %v5111
    %v5113 = vrot.slane %v5105, %v5112
    %v5115 = vunpack.c.l.s4 1966171168
    %v5116 = vunpack.c.0.s8 %v5115
    %v5117 = vlaneseq
    %v5118 = vshrl.u32 %v5117, 7
    %v5119 = vsub.s32 %v5116, %v5118
    %v5120 = vrot.slane %v5106, %v5119
    %v5122 = vunpack.c.l.s4 1966171168
    %v5123 = vunpack.c.0.s8 %v5122
    %v5124 = vlaneseq
    %v5125 = vshrl.u32 %v5124, 7
    %v5126 = vsub.s32 %v5123, %v5125
    %v5127 = vrot.slane %v5002, %v5126
    %v5128 = vcombine.high %v5127, %v5127
    %v5130 = vunpack.c.l.s4 1966171168
    %v5131 = vunpack.c.0.s8 %v5130
    %v5132 = vlaneseq
    %v5133 = vshrl.u32 %v5132, 7
    %v5134 = vsub.s32 %v5131, %v5133
    %v5135 = vrot.slane %v5127, %v5134
    %v5137 = vunpack.c.l.s4 1966171168
    %v5138 = vunpack.c.0.s8 %v5137
    %v5139 = vlaneseq
    %v5140 = vshrl.u32 %v5139, 7
    %v5141 = vsub.s32 %v5138, %v5140
    %v5142 = vrot.slane %v5128, %v5141
    %v5144 = vunpack.c.l.s4 1966171168
    %v5145 = vunpack.c.0.s8 %v5144
    %v5146 = vlaneseq
    %v5147 = vshrl.u32 %v5146, 7
    %v5148 = vsub.s32 %v5145, %v5147
    %v5149 = vrot.slane %v5003, %v5148
    %v5150 = vcombine.high %v5149, %v5149
    %v5152 = vunpack.c.l.s4 1966171168
    %v5153 = vunpack.c.0.s8 %v5152
    %v5154 = vlaneseq
    %v5155 = vshrl.u32 %v5154, 7
    %v5156 = vsub.s32 %v5153, %v5155
    %v5157 = vrot.slane %v5149, %v5156
    %v5159 = vunpack.c.l.s4 1966171168
    %v5160 = vunpack.c.0.s8 %v5159
    %v5161 = vlaneseq
    %v5162 = vshrl.u32 %v5161, 7
    %v5163 = vsub.s32 %v5160, %v5162
    %v5164 = vrot.slane %v5150, %v5163
    %v5165 = vcombine.low %v2325, %v2332
    %v5166 = vcombine.low %v2339, %v2364
    %v5168 = vunpack.c.l.s4 1966171168
    %v5169 = vunpack.c.0.s8 %v5168
    %v5170 = vlaneseq
    %v5171 = vshrl.u32 %v5170, 7
    %v5172 = vsub.s32 %v5169, %v5171
    %v5173 = vrot.slane %v5165, %v5172
    %v5175 = vunpack.c.l.s4 1966171168
    %v5176 = vunpack.c.0.s8 %v5175
    %v5177 = vlaneseq
    %v5178 = vshrl.u32 %v5177, 7
    %v5179 = vsub.s32 %v5176, %v5178
    %v5180 = vrot.slane %v5166, %v5179
    %v5181 = vcombine.low %v5173, %v5180
    %v5182 = vcombine.low %v5025, %v5032
    %v5184 = vunpack.c.l.s4 1966171168
    %v5185 = vunpack.c.0.s8 %v5184
    %v5186 = vlaneseq
    %v5187 = vshrl.u32 %v5186, 7
    %v5188 = vsub.s32 %v5185, %v5187
    %v5189 = vrot.slane %v5182, %v5188
    %v5191 = vunpack.c.l.s4 1966171168
    %v5192 = vunpack.c.0.s8 %v5191
    %v5193 = vlaneseq
    %v5194 = vshrl.u32 %v5193, 7
    %v5195 = vsub.s32 %v5192, %v5194
    %v5196 = vrot.slane %v5189, %v5195
    %v5197 = vcombine.low %v2389, %v2396
    %v5198 = vcombine.low %v2403, %v2428
    %v5200 = vunpack.c.l.s4 1966171168
    %v5201 = vunpack.c.0.s8 %v5200
    %v5202 = vlaneseq
    %v5203 = vshrl.u32 %v5202, 7
    %v5204 = vsub.s32 %v5201, %v5203
    %v5205 = vrot.slane %v5197, %v5204
    %v5207 = vunpack.c.l.s4 1966171168
    %v5208 = vunpack.c.0.s8 %v5207
    %v5209 = vlaneseq
    %v5210 = vshrl.u32 %v5209, 7
    %v5211 = vsub.s32 %v5208, %v5210
    %v5212 = vrot.slane %v5198, %v5211
    %v5213 = vcombine.low %v5205, %v5212
    %v5214 = vcombine.low %v5047, %v5054
    %v5216 = vunpack.c.l.s4 1966171168
    %v5217 = vunpack.c.0.s8 %v5216
    %v5218 = vlaneseq
    %v5219 = vshrl.u32 %v5218, 7
    %v5220 = vsub.s32 %v5217, %v5219
    %v5221 = vrot.slane %v5214, %v5220
    %v5223 = vunpack.c.l.s4 1966171168
    %v5224 = vunpack.c.0.s8 %v5223
    %v5225 = vlaneseq
    %v5226 = vshrl.u32 %v5225, 7
    %v5227 = vsub.s32 %v5224, %v5226
    %v5228 = vrot.slane %v5221, %v5227
    %v5229 = vcombine.low %v2453, %v2460
    %v5230 = vcombine.low %v2467, %v2492
    %v5232 = vunpack.c.l.s4 1966171168
    %v5233 = vunpack.c.0.s8 %v5232
    %v5234 = vlaneseq
    %v5235 = vshrl.u32 %v5234, 7
    %v5236 = vsub.s32 %v5233, %v5235
    %v5237 = vrot.slane %v5229, %v5236
    %v5239 = vunpack.c.l.s4 1966171168
    %v5240 = vunpack.c.0.s8 %v5239
    %v5241 = vlaneseq
    %v5242 = vshrl.u32 %v5241, 7
    %v5243 = vsub.s32 %v5240, %v5242
    %v5244 = vrot.slane %v5230, %v5243
    %v5245 = vcombine.low %v5237, %v5244
    %v5246 = vcombine.low %v5069, %v5076
    %v5248 = vunpack.c.l.s4 1966171168
    %v5249 = vunpack.c.0.s8 %v5248
    %v5250 = vlaneseq
    %v5251 = vshrl.u32 %v5250, 7
    %v5252 = vsub.s32 %v5249, %v5251
    %v5253 = vrot.slane %v5246, %v5252
    %v5255 = vunpack.c.l.s4 1966171168
    %v5256 = vunpack.c.0.s8 %v5255
    %v5257 = vlaneseq
    %v5258 = vshrl.u32 %v5257, 7
    %v5259 = vsub.s32 %v5256, %v5258
    %v5260 = vrot.slane %v5253, %v5259
    %v5261 = vcombine.low %v2517, %v2524
    %v5262 = vcombine.low %v2531, %v2556
    %v5264 = vunpack.c.l.s4 1966171168
    %v5265 = vunpack.c.0.s8 %v5264
    %v5266 = vlaneseq
    %v5267 = vshrl.u32 %v5266, 7
    %v5268 = vsub.s32 %v5265, %v5267
    %v5269 = vrot.slane %v5261, %v5268
    %v5271 = vunpack.c.l.s4 1966171168
    %v5272 = vunpack.c.0.s8 %v5271
    %v5273 = vlaneseq
    %v5274 = vshrl.u32 %v5273, 7
    %v5275 = vsub.s32 %v5272, %v5274
    %v5276 = vrot.slane %v5262, %v5275
    %v5277 = vcombine.low %v5269, %v5276
    %v5278 = vcombine.low %v5091, %v5098
    %v5280 = vunpack.c.l.s4 1966171168
    %v5281 = vunpack.c.0.s8 %v5280
    %v5282 = vlaneseq
    %v5283 = vshrl.u32 %v5282, 7
    %v5284 = vsub.s32 %v5281, %v5283
    %v5285 = vrot.slane %v5278, %v5284
    %v5287 = vunpack.c.l.s4 1966171168
    %v5288 = vunpack.c.0.s8 %v5287
    %v5289 = vlaneseq
    %v5290 = vshrl.u32 %v5289, 7
    %v5291 = vsub.s32 %v5288, %v5290
    %v5292 = vrot.slane %v5285, %v5291
    %v5293 = vcombine.low %v2581, %v2588
    %v5294 = vcombine.low %v2595, %v2620
    %v5296 = vunpack.c.l.s4 1966171168
    %v5297 = vunpack.c.0.s8 %v5296
    %v5298 = vlaneseq
    %v5299 = vshrl.u32 %v5298, 7
    %v5300 = vsub.s32 %v5297, %v5299
    %v5301 = vrot.slane %v5293, %v5300
    %v5303 = vunpack.c.l.s4 1966171168
    %v5304 = vunpack.c.0.s8 %v5303
    %v5305 = vlaneseq
    %v5306 = vshrl.u32 %v5305, 7
    %v5307 = vsub.s32 %v5304, %v5306
    %v5308 = vrot.slane %v5294, %v5307
    %v5309 = vcombine.low %v5301, %v5308
    %v5310 = vcombine.low %v5113, %v5120
    %v5312 = vunpack.c.l.s4 1966171168
    %v5313 = vunpack.c.0.s8 %v5312
    %v5314 = vlaneseq
    %v5315 = vshrl.u32 %v5314, 7
    %v5316 = vsub.s32 %v5313, %v5315
    %v5317 = vrot.slane %v5310, %v5316
    %v5319 = vunpack.c.l.s4 1966171168
    %v5320 = vunpack.c.0.s8 %v5319
    %v5321 = vlaneseq
    %v5322 = vshrl.u32 %v5321, 7
    %v5323 = vsub.s32 %v5320, %v5322
    %v5324 = vrot.slane %v5317, %v5323
    %v5325 = vcombine.low %v2645, %v2652
    %v5326 = vcombine.low %v2659, %v2684
    %v5328 = vunpack.c.l.s4 1966171168
    %v5329 = vunpack.c.0.s8 %v5328
    %v5330 = vlaneseq
    %v5331 = vshrl.u32 %v5330, 7
    %v5332 = vsub.s32 %v5329, %v5331
    %v5333 = vrot.slane %v5325, %v5332
    %v5335 = vunpack.c.l.s4 1966171168
    %v5336 = vunpack.c.0.s8 %v5335
    %v5337 = vlaneseq
    %v5338 = vshrl.u32 %v5337, 7
    %v5339 = vsub.s32 %v5336, %v5338
    %v5340 = vrot.slane %v5326, %v5339
    %v5341 = vcombine.low %v5333, %v5340
    %v5342 = vcombine.low %v5135, %v5142
    %v5344 = vunpack.c.l.s4 1966171168
    %v5345 = vunpack.c.0.s8 %v5344
    %v5346 = vlaneseq
    %v5347 = vshrl.u32 %v5346, 7
    %v5348 = vsub.s32 %v5345, %v5347
    %v5349 = vrot.slane %v5342, %v5348
    %v5351 = vunpack.c.l.s4 1966171168
    %v5352 = vunpack.c.0.s8 %v5351
    %v5353 = vlaneseq
    %v5354 = vshrl.u32 %v5353, 7
    %v5355 = vsub.s32 %v5352, %v5354
    %v5356 = vrot.slane %v5349, %v5355
    %v5357 = vcombine.low %v2709, %v2716
    %v5358 = vcombine.low %v2723, %v2748
    %v5360 = vunpack.c.l.s4 1966171168
    %v5361 = vunpack.c.0.s8 %v5360
    %v5362 = vlaneseq
    %v5363 = vshrl.u32 %v5362, 7
    %v5364 = vsub.s32 %v5361, %v5363
    %v5365 = vrot.slane %v5357, %v5364
    %v5367 = vunpack.c.l.s4 1966171168
    %v5368 = vunpack.c.0.s8 %v5367
    %v5369 = vlaneseq
    %v5370 = vshrl.u32 %v5369, 7
    %v5371 = vsub.s32 %v5368, %v5370
    %v5372 = vrot.slane %v5358, %v5371
    %v5373 = vcombine.low %v5365, %v5372
    %v5374 = vcombine.low %v5157, %v5164
    %v5376 = vunpack.c.l.s4 1966171168
    %v5377 = vunpack.c.0.s8 %v5376
    %v5378 = vlaneseq
    %v5379 = vshrl.u32 %v5378, 7
    %v5380 = vsub.s32 %v5377, %v5379
    %v5381 = vrot.slane %v5374, %v5380
    %v5383 = vunpack.c.l.s4 1966171168
    %v5384 = vunpack.c.0.s8 %v5383
    %v5385 = vlaneseq
    %v5386 = vshrl.u32 %v5385, 7
    %v5387 = vsub.s32 %v5384, %v5386
    %v5388 = vrot.slane %v5381, %v5387
    %v5389 = vcombine.low %v5181, %v5213
    %v5390 = vcombine.high %v5181, %v5213
    %v5391 = vcombine.low %v5245, %v5277
    %v5392 = vcombine.high %v5245, %v5277
    %v5393 = vcombine.low %v5309, %v5341
    %v5394 = vcombine.high %v5309, %v5341
    %v5395 = vcombine.high %v5373, %v5373
    %v5397 = vunpack.c.l.s4 1966171168
    %v5398 = vunpack.c.0.s8 %v5397
    %v5399 = vlaneseq
    %v5400 = vshrl.u32 %v5399, 7
    %v5401 = vsub.s32 %v5398, %v5400
    %v5402 = vrot.slane %v5389, %v5401
    %v5404 = vunpack.c.l.s4 1966171168
    %v5405 = vunpack.c.0.s8 %v5404
    %v5406 = vlaneseq
    %v5407 = vshrl.u32 %v5406, 7
    %v5408 = vsub.s32 %v5405, %v5407
    %v5409 = vrot.slane %v5390, %v5408
    %v5411 = vunpack.c.l.s4 1966171168
    %v5412 = vunpack.c.0.s8 %v5411
    %v5413 = vlaneseq
    %v5414 = vshrl.u32 %v5413, 7
    %v5415 = vsub.s32 %v5412, %v5414
    %v5416 = vrot.slane %v5391, %v5415
    %v5418 = vunpack.c.l.s4 1966171168
    %v5419 = vunpack.c.0.s8 %v5418
    %v5420 = vlaneseq
    %v5421 = vshrl.u32 %v5420, 7
    %v5422 = vsub.s32 %v5419, %v5421
    %v5423 = vrot.slane %v5392, %v5422
    %v5425 = vunpack.c.l.s4 1966171168
    %v5426 = vunpack.c.0.s8 %v5425
    %v5427 = vlaneseq
    %v5428 = vshrl.u32 %v5427, 7
    %v5429 = vsub.s32 %v5426, %v5428
    %v5430 = vrot.slane %v5393, %v5429
    %v5432 = vunpack.c.l.s4 1966171168
    %v5433 = vunpack.c.0.s8 %v5432
    %v5434 = vlaneseq
    %v5435 = vshrl.u32 %v5434, 7
    %v5436 = vsub.s32 %v5433, %v5435
    %v5437 = vrot.slane %v5394, %v5436
    %v5439 = vunpack.c.l.s4 1966171168
    %v5440 = vunpack.c.0.s8 %v5439
    %v5441 = vlaneseq
    %v5442 = vshrl.u32 %v5441, 7
    %v5443 = vsub.s32 %v5440, %v5442
    %v5444 = vrot.slane %v5373, %v5443
    %v5446 = vunpack.c.l.s4 1966171168
    %v5447 = vunpack.c.0.s8 %v5446
    %v5448 = vlaneseq
    %v5449 = vshrl.u32 %v5448, 7
    %v5450 = vsub.s32 %v5447, %v5449
    %v5451 = vrot.slane %v5395, %v5450
    %v5452 = vcombine.low %v5402, %v5416
    %v5453 = vcombine.high %v5402, %v5416
    %v5454 = vcombine.low %v5409, %v5423
    %v5455 = vcombine.high %v5409, %v5423
    %v5456 = vcombine.low %v5430, %v5444
    %v5457 = vcombine.high %v5430, %v5444
    %v5458 = vcombine.low %v5437, %v5451
    %v5459 = vcombine.high %v5437, %v5451
    %v5461 = vunpack.c.l.s4 1966171168
    %v5462 = vunpack.c.0.s8 %v5461
    %v5463 = vlaneseq
    %v5464 = vshrl.u32 %v5463, 7
    %v5465 = vsub.s32 %v5462, %v5464
    %v5466 = vrot.slane %v5452, %v5465
    %v5468 = vunpack.c.l.s4 1966171168
    %v5469 = vunpack.c.0.s8 %v5468
    %v5470 = vlaneseq
    %v5471 = vshrl.u32 %v5470, 7
    %v5472 = vsub.s32 %v5469, %v5471
    %v5473 = vrot.slane %v5454, %v5472
    %v5475 = vunpack.c.l.s4 1966171168
    %v5476 = vunpack.c.0.s8 %v5475
    %v5477 = vlaneseq
    %v5478 = vshrl.u32 %v5477, 7
    %v5479 = vsub.s32 %v5476, %v5478
    %v5480 = vrot.slane %v5453, %v5479
    %v5482 = vunpack.c.l.s4 1966171168
    %v5483 = vunpack.c.0.s8 %v5482
    %v5484 = vlaneseq
    %v5485 = vshrl.u32 %v5484, 7
    %v5486 = vsub.s32 %v5483, %v5485
    %v5487 = vrot.slane %v5455, %v5486
    %v5489 = vunpack.c.l.s4 1966171168
    %v5490 = vunpack.c.0.s8 %v5489
    %v5491 = vlaneseq
    %v5492 = vshrl.u32 %v5491, 7
    %v5493 = vsub.s32 %v5490, %v5492
    %v5494 = vrot.slane %v5456, %v5493
    %v5496 = vunpack.c.l.s4 1966171168
    %v5497 = vunpack.c.0.s8 %v5496
    %v5498 = vlaneseq
    %v5499 = vshrl.u32 %v5498, 7
    %v5500 = vsub.s32 %v5497, %v5499
    %v5501 = vrot.slane %v5458, %v5500
    %v5503 = vunpack.c.l.s4 1966171168
    %v5504 = vunpack.c.0.s8 %v5503
    %v5505 = vlaneseq
    %v5506 = vshrl.u32 %v5505, 7
    %v5507 = vsub.s32 %v5504, %v5506
    %v5508 = vrot.slane %v5457, %v5507
    %v5510 = vunpack.c.l.s4 1966171168
    %v5511 = vunpack.c.0.s8 %v5510
    %v5512 = vlaneseq
    %v5513 = vshrl.u32 %v5512, 7
    %v5514 = vsub.s32 %v5511, %v5513
    %v5515 = vrot.slane %v5459, %v5514
    %v5516 = vcombine.low %v5466, %v5494
    %v5517 = vcombine.high %v5466, %v5494
    %v5518 = vcombine.low %v5473, %v5501
    %v5519 = vcombine.high %v5473, %v5501
    %v5520 = vcombine.low %v5480, %v5508
    %v5521 = vcombine.high %v5480, %v5508
    %v5522 = vcombine.low %v5487, %v5515
    %v5523 = vcombine.high %v5487, %v5515
    %v5524 = vcombine.low %v5196, %v5228
    %v5525 = vcombine.low %v5260, %v5292
    %v5526 = vcombine.low %v5324, %v5356
    %v5528 = vunpack.c.l.s4 1966171168
    %v5529 = vunpack.c.0.s8 %v5528
    %v5530 = vlaneseq
    %v5531 = vshrl.u32 %v5530, 7
    %v5532 = vsub.s32 %v5529, %v5531
    %v5533 = vrot.slane %v5524, %v5532
    %v5535 = vunpack.c.l.s4 1966171168
    %v5536 = vunpack.c.0.s8 %v5535
    %v5537 = vlaneseq
    %v5538 = vshrl.u32 %v5537, 7
    %v5539 = vsub.s32 %v5536, %v5538
    %v5540 = vrot.slane %v5525, %v5539
    %v5542 = vunpack.c.l.s4 1966171168
    %v5543 = vunpack.c.0.s8 %v5542
    %v5544 = vlaneseq
    %v5545 = vshrl.u32 %v5544, 7
    %v5546 = vsub.s32 %v5543, %v5545
    %v5547 = vrot.slane %v5526, %v5546
    %v5549 = vunpack.c.l.s4 1966171168
    %v5550 = vunpack.c.0.s8 %v5549
    %v5551 = vlaneseq
    %v5552 = vshrl.u32 %v5551, 7
    %v5553 = vsub.s32 %v5550, %v5552
    %v5554 = vrot.slane %v5388, %v5553
    %v5555 = vcombine.low %v5533, %v5540
    %v5556 = vcombine.high %v5533, %v5540
    %v5557 = vcombine.low %v5547, %v5554
    %v5558 = vcombine.high %v5547, %v5554
    %v5560 = vunpack.c.l.s4 1966171168
    %v5561 = vunpack.c.0.s8 %v5560
    %v5562 = vlaneseq
    %v5563 = vshrl.u32 %v5562, 7
    %v5564 = vsub.s32 %v5561, %v5563
    %v5565 = vrot.slane %v5555, %v5564
    %v5567 = vunpack.c.l.s4 1966171168
    %v5568 = vunpack.c.0.s8 %v5567
    %v5569 = vlaneseq
    %v5570 = vshrl.u32 %v5569, 7
    %v5571 = vsub.s32 %v5568, %v5570
    %v5572 = vrot.slane %v5556, %v5571
    %v5574 = vunpack.c.l.s4 1966171168
    %v5575 = vunpack.c.0.s8 %v5574
    %v5576 = vlaneseq
    %v5577 = vshrl.u32 %v5576, 7
    %v5578 = vsub.s32 %v5575, %v5577
    %v5579 = vrot.slane %v5557, %v5578
    %v5581 = vunpack.c.l.s4 1966171168
    %v5582 = vunpack.c.0.s8 %v5581
    %v5583 = vlaneseq
    %v5584 = vshrl.u32 %v5583, 7
    %v5585 = vsub.s32 %v5582, %v5584
    %v5586 = vrot.slane %v5558, %v5585
    %v5587 = vcombine.low %v5565, %v5579
    %v5588 = vcombine.low %v5572, %v5586
    %5599 = vmatprep.subr.bf16.mxu0 %v3955
    %5600 = vmatpush1.bf16.msra.mxu0 %v3954
    %5601 = vmatprep.subr.bf16.mxu0 %v3951
    %5602 = vmatpush1.bf16.msra.mxu0 %v3950
    %5603 = vmatprep.subr.bf16.mxu0 %v3947
    %5604 = vmatpush1.bf16.msra.mxu0 %v3946
    %5605 = vmatprep.subr.bf16.mxu0 %v3943
    %5606 = vmatpush1.bf16.msra.mxu0 %v3942
    %5607 = vmatprep.subr.bf16.mxu0 %v3939
    %5608 = vmatpush1.bf16.msra.mxu0 %v3938
    %5609 = vmatprep.subr.bf16.mxu0 %v3935
    %5610 = vmatpush1.bf16.msra.mxu0 %v3934
    %5611 = vmatprep.subr.bf16.mxu0 %v3931
    %5612 = vmatpush1.bf16.msra.mxu0 %v3930
    %5613 = vmatprep.subr.bf16.mxu0 %v3927
    %5614 = vmatpush1.bf16.msra.mxu0 %v3926
    %5615 = vmatprep.subr.bf16.mxu0 %v3987
    %5616 = vmatpush2.bf16.msra.mxu0 %v3986
    %5617 = vmatprep.subr.bf16.mxu0 %v3983
    %5618 = vmatpush2.bf16.msra.mxu0 %v3982
    %5619 = vmatprep.subr.bf16.mxu0 %v3979
    %5620 = vmatpush2.bf16.msra.mxu0 %v3978
    %5621 = vmatprep.subr.bf16.mxu0 %v3975
    %5622 = vmatpush2.bf16.msra.mxu0 %v3974
    %5623 = vmatprep.subr.bf16.mxu0 %v3971
    %5624 = vmatpush2.bf16.msra.mxu0 %v3970
    %5625 = vmatprep.subr.bf16.mxu0 %v3967
    %5626 = vmatpush2.bf16.msra.mxu0 %v3966
    %5627 = vmatprep.subr.bf16.mxu0 %v3963
    %5628 = vmatpush2.bf16.msra.mxu0 %v3962
    %5629 = vmatprep.subr.bf16.mxu0 %v3959
    %5630 = vmatpush2.bf16.msra.mxu0 %v3958
    %5631 = vmatprep.mubr.bf16.mxu0 %v5520
    %5632 = vmatmul.mubr.bf16.gmra.mxu0 %v5516
    %v5633 = vpop.f32.mrf.mxu0
    %v5634 = vadd.f32 0.0, %v5633
    %v5635 = vpop.f32.mrf.mxu0
    %v5636 = vadd.f32 0.0, %v5635
    %v5637 = vpop.f32.mrf.mxu0
    %v5638 = vadd.f32 0.0, %v5637
    %v5639 = vpop.f32.mrf.mxu0
    %v5640 = vadd.f32 0.0, %v5639
    %5641 = vdwg.mxu0
    %5642 = vmatprep.subr.bf16.mxu0 %v4019
    %5643 = vmatpush1.bf16.msra.mxu0 %v4018
    %5644 = vmatprep.subr.bf16.mxu0 %v4015
    %5645 = vmatpush1.bf16.msra.mxu0 %v4014
    %5646 = vmatprep.subr.bf16.mxu0 %v4011
    %5647 = vmatpush1.bf16.msra.mxu0 %v4010
    %5648 = vmatprep.subr.bf16.mxu0 %v4007
    %5649 = vmatpush1.bf16.msra.mxu0 %v4006
    %5650 = vmatprep.subr.bf16.mxu0 %v4003
    %5651 = vmatpush1.bf16.msra.mxu0 %v4002
    %5652 = vmatprep.subr.bf16.mxu0 %v3999
    %5653 = vmatpush1.bf16.msra.mxu0 %v3998
    %5654 = vmatprep.subr.bf16.mxu0 %v3995
    %5655 = vmatpush1.bf16.msra.mxu0 %v3994
    %5656 = vmatprep.subr.bf16.mxu0 %v3991
    %5657 = vmatpush1.bf16.msra.mxu0 %v3990
    %5658 = vmatprep.subr.bf16.mxu0 %v4051
    %5659 = vmatpush2.bf16.msra.mxu0 %v4050
    %5660 = vmatprep.subr.bf16.mxu0 %v4047
    %5661 = vmatpush2.bf16.msra.mxu0 %v4046
    %5662 = vmatprep.subr.bf16.mxu0 %v4043
    %5663 = vmatpush2.bf16.msra.mxu0 %v4042
    %5664 = vmatprep.subr.bf16.mxu0 %v4039
    %5665 = vmatpush2.bf16.msra.mxu0 %v4038
    %5666 = vmatprep.subr.bf16.mxu0 %v4035
    %5667 = vmatpush2.bf16.msra.mxu0 %v4034
    %5668 = vmatprep.subr.bf16.mxu0 %v4031
    %5669 = vmatpush2.bf16.msra.mxu0 %v4030
    %5670 = vmatprep.subr.bf16.mxu0 %v4027
    %5671 = vmatpush2.bf16.msra.mxu0 %v4026
    %5672 = vmatprep.subr.bf16.mxu0 %v4023
    %5673 = vmatpush2.bf16.msra.mxu0 %v4022
    %5674 = vmatprep.mubr.bf16.mxu0 %v5521
    %5675 = vmatmul.mubr.bf16.gmra.mxu0 %v5517
    %v5676 = vpop.f32.mrf.mxu0
    %v5677 = vadd.f32 %v5634, %v5676
    %v5678 = vpop.f32.mrf.mxu0
    %v5679 = vadd.f32 %v5636, %v5678
    %v5680 = vpop.f32.mrf.mxu0
    %v5681 = vadd.f32 %v5638, %v5680
    %v5682 = vpop.f32.mrf.mxu0
    %v5683 = vadd.f32 %v5640, %v5682
    %5684 = vdwg.mxu0
    %5685 = vmatprep.subr.bf16.mxu0 %v4083
    %5686 = vmatpush1.bf16.msra.mxu0 %v4082
    %5687 = vmatprep.subr.bf16.mxu0 %v4079
    %5688 = vmatpush1.bf16.msra.mxu0 %v4078
    %5689 = vmatprep.subr.bf16.mxu0 %v4075
    %5690 = vmatpush1.bf16.msra.mxu0 %v4074
    %5691 = vmatprep.subr.bf16.mxu0 %v4071
    %5692 = vmatpush1.bf16.msra.mxu0 %v4070
    %5693 = vmatprep.subr.bf16.mxu0 %v4067
    %5694 = vmatpush1.bf16.msra.mxu0 %v4066
    %5695 = vmatprep.subr.bf16.mxu0 %v4063
    %5696 = vmatpush1.bf16.msra.mxu0 %v4062
    %5697 = vmatprep.subr.bf16.mxu0 %v4059
    %5698 = vmatpush1.bf16.msra.mxu0 %v4058
    %5699 = vmatprep.subr.bf16.mxu0 %v4055
    %5700 = vmatpush1.bf16.msra.mxu0 %v4054
    %5701 = vmatprep.subr.bf16.mxu0 %v4115
    %5702 = vmatpush2.bf16.msra.mxu0 %v4114
    %5703 = vmatprep.subr.bf16.mxu0 %v4111
    %5704 = vmatpush2.bf16.msra.mxu0 %v4110
    %5705 = vmatprep.subr.bf16.mxu0 %v4107
    %5706 = vmatpush2.bf16.msra.mxu0 %v4106
    %5707 = vmatprep.subr.bf16.mxu0 %v4103
    %5708 = vmatpush2.bf16.msra.mxu0 %v4102
    %5709 = vmatprep.subr.bf16.mxu0 %v4099
    %5710 = vmatpush2.bf16.msra.mxu0 %v4098
    %5711 = vmatprep.subr.bf16.mxu0 %v4095
    %5712 = vmatpush2.bf16.msra.mxu0 %v4094
    %5713 = vmatprep.subr.bf16.mxu0 %v4091
    %5714 = vmatpush2.bf16.msra.mxu0 %v4090
    %5715 = vmatprep.subr.bf16.mxu0 %v4087
    %5716 = vmatpush2.bf16.msra.mxu0 %v4086
    %5717 = vmatprep.mubr.bf16.mxu0 %v5522
    %5718 = vmatmul.mubr.bf16.gmra.mxu0 %v5518
    %v5719 = vpop.f32.mrf.mxu0
    %v5720 = vadd.f32 %v5677, %v5719
    %v5721 = vpop.f32.mrf.mxu0
    %v5722 = vadd.f32 %v5679, %v5721
    %v5723 = vpop.f32.mrf.mxu0
    %v5724 = vadd.f32 %v5681, %v5723
    %v5725 = vpop.f32.mrf.mxu0
    %v5726 = vadd.f32 %v5683, %v5725
    %5727 = vdwg.mxu0
    %5728 = vmatprep.subr.bf16.mxu0 %v4147
    %5729 = vmatpush1.bf16.msra.mxu0 %v4146
    %5730 = vmatprep.subr.bf16.mxu0 %v4143
    %5731 = vmatpush1.bf16.msra.mxu0 %v4142
    %5732 = vmatprep.subr.bf16.mxu0 %v4139
    %5733 = vmatpush1.bf16.msra.mxu0 %v4138
    %5734 = vmatprep.subr.bf16.mxu0 %v4135
    %5735 = vmatpush1.bf16.msra.mxu0 %v4134
    %5736 = vmatprep.subr.bf16.mxu0 %v4131
    %5737 = vmatpush1.bf16.msra.mxu0 %v4130
    %5738 = vmatprep.subr.bf16.mxu0 %v4127
    %5739 = vmatpush1.bf16.msra.mxu0 %v4126
    %5740 = vmatprep.subr.bf16.mxu0 %v4123
    %5741 = vmatpush1.bf16.msra.mxu0 %v4122
    %5742 = vmatprep.subr.bf16.mxu0 %v4119
    %5743 = vmatpush1.bf16.msra.mxu0 %v4118
    %5744 = vmatprep.subr.bf16.mxu0 %v4179
    %5745 = vmatpush2.bf16.msra.mxu0 %v4178
    %5746 = vmatprep.subr.bf16.mxu0 %v4175
    %5747 = vmatpush2.bf16.msra.mxu0 %v4174
    %5748 = vmatprep.subr.bf16.mxu0 %v4171
    %5749 = vmatpush2.bf16.msra.mxu0 %v4170
    %5750 = vmatprep.subr.bf16.mxu0 %v4167
    %5751 = vmatpush2.bf16.msra.mxu0 %v4166
    %5752 = vmatprep.subr.bf16.mxu0 %v4163
    %5753 = vmatpush2.bf16.msra.mxu0 %v4162
    %5754 = vmatprep.subr.bf16.mxu0 %v4159
    %5755 = vmatpush2.bf16.msra.mxu0 %v4158
    %5756 = vmatprep.subr.bf16.mxu0 %v4155
    %5757 = vmatpush2.bf16.msra.mxu0 %v4154
    %5758 = vmatprep.subr.bf16.mxu0 %v4151
    %5759 = vmatpush2.bf16.msra.mxu0 %v4150
    %5760 = vmatprep.mubr.bf16.mxu0 %v5523
    %5761 = vmatmul.mubr.bf16.gmra.mxu0 %v5519
    %v5762 = vpop.f32.mrf.mxu0
    %v5763 = vadd.f32 %v5720, %v5762
    %v5764 = vpop.f32.mrf.mxu0
    %v5765 = vadd.f32 %v5722, %v5764
    %v5766 = vpop.f32.mrf.mxu0
    %v5767 = vadd.f32 %v5724, %v5766
    %v5768 = vpop.f32.mrf.mxu0
    %v5769 = vadd.f32 %v5726, %v5768
    %5770 = vdwg.mxu0
    %5771 = vmatprep.subr.bf16.mxu0 %v4211
    %5772 = vmatpush1.bf16.msra.mxu0 %v4210
    %5773 = vmatprep.subr.bf16.mxu0 %v4207
    %5774 = vmatpush1.bf16.msra.mxu0 %v4206
    %5775 = vmatprep.subr.bf16.mxu0 %v4203
    %5776 = vmatpush1.bf16.msra.mxu0 %v4202
    %5777 = vmatprep.subr.bf16.mxu0 %v4199
    %5778 = vmatpush1.bf16.msra.mxu0 %v4198
    %5779 = vmatprep.subr.bf16.mxu0 %v4195
    %5780 = vmatpush1.bf16.msra.mxu0 %v4194
    %5781 = vmatprep.subr.bf16.mxu0 %v4191
    %5782 = vmatpush1.bf16.msra.mxu0 %v4190
    %5783 = vmatprep.subr.bf16.mxu0 %v4187
    %5784 = vmatpush1.bf16.msra.mxu0 %v4186
    %5785 = vmatprep.subr.bf16.mxu0 %v4183
    %5786 = vmatpush1.bf16.msra.mxu0 %v4182
    %5787 = vmatprep.subr.bf16.mxu0 %v4243
    %5788 = vmatpush2.bf16.msra.mxu0 %v4242
    %5789 = vmatprep.subr.bf16.mxu0 %v4239
    %5790 = vmatpush2.bf16.msra.mxu0 %v4238
    %5791 = vmatprep.subr.bf16.mxu0 %v4235
    %5792 = vmatpush2.bf16.msra.mxu0 %v4234
    %5793 = vmatprep.subr.bf16.mxu0 %v4231
    %5794 = vmatpush2.bf16.msra.mxu0 %v4230
    %5795 = vmatprep.subr.bf16.mxu0 %v4227
    %5796 = vmatpush2.bf16.msra.mxu0 %v4226
    %5797 = vmatprep.subr.bf16.mxu0 %v4223
    %5798 = vmatpush2.bf16.msra.mxu0 %v4222
    %5799 = vmatprep.subr.bf16.mxu0 %v4219
    %5800 = vmatpush2.bf16.msra.mxu0 %v4218
    %5801 = vmatprep.subr.bf16.mxu0 %v4215
    %5802 = vmatpush2.bf16.msra.mxu0 %v4214
    %5803 = vmatprep.mubr.bf16.mxu0 %v5588
    %5804 = vmatmul.mubr.bf16.gmra.mxu0 %v5587
    %v5805 = vpop.f32.mrf.mxu0
    %v5806 = vadd.f32 %v5763, %v5805
    %v5807 = vpop.f32.mrf.mxu0
    %v5808 = vadd.f32 %v5765, %v5807
    %v5809 = vpop.f32.mrf.mxu0
    %v5810 = vadd.f32 %v5767, %v5809
    %v5811 = vpop.f32.mrf.mxu0
    %v5812 = vadd.f32 %v5769, %v5811
    %5813 = vdwg.mxu0
    %5814 = vmatprep.subr.bf16.mxu0 %v3957
    %5815 = vmatpush1.bf16.msra.mxu0 %v3956
    %5816 = vmatprep.subr.bf16.mxu0 %v3953
    %5817 = vmatpush1.bf16.msra.mxu0 %v3952
    %5818 = vmatprep.subr.bf16.mxu0 %v3949
    %5819 = vmatpush1.bf16.msra.mxu0 %v3948
    %5820 = vmatprep.subr.bf16.mxu0 %v3945
    %5821 = vmatpush1.bf16.msra.mxu0 %v3944
    %5822 = vmatprep.subr.bf16.mxu0 %v3941
    %5823 = vmatpush1.bf16.msra.mxu0 %v3940
    %5824 = vmatprep.subr.bf16.mxu0 %v3937
    %5825 = vmatpush1.bf16.msra.mxu0 %v3936
    %5826 = vmatprep.subr.bf16.mxu0 %v3933
    %5827 = vmatpush1.bf16.msra.mxu0 %v3932
    %5828 = vmatprep.subr.bf16.mxu0 %v3929
    %5829 = vmatpush1.bf16.msra.mxu0 %v3928
    %5830 = vmatprep.subr.bf16.mxu0 %v3989
    %5831 = vmatpush2.bf16.msra.mxu0 %v3988
    %5832 = vmatprep.subr.bf16.mxu0 %v3985
    %5833 = vmatpush2.bf16.msra.mxu0 %v3984
    %5834 = vmatprep.subr.bf16.mxu0 %v3981
    %5835 = vmatpush2.bf16.msra.mxu0 %v3980
    %5836 = vmatprep.subr.bf16.mxu0 %v3977
    %5837 = vmatpush2.bf16.msra.mxu0 %v3976
    %5838 = vmatprep.subr.bf16.mxu0 %v3973
    %5839 = vmatpush2.bf16.msra.mxu0 %v3972
    %5840 = vmatprep.subr.bf16.mxu0 %v3969
    %5841 = vmatpush2.bf16.msra.mxu0 %v3968
    %5842 = vmatprep.subr.bf16.mxu0 %v3965
    %5843 = vmatpush2.bf16.msra.mxu0 %v3964
    %5844 = vmatprep.subr.bf16.mxu0 %v3961
    %5845 = vmatpush2.bf16.msra.mxu0 %v3960
    %5846 = vmatprep.mubr.bf16.mxu0 %v5520
    %5847 = vmatmul.mubr.bf16.gmra.mxu0 %v5516
    %v5848 = vpop.f32.mrf.mxu0
    %v5849 = vadd.f32 0.0, %v5848
    %v5850 = vpop.f32.mrf.mxu0
    %v5851 = vadd.f32 0.0, %v5850
    %v5852 = vpop.f32.mrf.mxu0
    %v5853 = vadd.f32 0.0, %v5852
    %v5854 = vpop.f32.mrf.mxu0
    %v5855 = vadd.f32 0.0, %v5854
    %5856 = vdwg.mxu0
    %5857 = vmatprep.subr.bf16.mxu0 %v4021
    %5858 = vmatpush1.bf16.msra.mxu0 %v4020
    %5859 = vmatprep.subr.bf16.mxu0 %v4017
    %5860 = vmatpush1.bf16.msra.mxu0 %v4016
    %5861 = vmatprep.subr.bf16.mxu0 %v4013
    %5862 = vmatpush1.bf16.msra.mxu0 %v4012
    %5863 = vmatprep.subr.bf16.mxu0 %v4009
    %5864 = vmatpush1.bf16.msra.mxu0 %v4008
    %5865 = vmatprep.subr.bf16.mxu0 %v4005
    %5866 = vmatpush1.bf16.msra.mxu0 %v4004
    %5867 = vmatprep.subr.bf16.mxu0 %v4001
    %5868 = vmatpush1.bf16.msra.mxu0 %v4000
    %5869 = vmatprep.subr.bf16.mxu0 %v3997
    %5870 = vmatpush1.bf16.msra.mxu0 %v3996
    %5871 = vmatprep.subr.bf16.mxu0 %v3993
    %5872 = vmatpush1.bf16.msra.mxu0 %v3992
    %5873 = vmatprep.subr.bf16.mxu0 %v4053
    %5874 = vmatpush2.bf16.msra.mxu0 %v4052
    %5875 = vmatprep.subr.bf16.mxu0 %v4049
    %5876 = vmatpush2.bf16.msra.mxu0 %v4048
    %5877 = vmatprep.subr.bf16.mxu0 %v4045
    %5878 = vmatpush2.bf16.msra.mxu0 %v4044
    %5879 = vmatprep.subr.bf16.mxu0 %v4041
    %5880 = vmatpush2.bf16.msra.mxu0 %v4040
    %5881 = vmatprep.subr.bf16.mxu0 %v4037
    %5882 = vmatpush2.bf16.msra.mxu0 %v4036
    %5883 = vmatprep.subr.bf16.mxu0 %v4033
    %5884 = vmatpush2.bf16.msra.mxu0 %v4032
    %5885 = vmatprep.subr.bf16.mxu0 %v4029
    %5886 = vmatpush2.bf16.msra.mxu0 %v4028
    %5887 = vmatprep.subr.bf16.mxu0 %v4025
    %5888 = vmatpush2.bf16.msra.mxu0 %v4024
    %5889 = vmatprep.mubr.bf16.mxu0 %v5521
    %5890 = vmatmul.mubr.bf16.gmra.mxu0 %v5517
    %v5891 = vpop.f32.mrf.mxu0
    %v5892 = vadd.f32 %v5849, %v5891
    %v5893 = vpop.f32.mrf.mxu0
    %v5894 = vadd.f32 %v5851, %v5893
    %v5895 = vpop.f32.mrf.mxu0
    %v5896 = vadd.f32 %v5853, %v5895
    %v5897 = vpop.f32.mrf.mxu0
    %v5898 = vadd.f32 %v5855, %v5897
    %5899 = vdwg.mxu0
    %5900 = vmatprep.subr.bf16.mxu0 %v4085
    %5901 = vmatpush1.bf16.msra.mxu0 %v4084
    %5902 = vmatprep.subr.bf16.mxu0 %v4081
    %5903 = vmatpush1.bf16.msra.mxu0 %v4080
    %5904 = vmatprep.subr.bf16.mxu0 %v4077
    %5905 = vmatpush1.bf16.msra.mxu0 %v4076
    %5906 = vmatprep.subr.bf16.mxu0 %v4073
    %5907 = vmatpush1.bf16.msra.mxu0 %v4072
    %5908 = vmatprep.subr.bf16.mxu0 %v4069
    %5909 = vmatpush1.bf16.msra.mxu0 %v4068
    %5910 = vmatprep.subr.bf16.mxu0 %v4065
    %5911 = vmatpush1.bf16.msra.mxu0 %v4064
    %5912 = vmatprep.subr.bf16.mxu0 %v4061
    %5913 = vmatpush1.bf16.msra.mxu0 %v4060
    %5914 = vmatprep.subr.bf16.mxu0 %v4057
    %5915 = vmatpush1.bf16.msra.mxu0 %v4056
    %5916 = vmatprep.subr.bf16.mxu0 %v4117
    %5917 = vmatpush2.bf16.msra.mxu0 %v4116
    %5918 = vmatprep.subr.bf16.mxu0 %v4113
    %5919 = vmatpush2.bf16.msra.mxu0 %v4112
    %5920 = vmatprep.subr.bf16.mxu0 %v4109
    %5921 = vmatpush2.bf16.msra.mxu0 %v4108
    %5922 = vmatprep.subr.bf16.mxu0 %v4105
    %5923 = vmatpush2.bf16.msra.mxu0 %v4104
    %5924 = vmatprep.subr.bf16.mxu0 %v4101
    %5925 = vmatpush2.bf16.msra.mxu0 %v4100
    %5926 = vmatprep.subr.bf16.mxu0 %v4097
    %5927 = vmatpush2.bf16.msra.mxu0 %v4096
    %5928 = vmatprep.subr.bf16.mxu0 %v4093
    %5929 = vmatpush2.bf16.msra.mxu0 %v4092
    %5930 = vmatprep.subr.bf16.mxu0 %v4089
    %5931 = vmatpush2.bf16.msra.mxu0 %v4088
    %5932 = vmatprep.mubr.bf16.mxu0 %v5522
    %5933 = vmatmul.mubr.bf16.gmra.mxu0 %v5518
    %v5934 = vpop.f32.mrf.mxu0
    %v5935 = vadd.f32 %v5892, %v5934
    %v5936 = vpop.f32.mrf.mxu0
    %v5937 = vadd.f32 %v5894, %v5936
    %v5938 = vpop.f32.mrf.mxu0
    %v5939 = vadd.f32 %v5896, %v5938
    %v5940 = vpop.f32.mrf.mxu0
    %v5941 = vadd.f32 %v5898, %v5940
    %5942 = vdwg.mxu0
    %5943 = vmatprep.subr.bf16.mxu0 %v4149
    %5944 = vmatpush1.bf16.msra.mxu0 %v4148
    %5945 = vmatprep.subr.bf16.mxu0 %v4145
    %5946 = vmatpush1.bf16.msra.mxu0 %v4144
    %5947 = vmatprep.subr.bf16.mxu0 %v4141
    %5948 = vmatpush1.bf16.msra.mxu0 %v4140
    %5949 = vmatprep.subr.bf16.mxu0 %v4137
    %5950 = vmatpush1.bf16.msra.mxu0 %v4136
    %5951 = vmatprep.subr.bf16.mxu0 %v4133
    %5952 = vmatpush1.bf16.msra.mxu0 %v4132
    %5953 = vmatprep.subr.bf16.mxu0 %v4129
    %5954 = vmatpush1.bf16.msra.mxu0 %v4128
    %5955 = vmatprep.subr.bf16.mxu0 %v4125
    %5956 = vmatpush1.bf16.msra.mxu0 %v4124
    %5957 = vmatprep.subr.bf16.mxu0 %v4121
    %5958 = vmatpush1.bf16.msra.mxu0 %v4120
    %5959 = vmatprep.subr.bf16.mxu0 %v4181
    %5960 = vmatpush2.bf16.msra.mxu0 %v4180
    %5961 = vmatprep.subr.bf16.mxu0 %v4177
    %5962 = vmatpush2.bf16.msra.mxu0 %v4176
    %5963 = vmatprep.subr.bf16.mxu0 %v4173
    %5964 = vmatpush2.bf16.msra.mxu0 %v4172
    %5965 = vmatprep.subr.bf16.mxu0 %v4169
    %5966 = vmatpush2.bf16.msra.mxu0 %v4168
    %5967 = vmatprep.subr.bf16.mxu0 %v4165
    %5968 = vmatpush2.bf16.msra.mxu0 %v4164
    %5969 = vmatprep.subr.bf16.mxu0 %v4161
    %5970 = vmatpush2.bf16.msra.mxu0 %v4160
    %5971 = vmatprep.subr.bf16.mxu0 %v4157
    %5972 = vmatpush2.bf16.msra.mxu0 %v4156
    %5973 = vmatprep.subr.bf16.mxu0 %v4153
    %5974 = vmatpush2.bf16.msra.mxu0 %v4152
    %5975 = vmatprep.mubr.bf16.mxu0 %v5523
    %5976 = vmatmul.mubr.bf16.gmra.mxu0 %v5519
    %v5977 = vpop.f32.mrf.mxu0
    %v5978 = vadd.f32 %v5935, %v5977
    %v5979 = vpop.f32.mrf.mxu0
    %v5980 = vadd.f32 %v5937, %v5979
    %v5981 = vpop.f32.mrf.mxu0
    %v5982 = vadd.f32 %v5939, %v5981
    %v5983 = vpop.f32.mrf.mxu0
    %v5984 = vadd.f32 %v5941, %v5983
    %5985 = vdwg.mxu0
    %5986 = vmatprep.subr.bf16.mxu0 %v4213
    %5987 = vmatpush1.bf16.msra.mxu0 %v4212
    %5988 = vmatprep.subr.bf16.mxu0 %v4209
    %5989 = vmatpush1.bf16.msra.mxu0 %v4208
    %5990 = vmatprep.subr.bf16.mxu0 %v4205
    %5991 = vmatpush1.bf16.msra.mxu0 %v4204
    %5992 = vmatprep.subr.bf16.mxu0 %v4201
    %5993 = vmatpush1.bf16.msra.mxu0 %v4200
    %5994 = vmatprep.subr.bf16.mxu0 %v4197
    %5995 = vmatpush1.bf16.msra.mxu0 %v4196
    %5996 = vmatprep.subr.bf16.mxu0 %v4193
    %5997 = vmatpush1.bf16.msra.mxu0 %v4192
    %5998 = vmatprep.subr.bf16.mxu0 %v4189
    %5999 = vmatpush1.bf16.msra.mxu0 %v4188
    %6000 = vmatprep.subr.bf16.mxu0 %v4185
    %6001 = vmatpush1.bf16.msra.mxu0 %v4184
    %6002 = vmatprep.subr.bf16.mxu0 %v4245
    %6003 = vmatpush2.bf16.msra.mxu0 %v4244
    %6004 = vmatprep.subr.bf16.mxu0 %v4241
    %6005 = vmatpush2.bf16.msra.mxu0 %v4240
    %6006 = vmatprep.subr.bf16.mxu0 %v4237
    %6007 = vmatpush2.bf16.msra.mxu0 %v4236
    %6008 = vmatprep.subr.bf16.mxu0 %v4233
    %6009 = vmatpush2.bf16.msra.mxu0 %v4232
    %6010 = vmatprep.subr.bf16.mxu0 %v4229
    %6011 = vmatpush2.bf16.msra.mxu0 %v4228
    %6012 = vmatprep.subr.bf16.mxu0 %v4225
    %6013 = vmatpush2.bf16.msra.mxu0 %v4224
    %6014 = vmatprep.subr.bf16.mxu0 %v4221
    %6015 = vmatpush2.bf16.msra.mxu0 %v4220
    %6016 = vmatprep.subr.bf16.mxu0 %v4217
    %6017 = vmatpush2.bf16.msra.mxu0 %v4216
    %6018 = vmatprep.mubr.bf16.mxu0 %v5588
    %6019 = vmatmul.mubr.bf16.gmra.mxu0 %v5587
    %v6020 = vpop.f32.mrf.mxu0
    %v6021 = vadd.f32 %v5978, %v6020
    %v6022 = vpop.f32.mrf.mxu0
    %v6023 = vadd.f32 %v5980, %v6022
    %v6024 = vpop.f32.mrf.mxu0
    %v6025 = vadd.f32 %v5982, %v6024
    %v6026 = vpop.f32.mrf.mxu0
    %v6027 = vadd.f32 %v5984, %v6026
    %6028 = vdwg.mxu0
    %v6029 = vmax.f32 %v4773, %v4988
    %v6030 = vmax.f32 %v4775, %v4990
    %v6031 = vmax.f32 %v4777, %v4992
    %v6032 = vmax.f32 %v4779, %v4994
    %v6033 = vmax.f32 %v5806, %v6021
    %v6034 = vmax.f32 %v5808, %v6023
    %v6035 = vmax.f32 %v5810, %v6025
    %v6036 = vmax.f32 %v5812, %v6027
    %v6037 = vmax.f32 %v6029, %v6033
    %v6038 = vmax.f32 %v6030, %v6034
    %v6039 = vmax.f32 %v6031, %v6035
    %v6040 = vmax.f32 %v6032, %v6036
    %v6042 = vlaneseq
    %v6043 = vshrl.u32 %v6042, 7
    %v6044 = vsub.s32 0, %v6043
    %v6045 = vrot.slane %v398, %v6044
    %v6046 = vlaneseq
    %v6047 = vshrl.u32 %v6046, 7
    %v6048 = vsub.s32 1, %v6047
    %v6049 = vrot.slane %v398, %v6048
    %v6052 = vadd.f32 %v6037, %v6045
    %v6053 = vadd.f32 %v6038, %v6049
    %v6054 = vadd.f32 %v6039, %v6045
    %v6055 = vadd.f32 %v6040, %v6049
    %v6056 = vmax.f32 %v6052, 0.0
    %v6057 = vmax.f32 %v6053, 0.0
    %v6058 = vmax.f32 %v6054, 0.0
    %v6059 = vmax.f32 %v6055, 0.0
    %v6060 = vpack.c.bf16 %v6058, %v6056
    %v6061 = vpack.c.bf16 %v6059, %v6057
    %v6064 = vcombine.low %v6060, %v6061
    %v6065 = vcombine.high %v6060, %v6061
    %v6067 = vunpack.c.l.s4 1966171168
    %v6068 = vunpack.c.0.s8 %v6067
    %v6069 = vlaneseq
    %v6070 = vshrl.u32 %v6069, 7
    %v6071 = vsub.s32 %v6068, %v6070
    %v6072 = vrot.slane %v6064, %v6071
    %v6074 = vunpack.c.l.s4 1966171168
    %v6075 = vunpack.c.0.s8 %v6074
    %v6076 = vlaneseq
    %v6077 = vshrl.u32 %v6076, 7
    %v6078 = vsub.s32 %v6075, %v6077
    %v6079 = vrot.slane %v6065, %v6078
    %v6080 = vcombine.high %v6072, %v6072
    %v6081 = vcombine.high %v6079, %v6079
    %v6083 = vunpack.c.l.s4 1966171168
    %v6084 = vunpack.c.0.s8 %v6083
    %v6085 = vlaneseq
    %v6086 = vshrl.u32 %v6085, 7
    %v6087 = vsub.s32 %v6084, %v6086
    %v6088 = vrot.slane %v6072, %v6087
    %v6090 = vunpack.c.l.s4 1966171168
    %v6091 = vunpack.c.0.s8 %v6090
    %v6092 = vlaneseq
    %v6093 = vshrl.u32 %v6092, 7
    %v6094 = vsub.s32 %v6091, %v6093
    %v6095 = vrot.slane %v6079, %v6094
    %v6097 = vunpack.c.l.s4 1966171168
    %v6098 = vunpack.c.0.s8 %v6097
    %v6099 = vlaneseq
    %v6100 = vshrl.u32 %v6099, 7
    %v6101 = vsub.s32 %v6098, %v6100
    %v6102 = vrot.slane %v6080, %v6101
    %v6104 = vunpack.c.l.s4 1966171168
    %v6105 = vunpack.c.0.s8 %v6104
    %v6106 = vlaneseq
    %v6107 = vshrl.u32 %v6106, 7
    %v6108 = vsub.s32 %v6105, %v6107
    %v6109 = vrot.slane %v6081, %v6108
    %v6110 = vcombine.high %v6088, %v6088
    %v6111 = vcombine.high %v6095, %v6095
    %v6112 = vcombine.high %v6102, %v6102
    %6120 = vst [vmem:[%s8] sm:$0x3] %v6088
    %6121 = vst [vmem:[%s8 + $0x2] sm:$0x3] %v6102
    %6122 = vst [vmem:[%s8 + $0x4] sm:$0x3] %v6110
    %6123 = vst [vmem:[%s8 + $0x6] sm:$0x3] %v6112
    %6124 = vst [vmem:[%s8 + $0x8] sm:$0x3] %v6095
    %6125 = vst [vmem:[%s8 + $0xa] sm:$0x3] %v6109
    %6126 = vst [vmem:[%s8 + $0xc] sm:$0x3] %v6111
    %v6127 = vld [vmem:[%s5] sm:$0xf]
    %v6128 = vld [vmem:[%s5 + $0x4] sm:$0xf]
    %v6129 = vld [vmem:[%s5 + $0x8] sm:$0xf]
    %v6130 = vld [vmem:[%s5 + $0xc] sm:$0xf]
    %v6131 = vld [vmem:[%s5 + $0x10] sm:$0xf]
    %v6132 = vld [vmem:[%s5 + $0x14] sm:$0xf]
    %v6133 = vld [vmem:[%s5 + $0x18] sm:$0xf]
    %v6134 = vld [vmem:[%s5 + $0x1c] sm:$0xf]
    %v6135 = vld [vmem:[%s5 + $0x20] sm:$0xf]
    %v6136 = vld [vmem:[%s5 + $0x24] sm:$0xf]
    %v6137 = vld [vmem:[%s5 + $0x28] sm:$0xf]
    %v6138 = vld [vmem:[%s5 + $0x2c] sm:$0xf]
    %v6139 = vld [vmem:[%s5 + $0x30] sm:$0xf]
    %v6140 = vld [vmem:[%s5 + $0x34] sm:$0xf]
    %v6141 = vld [vmem:[%s5 + $0x38] sm:$0xf]
    %v6142 = vld [vmem:[%s5 + $0x3c] sm:$0xf]
    %v6143 = vld [vmem:[%s5 + $0x40] sm:$0xf]
    %v6144 = vld [vmem:[%s5 + $0x44] sm:$0xf]
    %v6145 = vld [vmem:[%s5 + $0x48] sm:$0xf]
    %v6146 = vld [vmem:[%s5 + $0x4c] sm:$0xf]
    %v6147 = vld [vmem:[%s5 + $0x50] sm:$0xf]
    %v6148 = vld [vmem:[%s5 + $0x54] sm:$0xf]
    %v6149 = vld [vmem:[%s5 + $0x58] sm:$0xf]
    %v6150 = vld [vmem:[%s5 + $0x5c] sm:$0xf]
    %v6151 = vld [vmem:[%s5 + $0x60] sm:$0xf]
    %v6152 = vld [vmem:[%s5 + $0x64] sm:$0xf]
    %v6153 = vld [vmem:[%s5 + $0x68] sm:$0xf]
    %v6154 = vld [vmem:[%s5 + $0x6c] sm:$0xf]
    %v6155 = vld [vmem:[%s5 + $0x70] sm:$0xf]
    %v6156 = vld [vmem:[%s5 + $0x74] sm:$0xf]
    %v6157 = vld [vmem:[%s5 + $0x78] sm:$0xf]
    %v6158 = vld [vmem:[%s5 + $0x7c] sm:$0xf]
    %s6159 = scalar_lea.vmem %s5, 128
    %v6160 = vld [vmem:[%s6159] sm:$0xf]
    %v6161 = vld [vmem:[%s6159 + $0x4] sm:$0xf]
    %v6162 = vld [vmem:[%s6159 + $0x8] sm:$0xf]
    %v6163 = vld [vmem:[%s6159 + $0xc] sm:$0xf]
    %v6164 = vld [vmem:[%s6159 + $0x10] sm:$0xf]
    %v6165 = vld [vmem:[%s6159 + $0x14] sm:$0xf]
    %v6166 = vld [vmem:[%s6159 + $0x18] sm:$0xf]
    %v6167 = vld [vmem:[%s6159 + $0x1c] sm:$0xf]
    %v6168 = vld [vmem:[%s6159 + $0x20] sm:$0xf]
    %v6169 = vld [vmem:[%s6159 + $0x24] sm:$0xf]
    %v6170 = vld [vmem:[%s6159 + $0x28] sm:$0xf]
    %v6171 = vld [vmem:[%s6159 + $0x2c] sm:$0xf]
    %v6172 = vld [vmem:[%s6159 + $0x30] sm:$0xf]
    %v6173 = vld [vmem:[%s6159 + $0x34] sm:$0xf]
    %v6174 = vld [vmem:[%s6159 + $0x38] sm:$0xf]
    %v6175 = vld [vmem:[%s6159 + $0x3c] sm:$0xf]
    %v6176 = vld [vmem:[%s6159 + $0x40] sm:$0xf]
    %v6177 = vld [vmem:[%s6159 + $0x44] sm:$0xf]
    %v6178 = vld [vmem:[%s6159 + $0x48] sm:$0xf]
    %v6179 = vld [vmem:[%s6159 + $0x4c] sm:$0xf]
    %v6180 = vld [vmem:[%s6159 + $0x50] sm:$0xf]
    %v6181 = vld [vmem:[%s6159 + $0x54] sm:$0xf]
    %v6182 = vld [vmem:[%s6159 + $0x58] sm:$0xf]
    %v6183 = vld [vmem:[%s6159 + $0x5c] sm:$0xf]
    %v6184 = vld [vmem:[%s6159 + $0x60] sm:$0xf]
    %v6185 = vld [vmem:[%s6159 + $0x64] sm:$0xf]
    %v6186 = vld [vmem:[%s6159 + $0x68] sm:$0xf]
    %v6187 = vld [vmem:[%s6159 + $0x6c] sm:$0xf]
    %v6188 = vld [vmem:[%s6159 + $0x70] sm:$0xf]
    %v6189 = vld [vmem:[%s6159 + $0x74] sm:$0xf]
    %v6190 = vld [vmem:[%s6159 + $0x78] sm:$0xf]
    %v6191 = vld [vmem:[%s6159 + $0x7c] sm:$0xf]
    %v6192 = vrot.slane %v6060, 1
    %v6193 = vrot.slane %v6061, 1
    %v6228 = vunpack.c.l.b16 %v6160
    %v6229 = vunpack.c.l.b16 %v6161
    %v6230 = vunpack.c.l.b16 %v6162
    %v6231 = vunpack.c.l.b16 %v6163
    %v6232 = vunpack.c.l.b16 %v6164
    %v6233 = vunpack.c.l.b16 %v6165
    %v6234 = vunpack.c.l.b16 %v6166
    %v6235 = vunpack.c.l.b16 %v6167
    %v6236 = vunpack.c.l.b16 %v6168
    %v6237 = vunpack.c.l.b16 %v6169
    %v6238 = vunpack.c.l.b16 %v6170
    %v6239 = vunpack.c.l.b16 %v6171
    %v6240 = vunpack.c.l.b16 %v6172
    %v6241 = vunpack.c.l.b16 %v6173
    %v6242 = vunpack.c.l.b16 %v6174
    %v6243 = vunpack.c.l.b16 %v6175
    %v6244 = vunpack.c.l.b16 %v6176
    %v6245 = vunpack.c.l.b16 %v6177
    %v6246 = vunpack.c.l.b16 %v6178
    %v6247 = vunpack.c.l.b16 %v6179
    %v6248 = vunpack.c.l.b16 %v6180
    %v6249 = vunpack.c.l.b16 %v6181
    %v6250 = vunpack.c.l.b16 %v6182
    %v6251 = vunpack.c.l.b16 %v6183
    %v6252 = vunpack.c.l.b16 %v6184
    %v6253 = vunpack.c.l.b16 %v6185
    %v6254 = vunpack.c.l.b16 %v6186
    %v6255 = vunpack.c.l.b16 %v6187
    %v6256 = vunpack.c.l.b16 %v6188
    %v6257 = vunpack.c.l.b16 %v6189
    %v6258 = vunpack.c.l.b16 %v6190
    %v6259 = vunpack.c.l.b16 %v6191
    %v6260 = vpack.c.b16 %v6229, %v6228
    %v6261 = vpack.c.b16 %v6231, %v6230
    %v6262 = vpack.c.b16 %v6233, %v6232
    %v6263 = vpack.c.b16 %v6235, %v6234
    %v6264 = vpack.c.b16 %v6237, %v6236
    %v6265 = vpack.c.b16 %v6239, %v6238
    %v6266 = vpack.c.b16 %v6241, %v6240
    %v6267 = vpack.c.b16 %v6243, %v6242
    %v6268 = vpack.c.b16 %v6245, %v6244
    %v6269 = vpack.c.b16 %v6247, %v6246
    %v6270 = vpack.c.b16 %v6249, %v6248
    %v6271 = vpack.c.b16 %v6251, %v6250
    %v6272 = vpack.c.b16 %v6253, %v6252
    %v6273 = vpack.c.b16 %v6255, %v6254
    %v6274 = vpack.c.b16 %v6257, %v6256
    %v6275 = vpack.c.b16 %v6259, %v6258
    %6292 = vmatprep.subr.bf16.mxu0 0
    %6293 = vmatpush1.bf16.msra.mxu0 %v6267
    %6294 = vmatprep.subr.bf16.mxu0 0
    %6295 = vmatpush1.bf16.msra.mxu0 %v6266
    %6296 = vmatprep.subr.bf16.mxu0 0
    %6297 = vmatpush1.bf16.msra.mxu0 %v6265
    %6298 = vmatprep.subr.bf16.mxu0 0
    %6299 = vmatpush1.bf16.msra.mxu0 %v6264
    %6300 = vmatprep.subr.bf16.mxu0 0
    %6301 = vmatpush1.bf16.msra.mxu0 %v6263
    %6302 = vmatprep.subr.bf16.mxu0 0
    %6303 = vmatpush1.bf16.msra.mxu0 %v6262
    %6304 = vmatprep.subr.bf16.mxu0 0
    %6305 = vmatpush1.bf16.msra.mxu0 %v6261
    %6306 = vmatprep.subr.bf16.mxu0 0
    %6307 = vmatpush1.bf16.msra.mxu0 %v6260
    %6308 = vmatprep.subr.bf16.mxu0 0
    %6309 = vmatpush2.bf16.msra.mxu0 %v6275
    %6310 = vmatprep.subr.bf16.mxu0 0
    %6311 = vmatpush2.bf16.msra.mxu0 %v6274
    %6312 = vmatprep.subr.bf16.mxu0 0
    %6313 = vmatpush2.bf16.msra.mxu0 %v6273
    %6314 = vmatprep.subr.bf16.mxu0 0
    %6315 = vmatpush2.bf16.msra.mxu0 %v6272
    %6316 = vmatprep.subr.bf16.mxu0 0
    %6317 = vmatpush2.bf16.msra.mxu0 %v6271
    %6318 = vmatprep.subr.bf16.mxu0 0
    %6319 = vmatpush2.bf16.msra.mxu0 %v6270
    %6320 = vmatprep.subr.bf16.mxu0 0
    %6321 = vmatpush2.bf16.msra.mxu0 %v6269
    %6322 = vmatprep.subr.bf16.mxu0 0
    %6323 = vmatpush2.bf16.msra.mxu0 %v6268
    %6324 = vmatprep.mubr.bf16.mxu0 %v6193
    %6325 = vmatmul.mubr.bf16.gmra.mxu0 %v6192
    %v6326 = vpop.f32.mrf.mxu0
    %v6327 = vadd.f32 0.0, %v6326
    %v6328 = vpop.f32.mrf.mxu0
    %v6329 = vpop.f32.mrf.mxu0
    %v6330 = vpop.f32.mrf.mxu0
    %6331 = vdwg.mxu0
    %v6364 = vunpack.c.l.b16 %v6127
    %v6365 = vunpack.c.l.b16 %v6128
    %v6366 = vunpack.c.l.b16 %v6129
    %v6367 = vunpack.c.l.b16 %v6130
    %v6368 = vunpack.c.l.b16 %v6131
    %v6369 = vunpack.c.l.b16 %v6132
    %v6370 = vunpack.c.l.b16 %v6133
    %v6371 = vunpack.c.l.b16 %v6134
    %v6372 = vunpack.c.l.b16 %v6135
    %v6373 = vunpack.c.l.b16 %v6136
    %v6374 = vunpack.c.l.b16 %v6137
    %v6375 = vunpack.c.l.b16 %v6138
    %v6376 = vunpack.c.l.b16 %v6139
    %v6377 = vunpack.c.l.b16 %v6140
    %v6378 = vunpack.c.l.b16 %v6141
    %v6379 = vunpack.c.l.b16 %v6142
    %v6380 = vunpack.c.l.b16 %v6143
    %v6381 = vunpack.c.l.b16 %v6144
    %v6382 = vunpack.c.l.b16 %v6145
    %v6383 = vunpack.c.l.b16 %v6146
    %v6384 = vunpack.c.l.b16 %v6147
    %v6385 = vunpack.c.l.b16 %v6148
    %v6386 = vunpack.c.l.b16 %v6149
    %v6387 = vunpack.c.l.b16 %v6150
    %v6388 = vunpack.c.l.b16 %v6151
    %v6389 = vunpack.c.l.b16 %v6152
    %v6390 = vunpack.c.l.b16 %v6153
    %v6391 = vunpack.c.l.b16 %v6154
    %v6392 = vunpack.c.l.b16 %v6155
    %v6393 = vunpack.c.l.b16 %v6156
    %v6394 = vunpack.c.l.b16 %v6157
    %v6395 = vunpack.c.l.b16 %v6158
    %v6396 = vpack.c.b16 %v6365, %v6364
    %v6397 = vpack.c.b16 %v6367, %v6366
    %v6398 = vpack.c.b16 %v6369, %v6368
    %v6399 = vpack.c.b16 %v6371, %v6370
    %v6400 = vpack.c.b16 %v6373, %v6372
    %v6401 = vpack.c.b16 %v6375, %v6374
    %v6402 = vpack.c.b16 %v6377, %v6376
    %v6403 = vpack.c.b16 %v6379, %v6378
    %v6404 = vpack.c.b16 %v6381, %v6380
    %v6405 = vpack.c.b16 %v6383, %v6382
    %v6406 = vpack.c.b16 %v6385, %v6384
    %v6407 = vpack.c.b16 %v6387, %v6386
    %v6408 = vpack.c.b16 %v6389, %v6388
    %v6409 = vpack.c.b16 %v6391, %v6390
    %v6410 = vpack.c.b16 %v6393, %v6392
    %v6411 = vpack.c.b16 %v6395, %v6394
    %6428 = vmatprep.subr.bf16.mxu0 0
    %6429 = vmatpush1.bf16.msra.mxu0 %v6403
    %6430 = vmatprep.subr.bf16.mxu0 0
    %6431 = vmatpush1.bf16.msra.mxu0 %v6402
    %6432 = vmatprep.subr.bf16.mxu0 0
    %6433 = vmatpush1.bf16.msra.mxu0 %v6401
    %6434 = vmatprep.subr.bf16.mxu0 0
    %6435 = vmatpush1.bf16.msra.mxu0 %v6400
    %6436 = vmatprep.subr.bf16.mxu0 0
    %6437 = vmatpush1.bf16.msra.mxu0 %v6399
    %6438 = vmatprep.subr.bf16.mxu0 0
    %6439 = vmatpush1.bf16.msra.mxu0 %v6398
    %6440 = vmatprep.subr.bf16.mxu0 0
    %6441 = vmatpush1.bf16.msra.mxu0 %v6397
    %6442 = vmatprep.subr.bf16.mxu0 0
    %6443 = vmatpush1.bf16.msra.mxu0 %v6396
    %6444 = vmatprep.subr.bf16.mxu0 0
    %6445 = vmatpush2.bf16.msra.mxu0 %v6411
    %6446 = vmatprep.subr.bf16.mxu0 0
    %6447 = vmatpush2.bf16.msra.mxu0 %v6410
    %6448 = vmatprep.subr.bf16.mxu0 0
    %6449 = vmatpush2.bf16.msra.mxu0 %v6409
    %6450 = vmatprep.subr.bf16.mxu0 0
    %6451 = vmatpush2.bf16.msra.mxu0 %v6408
    %6452 = vmatprep.subr.bf16.mxu0 0
    %6453 = vmatpush2.bf16.msra.mxu0 %v6407
    %6454 = vmatprep.subr.bf16.mxu0 0
    %6455 = vmatpush2.bf16.msra.mxu0 %v6406
    %6456 = vmatprep.subr.bf16.mxu0 0
    %6457 = vmatpush2.bf16.msra.mxu0 %v6405
    %6458 = vmatprep.subr.bf16.mxu0 0
    %6459 = vmatpush2.bf16.msra.mxu0 %v6404
    %6460 = vmatprep.mubr.bf16.mxu0 %v6061
    %6461 = vmatmul.mubr.bf16.gmra.mxu0 %v6060
    %v6462 = vpop.f32.mrf.mxu0
    %v6463 = vadd.f32 %v6327, %v6462
    %v6464 = vpop.f32.mrf.mxu0
    %v6465 = vpop.f32.mrf.mxu0
    %v6466 = vpop.f32.mrf.mxu0
    %6467 = vdwg.mxu0
    %s6468 = scalar_lea.vmem %s5, 256
    %v6469 = vld [vmem:[%s6468] sm:$0xf]
    %v6470 = vld [vmem:[%s6468 + $0x4] sm:$0xf]
    %v6471 = vld [vmem:[%s6468 + $0x8] sm:$0xf]
    %v6472 = vld [vmem:[%s6468 + $0xc] sm:$0xf]
    %v6473 = vld [vmem:[%s6468 + $0x10] sm:$0xf]
    %v6474 = vld [vmem:[%s6468 + $0x14] sm:$0xf]
    %v6475 = vld [vmem:[%s6468 + $0x18] sm:$0xf]
    %v6476 = vld [vmem:[%s6468 + $0x1c] sm:$0xf]
    %v6477 = vld [vmem:[%s6468 + $0x20] sm:$0xf]
    %v6478 = vld [vmem:[%s6468 + $0x24] sm:$0xf]
    %v6479 = vld [vmem:[%s6468 + $0x28] sm:$0xf]
    %v6480 = vld [vmem:[%s6468 + $0x2c] sm:$0xf]
    %v6481 = vld [vmem:[%s6468 + $0x30] sm:$0xf]
    %v6482 = vld [vmem:[%s6468 + $0x34] sm:$0xf]
    %v6483 = vld [vmem:[%s6468 + $0x38] sm:$0xf]
    %v6484 = vld [vmem:[%s6468 + $0x3c] sm:$0xf]
    %v6485 = vld [vmem:[%s6468 + $0x40] sm:$0xf]
    %v6486 = vld [vmem:[%s6468 + $0x44] sm:$0xf]
    %v6487 = vld [vmem:[%s6468 + $0x48] sm:$0xf]
    %v6488 = vld [vmem:[%s6468 + $0x4c] sm:$0xf]
    %v6489 = vld [vmem:[%s6468 + $0x50] sm:$0xf]
    %v6490 = vld [vmem:[%s6468 + $0x54] sm:$0xf]
    %v6491 = vld [vmem:[%s6468 + $0x58] sm:$0xf]
    %v6492 = vld [vmem:[%s6468 + $0x5c] sm:$0xf]
    %v6493 = vld [vmem:[%s6468 + $0x60] sm:$0xf]
    %v6494 = vld [vmem:[%s6468 + $0x64] sm:$0xf]
    %v6495 = vld [vmem:[%s6468 + $0x68] sm:$0xf]
    %v6496 = vld [vmem:[%s6468 + $0x6c] sm:$0xf]
    %v6497 = vld [vmem:[%s6468 + $0x70] sm:$0xf]
    %v6498 = vld [vmem:[%s6468 + $0x74] sm:$0xf]
    %v6499 = vld [vmem:[%s6468 + $0x78] sm:$0xf]
    %v6500 = vld [vmem:[%s6468 + $0x7c] sm:$0xf]
    %v6501 = vrot.slane %v6060, 2
    %v6502 = vrot.slane %v6061, 2
    %v6537 = vunpack.c.l.b16 %v6469
    %v6538 = vunpack.c.l.b16 %v6470
    %v6539 = vunpack.c.l.b16 %v6471
    %v6540 = vunpack.c.l.b16 %v6472
    %v6541 = vunpack.c.l.b16 %v6473
    %v6542 = vunpack.c.l.b16 %v6474
    %v6543 = vunpack.c.l.b16 %v6475
    %v6544 = vunpack.c.l.b16 %v6476
    %v6545 = vunpack.c.l.b16 %v6477
    %v6546 = vunpack.c.l.b16 %v6478
    %v6547 = vunpack.c.l.b16 %v6479
    %v6548 = vunpack.c.l.b16 %v6480
    %v6549 = vunpack.c.l.b16 %v6481
    %v6550 = vunpack.c.l.b16 %v6482
    %v6551 = vunpack.c.l.b16 %v6483
    %v6552 = vunpack.c.l.b16 %v6484
    %v6553 = vunpack.c.l.b16 %v6485
    %v6554 = vunpack.c.l.b16 %v6486
    %v6555 = vunpack.c.l.b16 %v6487
    %v6556 = vunpack.c.l.b16 %v6488
    %v6557 = vunpack.c.l.b16 %v6489
    %v6558 = vunpack.c.l.b16 %v6490
    %v6559 = vunpack.c.l.b16 %v6491
    %v6560 = vunpack.c.l.b16 %v6492
    %v6561 = vunpack.c.l.b16 %v6493
    %v6562 = vunpack.c.l.b16 %v6494
    %v6563 = vunpack.c.l.b16 %v6495
    %v6564 = vunpack.c.l.b16 %v6496
    %v6565 = vunpack.c.l.b16 %v6497
    %v6566 = vunpack.c.l.b16 %v6498
    %v6567 = vunpack.c.l.b16 %v6499
    %v6568 = vunpack.c.l.b16 %v6500
    %v6569 = vpack.c.b16 %v6538, %v6537
    %v6570 = vpack.c.b16 %v6540, %v6539
    %v6571 = vpack.c.b16 %v6542, %v6541
    %v6572 = vpack.c.b16 %v6544, %v6543
    %v6573 = vpack.c.b16 %v6546, %v6545
    %v6574 = vpack.c.b16 %v6548, %v6547
    %v6575 = vpack.c.b16 %v6550, %v6549
    %v6576 = vpack.c.b16 %v6552, %v6551
    %v6577 = vpack.c.b16 %v6554, %v6553
    %v6578 = vpack.c.b16 %v6556, %v6555
    %v6579 = vpack.c.b16 %v6558, %v6557
    %v6580 = vpack.c.b16 %v6560, %v6559
    %v6581 = vpack.c.b16 %v6562, %v6561
    %v6582 = vpack.c.b16 %v6564, %v6563
    %v6583 = vpack.c.b16 %v6566, %v6565
    %v6584 = vpack.c.b16 %v6568, %v6567
    %6601 = vmatprep.subr.bf16.mxu0 0
    %6602 = vmatpush1.bf16.msra.mxu0 %v6576
    %6603 = vmatprep.subr.bf16.mxu0 0
    %6604 = vmatpush1.bf16.msra.mxu0 %v6575
    %6605 = vmatprep.subr.bf16.mxu0 0
    %6606 = vmatpush1.bf16.msra.mxu0 %v6574
    %6607 = vmatprep.subr.bf16.mxu0 0
    %6608 = vmatpush1.bf16.msra.mxu0 %v6573
    %6609 = vmatprep.subr.bf16.mxu0 0
    %6610 = vmatpush1.bf16.msra.mxu0 %v6572
    %6611 = vmatprep.subr.bf16.mxu0 0
    %6612 = vmatpush1.bf16.msra.mxu0 %v6571
    %6613 = vmatprep.subr.bf16.mxu0 0
    %6614 = vmatpush1.bf16.msra.mxu0 %v6570
    %6615 = vmatprep.subr.bf16.mxu0 0
    %6616 = vmatpush1.bf16.msra.mxu0 %v6569
    %6617 = vmatprep.subr.bf16.mxu0 0
    %6618 = vmatpush2.bf16.msra.mxu0 %v6584
    %6619 = vmatprep.subr.bf16.mxu0 0
    %6620 = vmatpush2.bf16.msra.mxu0 %v6583
    %6621 = vmatprep.subr.bf16.mxu0 0
    %6622 = vmatpush2.bf16.msra.mxu0 %v6582
    %6623 = vmatprep.subr.bf16.mxu0 0
    %6624 = vmatpush2.bf16.msra.mxu0 %v6581
    %6625 = vmatprep.subr.bf16.mxu0 0
    %6626 = vmatpush2.bf16.msra.mxu0 %v6580
    %6627 = vmatprep.subr.bf16.mxu0 0
    %6628 = vmatpush2.bf16.msra.mxu0 %v6579
    %6629 = vmatprep.subr.bf16.mxu0 0
    %6630 = vmatpush2.bf16.msra.mxu0 %v6578
    %6631 = vmatprep.subr.bf16.mxu0 0
    %6632 = vmatpush2.bf16.msra.mxu0 %v6577
    %6633 = vmatprep.mubr.bf16.mxu0 %v6502
    %6634 = vmatmul.mubr.bf16.gmra.mxu0 %v6501
    %v6635 = vpop.f32.mrf.mxu0
    %v6636 = vadd.f32 0.0, %v6635
    %v6637 = vpop.f32.mrf.mxu0
    %v6638 = vpop.f32.mrf.mxu0
    %v6639 = vpop.f32.mrf.mxu0
    %6640 = vdwg.mxu0
    %v6641 = vadd.f32 %v6463, %v6636
    %s6642 = scalar_lea.vmem %s5, 384
    %v6643 = vld [vmem:[%s6642] sm:$0xf]
    %v6644 = vld [vmem:[%s6642 + $0x4] sm:$0xf]
    %v6645 = vld [vmem:[%s6642 + $0x8] sm:$0xf]
    %v6646 = vld [vmem:[%s6642 + $0xc] sm:$0xf]
    %v6647 = vld [vmem:[%s6642 + $0x10] sm:$0xf]
    %v6648 = vld [vmem:[%s6642 + $0x14] sm:$0xf]
    %v6649 = vld [vmem:[%s6642 + $0x18] sm:$0xf]
    %v6650 = vld [vmem:[%s6642 + $0x1c] sm:$0xf]
    %v6651 = vld [vmem:[%s6642 + $0x20] sm:$0xf]
    %v6652 = vld [vmem:[%s6642 + $0x24] sm:$0xf]
    %v6653 = vld [vmem:[%s6642 + $0x28] sm:$0xf]
    %v6654 = vld [vmem:[%s6642 + $0x2c] sm:$0xf]
    %v6655 = vld [vmem:[%s6642 + $0x30] sm:$0xf]
    %v6656 = vld [vmem:[%s6642 + $0x34] sm:$0xf]
    %v6657 = vld [vmem:[%s6642 + $0x38] sm:$0xf]
    %v6658 = vld [vmem:[%s6642 + $0x3c] sm:$0xf]
    %v6659 = vld [vmem:[%s6642 + $0x40] sm:$0xf]
    %v6660 = vld [vmem:[%s6642 + $0x44] sm:$0xf]
    %v6661 = vld [vmem:[%s6642 + $0x48] sm:$0xf]
    %v6662 = vld [vmem:[%s6642 + $0x4c] sm:$0xf]
    %v6663 = vld [vmem:[%s6642 + $0x50] sm:$0xf]
    %v6664 = vld [vmem:[%s6642 + $0x54] sm:$0xf]
    %v6665 = vld [vmem:[%s6642 + $0x58] sm:$0xf]
    %v6666 = vld [vmem:[%s6642 + $0x5c] sm:$0xf]
    %v6667 = vld [vmem:[%s6642 + $0x60] sm:$0xf]
    %v6668 = vld [vmem:[%s6642 + $0x64] sm:$0xf]
    %v6669 = vld [vmem:[%s6642 + $0x68] sm:$0xf]
    %v6670 = vld [vmem:[%s6642 + $0x6c] sm:$0xf]
    %v6671 = vld [vmem:[%s6642 + $0x70] sm:$0xf]
    %v6672 = vld [vmem:[%s6642 + $0x74] sm:$0xf]
    %v6673 = vld [vmem:[%s6642 + $0x78] sm:$0xf]
    %v6674 = vld [vmem:[%s6642 + $0x7c] sm:$0xf]
    %v6675 = vrot.slane %v6060, 3
    %v6676 = vrot.slane %v6061, 3
    %v6711 = vunpack.c.l.b16 %v6643
    %v6712 = vunpack.c.l.b16 %v6644
    %v6713 = vunpack.c.l.b16 %v6645
    %v6714 = vunpack.c.l.b16 %v6646
    %v6715 = vunpack.c.l.b16 %v6647
    %v6716 = vunpack.c.l.b16 %v6648
    %v6717 = vunpack.c.l.b16 %v6649
    %v6718 = vunpack.c.l.b16 %v6650
    %v6719 = vunpack.c.l.b16 %v6651
    %v6720 = vunpack.c.l.b16 %v6652
    %v6721 = vunpack.c.l.b16 %v6653
    %v6722 = vunpack.c.l.b16 %v6654
    %v6723 = vunpack.c.l.b16 %v6655
    %v6724 = vunpack.c.l.b16 %v6656
    %v6725 = vunpack.c.l.b16 %v6657
    %v6726 = vunpack.c.l.b16 %v6658
    %v6727 = vunpack.c.l.b16 %v6659
    %v6728 = vunpack.c.l.b16 %v6660
    %v6729 = vunpack.c.l.b16 %v6661
    %v6730 = vunpack.c.l.b16 %v6662
    %v6731 = vunpack.c.l.b16 %v6663
    %v6732 = vunpack.c.l.b16 %v6664
    %v6733 = vunpack.c.l.b16 %v6665
    %v6734 = vunpack.c.l.b16 %v6666
    %v6735 = vunpack.c.l.b16 %v6667
    %v6736 = vunpack.c.l.b16 %v6668
    %v6737 = vunpack.c.l.b16 %v6669
    %v6738 = vunpack.c.l.b16 %v6670
    %v6739 = vunpack.c.l.b16 %v6671
    %v6740 = vunpack.c.l.b16 %v6672
    %v6741 = vunpack.c.l.b16 %v6673
    %v6742 = vunpack.c.l.b16 %v6674
    %v6743 = vpack.c.b16 %v6712, %v6711
    %v6744 = vpack.c.b16 %v6714, %v6713
    %v6745 = vpack.c.b16 %v6716, %v6715
    %v6746 = vpack.c.b16 %v6718, %v6717
    %v6747 = vpack.c.b16 %v6720, %v6719
    %v6748 = vpack.c.b16 %v6722, %v6721
    %v6749 = vpack.c.b16 %v6724, %v6723
    %v6750 = vpack.c.b16 %v6726, %v6725
    %v6751 = vpack.c.b16 %v6728, %v6727
    %v6752 = vpack.c.b16 %v6730, %v6729
    %v6753 = vpack.c.b16 %v6732, %v6731
    %v6754 = vpack.c.b16 %v6734, %v6733
    %v6755 = vpack.c.b16 %v6736, %v6735
    %v6756 = vpack.c.b16 %v6738, %v6737
    %v6757 = vpack.c.b16 %v6740, %v6739
    %v6758 = vpack.c.b16 %v6742, %v6741
    %6775 = vmatprep.subr.bf16.mxu0 0
    %6776 = vmatpush1.bf16.msra.mxu0 %v6750
    %6777 = vmatprep.subr.bf16.mxu0 0
    %6778 = vmatpush1.bf16.msra.mxu0 %v6749
    %6779 = vmatprep.subr.bf16.mxu0 0
    %6780 = vmatpush1.bf16.msra.mxu0 %v6748
    %6781 = vmatprep.subr.bf16.mxu0 0
    %6782 = vmatpush1.bf16.msra.mxu0 %v6747
    %6783 = vmatprep.subr.bf16.mxu0 0
    %6784 = vmatpush1.bf16.msra.mxu0 %v6746
    %6785 = vmatprep.subr.bf16.mxu0 0
    %6786 = vmatpush1.bf16.msra.mxu0 %v6745
    %6787 = vmatprep.subr.bf16.mxu0 0
    %6788 = vmatpush1.bf16.msra.mxu0 %v6744
    %6789 = vmatprep.subr.bf16.mxu0 0
    %6790 = vmatpush1.bf16.msra.mxu0 %v6743
    %6791 = vmatprep.subr.bf16.mxu0 0
    %6792 = vmatpush2.bf16.msra.mxu0 %v6758
    %6793 = vmatprep.subr.bf16.mxu0 0
    %6794 = vmatpush2.bf16.msra.mxu0 %v6757
    %6795 = vmatprep.subr.bf16.mxu0 0
    %6796 = vmatpush2.bf16.msra.mxu0 %v6756
    %6797 = vmatprep.subr.bf16.mxu0 0
    %6798 = vmatpush2.bf16.msra.mxu0 %v6755
    %6799 = vmatprep.subr.bf16.mxu0 0
    %6800 = vmatpush2.bf16.msra.mxu0 %v6754
    %6801 = vmatprep.subr.bf16.mxu0 0
    %6802 = vmatpush2.bf16.msra.mxu0 %v6753
    %6803 = vmatprep.subr.bf16.mxu0 0
    %6804 = vmatpush2.bf16.msra.mxu0 %v6752
    %6805 = vmatprep.subr.bf16.mxu0 0
    %6806 = vmatpush2.bf16.msra.mxu0 %v6751
    %6807 = vmatprep.mubr.bf16.mxu0 %v6676
    %6808 = vmatmul.mubr.bf16.gmra.mxu0 %v6675
    %v6809 = vpop.f32.mrf.mxu0
    %v6810 = vadd.f32 0.0, %v6809
    %v6811 = vpop.f32.mrf.mxu0
    %v6812 = vpop.f32.mrf.mxu0
    %v6813 = vpop.f32.mrf.mxu0
    %6814 = vdwg.mxu0
    %v6815 = vadd.f32 %v6641, %v6810
    %s6816 = scalar_lea.vmem %s5, 512
    %v6817 = vld [vmem:[%s6816] sm:$0xf]
    %v6818 = vld [vmem:[%s6816 + $0x4] sm:$0xf]
    %v6819 = vld [vmem:[%s6816 + $0x8] sm:$0xf]
    %v6820 = vld [vmem:[%s6816 + $0xc] sm:$0xf]
    %v6821 = vld [vmem:[%s6816 + $0x10] sm:$0xf]
    %v6822 = vld [vmem:[%s6816 + $0x14] sm:$0xf]
    %v6823 = vld [vmem:[%s6816 + $0x18] sm:$0xf]
    %v6824 = vld [vmem:[%s6816 + $0x1c] sm:$0xf]
    %v6825 = vld [vmem:[%s6816 + $0x20] sm:$0xf]
    %v6826 = vld [vmem:[%s6816 + $0x24] sm:$0xf]
    %v6827 = vld [vmem:[%s6816 + $0x28] sm:$0xf]
    %v6828 = vld [vmem:[%s6816 + $0x2c] sm:$0xf]
    %v6829 = vld [vmem:[%s6816 + $0x30] sm:$0xf]
    %v6830 = vld [vmem:[%s6816 + $0x34] sm:$0xf]
    %v6831 = vld [vmem:[%s6816 + $0x38] sm:$0xf]
    %v6832 = vld [vmem:[%s6816 + $0x3c] sm:$0xf]
    %v6833 = vld [vmem:[%s6816 + $0x40] sm:$0xf]
    %v6834 = vld [vmem:[%s6816 + $0x44] sm:$0xf]
    %v6835 = vld [vmem:[%s6816 + $0x48] sm:$0xf]
    %v6836 = vld [vmem:[%s6816 + $0x4c] sm:$0xf]
    %v6837 = vld [vmem:[%s6816 + $0x50] sm:$0xf]
    %v6838 = vld [vmem:[%s6816 + $0x54] sm:$0xf]
    %v6839 = vld [vmem:[%s6816 + $0x58] sm:$0xf]
    %v6840 = vld [vmem:[%s6816 + $0x5c] sm:$0xf]
    %v6841 = vld [vmem:[%s6816 + $0x60] sm:$0xf]
    %v6842 = vld [vmem:[%s6816 + $0x64] sm:$0xf]
    %v6843 = vld [vmem:[%s6816 + $0x68] sm:$0xf]
    %v6844 = vld [vmem:[%s6816 + $0x6c] sm:$0xf]
    %v6845 = vld [vmem:[%s6816 + $0x70] sm:$0xf]
    %v6846 = vld [vmem:[%s6816 + $0x74] sm:$0xf]
    %v6847 = vld [vmem:[%s6816 + $0x78] sm:$0xf]
    %v6848 = vld [vmem:[%s6816 + $0x7c] sm:$0xf]
    %v6849 = vrot.slane %v6060, 4
    %v6850 = vrot.slane %v6061, 4
    %v6885 = vunpack.c.l.b16 %v6817
    %v6886 = vunpack.c.l.b16 %v6818
    %v6887 = vunpack.c.l.b16 %v6819
    %v6888 = vunpack.c.l.b16 %v6820
    %v6889 = vunpack.c.l.b16 %v6821
    %v6890 = vunpack.c.l.b16 %v6822
    %v6891 = vunpack.c.l.b16 %v6823
    %v6892 = vunpack.c.l.b16 %v6824
    %v6893 = vunpack.c.l.b16 %v6825
    %v6894 = vunpack.c.l.b16 %v6826
    %v6895 = vunpack.c.l.b16 %v6827
    %v6896 = vunpack.c.l.b16 %v6828
    %v6897 = vunpack.c.l.b16 %v6829
    %v6898 = vunpack.c.l.b16 %v6830
    %v6899 = vunpack.c.l.b16 %v6831
    %v6900 = vunpack.c.l.b16 %v6832
    %v6901 = vunpack.c.l.b16 %v6833
    %v6902 = vunpack.c.l.b16 %v6834
    %v6903 = vunpack.c.l.b16 %v6835
    %v6904 = vunpack.c.l.b16 %v6836
    %v6905 = vunpack.c.l.b16 %v6837
    %v6906 = vunpack.c.l.b16 %v6838
    %v6907 = vunpack.c.l.b16 %v6839
    %v6908 = vunpack.c.l.b16 %v6840
    %v6909 = vunpack.c.l.b16 %v6841
    %v6910 = vunpack.c.l.b16 %v6842
    %v6911 = vunpack.c.l.b16 %v6843
    %v6912 = vunpack.c.l.b16 %v6844
    %v6913 = vunpack.c.l.b16 %v6845
    %v6914 = vunpack.c.l.b16 %v6846
    %v6915 = vunpack.c.l.b16 %v6847
    %v6916 = vunpack.c.l.b16 %v6848
    %v6917 = vpack.c.b16 %v6886, %v6885
    %v6918 = vpack.c.b16 %v6888, %v6887
    %v6919 = vpack.c.b16 %v6890, %v6889
    %v6920 = vpack.c.b16 %v6892, %v6891
    %v6921 = vpack.c.b16 %v6894, %v6893
    %v6922 = vpack.c.b16 %v6896, %v6895
    %v6923 = vpack.c.b16 %v6898, %v6897
    %v6924 = vpack.c.b16 %v6900, %v6899
    %v6925 = vpack.c.b16 %v6902, %v6901
    %v6926 = vpack.c.b16 %v6904, %v6903
    %v6927 = vpack.c.b16 %v6906, %v6905
    %v6928 = vpack.c.b16 %v6908, %v6907
    %v6929 = vpack.c.b16 %v6910, %v6909
    %v6930 = vpack.c.b16 %v6912, %v6911
    %v6931 = vpack.c.b16 %v6914, %v6913
    %v6932 = vpack.c.b16 %v6916, %v6915
    %6949 = vmatprep.subr.bf16.mxu0 0
    %6950 = vmatpush1.bf16.msra.mxu0 %v6924
    %6951 = vmatprep.subr.bf16.mxu0 0
    %6952 = vmatpush1.bf16.msra.mxu0 %v6923
    %6953 = vmatprep.subr.bf16.mxu0 0
    %6954 = vmatpush1.bf16.msra.mxu0 %v6922
    %6955 = vmatprep.subr.bf16.mxu0 0
    %6956 = vmatpush1.bf16.msra.mxu0 %v6921
    %6957 = vmatprep.subr.bf16.mxu0 0
    %6958 = vmatpush1.bf16.msra.mxu0 %v6920
    %6959 = vmatprep.subr.bf16.mxu0 0
    %6960 = vmatpush1.bf16.msra.mxu0 %v6919
    %6961 = vmatprep.subr.bf16.mxu0 0
    %6962 = vmatpush1.bf16.msra.mxu0 %v6918
    %6963 = vmatprep.subr.bf16.mxu0 0
    %6964 = vmatpush1.bf16.msra.mxu0 %v6917
    %6965 = vmatprep.subr.bf16.mxu0 0
    %6966 = vmatpush2.bf16.msra.mxu0 %v6932
    %6967 = vmatprep.subr.bf16.mxu0 0
    %6968 = vmatpush2.bf16.msra.mxu0 %v6931
    %6969 = vmatprep.subr.bf16.mxu0 0
    %6970 = vmatpush2.bf16.msra.mxu0 %v6930
    %6971 = vmatprep.subr.bf16.mxu0 0
    %6972 = vmatpush2.bf16.msra.mxu0 %v6929
    %6973 = vmatprep.subr.bf16.mxu0 0
    %6974 = vmatpush2.bf16.msra.mxu0 %v6928
    %6975 = vmatprep.subr.bf16.mxu0 0
    %6976 = vmatpush2.bf16.msra.mxu0 %v6927
    %6977 = vmatprep.subr.bf16.mxu0 0
    %6978 = vmatpush2.bf16.msra.mxu0 %v6926
    %6979 = vmatprep.subr.bf16.mxu0 0
    %6980 = vmatpush2.bf16.msra.mxu0 %v6925
    %6981 = vmatprep.mubr.bf16.mxu0 %v6850
    %6982 = vmatmul.mubr.bf16.gmra.mxu0 %v6849
    %v6983 = vpop.f32.mrf.mxu0
    %v6984 = vadd.f32 0.0, %v6983
    %v6985 = vpop.f32.mrf.mxu0
    %v6986 = vpop.f32.mrf.mxu0
    %v6987 = vpop.f32.mrf.mxu0
    %6988 = vdwg.mxu0
    %v6989 = vadd.f32 %v6815, %v6984
    %s6990 = scalar_lea.vmem %s5, 640
    %v6991 = vld [vmem:[%s6990] sm:$0xf]
    %v6992 = vld [vmem:[%s6990 + $0x4] sm:$0xf]
    %v6993 = vld [vmem:[%s6990 + $0x8] sm:$0xf]
    %v6994 = vld [vmem:[%s6990 + $0xc] sm:$0xf]
    %v6995 = vld [vmem:[%s6990 + $0x10] sm:$0xf]
    %v6996 = vld [vmem:[%s6990 + $0x14] sm:$0xf]
    %v6997 = vld [vmem:[%s6990 + $0x18] sm:$0xf]
    %v6998 = vld [vmem:[%s6990 + $0x1c] sm:$0xf]
    %v6999 = vld [vmem:[%s6990 + $0x20] sm:$0xf]
    %v7000 = vld [vmem:[%s6990 + $0x24] sm:$0xf]
    %v7001 = vld [vmem:[%s6990 + $0x28] sm:$0xf]
    %v7002 = vld [vmem:[%s6990 + $0x2c] sm:$0xf]
    %v7003 = vld [vmem:[%s6990 + $0x30] sm:$0xf]
    %v7004 = vld [vmem:[%s6990 + $0x34] sm:$0xf]
    %v7005 = vld [vmem:[%s6990 + $0x38] sm:$0xf]
    %v7006 = vld [vmem:[%s6990 + $0x3c] sm:$0xf]
    %v7007 = vld [vmem:[%s6990 + $0x40] sm:$0xf]
    %v7008 = vld [vmem:[%s6990 + $0x44] sm:$0xf]
    %v7009 = vld [vmem:[%s6990 + $0x48] sm:$0xf]
    %v7010 = vld [vmem:[%s6990 + $0x4c] sm:$0xf]
    %v7011 = vld [vmem:[%s6990 + $0x50] sm:$0xf]
    %v7012 = vld [vmem:[%s6990 + $0x54] sm:$0xf]
    %v7013 = vld [vmem:[%s6990 + $0x58] sm:$0xf]
    %v7014 = vld [vmem:[%s6990 + $0x5c] sm:$0xf]
    %v7015 = vld [vmem:[%s6990 + $0x60] sm:$0xf]
    %v7016 = vld [vmem:[%s6990 + $0x64] sm:$0xf]
    %v7017 = vld [vmem:[%s6990 + $0x68] sm:$0xf]
    %v7018 = vld [vmem:[%s6990 + $0x6c] sm:$0xf]
    %v7019 = vld [vmem:[%s6990 + $0x70] sm:$0xf]
    %v7020 = vld [vmem:[%s6990 + $0x74] sm:$0xf]
    %v7021 = vld [vmem:[%s6990 + $0x78] sm:$0xf]
    %v7022 = vld [vmem:[%s6990 + $0x7c] sm:$0xf]
    %v7023 = vrot.slane %v6060, 5
    %v7024 = vrot.slane %v6061, 5
    %v7059 = vunpack.c.l.b16 %v6991
    %v7060 = vunpack.c.l.b16 %v6992
    %v7061 = vunpack.c.l.b16 %v6993
    %v7062 = vunpack.c.l.b16 %v6994
    %v7063 = vunpack.c.l.b16 %v6995
    %v7064 = vunpack.c.l.b16 %v6996
    %v7065 = vunpack.c.l.b16 %v6997
    %v7066 = vunpack.c.l.b16 %v6998
    %v7067 = vunpack.c.l.b16 %v6999
    %v7068 = vunpack.c.l.b16 %v7000
    %v7069 = vunpack.c.l.b16 %v7001
    %v7070 = vunpack.c.l.b16 %v7002
    %v7071 = vunpack.c.l.b16 %v7003
    %v7072 = vunpack.c.l.b16 %v7004
    %v7073 = vunpack.c.l.b16 %v7005
    %v7074 = vunpack.c.l.b16 %v7006
    %v7075 = vunpack.c.l.b16 %v7007
    %v7076 = vunpack.c.l.b16 %v7008
    %v7077 = vunpack.c.l.b16 %v7009
    %v7078 = vunpack.c.l.b16 %v7010
    %v7079 = vunpack.c.l.b16 %v7011
    %v7080 = vunpack.c.l.b16 %v7012
    %v7081 = vunpack.c.l.b16 %v7013
    %v7082 = vunpack.c.l.b16 %v7014
    %v7083 = vunpack.c.l.b16 %v7015
    %v7084 = vunpack.c.l.b16 %v7016
    %v7085 = vunpack.c.l.b16 %v7017
    %v7086 = vunpack.c.l.b16 %v7018
    %v7087 = vunpack.c.l.b16 %v7019
    %v7088 = vunpack.c.l.b16 %v7020
    %v7089 = vunpack.c.l.b16 %v7021
    %v7090 = vunpack.c.l.b16 %v7022
    %v7091 = vpack.c.b16 %v7060, %v7059
    %v7092 = vpack.c.b16 %v7062, %v7061
    %v7093 = vpack.c.b16 %v7064, %v7063
    %v7094 = vpack.c.b16 %v7066, %v7065
    %v7095 = vpack.c.b16 %v7068, %v7067
    %v7096 = vpack.c.b16 %v7070, %v7069
    %v7097 = vpack.c.b16 %v7072, %v7071
    %v7098 = vpack.c.b16 %v7074, %v7073
    %v7099 = vpack.c.b16 %v7076, %v7075
    %v7100 = vpack.c.b16 %v7078, %v7077
    %v7101 = vpack.c.b16 %v7080, %v7079
    %v7102 = vpack.c.b16 %v7082, %v7081
    %v7103 = vpack.c.b16 %v7084, %v7083
    %v7104 = vpack.c.b16 %v7086, %v7085
    %v7105 = vpack.c.b16 %v7088, %v7087
    %v7106 = vpack.c.b16 %v7090, %v7089
    %7123 = vmatprep.subr.bf16.mxu0 0
    %7124 = vmatpush1.bf16.msra.mxu0 %v7098
    %7125 = vmatprep.subr.bf16.mxu0 0
    %7126 = vmatpush1.bf16.msra.mxu0 %v7097
    %7127 = vmatprep.subr.bf16.mxu0 0
    %7128 = vmatpush1.bf16.msra.mxu0 %v7096
    %7129 = vmatprep.subr.bf16.mxu0 0
    %7130 = vmatpush1.bf16.msra.mxu0 %v7095
    %7131 = vmatprep.subr.bf16.mxu0 0
    %7132 = vmatpush1.bf16.msra.mxu0 %v7094
    %7133 = vmatprep.subr.bf16.mxu0 0
    %7134 = vmatpush1.bf16.msra.mxu0 %v7093
    %7135 = vmatprep.subr.bf16.mxu0 0
    %7136 = vmatpush1.bf16.msra.mxu0 %v7092
    %7137 = vmatprep.subr.bf16.mxu0 0
    %7138 = vmatpush1.bf16.msra.mxu0 %v7091
    %7139 = vmatprep.subr.bf16.mxu0 0
    %7140 = vmatpush2.bf16.msra.mxu0 %v7106
    %7141 = vmatprep.subr.bf16.mxu0 0
    %7142 = vmatpush2.bf16.msra.mxu0 %v7105
    %7143 = vmatprep.subr.bf16.mxu0 0
    %7144 = vmatpush2.bf16.msra.mxu0 %v7104
    %7145 = vmatprep.subr.bf16.mxu0 0
    %7146 = vmatpush2.bf16.msra.mxu0 %v7103
    %7147 = vmatprep.subr.bf16.mxu0 0
    %7148 = vmatpush2.bf16.msra.mxu0 %v7102
    %7149 = vmatprep.subr.bf16.mxu0 0
    %7150 = vmatpush2.bf16.msra.mxu0 %v7101
    %7151 = vmatprep.subr.bf16.mxu0 0
    %7152 = vmatpush2.bf16.msra.mxu0 %v7100
    %7153 = vmatprep.subr.bf16.mxu0 0
    %7154 = vmatpush2.bf16.msra.mxu0 %v7099
    %7155 = vmatprep.mubr.bf16.mxu0 %v7024
    %7156 = vmatmul.mubr.bf16.gmra.mxu0 %v7023
    %v7157 = vpop.f32.mrf.mxu0
    %v7158 = vadd.f32 0.0, %v7157
    %v7159 = vpop.f32.mrf.mxu0
    %v7160 = vpop.f32.mrf.mxu0
    %v7161 = vpop.f32.mrf.mxu0
    %7162 = vdwg.mxu0
    %v7163 = vadd.f32 %v6989, %v7158
    %s7164 = scalar_lea.vmem %s5, 768
    %v7165 = vld [vmem:[%s7164] sm:$0xf]
    %v7166 = vld [vmem:[%s7164 + $0x4] sm:$0xf]
    %v7167 = vld [vmem:[%s7164 + $0x8] sm:$0xf]
    %v7168 = vld [vmem:[%s7164 + $0xc] sm:$0xf]
    %v7169 = vld [vmem:[%s7164 + $0x10] sm:$0xf]
    %v7170 = vld [vmem:[%s7164 + $0x14] sm:$0xf]
    %v7171 = vld [vmem:[%s7164 + $0x18] sm:$0xf]
    %v7172 = vld [vmem:[%s7164 + $0x1c] sm:$0xf]
    %v7173 = vld [vmem:[%s7164 + $0x20] sm:$0xf]
    %v7174 = vld [vmem:[%s7164 + $0x24] sm:$0xf]
    %v7175 = vld [vmem:[%s7164 + $0x28] sm:$0xf]
    %v7176 = vld [vmem:[%s7164 + $0x2c] sm:$0xf]
    %v7177 = vld [vmem:[%s7164 + $0x30] sm:$0xf]
    %v7178 = vld [vmem:[%s7164 + $0x34] sm:$0xf]
    %v7179 = vld [vmem:[%s7164 + $0x38] sm:$0xf]
    %v7180 = vld [vmem:[%s7164 + $0x3c] sm:$0xf]
    %v7181 = vld [vmem:[%s7164 + $0x40] sm:$0xf]
    %v7182 = vld [vmem:[%s7164 + $0x44] sm:$0xf]
    %v7183 = vld [vmem:[%s7164 + $0x48] sm:$0xf]
    %v7184 = vld [vmem:[%s7164 + $0x4c] sm:$0xf]
    %v7185 = vld [vmem:[%s7164 + $0x50] sm:$0xf]
    %v7186 = vld [vmem:[%s7164 + $0x54] sm:$0xf]
    %v7187 = vld [vmem:[%s7164 + $0x58] sm:$0xf]
    %v7188 = vld [vmem:[%s7164 + $0x5c] sm:$0xf]
    %v7189 = vld [vmem:[%s7164 + $0x60] sm:$0xf]
    %v7190 = vld [vmem:[%s7164 + $0x64] sm:$0xf]
    %v7191 = vld [vmem:[%s7164 + $0x68] sm:$0xf]
    %v7192 = vld [vmem:[%s7164 + $0x6c] sm:$0xf]
    %v7193 = vld [vmem:[%s7164 + $0x70] sm:$0xf]
    %v7194 = vld [vmem:[%s7164 + $0x74] sm:$0xf]
    %v7195 = vld [vmem:[%s7164 + $0x78] sm:$0xf]
    %v7196 = vld [vmem:[%s7164 + $0x7c] sm:$0xf]
    %v7197 = vrot.slane %v6060, 6
    %v7198 = vrot.slane %v6061, 6
    %v7233 = vunpack.c.l.b16 %v7165
    %v7234 = vunpack.c.l.b16 %v7166
    %v7235 = vunpack.c.l.b16 %v7167
    %v7236 = vunpack.c.l.b16 %v7168
    %v7237 = vunpack.c.l.b16 %v7169
    %v7238 = vunpack.c.l.b16 %v7170
    %v7239 = vunpack.c.l.b16 %v7171
    %v7240 = vunpack.c.l.b16 %v7172
    %v7241 = vunpack.c.l.b16 %v7173
    %v7242 = vunpack.c.l.b16 %v7174
    %v7243 = vunpack.c.l.b16 %v7175
    %v7244 = vunpack.c.l.b16 %v7176
    %v7245 = vunpack.c.l.b16 %v7177
    %v7246 = vunpack.c.l.b16 %v7178
    %v7247 = vunpack.c.l.b16 %v7179
    %v7248 = vunpack.c.l.b16 %v7180
    %v7249 = vunpack.c.l.b16 %v7181
    %v7250 = vunpack.c.l.b16 %v7182
    %v7251 = vunpack.c.l.b16 %v7183
    %v7252 = vunpack.c.l.b16 %v7184
    %v7253 = vunpack.c.l.b16 %v7185
    %v7254 = vunpack.c.l.b16 %v7186
    %v7255 = vunpack.c.l.b16 %v7187
    %v7256 = vunpack.c.l.b16 %v7188
    %v7257 = vunpack.c.l.b16 %v7189
    %v7258 = vunpack.c.l.b16 %v7190
    %v7259 = vunpack.c.l.b16 %v7191
    %v7260 = vunpack.c.l.b16 %v7192
    %v7261 = vunpack.c.l.b16 %v7193
    %v7262 = vunpack.c.l.b16 %v7194
    %v7263 = vunpack.c.l.b16 %v7195
    %v7264 = vunpack.c.l.b16 %v7196
    %v7265 = vpack.c.b16 %v7234, %v7233
    %v7266 = vpack.c.b16 %v7236, %v7235
    %v7267 = vpack.c.b16 %v7238, %v7237
    %v7268 = vpack.c.b16 %v7240, %v7239
    %v7269 = vpack.c.b16 %v7242, %v7241
    %v7270 = vpack.c.b16 %v7244, %v7243
    %v7271 = vpack.c.b16 %v7246, %v7245
    %v7272 = vpack.c.b16 %v7248, %v7247
    %v7273 = vpack.c.b16 %v7250, %v7249
    %v7274 = vpack.c.b16 %v7252, %v7251
    %v7275 = vpack.c.b16 %v7254, %v7253
    %v7276 = vpack.c.b16 %v7256, %v7255
    %v7277 = vpack.c.b16 %v7258, %v7257
    %v7278 = vpack.c.b16 %v7260, %v7259
    %v7279 = vpack.c.b16 %v7262, %v7261
    %v7280 = vpack.c.b16 %v7264, %v7263
    %7297 = vmatprep.subr.bf16.mxu0 0
    %7298 = vmatpush1.bf16.msra.mxu0 %v7272
    %7299 = vmatprep.subr.bf16.mxu0 0
    %7300 = vmatpush1.bf16.msra.mxu0 %v7271
    %7301 = vmatprep.subr.bf16.mxu0 0
    %7302 = vmatpush1.bf16.msra.mxu0 %v7270
    %7303 = vmatprep.subr.bf16.mxu0 0
    %7304 = vmatpush1.bf16.msra.mxu0 %v7269
    %7305 = vmatprep.subr.bf16.mxu0 0
    %7306 = vmatpush1.bf16.msra.mxu0 %v7268
    %7307 = vmatprep.subr.bf16.mxu0 0
    %7308 = vmatpush1.bf16.msra.mxu0 %v7267
    %7309 = vmatprep.subr.bf16.mxu0 0
    %7310 = vmatpush1.bf16.msra.mxu0 %v7266
    %7311 = vmatprep.subr.bf16.mxu0 0
    %7312 = vmatpush1.bf16.msra.mxu0 %v7265
    %7313 = vmatprep.subr.bf16.mxu0 0
    %7314 = vmatpush2.bf16.msra.mxu0 %v7280
    %7315 = vmatprep.subr.bf16.mxu0 0
    %7316 = vmatpush2.bf16.msra.mxu0 %v7279
    %7317 = vmatprep.subr.bf16.mxu0 0
    %7318 = vmatpush2.bf16.msra.mxu0 %v7278
    %7319 = vmatprep.subr.bf16.mxu0 0
    %7320 = vmatpush2.bf16.msra.mxu0 %v7277
    %7321 = vmatprep.subr.bf16.mxu0 0
    %7322 = vmatpush2.bf16.msra.mxu0 %v7276
    %7323 = vmatprep.subr.bf16.mxu0 0
    %7324 = vmatpush2.bf16.msra.mxu0 %v7275
    %7325 = vmatprep.subr.bf16.mxu0 0
    %7326 = vmatpush2.bf16.msra.mxu0 %v7274
    %7327 = vmatprep.subr.bf16.mxu0 0
    %7328 = vmatpush2.bf16.msra.mxu0 %v7273
    %7329 = vmatprep.mubr.bf16.mxu0 %v7198
    %7330 = vmatmul.mubr.bf16.gmra.mxu0 %v7197
    %v7331 = vpop.f32.mrf.mxu0
    %v7332 = vadd.f32 0.0, %v7331
    %v7333 = vpop.f32.mrf.mxu0
    %v7334 = vpop.f32.mrf.mxu0
    %v7335 = vpop.f32.mrf.mxu0
    %7336 = vdwg.mxu0
    %v7337 = vadd.f32 %v7163, %v7332
    %v7339 = vlaneseq
    %v7340 = vshrl.u32 %v7339, 7
    %v7341 = vsub.s32 0, %v7340
    %v7342 = vrot.slane %v399, %v7341
    %v7344 = vadd.f32 %v7337, %v7342
    %7345 = vst [vmem:[#allocation3] sm:$0x3] %v7344
    // Predicated region
    $region30: #{_cnn_forward_impl.1} parent=1 // pred_check
      _
    $region31: #{_cnn_forward_impl.1} parent=1 // pred_check_branch
      %7347 = sbr.rel (0) target = $region33
    $region32: #{_cnn_forward_impl.1} parent=1 // pred_region
      %s7349 = ssub.s32 32, 32
      %7350 = vsyncadd [#allocation4], %s7349
      %s7352 = sshll.u32 [#allocation3], 4
      %s7353 = int_to_ptr.vmem [resolvable:$true] %s7352
      %7355 = dma.vmem_to_hbm [thread:$0]  %s7353, 32, %s7, [#allocation4]
    $region33: #{_cnn_forward_impl.1} parent=1 // pred_fallthru
      _
    // Predicated region
    $region34: #{_cnn_forward_impl.1} parent=1 // pred_check
      _
    $region35: #{_cnn_forward_impl.1} parent=1 // pred_check_branch
      %7357 = sbr.rel (0) target = $region37
    $region36: #{_cnn_forward_impl.1} parent=1 // pred_region
      _
    $region37: #{_cnn_forward_impl.1} parent=1 // pred_fallthru
      _
    // Predicated region
    $region38: #{_cnn_forward_impl.1} parent=1 // pred_check
      _
    $region39: #{_cnn_forward_impl.1} parent=1 // pred_check_branch
      %7359 = sbr.rel (0) target = $region41
    $region40: #{_cnn_forward_impl.1} parent=1 // pred_region
      %7360 = dma.done [#allocation4], 32
    $region41: #{_cnn_forward_impl.1} parent=1 // pred_fallthru
      _
    // Predicated region
    $region42: #{_cnn_forward_impl.1} parent=1 // pred_check
      _
    $region43: #{_cnn_forward_impl.1} parent=1 // pred_check_branch
      %7362 = sbr.rel (0) target = $region45
    $region44: #{_cnn_forward_impl.1} parent=1 // pred_region
      _
    $region45: #{_cnn_forward_impl.1} parent=1 // pred_fallthru
      _
    %7363 = vsyncpa [#allocation4], 1

</llo_original>
